<compile_context>
chip_gen: v7x
topology: tpu7x:2x2x1
jax: 0.10.0
libtpu: 0.0.40
codegen_flags: <defaults>
</compile_context>

<pallas_src>
import jax
import jax.numpy as jnp
from jax import lax
from jax.experimental import pallas as pl
from jax.experimental.pallas import tpu as pltpu

NUM_CLASSES = 10
EMBEDDING_DIM = 50
LRELU_SLOPE = 0.2
BN_EPS = 1e-5
CIN1_PAD = 64           # 3 + 50 = 53 input channels, zero-padded to 64
COUT1_PAD = 128         # conv1 output channels 64, zero-padded to 128 (lane-dense)


# ---------------------------------------------------------------------------
# Pallas kernels
# ---------------------------------------------------------------------------
def _make_conv_kernel(th, ow, apply_lrelu, with_stats):
    """2x2/stride-1 macro-conv (== original 4x4/stride-2 conv on s2d input).

    Block layout per grid step (b, r):
      a_ref : (1, Hm, Wm, 4*Cin)  full per-batch s2d activation (resident)
      w_ref : (2, 2, 4*Cin, O)    macro-tap weights
      b_ref : (1, O)              bias (f32)
      o_ref : (1, th, ow, O)      output rows [r*th, r*th+th)
      stats : (1, 8, O) x2        per-step BN partial sum / sum-of-squares
    """
    def kernel(a_ref, w_ref, b_ref, o_ref, *stat_refs):
        r = pl.program_id(1)
        row0 = r * th
        bias = b_ref[...]                                             # (1, O) f32

        acc = [None] * th
        for di in range(2):
            for dj in range(2):
                tap = a_ref[0, pl.ds(row0 + di, th), pl.ds(dj, ow), :]  # (th,ow,4C)
                wt = w_ref[di, dj]                                      # (4C, O)
                for i in range(th):
                    d = jnp.dot(tap[i], wt, preferred_element_type=jnp.float32)
                    acc[i] = d if acc[i] is None else acc[i] + d

        s_sum = None
        s_sq = None
        for i in range(th):
            y = acc[i] + bias                                          # (ow, O) f32
            if with_stats:
                p1 = jnp.sum(y, axis=0, keepdims=True)                 # (1, O)
                p2 = jnp.sum(y * y, axis=0, keepdims=True)
                s_sum = p1 if s_sum is None else s_sum + p1
                s_sq = p2 if s_sq is None else s_sq + p2
            if apply_lrelu:
                y = jnp.maximum(y, LRELU_SLOPE * y)
            o_ref[0, i] = y.astype(o_ref.dtype)

        if with_stats:
            cout = s_sum.shape[-1]
            stat_refs[0][...] = jnp.broadcast_to(s_sum, (1, 8, cout))
            stat_refs[1][...] = jnp.broadcast_to(s_sq, (1, 8, cout))
    return kernel


def _final_kernel(y_ref, s_ref, t_ref, w_ref, b_ref, o_ref):
    # fused: BN3 affine + LeakyReLU + Flatten + Linear(4096->1) + Sigmoid.
    # y_ref: (1, P, 256) bf16; s/t: (1, 256) f32; w: (P, 256) f32; b: (1, 1) f32.
    z = y_ref[0].astype(jnp.float32) * s_ref[...] + t_ref[...]         # (P, 256)
    z = jnp.maximum(z, LRELU_SLOPE * z)
    part = jnp.sum(z * w_ref[...], axis=0, keepdims=True)              # (1, 256)
    logit = jnp.sum(part, axis=1, keepdims=True) + b_ref[...]          # (1, 1)
    sig = 1.0 / (1.0 + jnp.exp(-logit))
    o_ref[...] = jnp.broadcast_to(sig, o_ref.shape)                    # (1, 8, 128)


# ---------------------------------------------------------------------------
# pallas_call wrappers
# ---------------------------------------------------------------------------
def _pick_row_tile(oh):
    # largest row tile that still yields >= 2 row steps (keeps >= 4 parallel
    # grid steps at B >= 2 so v7x's second TensorCore has work).
    for t in (8, 4, 2, 1):
        if oh % t == 0 and oh // t >= 2:
            return t
    return oh


def _conv_stage(a, w, b, *, oh, ow, cout, apply_lrelu, with_stats):
    B, hm, wm, c4 = a.shape
    th = _pick_row_tile(oh)
    R = oh // th
    kernel = _make_conv_kernel(th, ow, apply_lrelu, with_stats)

    in_specs = [
        pl.BlockSpec((1, hm, wm, c4), lambda bi, ri: (bi, 0, 0, 0)),
        pl.BlockSpec((2, 2, c4, cout), lambda bi, ri: (0, 0, 0, 0)),
        pl.BlockSpec((1, cout), lambda bi, ri: (0, 0)),
    ]
    out_spec_y = pl.BlockSpec((1, th, ow, cout), lambda bi, ri: (bi, ri, 0, 0))
    out_shape_y = jax.ShapeDtypeStruct((B, oh, ow, cout), jnp.bfloat16)

    if with_stats:
        stat_spec = pl.BlockSpec((1, 8, cout), lambda bi, ri: (bi * R + ri, 0, 0))
        out_shape = (out_shape_y,
                     jax.ShapeDtypeStruct((B * R, 8, cout), jnp.float32),
                     jax.ShapeDtypeStruct((B * R, 8, cout), jnp.float32))
        out_specs = (out_spec_y, stat_spec, stat_spec)
    else:
        out_shape = out_shape_y
        out_specs = out_spec_y

    return pl.pallas_call(
        kernel,
        out_shape=out_shape,
        grid=(B, R),
        in_specs=in_specs,
        out_specs=out_specs,
        compiler_params=pltpu.CompilerParams(
            dimension_semantics=("parallel", "parallel")),
    )(a, w, b)


def _final_stage(yf, scale, shift, wl, bl):
    B, P, C = yf.shape
    out = pl.pallas_call(
        _final_kernel,
        out_shape=jax.ShapeDtypeStruct((B, 8, 128), jnp.float32),
        grid=(B,),
        in_specs=[pl.BlockSpec((1, P, C), lambda bi: (bi, 0, 0)),
                  pl.BlockSpec((1, C), lambda bi: (0, 0)),
                  pl.BlockSpec((1, C), lambda bi: (0, 0)),
                  pl.BlockSpec((P, C), lambda bi: (0, 0)),
                  pl.BlockSpec((1, 1), lambda bi: (0, 0))],
        out_specs=pl.BlockSpec((1, 8, 128), lambda bi: (bi, 0, 0)),
        compiler_params=pltpu.CompilerParams(dimension_semantics=("parallel",)),
    )(yf, scale, shift, wl, bl)
    return out[:, 0, :1]                                               # (B, 1)


# ---------------------------------------------------------------------------
# Glue: pad + space-to-depth(2)  (pure layout pass, no patch duplication)
# ---------------------------------------------------------------------------
def _space_to_depth_pad(x):
    # x: (B, H, W, C) NHWC -> (B, (H+2)//2, (W+2)//2, 4C); channel index =
    # (p*2 + q)*C + c for the sub-pixel (p, q) of each 2x2 macro pixel.
    B, H, W, C = x.shape
    xp = jnp.pad(x, ((0, 0), (1, 1), (1, 1), (0, 0)))
    hm, wm = (H + 2) // 2, (W + 2) // 2
    a = xp.reshape(B, hm, 2, wm, 2, C)
    a = jnp.transpose(a, (0, 1, 3, 2, 4, 5))
    return a.reshape(B, hm, wm, 4 * C)


# ---------------------------------------------------------------------------
# Parameters (PyTorch layout) + one-time device-friendly preprocessing
# ---------------------------------------------------------------------------
def init_params(key):
    ks = jax.random.split(key, 8)
    p = {}
    p["emb"] = jax.random.normal(ks[0], (NUM_CLASSES, EMBEDDING_DIM), jnp.float32)
    cin1 = 3 + EMBEDDING_DIM  # 53
    p["w1"] = 0.05 * jax.random.normal(ks[1], (64, cin1, 4, 4), jnp.float32)
    p["b1"] = 0.01 * jax.random.normal(ks[2], (64,), jnp.float32)
    p["w2"] = 0.05 * jax.random.normal(ks[3], (128, 64, 4, 4), jnp.float32)
    p["b2"] = 0.01 * jax.random.normal(ks[4], (128,), jnp.float32)
    p["g2"] = jnp.ones((128,), jnp.float32)
    p["beta2"] = jnp.zeros((128,), jnp.float32)
    p["w3"] = 0.05 * jax.random.normal(ks[5], (256, 128, 4, 4), jnp.float32)
    p["b3"] = 0.01 * jax.random.normal(ks[6], (256,), jnp.float32)
    p["g3"] = jnp.ones((256,), jnp.float32)
    p["beta3"] = jnp.zeros((256,), jnp.float32)
    p["wl"] = 0.02 * jax.random.normal(ks[7], (1, 256 * 4 * 4), jnp.float32)
    p["bl"] = jnp.zeros((1,), jnp.float32)
    return p


def prepare_params(p):
    """Pad / macro-reorder / cast weights once, outside the jitted forward."""
    def conv_w_macro(w, cin_pad, cout_pad):
        o, i, _, _ = w.shape
        w = jnp.pad(w, ((0, cout_pad - o), (0, cin_pad - i), (0, 0), (0, 0)))
        # (O, C, 4, 4) -> (O, C, di, p, dj, q) -> (di, dj, p, q, C, O)
        w = w.reshape(cout_pad, cin_pad, 2, 2, 2, 2)
        w = jnp.transpose(w, (2, 4, 3, 5, 1, 0))
        return w.reshape(2, 2, 4 * cin_pad, cout_pad).astype(jnp.bfloat16)

    pp = {}
    pp["emb"] = p["emb"].astype(jnp.float32)
    pp["w1"] = conv_w_macro(p["w1"], CIN1_PAD, COUT1_PAD)
    pp["b1"] = jnp.pad(p["b1"], (0, COUT1_PAD - 64)).reshape(1, COUT1_PAD).astype(jnp.float32)
    pp["w2"] = conv_w_macro(p["w2"], COUT1_PAD, 128)
    pp["b2"] = p["b2"].reshape(1, 128).astype(jnp.float32)
    pp["g2"], pp["beta2"] = p["g2"], p["beta2"]
    pp["w3"] = conv_w_macro(p["w3"], 128, 256)
    pp["b3"] = p["b3"].reshape(1, 256).astype(jnp.float32)
    pp["g3"], pp["beta3"] = p["g3"], p["beta3"]
    # final linear: reorder columns from NCHW-flatten (c,h,w) to (h*w, c); kept f32.
    wl = p["wl"].reshape(256, 4, 4)
    pp["wl"] = jnp.transpose(wl, (1, 2, 0)).reshape(16, 256).astype(jnp.float32)
    pp["bl"] = p["bl"].reshape(1, 1).astype(jnp.float32)
    return pp


# ---------------------------------------------------------------------------
# Forward pass using Pallas kernels
# ---------------------------------------------------------------------------
@jax.jit
def discriminator_forward(pp, x, labels):
    B, _, H, W = x.shape
    # Embedding lookup + single-pass conv1 input build (NHWC, padded to 64 ch).
    emb = pp["emb"][labels]                                            # (B, 50)
    h = jnp.zeros((B, H, W, CIN1_PAD), jnp.float32)
    h = h.at[..., 0:3].set(jnp.transpose(x, (0, 2, 3, 1)))
    h = h.at[..., 3:3 + EMBEDDING_DIM].set(emb[:, None, None, :])
    a1 = _space_to_depth_pad(h.astype(jnp.bfloat16))                   # (B,17,17,256)

    # ---- Conv1 (53->64, padded out to 128) + bias + LeakyReLU ---------------
    z1 = _conv_stage(a1, pp["w1"], pp["b1"], oh=H // 2, ow=W // 2,
                     cout=COUT1_PAD, apply_lrelu=True, with_stats=False)

    # ---- Conv2 (->128) + bias, bf16 out, BN partial stats in-kernel ---------
    a2 = _space_to_depth_pad(z1)                                       # (B,9,9,512)
    y2, sum2, sq2 = _conv_stage(a2, pp["w2"], pp["b2"], oh=H // 4, ow=W // 4,
                                cout=128, apply_lrelu=False, with_stats=True)
    m2 = B * (H // 4) * (W // 4)
    mean2 = jnp.sum(sum2[:, 0, :], axis=0) / m2
    var2 = jnp.sum(sq2[:, 0, :], axis=0) / m2 - mean2 * mean2
    scale2 = pp["g2"] * lax.rsqrt(var2 + BN_EPS)
    shift2 = pp["beta2"] - mean2 * scale2
    # BN2 affine + LReLU fused by XLA into the pad + space-to-depth pass below.
    z2 = y2.astype(jnp.float32) * scale2 + shift2
    z2 = jnp.maximum(z2, LRELU_SLOPE * z2).astype(jnp.bfloat16)
    a3 = _space_to_depth_pad(z2)                                       # (B,5,5,512)

    # ---- Conv3 (->256) + bias, bf16 out, BN partial stats in-kernel ---------
    y3, sum3, sq3 = _conv_stage(a3, pp["w3"], pp["b3"], oh=H // 8, ow=W // 8,
                                cout=256, apply_lrelu=False, with_stats=True)
    m3 = B * (H // 8) * (W // 8)
    mean3 = jnp.sum(sum3[:, 0, :], axis=0) / m3
    var3 = jnp.sum(sq3[:, 0, :], axis=0) / m3 - mean3 * mean3
    scale3 = pp["g3"] * lax.rsqrt(var3 + BN_EPS)
    shift3 = pp["beta3"] - mean3 * scale3

    # ---- fused BN3 + LeakyReLU + Flatten + Linear(4096->1) + Sigmoid --------
    yf = y3.reshape(B, (H // 8) * (W // 8), 256)                       # free reshape
    return _final_stage(yf, scale3.reshape(1, 256), shift3.reshape(1, 256),
                        pp["wl"], pp["bl"])                            # (B, 1)


# ---------------------------------------------------------------------------
# Pure-JAX reference (lax.conv, f32, NCHW) for a correctness sanity check
# ---------------------------------------------------------------------------
def reference_forward(params, x, labels):
    B, _, H, W = x.shape
    emb = params["emb"][labels]
    emb_map = jnp.broadcast_to(emb[:, :, None, None], (B, EMBEDDING_DIM, H, W))
    h = jnp.concatenate([x, emb_map], axis=1)

    def conv(z, w, b):
        y = lax.conv_general_dilated(z, w, (2, 2), [(1, 1), (1, 1)],
                                     dimension_numbers=("NCHW", "OIHW", "NCHW"))
        return y + b[None, :, None, None]

    def bn(y, g, beta):
        mean = y.mean(axis=(0, 2, 3), keepdims=True)
        var = ((y - mean) ** 2).mean(axis=(0, 2, 3), keepdims=True)
        return ((y - mean) * lax.rsqrt(var + BN_EPS)
                * g[None, :, None, None] + beta[None, :, None, None])

    lrelu = lambda z: jnp.where(z >= 0.0, z, LRELU_SLOPE * z)

    h = lrelu(conv(h, params["w1"], params["b1"]))
    h = lrelu(bn(conv(h, params["w2"], params["b2"]), params["g2"], params["beta2"]))
    h = lrelu(bn(conv(h, params["w3"], params["b3"]), params["g3"], params["beta3"]))
    flat = h.reshape(B, -1)
    return jax.nn.sigmoid(flat @ params["wl"].T + params["bl"][None, :])


if __name__ == "__main__":
    key = jax.random.PRNGKey(0)
    kp, kx, kl = jax.random.split(key, 3)
    params = init_params(kp)
    prepared = prepare_params(params)

    # Spatial size must be 32x32 so three stride-2 convs -> 4x4 (Linear(256*4*4, 1)).
    x = jax.random.normal(kx, (2, 3, 32, 32), jnp.float32)
    labels = jax.random.randint(kl, (2,), 0, NUM_CLASSES)

    out = jax.block_until_ready(discriminator_forward(prepared, x, labels))
    ref = reference_forward(params, x, labels)

    assert out.shape == (2, 1), out.shape
    assert bool(jnp.all(jnp.isfinite(out)))
    assert bool(jnp.max(jnp.abs(out - ref)) < 5e-2), (out, ref)

    print("KERNEL_OK")
</pallas_src>

<mosaic_0001>
module attributes {stable_mosaic.version = 11 : i64} {
  func.func @kernel(%arg0: i32, %arg1: i32, %arg2: memref<1x17x17x256xbf16, #tpu.memory_space<vmem>>, %arg3: memref<2x2x256x128xbf16, #tpu.memory_space<vmem>>, %arg4: memref<1x128xf32, #tpu.memory_space<vmem>>, %arg5: memref<1x8x16x128xbf16, #tpu.memory_space<vmem>>) attributes {dimension_semantics = [#tpu.dimension_semantics<parallel>, #tpu.dimension_semantics<parallel>], iteration_bounds = array<i64: 2, 2>, scalar_prefetch = 0 : i64, scratch_operands = 0 : i64, tpu.core_type = #tpu.core_type<tc>, window_params = [{transform_indices = @transform_0, window_bounds = array<i64: 1, 17, 17, 256>}, {pipeline_mode = #tpu.pipeline_mode<synchronous>, transform_indices = @transform_1, window_bounds = array<i64: 2, 2, 256, 128>}, {pipeline_mode = #tpu.pipeline_mode<synchronous>, transform_indices = @transform_2, window_bounds = array<i64: 1, 128>}, {transform_indices = @transform_3, window_bounds = array<i64: 1, 8, 16, 128>}]} {
    %c8_i32 = arith.constant 8 : i32
    %0 = arith.muli %arg1, %c8_i32 : i32
    %c0 = arith.constant 0 : index
    %c0_0 = arith.constant 0 : index
    %1 = vector.load %arg4[%c0, %c0_0] : memref<1x128xf32, #tpu.memory_space<vmem>>, vector<1x128xf32>
    %c0_i32 = arith.constant 0 : i32
    %2 = arith.addi %0, %c0_i32 : i32
    %c0_1 = arith.constant 0 : index
    %3 = arith.index_cast %2 : i32 to index
    %c0_2 = arith.constant 0 : index
    %c0_3 = arith.constant 0 : index
    %4 = vector.load %arg2[%c0_1, %3, %c0_2, %c0_3] : memref<1x17x17x256xbf16, #tpu.memory_space<vmem>>, vector<1x8x16x256xbf16>
    %5 = vector.shape_cast %4 : vector<1x8x16x256xbf16> to vector<8x16x256xbf16>
    %c0_4 = arith.constant 0 : index
    %c0_5 = arith.constant 0 : index
    %c0_6 = arith.constant 0 : index
    %c0_7 = arith.constant 0 : index
    %6 = vector.load %arg3[%c0_4, %c0_5, %c0_6, %c0_7] : memref<2x2x256x128xbf16, #tpu.memory_space<vmem>>, vector<1x1x256x128xbf16>
    %7 = vector.shape_cast %6 : vector<1x1x256x128xbf16> to vector<256x128xbf16>
    %8 = vector.extract_strided_slice %5 {offsets = [0, 0, 0], sizes = [1, 16, 256], strides = [1, 1, 1]} : vector<8x16x256xbf16> to vector<1x16x256xbf16>
    %9 = vector.shape_cast %8 : vector<1x16x256xbf16> to vector<16x256xbf16>
    %cst = arith.constant dense<0.000000e+00> : vector<16x128xf32>
    %10 = tpu.matmul %9, %7, %cst {dimension_numbers = #tpu.dot_dimension_numbers<[1], [0], [0], [1], [0, 0, 1, 1], [], []>} : vector<16x256xbf16>, vector<256x128xbf16>, vector<16x128xf32> -> vector<16x128xf32>
    %11 = vector.extract_strided_slice %5 {offsets = [1, 0, 0], sizes = [1, 16, 256], strides = [1, 1, 1]} : vector<8x16x256xbf16> to vector<1x16x256xbf16>
    %12 = vector.shape_cast %11 : vector<1x16x256xbf16> to vector<16x256xbf16>
    %cst_8 = arith.constant dense<0.000000e+00> : vector<16x128xf32>
    %13 = tpu.matmul %12, %7, %cst_8 {dimension_numbers = #tpu.dot_dimension_numbers<[1], [0], [0], [1], [0, 0, 1, 1], [], []>} : vector<16x256xbf16>, vector<256x128xbf16>, vector<16x128xf32> -> vector<16x128xf32>
    %14 = vector.extract_strided_slice %5 {offsets = [2, 0, 0], sizes = [1, 16, 256], strides = [1, 1, 1]} : vector<8x16x256xbf16> to vector<1x16x256xbf16>
    %15 = vector.shape_cast %14 : vector<1x16x256xbf16> to vector<16x256xbf16>
    %cst_9 = arith.constant dense<0.000000e+00> : vector<16x128xf32>
    %16 = tpu.matmul %15, %7, %cst_9 {dimension_numbers = #tpu.dot_dimension_numbers<[1], [0], [0], [1], [0, 0, 1, 1], [], []>} : vector<16x256xbf16>, vector<256x128xbf16>, vector<16x128xf32> -> vector<16x128xf32>
    %17 = vector.extract_strided_slice %5 {offsets = [3, 0, 0], sizes = [1, 16, 256], strides = [1, 1, 1]} : vector<8x16x256xbf16> to vector<1x16x256xbf16>
    %18 = vector.shape_cast %17 : vector<1x16x256xbf16> to vector<16x256xbf16>
    %cst_10 = arith.constant dense<0.000000e+00> : vector<16x128xf32>
    %19 = tpu.matmul %18, %7, %cst_10 {dimension_numbers = #tpu.dot_dimension_numbers<[1], [0], [0], [1], [0, 0, 1, 1], [], []>} : vector<16x256xbf16>, vector<256x128xbf16>, vector<16x128xf32> -> vector<16x128xf32>
    %20 = vector.extract_strided_slice %5 {offsets = [4, 0, 0], sizes = [1, 16, 256], strides = [1, 1, 1]} : vector<8x16x256xbf16> to vector<1x16x256xbf16>
    %21 = vector.shape_cast %20 : vector<1x16x256xbf16> to vector<16x256xbf16>
    %cst_11 = arith.constant dense<0.000000e+00> : vector<16x128xf32>
    %22 = tpu.matmul %21, %7, %cst_11 {dimension_numbers = #tpu.dot_dimension_numbers<[1], [0], [0], [1], [0, 0, 1, 1], [], []>} : vector<16x256xbf16>, vector<256x128xbf16>, vector<16x128xf32> -> vector<16x128xf32>
    %23 = vector.extract_strided_slice %5 {offsets = [5, 0, 0], sizes = [1, 16, 256], strides = [1, 1, 1]} : vector<8x16x256xbf16> to vector<1x16x256xbf16>
    %24 = vector.shape_cast %23 : vector<1x16x256xbf16> to vector<16x256xbf16>
    %cst_12 = arith.constant dense<0.000000e+00> : vector<16x128xf32>
    %25 = tpu.matmul %24, %7, %cst_12 {dimension_numbers = #tpu.dot_dimension_numbers<[1], [0], [0], [1], [0, 0, 1, 1], [], []>} : vector<16x256xbf16>, vector<256x128xbf16>, vector<16x128xf32> -> vector<16x128xf32>
    %26 = vector.extract_strided_slice %5 {offsets = [6, 0, 0], sizes = [1, 16, 256], strides = [1, 1, 1]} : vector<8x16x256xbf16> to vector<1x16x256xbf16>
    %27 = vector.shape_cast %26 : vector<1x16x256xbf16> to vector<16x256xbf16>
    %cst_13 = arith.constant dense<0.000000e+00> : vector<16x128xf32>
    %28 = tpu.matmul %27, %7, %cst_13 {dimension_numbers = #tpu.dot_dimension_numbers<[1], [0], [0], [1], [0, 0, 1, 1], [], []>} : vector<16x256xbf16>, vector<256x128xbf16>, vector<16x128xf32> -> vector<16x128xf32>
    %29 = vector.extract_strided_slice %5 {offsets = [7, 0, 0], sizes = [1, 16, 256], strides = [1, 1, 1]} : vector<8x16x256xbf16> to vector<1x16x256xbf16>
    %30 = vector.shape_cast %29 : vector<1x16x256xbf16> to vector<16x256xbf16>
    %cst_14 = arith.constant dense<0.000000e+00> : vector<16x128xf32>
    %31 = tpu.matmul %30, %7, %cst_14 {dimension_numbers = #tpu.dot_dimension_numbers<[1], [0], [0], [1], [0, 0, 1, 1], [], []>} : vector<16x256xbf16>, vector<256x128xbf16>, vector<16x128xf32> -> vector<16x128xf32>
    %c0_i32_15 = arith.constant 0 : i32
    %32 = arith.addi %0, %c0_i32_15 : i32
    %c0_16 = arith.constant 0 : index
    %33 = arith.index_cast %32 : i32 to index
    %c1 = arith.constant 1 : index
    %c0_17 = arith.constant 0 : index
    %34 = vector.load %arg2[%c0_16, %33, %c1, %c0_17] : memref<1x17x17x256xbf16, #tpu.memory_space<vmem>>, vector<1x8x16x256xbf16>
    %35 = vector.shape_cast %34 : vector<1x8x16x256xbf16> to vector<8x16x256xbf16>
    %c0_18 = arith.constant 0 : index
    %c1_19 = arith.constant 1 : index
    %c0_20 = arith.constant 0 : index
    %c0_21 = arith.constant 0 : index
    %36 = vector.load %arg3[%c0_18, %c1_19, %c0_20, %c0_21] : memref<2x2x256x128xbf16, #tpu.memory_space<vmem>>, vector<1x1x256x128xbf16>
    %37 = vector.shape_cast %36 : vector<1x1x256x128xbf16> to vector<256x128xbf16>
    %38 = vector.extract_strided_slice %35 {offsets = [0, 0, 0], sizes = [1, 16, 256], strides = [1, 1, 1]} : vector<8x16x256xbf16> to vector<1x16x256xbf16>
    %39 = vector.shape_cast %38 : vector<1x16x256xbf16> to vector<16x256xbf16>
    %cst_22 = arith.constant dense<0.000000e+00> : vector<16x128xf32>
    %40 = tpu.matmul %39, %37, %cst_22 {dimension_numbers = #tpu.dot_dimension_numbers<[1], [0], [0], [1], [0, 0, 1, 1], [], []>} : vector<16x256xbf16>, vector<256x128xbf16>, vector<16x128xf32> -> vector<16x128xf32>
    %41 = arith.addf %10, %40 : vector<16x128xf32>
    %42 = vector.extract_strided_slice %35 {offsets = [1, 0, 0], sizes = [1, 16, 256], strides = [1, 1, 1]} : vector<8x16x256xbf16> to vector<1x16x256xbf16>
    %43 = vector.shape_cast %42 : vector<1x16x256xbf16> to vector<16x256xbf16>
    %cst_23 = arith.constant dense<0.000000e+00> : vector<16x128xf32>
    %44 = tpu.matmul %43, %37, %cst_23 {dimension_numbers = #tpu.dot_dimension_numbers<[1], [0], [0], [1], [0, 0, 1, 1], [], []>} : vector<16x256xbf16>, vector<256x128xbf16>, vector<16x128xf32> -> vector<16x128xf32>
    %45 = arith.addf %13, %44 : vector<16x128xf32>
    %46 = vector.extract_strided_slice %35 {offsets = [2, 0, 0], sizes = [1, 16, 256], strides = [1, 1, 1]} : vector<8x16x256xbf16> to vector<1x16x256xbf16>
    %47 = vector.shape_cast %46 : vector<1x16x256xbf16> to vector<16x256xbf16>
    %cst_24 = arith.constant dense<0.000000e+00> : vector<16x128xf32>
    %48 = tpu.matmul %47, %37, %cst_24 {dimension_numbers = #tpu.dot_dimension_numbers<[1], [0], [0], [1], [0, 0, 1, 1], [], []>} : vector<16x256xbf16>, vector<256x128xbf16>, vector<16x128xf32> -> vector<16x128xf32>
    %49 = arith.addf %16, %48 : vector<16x128xf32>
    %50 = vector.extract_strided_slice %35 {offsets = [3, 0, 0], sizes = [1, 16, 256], strides = [1, 1, 1]} : vector<8x16x256xbf16> to vector<1x16x256xbf16>
    %51 = vector.shape_cast %50 : vector<1x16x256xbf16> to vector<16x256xbf16>
    %cst_25 = arith.constant dense<0.000000e+00> : vector<16x128xf32>
    %52 = tpu.matmul %51, %37, %cst_25 {dimension_numbers = #tpu.dot_dimension_numbers<[1], [0], [0], [1], [0, 0, 1, 1], [], []>} : vector<16x256xbf16>, vector<256x128xbf16>, vector<16x128xf32> -> vector<16x128xf32>
    %53 = arith.addf %19, %52 : vector<16x128xf32>
    %54 = vector.extract_strided_slice %35 {offsets = [4, 0, 0], sizes = [1, 16, 256], strides = [1, 1, 1]} : vector<8x16x256xbf16> to vector<1x16x256xbf16>
    %55 = vector.shape_cast %54 : vector<1x16x256xbf16> to vector<16x256xbf16>
    %cst_26 = arith.constant dense<0.000000e+00> : vector<16x128xf32>
    %56 = tpu.matmul %55, %37, %cst_26 {dimension_numbers = #tpu.dot_dimension_numbers<[1], [0], [0], [1], [0, 0, 1, 1], [], []>} : vector<16x256xbf16>, vector<256x128xbf16>, vector<16x128xf32> -> vector<16x128xf32>
    %57 = arith.addf %22, %56 : vector<16x128xf32>
    %58 = vector.extract_strided_slice %35 {offsets = [5, 0, 0], sizes = [1, 16, 256], strides = [1, 1, 1]} : vector<8x16x256xbf16> to vector<1x16x256xbf16>
    %59 = vector.shape_cast %58 : vector<1x16x256xbf16> to vector<16x256xbf16>
    %cst_27 = arith.constant dense<0.000000e+00> : vector<16x128xf32>
    %60 = tpu.matmul %59, %37, %cst_27 {dimension_numbers = #tpu.dot_dimension_numbers<[1], [0], [0], [1], [0, 0, 1, 1], [], []>} : vector<16x256xbf16>, vector<256x128xbf16>, vector<16x128xf32> -> vector<16x128xf32>
    %61 = arith.addf %25, %60 : vector<16x128xf32>
    %62 = vector.extract_strided_slice %35 {offsets = [6, 0, 0], sizes = [1, 16, 256], strides = [1, 1, 1]} : vector<8x16x256xbf16> to vector<1x16x256xbf16>
    %63 = vector.shape_cast %62 : vector<1x16x256xbf16> to vector<16x256xbf16>
    %cst_28 = arith.constant dense<0.000000e+00> : vector<16x128xf32>
    %64 = tpu.matmul %63, %37, %cst_28 {dimension_numbers = #tpu.dot_dimension_numbers<[1], [0], [0], [1], [0, 0, 1, 1], [], []>} : vector<16x256xbf16>, vector<256x128xbf16>, vector<16x128xf32> -> vector<16x128xf32>
    %65 = arith.addf %28, %64 : vector<16x128xf32>
    %66 = vector.extract_strided_slice %35 {offsets = [7, 0, 0], sizes = [1, 16, 256], strides = [1, 1, 1]} : vector<8x16x256xbf16> to vector<1x16x256xbf16>
    %67 = vector.shape_cast %66 : vector<1x16x256xbf16> to vector<16x256xbf16>
    %cst_29 = arith.constant dense<0.000000e+00> : vector<16x128xf32>
    %68 = tpu.matmul %67, %37, %cst_29 {dimension_numbers = #tpu.dot_dimension_numbers<[1], [0], [0], [1], [0, 0, 1, 1], [], []>} : vector<16x256xbf16>, vector<256x128xbf16>, vector<16x128xf32> -> vector<16x128xf32>
    %69 = arith.addf %31, %68 : vector<16x128xf32>
    %c1_i32 = arith.constant 1 : i32
    %70 = arith.addi %0, %c1_i32 : i32
    %c0_30 = arith.constant 0 : index
    %71 = arith.index_cast %70 : i32 to index
    %c0_31 = arith.constant 0 : index
    %c0_32 = arith.constant 0 : index
    %72 = vector.load %arg2[%c0_30, %71, %c0_31, %c0_32] : memref<1x17x17x256xbf16, #tpu.memory_space<vmem>>, vector<1x8x16x256xbf16>
    %73 = vector.shape_cast %72 : vector<1x8x16x256xbf16> to vector<8x16x256xbf16>
    %c1_33 = arith.constant 1 : index
    %c0_34 = arith.constant 0 : index
    %c0_35 = arith.constant 0 : index
    %c0_36 = arith.constant 0 : index
    %74 = vector.load %arg3[%c1_33, %c0_34, %c0_35, %c0_36] : memref<2x2x256x128xbf16, #tpu.memory_space<vmem>>, vector<1x1x256x128xbf16>
    %75 = vector.shape_cast %74 : vector<1x1x256x128xbf16> to vector<256x128xbf16>
    %76 = vector.extract_strided_slice %73 {offsets = [0, 0, 0], sizes = [1, 16, 256], strides = [1, 1, 1]} : vector<8x16x256xbf16> to vector<1x16x256xbf16>
    %77 = vector.shape_cast %76 : vector<1x16x256xbf16> to vector<16x256xbf16>
    %cst_37 = arith.constant dense<0.000000e+00> : vector<16x128xf32>
    %78 = tpu.matmul %77, %75, %cst_37 {dimension_numbers = #tpu.dot_dimension_numbers<[1], [0], [0], [1], [0, 0, 1, 1], [], []>} : vector<16x256xbf16>, vector<256x128xbf16>, vector<16x128xf32> -> vector<16x128xf32>
    %79 = arith.addf %41, %78 : vector<16x128xf32>
    %80 = vector.extract_strided_slice %73 {offsets = [1, 0, 0], sizes = [1, 16, 256], strides = [1, 1, 1]} : vector<8x16x256xbf16> to vector<1x16x256xbf16>
    %81 = vector.shape_cast %80 : vector<1x16x256xbf16> to vector<16x256xbf16>
    %cst_38 = arith.constant dense<0.000000e+00> : vector<16x128xf32>
    %82 = tpu.matmul %81, %75, %cst_38 {dimension_numbers = #tpu.dot_dimension_numbers<[1], [0], [0], [1], [0, 0, 1, 1], [], []>} : vector<16x256xbf16>, vector<256x128xbf16>, vector<16x128xf32> -> vector<16x128xf32>
    %83 = arith.addf %45, %82 : vector<16x128xf32>
    %84 = vector.extract_strided_slice %73 {offsets = [2, 0, 0], sizes = [1, 16, 256], strides = [1, 1, 1]} : vector<8x16x256xbf16> to vector<1x16x256xbf16>
    %85 = vector.shape_cast %84 : vector<1x16x256xbf16> to vector<16x256xbf16>
    %cst_39 = arith.constant dense<0.000000e+00> : vector<16x128xf32>
    %86 = tpu.matmul %85, %75, %cst_39 {dimension_numbers = #tpu.dot_dimension_numbers<[1], [0], [0], [1], [0, 0, 1, 1], [], []>} : vector<16x256xbf16>, vector<256x128xbf16>, vector<16x128xf32> -> vector<16x128xf32>
    %87 = arith.addf %49, %86 : vector<16x128xf32>
    %88 = vector.extract_strided_slice %73 {offsets = [3, 0, 0], sizes = [1, 16, 256], strides = [1, 1, 1]} : vector<8x16x256xbf16> to vector<1x16x256xbf16>
    %89 = vector.shape_cast %88 : vector<1x16x256xbf16> to vector<16x256xbf16>
    %cst_40 = arith.constant dense<0.000000e+00> : vector<16x128xf32>
    %90 = tpu.matmul %89, %75, %cst_40 {dimension_numbers = #tpu.dot_dimension_numbers<[1], [0], [0], [1], [0, 0, 1, 1], [], []>} : vector<16x256xbf16>, vector<256x128xbf16>, vector<16x128xf32> -> vector<16x128xf32>
    %91 = arith.addf %53, %90 : vector<16x128xf32>
    %92 = vector.extract_strided_slice %73 {offsets = [4, 0, 0], sizes = [1, 16, 256], strides = [1, 1, 1]} : vector<8x16x256xbf16> to vector<1x16x256xbf16>
    %93 = vector.shape_cast %92 : vector<1x16x256xbf16> to vector<16x256xbf16>
    %cst_41 = arith.constant dense<0.000000e+00> : vector<16x128xf32>
    %94 = tpu.matmul %93, %75, %cst_41 {dimension_numbers = #tpu.dot_dimension_numbers<[1], [0], [0], [1], [0, 0, 1, 1], [], []>} : vector<16x256xbf16>, vector<256x128xbf16>, vector<16x128xf32> -> vector<16x128xf32>
    %95 = arith.addf %57, %94 : vector<16x128xf32>
    %96 = vector.extract_strided_slice %73 {offsets = [5, 0, 0], sizes = [1, 16, 256], strides = [1, 1, 1]} : vector<8x16x256xbf16> to vector<1x16x256xbf16>
    %97 = vector.shape_cast %96 : vector<1x16x256xbf16> to vector<16x256xbf16>
    %cst_42 = arith.constant dense<0.000000e+00> : vector<16x128xf32>
    %98 = tpu.matmul %97, %75, %cst_42 {dimension_numbers = #tpu.dot_dimension_numbers<[1], [0], [0], [1], [0, 0, 1, 1], [], []>} : vector<16x256xbf16>, vector<256x128xbf16>, vector<16x128xf32> -> vector<16x128xf32>
    %99 = arith.addf %61, %98 : vector<16x128xf32>
    %100 = vector.extract_strided_slice %73 {offsets = [6, 0, 0], sizes = [1, 16, 256], strides = [1, 1, 1]} : vector<8x16x256xbf16> to vector<1x16x256xbf16>
    %101 = vector.shape_cast %100 : vector<1x16x256xbf16> to vector<16x256xbf16>
    %cst_43 = arith.constant dense<0.000000e+00> : vector<16x128xf32>
    %102 = tpu.matmul %101, %75, %cst_43 {dimension_numbers = #tpu.dot_dimension_numbers<[1], [0], [0], [1], [0, 0, 1, 1], [], []>} : vector<16x256xbf16>, vector<256x128xbf16>, vector<16x128xf32> -> vector<16x128xf32>
    %103 = arith.addf %65, %102 : vector<16x128xf32>
    %104 = vector.extract_strided_slice %73 {offsets = [7, 0, 0], sizes = [1, 16, 256], strides = [1, 1, 1]} : vector<8x16x256xbf16> to vector<1x16x256xbf16>
    %105 = vector.shape_cast %104 : vector<1x16x256xbf16> to vector<16x256xbf16>
    %cst_44 = arith.constant dense<0.000000e+00> : vector<16x128xf32>
    %106 = tpu.matmul %105, %75, %cst_44 {dimension_numbers = #tpu.dot_dimension_numbers<[1], [0], [0], [1], [0, 0, 1, 1], [], []>} : vector<16x256xbf16>, vector<256x128xbf16>, vector<16x128xf32> -> vector<16x128xf32>
    %107 = arith.addf %69, %106 : vector<16x128xf32>
    %c1_i32_45 = arith.constant 1 : i32
    %108 = arith.addi %0, %c1_i32_45 : i32
    %c0_46 = arith.constant 0 : index
    %109 = arith.index_cast %108 : i32 to index
    %c1_47 = arith.constant 1 : index
    %c0_48 = arith.constant 0 : index
    %110 = vector.load %arg2[%c0_46, %109, %c1_47, %c0_48] : memref<1x17x17x256xbf16, #tpu.memory_space<vmem>>, vector<1x8x16x256xbf16>
    %111 = vector.shape_cast %110 : vector<1x8x16x256xbf16> to vector<8x16x256xbf16>
    %c1_49 = arith.constant 1 : index
    %c1_50 = arith.constant 1 : index
    %c0_51 = arith.constant 0 : index
    %c0_52 = arith.constant 0 : index
    %112 = vector.load %arg3[%c1_49, %c1_50, %c0_51, %c0_52] : memref<2x2x256x128xbf16, #tpu.memory_space<vmem>>, vector<1x1x256x128xbf16>
    %113 = vector.shape_cast %112 : vector<1x1x256x128xbf16> to vector<256x128xbf16>
    %114 = vector.extract_strided_slice %111 {offsets = [0, 0, 0], sizes = [1, 16, 256], strides = [1, 1, 1]} : vector<8x16x256xbf16> to vector<1x16x256xbf16>
    %115 = vector.shape_cast %114 : vector<1x16x256xbf16> to vector<16x256xbf16>
    %cst_53 = arith.constant dense<0.000000e+00> : vector<16x128xf32>
    %116 = tpu.matmul %115, %113, %cst_53 {dimension_numbers = #tpu.dot_dimension_numbers<[1], [0], [0], [1], [0, 0, 1, 1], [], []>} : vector<16x256xbf16>, vector<256x128xbf16>, vector<16x128xf32> -> vector<16x128xf32>
    %117 = arith.addf %79, %116 : vector<16x128xf32>
    %118 = vector.extract_strided_slice %111 {offsets = [1, 0, 0], sizes = [1, 16, 256], strides = [1, 1, 1]} : vector<8x16x256xbf16> to vector<1x16x256xbf16>
    %119 = vector.shape_cast %118 : vector<1x16x256xbf16> to vector<16x256xbf16>
    %cst_54 = arith.constant dense<0.000000e+00> : vector<16x128xf32>
    %120 = tpu.matmul %119, %113, %cst_54 {dimension_numbers = #tpu.dot_dimension_numbers<[1], [0], [0], [1], [0, 0, 1, 1], [], []>} : vector<16x256xbf16>, vector<256x128xbf16>, vector<16x128xf32> -> vector<16x128xf32>
    %121 = arith.addf %83, %120 : vector<16x128xf32>
    %122 = vector.extract_strided_slice %111 {offsets = [2, 0, 0], sizes = [1, 16, 256], strides = [1, 1, 1]} : vector<8x16x256xbf16> to vector<1x16x256xbf16>
    %123 = vector.shape_cast %122 : vector<1x16x256xbf16> to vector<16x256xbf16>
    %cst_55 = arith.constant dense<0.000000e+00> : vector<16x128xf32>
    %124 = tpu.matmul %123, %113, %cst_55 {dimension_numbers = #tpu.dot_dimension_numbers<[1], [0], [0], [1], [0, 0, 1, 1], [], []>} : vector<16x256xbf16>, vector<256x128xbf16>, vector<16x128xf32> -> vector<16x128xf32>
    %125 = arith.addf %87, %124 : vector<16x128xf32>
    %126 = vector.extract_strided_slice %111 {offsets = [3, 0, 0], sizes = [1, 16, 256], strides = [1, 1, 1]} : vector<8x16x256xbf16> to vector<1x16x256xbf16>
    %127 = vector.shape_cast %126 : vector<1x16x256xbf16> to vector<16x256xbf16>
    %cst_56 = arith.constant dense<0.000000e+00> : vector<16x128xf32>
    %128 = tpu.matmul %127, %113, %cst_56 {dimension_numbers = #tpu.dot_dimension_numbers<[1], [0], [0], [1], [0, 0, 1, 1], [], []>} : vector<16x256xbf16>, vector<256x128xbf16>, vector<16x128xf32> -> vector<16x128xf32>
    %129 = arith.addf %91, %128 : vector<16x128xf32>
    %130 = vector.extract_strided_slice %111 {offsets = [4, 0, 0], sizes = [1, 16, 256], strides = [1, 1, 1]} : vector<8x16x256xbf16> to vector<1x16x256xbf16>
    %131 = vector.shape_cast %130 : vector<1x16x256xbf16> to vector<16x256xbf16>
    %cst_57 = arith.constant dense<0.000000e+00> : vector<16x128xf32>
    %132 = tpu.matmul %131, %113, %cst_57 {dimension_numbers = #tpu.dot_dimension_numbers<[1], [0], [0], [1], [0, 0, 1, 1], [], []>} : vector<16x256xbf16>, vector<256x128xbf16>, vector<16x128xf32> -> vector<16x128xf32>
    %133 = arith.addf %95, %132 : vector<16x128xf32>
    %134 = vector.extract_strided_slice %111 {offsets = [5, 0, 0], sizes = [1, 16, 256], strides = [1, 1, 1]} : vector<8x16x256xbf16> to vector<1x16x256xbf16>
    %135 = vector.shape_cast %134 : vector<1x16x256xbf16> to vector<16x256xbf16>
    %cst_58 = arith.constant dense<0.000000e+00> : vector<16x128xf32>
    %136 = tpu.matmul %135, %113, %cst_58 {dimension_numbers = #tpu.dot_dimension_numbers<[1], [0], [0], [1], [0, 0, 1, 1], [], []>} : vector<16x256xbf16>, vector<256x128xbf16>, vector<16x128xf32> -> vector<16x128xf32>
    %137 = arith.addf %99, %136 : vector<16x128xf32>
    %138 = vector.extract_strided_slice %111 {offsets = [6, 0, 0], sizes = [1, 16, 256], strides = [1, 1, 1]} : vector<8x16x256xbf16> to vector<1x16x256xbf16>
    %139 = vector.shape_cast %138 : vector<1x16x256xbf16> to vector<16x256xbf16>
    %cst_59 = arith.constant dense<0.000000e+00> : vector<16x128xf32>
    %140 = tpu.matmul %139, %113, %cst_59 {dimension_numbers = #tpu.dot_dimension_numbers<[1], [0], [0], [1], [0, 0, 1, 1], [], []>} : vector<16x256xbf16>, vector<256x128xbf16>, vector<16x128xf32> -> vector<16x128xf32>
    %141 = arith.addf %103, %140 : vector<16x128xf32>
    %142 = vector.extract_strided_slice %111 {offsets = [7, 0, 0], sizes = [1, 16, 256], strides = [1, 1, 1]} : vector<8x16x256xbf16> to vector<1x16x256xbf16>
    %143 = vector.shape_cast %142 : vector<1x16x256xbf16> to vector<16x256xbf16>
    %cst_60 = arith.constant dense<0.000000e+00> : vector<16x128xf32>
    %144 = tpu.matmul %143, %113, %cst_60 {dimension_numbers = #tpu.dot_dimension_numbers<[1], [0], [0], [1], [0, 0, 1, 1], [], []>} : vector<16x256xbf16>, vector<256x128xbf16>, vector<16x128xf32> -> vector<16x128xf32>
    %145 = arith.addf %107, %144 : vector<16x128xf32>
    %146 = vector.broadcast %1 : vector<1x128xf32> to vector<16x128xf32>
    %147 = arith.addf %117, %146 : vector<16x128xf32>
    %cst_61 = arith.constant 2.000000e-01 : f32
    %148 = vector.broadcast %cst_61 : f32 to vector<16x128xf32>
    %149 = arith.mulf %148, %147 : vector<16x128xf32>
    %150 = arith.maximumf %147, %149 : vector<16x128xf32>
    %151 = arith.truncf %150 : vector<16x128xf32> to vector<16x128xbf16>
    %c0_62 = arith.constant 0 : index
    %c0_63 = arith.constant 0 : index
    %c0_64 = arith.constant 0 : index
    %c0_65 = arith.constant 0 : index
    %152 = vector.load %arg5[%c0_62, %c0_63, %c0_64, %c0_65] : memref<1x8x16x128xbf16, #tpu.memory_space<vmem>>, vector<1x1x16x128xbf16>
    %153 = vector.shape_cast %152 : vector<1x1x16x128xbf16> to vector<16x128xbf16>
    %154 = vector.shape_cast %151 : vector<16x128xbf16> to vector<1x1x16x128xbf16>
    tpu.vector_store %arg5[%c0_62, %c0_63, %c0_64, %c0_65], %154 {strides = array<i32>} : memref<1x8x16x128xbf16, #tpu.memory_space<vmem>>, vector<1x1x16x128xbf16>,
    %155 = vector.broadcast %1 : vector<1x128xf32> to vector<16x128xf32>
    %156 = arith.addf %121, %155 : vector<16x128xf32>
    %cst_66 = arith.constant 2.000000e-01 : f32
    %157 = vector.broadcast %cst_66 : f32 to vector<16x128xf32>
    %158 = arith.mulf %157, %156 : vector<16x128xf32>
    %159 = arith.maximumf %156, %158 : vector<16x128xf32>
    %160 = arith.truncf %159 : vector<16x128xf32> to vector<16x128xbf16>
    %c0_67 = arith.constant 0 : index
    %c1_68 = arith.constant 1 : index
    %c0_69 = arith.constant 0 : index
    %c0_70 = arith.constant 0 : index
    %161 = vector.load %arg5[%c0_67, %c1_68, %c0_69, %c0_70] : memref<1x8x16x128xbf16, #tpu.memory_space<vmem>>, vector<1x1x16x128xbf16>
    %162 = vector.shape_cast %161 : vector<1x1x16x128xbf16> to vector<16x128xbf16>
    %163 = vector.shape_cast %160 : vector<16x128xbf16> to vector<1x1x16x128xbf16>
    tpu.vector_store %arg5[%c0_67, %c1_68, %c0_69, %c0_70], %163 {strides = array<i32>} : memref<1x8x16x128xbf16, #tpu.memory_space<vmem>>, vector<1x1x16x128xbf16>,
    %164 = vector.broadcast %1 : vector<1x128xf32> to vector<16x128xf32>
    %165 = arith.addf %125, %164 : vector<16x128xf32>
    %cst_71 = arith.constant 2.000000e-01 : f32
    %166 = vector.broadcast %cst_71 : f32 to vector<16x128xf32>
    %167 = arith.mulf %166, %165 : vector<16x128xf32>
    %168 = arith.maximumf %165, %167 : vector<16x128xf32>
    %169 = arith.truncf %168 : vector<16x128xf32> to vector<16x128xbf16>
    %c0_72 = arith.constant 0 : index
    %c2 = arith.constant 2 : index
    %c0_73 = arith.constant 0 : index
    %c0_74 = arith.constant 0 : index
    %170 = vector.load %arg5[%c0_72, %c2, %c0_73, %c0_74] : memref<1x8x16x128xbf16, #tpu.memory_space<vmem>>, vector<1x1x16x128xbf16>
    %171 = vector.shape_cast %170 : vector<1x1x16x128xbf16> to vector<16x128xbf16>
    %172 = vector.shape_cast %169 : vector<16x128xbf16> to vector<1x1x16x128xbf16>
    tpu.vector_store %arg5[%c0_72, %c2, %c0_73, %c0_74], %172 {strides = array<i32>} : memref<1x8x16x128xbf16, #tpu.memory_space<vmem>>, vector<1x1x16x128xbf16>,
    %173 = vector.broadcast %1 : vector<1x128xf32> to vector<16x128xf32>
    %174 = arith.addf %129, %173 : vector<16x128xf32>
    %cst_75 = arith.constant 2.000000e-01 : f32
    %175 = vector.broadcast %cst_75 : f32 to vector<16x128xf32>
    %176 = arith.mulf %175, %174 : vector<16x128xf32>
    %177 = arith.maximumf %174, %176 : vector<16x128xf32>
    %178 = arith.truncf %177 : vector<16x128xf32> to vector<16x128xbf16>
    %c0_76 = arith.constant 0 : index
    %c3 = arith.constant 3 : index
    %c0_77 = arith.constant 0 : index
    %c0_78 = arith.constant 0 : index
    %179 = vector.load %arg5[%c0_76, %c3, %c0_77, %c0_78] : memref<1x8x16x128xbf16, #tpu.memory_space<vmem>>, vector<1x1x16x128xbf16>
    %180 = vector.shape_cast %179 : vector<1x1x16x128xbf16> to vector<16x128xbf16>
    %181 = vector.shape_cast %178 : vector<16x128xbf16> to vector<1x1x16x128xbf16>
    tpu.vector_store %arg5[%c0_76, %c3, %c0_77, %c0_78], %181 {strides = array<i32>} : memref<1x8x16x128xbf16, #tpu.memory_space<vmem>>, vector<1x1x16x128xbf16>,
    %182 = vector.broadcast %1 : vector<1x128xf32> to vector<16x128xf32>
    %183 = arith.addf %133, %182 : vector<16x128xf32>
    %cst_79 = arith.constant 2.000000e-01 : f32
    %184 = vector.broadcast %cst_79 : f32 to vector<16x128xf32>
    %185 = arith.mulf %184, %183 : vector<16x128xf32>
    %186 = arith.maximumf %183, %185 : vector<16x128xf32>
    %187 = arith.truncf %186 : vector<16x128xf32> to vector<16x128xbf16>
    %c0_80 = arith.constant 0 : index
    %c4 = arith.constant 4 : index
    %c0_81 = arith.constant 0 : index
    %c0_82 = arith.constant 0 : index
    %188 = vector.load %arg5[%c0_80, %c4, %c0_81, %c0_82] : memref<1x8x16x128xbf16, #tpu.memory_space<vmem>>, vector<1x1x16x128xbf16>
    %189 = vector.shape_cast %188 : vector<1x1x16x128xbf16> to vector<16x128xbf16>
    %190 = vector.shape_cast %187 : vector<16x128xbf16> to vector<1x1x16x128xbf16>
    tpu.vector_store %arg5[%c0_80, %c4, %c0_81, %c0_82], %190 {strides = array<i32>} : memref<1x8x16x128xbf16, #tpu.memory_space<vmem>>, vector<1x1x16x128xbf16>,
    %191 = vector.broadcast %1 : vector<1x128xf32> to vector<16x128xf32>
    %192 = arith.addf %137, %191 : vector<16x128xf32>
    %cst_83 = arith.constant 2.000000e-01 : f32
    %193 = vector.broadcast %cst_83 : f32 to vector<16x128xf32>
    %194 = arith.mulf %193, %192 : vector<16x128xf32>
    %195 = arith.maximumf %192, %194 : vector<16x128xf32>
    %196 = arith.truncf %195 : vector<16x128xf32> to vector<16x128xbf16>
    %c0_84 = arith.constant 0 : index
    %c5 = arith.constant 5 : index
    %c0_85 = arith.constant 0 : index
    %c0_86 = arith.constant 0 : index
    %197 = vector.load %arg5[%c0_84, %c5, %c0_85, %c0_86] : memref<1x8x16x128xbf16, #tpu.memory_space<vmem>>, vector<1x1x16x128xbf16>
    %198 = vector.shape_cast %197 : vector<1x1x16x128xbf16> to vector<16x128xbf16>
    %199 = vector.shape_cast %196 : vector<16x128xbf16> to vector<1x1x16x128xbf16>
    tpu.vector_store %arg5[%c0_84, %c5, %c0_85, %c0_86], %199 {strides = array<i32>} : memref<1x8x16x128xbf16, #tpu.memory_space<vmem>>, vector<1x1x16x128xbf16>,
    %200 = vector.broadcast %1 : vector<1x128xf32> to vector<16x128xf32>
    %201 = arith.addf %141, %200 : vector<16x128xf32>
    %cst_87 = arith.constant 2.000000e-01 : f32
    %202 = vector.broadcast %cst_87 : f32 to vector<16x128xf32>
    %203 = arith.mulf %202, %201 : vector<16x128xf32>
    %204 = arith.maximumf %201, %203 : vector<16x128xf32>
    %205 = arith.truncf %204 : vector<16x128xf32> to vector<16x128xbf16>
    %c0_88 = arith.constant 0 : index
    %c6 = arith.constant 6 : index
    %c0_89 = arith.constant 0 : index
    %c0_90 = arith.constant 0 : index
    %206 = vector.load %arg5[%c0_88, %c6, %c0_89, %c0_90] : memref<1x8x16x128xbf16, #tpu.memory_space<vmem>>, vector<1x1x16x128xbf16>
    %207 = vector.shape_cast %206 : vector<1x1x16x128xbf16> to vector<16x128xbf16>
    %208 = vector.shape_cast %205 : vector<16x128xbf16> to vector<1x1x16x128xbf16>
    tpu.vector_store %arg5[%c0_88, %c6, %c0_89, %c0_90], %208 {strides = array<i32>} : memref<1x8x16x128xbf16, #tpu.memory_space<vmem>>, vector<1x1x16x128xbf16>,
    %209 = vector.broadcast %1 : vector<1x128xf32> to vector<16x128xf32>
    %210 = arith.addf %145, %209 : vector<16x128xf32>
    %cst_91 = arith.constant 2.000000e-01 : f32
    %211 = vector.broadcast %cst_91 : f32 to vector<16x128xf32>
    %212 = arith.mulf %211, %210 : vector<16x128xf32>
    %213 = arith.maximumf %210, %212 : vector<16x128xf32>
    %214 = arith.truncf %213 : vector<16x128xf32> to vector<16x128xbf16>
    %c0_92 = arith.constant 0 : index
    %c7 = arith.constant 7 : index
    %c0_93 = arith.constant 0 : index
    %c0_94 = arith.constant 0 : index
    %215 = vector.load %arg5[%c0_92, %c7, %c0_93, %c0_94] : memref<1x8x16x128xbf16, #tpu.memory_space<vmem>>, vector<1x1x16x128xbf16>
    %216 = vector.shape_cast %215 : vector<1x1x16x128xbf16> to vector<16x128xbf16>
    %217 = vector.shape_cast %214 : vector<16x128xbf16> to vector<1x1x16x128xbf16>
    tpu.vector_store %arg5[%c0_92, %c7, %c0_93, %c0_94], %217 {strides = array<i32>} : memref<1x8x16x128xbf16, #tpu.memory_space<vmem>>, vector<1x1x16x128xbf16>,
    return
  }
  func.func @transform_0(%arg0: i32, %arg1: i32) -> (i32, i32, i32, i32) {
    %c0_i32 = arith.constant 0 : i32
    %c0_i32_0 = arith.constant 0 : i32
    %c0_i32_1 = arith.constant 0 : i32
    %c0_i32_2 = arith.constant 0 : i32
    return %arg0, %c0_i32, %c0_i32_0, %c0_i32_1 : i32, i32, i32, i32
  }
  func.func @transform_1(%arg0: i32, %arg1: i32) -> (i32, i32, i32, i32) {
    %c0_i32 = arith.constant 0 : i32
    %c0_i32_0 = arith.constant 0 : i32
    %c0_i32_1 = arith.constant 0 : i32
    %c0_i32_2 = arith.constant 0 : i32
    %c0_i32_3 = arith.constant 0 : i32
    return %c0_i32, %c0_i32_0, %c0_i32_1, %c0_i32_2 : i32, i32, i32, i32
  }
  func.func @transform_2(%arg0: i32, %arg1: i32) -> (i32, i32) {
    %c0_i32 = arith.constant 0 : i32
    %c0_i32_0 = arith.constant 0 : i32
    %c0_i32_1 = arith.constant 0 : i32
    return %c0_i32, %c0_i32_0 : i32, i32
  }
  func.func @transform_3(%arg0: i32, %arg1: i32) -> (i32, i32, i32, i32) {
    %c0_i32 = arith.constant 0 : i32
    %c0_i32_0 = arith.constant 0 : i32
    %c0_i32_1 = arith.constant 0 : i32
    return %arg0, %arg1, %c0_i32, %c0_i32_0 : i32, i32, i32, i32
  }
}

module attributes {stable_mosaic.version = 11 : i64} {
  func.func @kernel(%arg0: i32, %arg1: i32, %arg2: memref<1x9x9x512xbf16, #tpu.memory_space<vmem>>, %arg3: memref<2x2x512x128xbf16, #tpu.memory_space<vmem>>, %arg4: memref<1x128xf32, #tpu.memory_space<vmem>>, %arg5: memref<1x4x8x128xbf16, #tpu.memory_space<vmem>>, %arg6: memref<1x8x128xf32, #tpu.memory_space<vmem>>, %arg7: memref<1x8x128xf32, #tpu.memory_space<vmem>>) attributes {dimension_semantics = [#tpu.dimension_semantics<parallel>, #tpu.dimension_semantics<parallel>], iteration_bounds = array<i64: 2, 2>, scalar_prefetch = 0 : i64, scratch_operands = 0 : i64, tpu.core_type = #tpu.core_type<tc>, window_params = [{transform_indices = @transform_0, window_bounds = array<i64: 1, 9, 9, 512>}, {pipeline_mode = #tpu.pipeline_mode<synchronous>, transform_indices = @transform_1, window_bounds = array<i64: 2, 2, 512, 128>}, {pipeline_mode = #tpu.pipeline_mode<synchronous>, transform_indices = @transform_2, window_bounds = array<i64: 1, 128>}, {transform_indices = @transform_3, window_bounds = array<i64: 1, 4, 8, 128>}, {transform_indices = @transform_4, window_bounds = array<i64: 1, 8, 128>}, {transform_indices = @transform_5, window_bounds = array<i64: 1, 8, 128>}]} {
    %c4_i32 = arith.constant 4 : i32
    %0 = arith.muli %arg1, %c4_i32 : i32
    %c0 = arith.constant 0 : index
    %c0_0 = arith.constant 0 : index
    %1 = vector.load %arg4[%c0, %c0_0] : memref<1x128xf32, #tpu.memory_space<vmem>>, vector<1x128xf32>
    %c0_i32 = arith.constant 0 : i32
    %2 = arith.addi %0, %c0_i32 : i32
    %c0_1 = arith.constant 0 : index
    %3 = arith.index_cast %2 : i32 to index
    %c0_2 = arith.constant 0 : index
    %c0_3 = arith.constant 0 : index
    %4 = vector.load %arg2[%c0_1, %3, %c0_2, %c0_3] : memref<1x9x9x512xbf16, #tpu.memory_space<vmem>>, vector<1x4x8x512xbf16>
    %5 = vector.shape_cast %4 : vector<1x4x8x512xbf16> to vector<4x8x512xbf16>
    %c0_4 = arith.constant 0 : index
    %c0_5 = arith.constant 0 : index
    %c0_6 = arith.constant 0 : index
    %c0_7 = arith.constant 0 : index
    %6 = vector.load %arg3[%c0_4, %c0_5, %c0_6, %c0_7] : memref<2x2x512x128xbf16, #tpu.memory_space<vmem>>, vector<1x1x512x128xbf16>
    %7 = vector.shape_cast %6 : vector<1x1x512x128xbf16> to vector<512x128xbf16>
    %8 = vector.extract_strided_slice %5 {offsets = [0, 0, 0], sizes = [1, 8, 512], strides = [1, 1, 1]} : vector<4x8x512xbf16> to vector<1x8x512xbf16>
    %9 = vector.shape_cast %8 : vector<1x8x512xbf16> to vector<8x512xbf16>
    %cst = arith.constant dense<0.000000e+00> : vector<8x128xf32>
    %10 = tpu.matmul %9, %7, %cst {dimension_numbers = #tpu.dot_dimension_numbers<[1], [0], [0], [1], [0, 0, 1, 1], [], []>} : vector<8x512xbf16>, vector<512x128xbf16>, vector<8x128xf32> -> vector<8x128xf32>
    %11 = vector.extract_strided_slice %5 {offsets = [1, 0, 0], sizes = [1, 8, 512], strides = [1, 1, 1]} : vector<4x8x512xbf16> to vector<1x8x512xbf16>
    %12 = vector.shape_cast %11 : vector<1x8x512xbf16> to vector<8x512xbf16>
    %cst_8 = arith.constant dense<0.000000e+00> : vector<8x128xf32>
    %13 = tpu.matmul %12, %7, %cst_8 {dimension_numbers = #tpu.dot_dimension_numbers<[1], [0], [0], [1], [0, 0, 1, 1], [], []>} : vector<8x512xbf16>, vector<512x128xbf16>, vector<8x128xf32> -> vector<8x128xf32>
    %14 = vector.extract_strided_slice %5 {offsets = [2, 0, 0], sizes = [1, 8, 512], strides = [1, 1, 1]} : vector<4x8x512xbf16> to vector<1x8x512xbf16>
    %15 = vector.shape_cast %14 : vector<1x8x512xbf16> to vector<8x512xbf16>
    %cst_9 = arith.constant dense<0.000000e+00> : vector<8x128xf32>
    %16 = tpu.matmul %15, %7, %cst_9 {dimension_numbers = #tpu.dot_dimension_numbers<[1], [0], [0], [1], [0, 0, 1, 1], [], []>} : vector<8x512xbf16>, vector<512x128xbf16>, vector<8x128xf32> -> vector<8x128xf32>
    %17 = vector.extract_strided_slice %5 {offsets = [3, 0, 0], sizes = [1, 8, 512], strides = [1, 1, 1]} : vector<4x8x512xbf16> to vector<1x8x512xbf16>
    %18 = vector.shape_cast %17 : vector<1x8x512xbf16> to vector<8x512xbf16>
    %cst_10 = arith.constant dense<0.000000e+00> : vector<8x128xf32>
    %19 = tpu.matmul %18, %7, %cst_10 {dimension_numbers = #tpu.dot_dimension_numbers<[1], [0], [0], [1], [0, 0, 1, 1], [], []>} : vector<8x512xbf16>, vector<512x128xbf16>, vector<8x128xf32> -> vector<8x128xf32>
    %c0_i32_11 = arith.constant 0 : i32
    %20 = arith.addi %0, %c0_i32_11 : i32
    %c0_12 = arith.constant 0 : index
    %21 = arith.index_cast %20 : i32 to index
    %c1 = arith.constant 1 : index
    %c0_13 = arith.constant 0 : index
    %22 = vector.load %arg2[%c0_12, %21, %c1, %c0_13] : memref<1x9x9x512xbf16, #tpu.memory_space<vmem>>, vector<1x4x8x512xbf16>
    %23 = vector.shape_cast %22 : vector<1x4x8x512xbf16> to vector<4x8x512xbf16>
    %c0_14 = arith.constant 0 : index
    %c1_15 = arith.constant 1 : index
    %c0_16 = arith.constant 0 : index
    %c0_17 = arith.constant 0 : index
    %24 = vector.load %arg3[%c0_14, %c1_15, %c0_16, %c0_17] : memref<2x2x512x128xbf16, #tpu.memory_space<vmem>>, vector<1x1x512x128xbf16>
    %25 = vector.shape_cast %24 : vector<1x1x512x128xbf16> to vector<512x128xbf16>
    %26 = vector.extract_strided_slice %23 {offsets = [0, 0, 0], sizes = [1, 8, 512], strides = [1, 1, 1]} : vector<4x8x512xbf16> to vector<1x8x512xbf16>
    %27 = vector.shape_cast %26 : vector<1x8x512xbf16> to vector<8x512xbf16>
    %cst_18 = arith.constant dense<0.000000e+00> : vector<8x128xf32>
    %28 = tpu.matmul %27, %25, %cst_18 {dimension_numbers = #tpu.dot_dimension_numbers<[1], [0], [0], [1], [0, 0, 1, 1], [], []>} : vector<8x512xbf16>, vector<512x128xbf16>, vector<8x128xf32> -> vector<8x128xf32>
    %29 = arith.addf %10, %28 : vector<8x128xf32>
    %30 = vector.extract_strided_slice %23 {offsets = [1, 0, 0], sizes = [1, 8, 512], strides = [1, 1, 1]} : vector<4x8x512xbf16> to vector<1x8x512xbf16>
    %31 = vector.shape_cast %30 : vector<1x8x512xbf16> to vector<8x512xbf16>
    %cst_19 = arith.constant dense<0.000000e+00> : vector<8x128xf32>
    %32 = tpu.matmul %31, %25, %cst_19 {dimension_numbers = #tpu.dot_dimension_numbers<[1], [0], [0], [1], [0, 0, 1, 1], [], []>} : vector<8x512xbf16>, vector<512x128xbf16>, vector<8x128xf32> -> vector<8x128xf32>
    %33 = arith.addf %13, %32 : vector<8x128xf32>
    %34 = vector.extract_strided_slice %23 {offsets = [2, 0, 0], sizes = [1, 8, 512], strides = [1, 1, 1]} : vector<4x8x512xbf16> to vector<1x8x512xbf16>
    %35 = vector.shape_cast %34 : vector<1x8x512xbf16> to vector<8x512xbf16>
    %cst_20 = arith.constant dense<0.000000e+00> : vector<8x128xf32>
    %36 = tpu.matmul %35, %25, %cst_20 {dimension_numbers = #tpu.dot_dimension_numbers<[1], [0], [0], [1], [0, 0, 1, 1], [], []>} : vector<8x512xbf16>, vector<512x128xbf16>, vector<8x128xf32> -> vector<8x128xf32>
    %37 = arith.addf %16, %36 : vector<8x128xf32>
    %38 = vector.extract_strided_slice %23 {offsets = [3, 0, 0], sizes = [1, 8, 512], strides = [1, 1, 1]} : vector<4x8x512xbf16> to vector<1x8x512xbf16>
    %39 = vector.shape_cast %38 : vector<1x8x512xbf16> to vector<8x512xbf16>
    %cst_21 = arith.constant dense<0.000000e+00> : vector<8x128xf32>
    %40 = tpu.matmul %39, %25, %cst_21 {dimension_numbers = #tpu.dot_dimension_numbers<[1], [0], [0], [1], [0, 0, 1, 1], [], []>} : vector<8x512xbf16>, vector<512x128xbf16>, vector<8x128xf32> -> vector<8x128xf32>
    %41 = arith.addf %19, %40 : vector<8x128xf32>
    %c1_i32 = arith.constant 1 : i32
    %42 = arith.addi %0, %c1_i32 : i32
    %c0_22 = arith.constant 0 : index
    %43 = arith.index_cast %42 : i32 to index
    %c0_23 = arith.constant 0 : index
    %c0_24 = arith.constant 0 : index
    %44 = vector.load %arg2[%c0_22, %43, %c0_23, %c0_24] : memref<1x9x9x512xbf16, #tpu.memory_space<vmem>>, vector<1x4x8x512xbf16>
    %45 = vector.shape_cast %44 : vector<1x4x8x512xbf16> to vector<4x8x512xbf16>
    %c1_25 = arith.constant 1 : index
    %c0_26 = arith.constant 0 : index
    %c0_27 = arith.constant 0 : index
    %c0_28 = arith.constant 0 : index
    %46 = vector.load %arg3[%c1_25, %c0_26, %c0_27, %c0_28] : memref<2x2x512x128xbf16, #tpu.memory_space<vmem>>, vector<1x1x512x128xbf16>
    %47 = vector.shape_cast %46 : vector<1x1x512x128xbf16> to vector<512x128xbf16>
    %48 = vector.extract_strided_slice %45 {offsets = [0, 0, 0], sizes = [1, 8, 512], strides = [1, 1, 1]} : vector<4x8x512xbf16> to vector<1x8x512xbf16>
    %49 = vector.shape_cast %48 : vector<1x8x512xbf16> to vector<8x512xbf16>
    %cst_29 = arith.constant dense<0.000000e+00> : vector<8x128xf32>
    %50 = tpu.matmul %49, %47, %cst_29 {dimension_numbers = #tpu.dot_dimension_numbers<[1], [0], [0], [1], [0, 0, 1, 1], [], []>} : vector<8x512xbf16>, vector<512x128xbf16>, vector<8x128xf32> -> vector<8x128xf32>
    %51 = arith.addf %29, %50 : vector<8x128xf32>
    %52 = vector.extract_strided_slice %45 {offsets = [1, 0, 0], sizes = [1, 8, 512], strides = [1, 1, 1]} : vector<4x8x512xbf16> to vector<1x8x512xbf16>
    %53 = vector.shape_cast %52 : vector<1x8x512xbf16> to vector<8x512xbf16>
    %cst_30 = arith.constant dense<0.000000e+00> : vector<8x128xf32>
    %54 = tpu.matmul %53, %47, %cst_30 {dimension_numbers = #tpu.dot_dimension_numbers<[1], [0], [0], [1], [0, 0, 1, 1], [], []>} : vector<8x512xbf16>, vector<512x128xbf16>, vector<8x128xf32> -> vector<8x128xf32>
    %55 = arith.addf %33, %54 : vector<8x128xf32>
    %56 = vector.extract_strided_slice %45 {offsets = [2, 0, 0], sizes = [1, 8, 512], strides = [1, 1, 1]} : vector<4x8x512xbf16> to vector<1x8x512xbf16>
    %57 = vector.shape_cast %56 : vector<1x8x512xbf16> to vector<8x512xbf16>
    %cst_31 = arith.constant dense<0.000000e+00> : vector<8x128xf32>
    %58 = tpu.matmul %57, %47, %cst_31 {dimension_numbers = #tpu.dot_dimension_numbers<[1], [0], [0], [1], [0, 0, 1, 1], [], []>} : vector<8x512xbf16>, vector<512x128xbf16>, vector<8x128xf32> -> vector<8x128xf32>
    %59 = arith.addf %37, %58 : vector<8x128xf32>
    %60 = vector.extract_strided_slice %45 {offsets = [3, 0, 0], sizes = [1, 8, 512], strides = [1, 1, 1]} : vector<4x8x512xbf16> to vector<1x8x512xbf16>
    %61 = vector.shape_cast %60 : vector<1x8x512xbf16> to vector<8x512xbf16>
    %cst_32 = arith.constant dense<0.000000e+00> : vector<8x128xf32>
    %62 = tpu.matmul %61, %47, %cst_32 {dimension_numbers = #tpu.dot_dimension_numbers<[1], [0], [0], [1], [0, 0, 1, 1], [], []>} : vector<8x512xbf16>, vector<512x128xbf16>, vector<8x128xf32> -> vector<8x128xf32>
    %63 = arith.addf %41, %62 : vector<8x128xf32>
    %c1_i32_33 = arith.constant 1 : i32
    %64 = arith.addi %0, %c1_i32_33 : i32
    %c0_34 = arith.constant 0 : index
    %65 = arith.index_cast %64 : i32 to index
    %c1_35 = arith.constant 1 : index
    %c0_36 = arith.constant 0 : index
    %66 = vector.load %arg2[%c0_34, %65, %c1_35, %c0_36] : memref<1x9x9x512xbf16, #tpu.memory_space<vmem>>, vector<1x4x8x512xbf16>
    %67 = vector.shape_cast %66 : vector<1x4x8x512xbf16> to vector<4x8x512xbf16>
    %c1_37 = arith.constant 1 : index
    %c1_38 = arith.constant 1 : index
    %c0_39 = arith.constant 0 : index
    %c0_40 = arith.constant 0 : index
    %68 = vector.load %arg3[%c1_37, %c1_38, %c0_39, %c0_40] : memref<2x2x512x128xbf16, #tpu.memory_space<vmem>>, vector<1x1x512x128xbf16>
    %69 = vector.shape_cast %68 : vector<1x1x512x128xbf16> to vector<512x128xbf16>
    %70 = vector.extract_strided_slice %67 {offsets = [0, 0, 0], sizes = [1, 8, 512], strides = [1, 1, 1]} : vector<4x8x512xbf16> to vector<1x8x512xbf16>
    %71 = vector.shape_cast %70 : vector<1x8x512xbf16> to vector<8x512xbf16>
    %cst_41 = arith.constant dense<0.000000e+00> : vector<8x128xf32>
    %72 = tpu.matmul %71, %69, %cst_41 {dimension_numbers = #tpu.dot_dimension_numbers<[1], [0], [0], [1], [0, 0, 1, 1], [], []>} : vector<8x512xbf16>, vector<512x128xbf16>, vector<8x128xf32> -> vector<8x128xf32>
    %73 = arith.addf %51, %72 : vector<8x128xf32>
    %74 = vector.extract_strided_slice %67 {offsets = [1, 0, 0], sizes = [1, 8, 512], strides = [1, 1, 1]} : vector<4x8x512xbf16> to vector<1x8x512xbf16>
    %75 = vector.shape_cast %74 : vector<1x8x512xbf16> to vector<8x512xbf16>
    %cst_42 = arith.constant dense<0.000000e+00> : vector<8x128xf32>
    %76 = tpu.matmul %75, %69, %cst_42 {dimension_numbers = #tpu.dot_dimension_numbers<[1], [0], [0], [1], [0, 0, 1, 1], [], []>} : vector<8x512xbf16>, vector<512x128xbf16>, vector<8x128xf32> -> vector<8x128xf32>
    %77 = arith.addf %55, %76 : vector<8x128xf32>
    %78 = vector.extract_strided_slice %67 {offsets = [2, 0, 0], sizes = [1, 8, 512], strides = [1, 1, 1]} : vector<4x8x512xbf16> to vector<1x8x512xbf16>
    %79 = vector.shape_cast %78 : vector<1x8x512xbf16> to vector<8x512xbf16>
    %cst_43 = arith.constant dense<0.000000e+00> : vector<8x128xf32>
    %80 = tpu.matmul %79, %69, %cst_43 {dimension_numbers = #tpu.dot_dimension_numbers<[1], [0], [0], [1], [0, 0, 1, 1], [], []>} : vector<8x512xbf16>, vector<512x128xbf16>, vector<8x128xf32> -> vector<8x128xf32>
    %81 = arith.addf %59, %80 : vector<8x128xf32>
    %82 = vector.extract_strided_slice %67 {offsets = [3, 0, 0], sizes = [1, 8, 512], strides = [1, 1, 1]} : vector<4x8x512xbf16> to vector<1x8x512xbf16>
    %83 = vector.shape_cast %82 : vector<1x8x512xbf16> to vector<8x512xbf16>
    %cst_44 = arith.constant dense<0.000000e+00> : vector<8x128xf32>
    %84 = tpu.matmul %83, %69, %cst_44 {dimension_numbers = #tpu.dot_dimension_numbers<[1], [0], [0], [1], [0, 0, 1, 1], [], []>} : vector<8x512xbf16>, vector<512x128xbf16>, vector<8x128xf32> -> vector<8x128xf32>
    %85 = arith.addf %63, %84 : vector<8x128xf32>
    %86 = vector.broadcast %1 : vector<1x128xf32> to vector<8x128xf32>
    %87 = arith.addf %73, %86 : vector<8x128xf32>
    %cst_45 = arith.constant dense<0.000000e+00> : vector<128xf32>
    %88 = vector.multi_reduction <add>, %87, %cst_45 [0] : vector<8x128xf32> to vector<128xf32>
    %89 = vector.shape_cast %88 : vector<128xf32> to vector<1x128xf32>
    %90 = arith.mulf %87, %87 : vector<8x128xf32>
    %cst_46 = arith.constant dense<0.000000e+00> : vector<128xf32>
    %91 = vector.multi_reduction <add>, %90, %cst_46 [0] : vector<8x128xf32> to vector<128xf32>
    %92 = vector.shape_cast %91 : vector<128xf32> to vector<1x128xf32>
    %93 = arith.truncf %87 : vector<8x128xf32> to vector<8x128xbf16>
    %c0_47 = arith.constant 0 : index
    %c0_48 = arith.constant 0 : index
    %c0_49 = arith.constant 0 : index
    %c0_50 = arith.constant 0 : index
    %94 = vector.load %arg5[%c0_47, %c0_48, %c0_49, %c0_50] : memref<1x4x8x128xbf16, #tpu.memory_space<vmem>>, vector<1x1x8x128xbf16>
    %95 = vector.shape_cast %94 : vector<1x1x8x128xbf16> to vector<8x128xbf16>
    %96 = vector.shape_cast %93 : vector<8x128xbf16> to vector<1x1x8x128xbf16>
    tpu.vector_store %arg5[%c0_47, %c0_48, %c0_49, %c0_50], %96 {strides = array<i32>} : memref<1x4x8x128xbf16, #tpu.memory_space<vmem>>, vector<1x1x8x128xbf16>,
    %97 = vector.broadcast %1 : vector<1x128xf32> to vector<8x128xf32>
    %98 = arith.addf %77, %97 : vector<8x128xf32>
    %cst_51 = arith.constant dense<0.000000e+00> : vector<128xf32>
    %99 = vector.multi_reduction <add>, %98, %cst_51 [0] : vector<8x128xf32> to vector<128xf32>
    %100 = vector.shape_cast %99 : vector<128xf32> to vector<1x128xf32>
    %101 = arith.mulf %98, %98 : vector<8x128xf32>
    %cst_52 = arith.constant dense<0.000000e+00> : vector<128xf32>
    %102 = vector.multi_reduction <add>, %101, %cst_52 [0] : vector<8x128xf32> to vector<128xf32>
    %103 = vector.shape_cast %102 : vector<128xf32> to vector<1x128xf32>
    %104 = arith.addf %89, %100 : vector<1x128xf32>
    %105 = arith.addf %92, %103 : vector<1x128xf32>
    %106 = arith.truncf %98 : vector<8x128xf32> to vector<8x128xbf16>
    %c0_53 = arith.constant 0 : index
    %c1_54 = arith.constant 1 : index
    %c0_55 = arith.constant 0 : index
    %c0_56 = arith.constant 0 : index
    %107 = vector.load %arg5[%c0_53, %c1_54, %c0_55, %c0_56] : memref<1x4x8x128xbf16, #tpu.memory_space<vmem>>, vector<1x1x8x128xbf16>
    %108 = vector.shape_cast %107 : vector<1x1x8x128xbf16> to vector<8x128xbf16>
    %109 = vector.shape_cast %106 : vector<8x128xbf16> to vector<1x1x8x128xbf16>
    tpu.vector_store %arg5[%c0_53, %c1_54, %c0_55, %c0_56], %109 {strides = array<i32>} : memref<1x4x8x128xbf16, #tpu.memory_space<vmem>>, vector<1x1x8x128xbf16>,
    %110 = vector.broadcast %1 : vector<1x128xf32> to vector<8x128xf32>
    %111 = arith.addf %81, %110 : vector<8x128xf32>
    %cst_57 = arith.constant dense<0.000000e+00> : vector<128xf32>
    %112 = vector.multi_reduction <add>, %111, %cst_57 [0] : vector<8x128xf32> to vector<128xf32>
    %113 = vector.shape_cast %112 : vector<128xf32> to vector<1x128xf32>
    %114 = arith.mulf %111, %111 : vector<8x128xf32>
    %cst_58 = arith.constant dense<0.000000e+00> : vector<128xf32>
    %115 = vector.multi_reduction <add>, %114, %cst_58 [0] : vector<8x128xf32> to vector<128xf32>
    %116 = vector.shape_cast %115 : vector<128xf32> to vector<1x128xf32>
    %117 = arith.addf %104, %113 : vector<1x128xf32>
    %118 = arith.addf %105, %116 : vector<1x128xf32>
    %119 = arith.truncf %111 : vector<8x128xf32> to vector<8x128xbf16>
    %c0_59 = arith.constant 0 : index
    %c2 = arith.constant 2 : index
    %c0_60 = arith.constant 0 : index
    %c0_61 = arith.constant 0 : index
    %120 = vector.load %arg5[%c0_59, %c2, %c0_60, %c0_61] : memref<1x4x8x128xbf16, #tpu.memory_space<vmem>>, vector<1x1x8x128xbf16>
    %121 = vector.shape_cast %120 : vector<1x1x8x128xbf16> to vector<8x128xbf16>
    %122 = vector.shape_cast %119 : vector<8x128xbf16> to vector<1x1x8x128xbf16>
    tpu.vector_store %arg5[%c0_59, %c2, %c0_60, %c0_61], %122 {strides = array<i32>} : memref<1x4x8x128xbf16, #tpu.memory_space<vmem>>, vector<1x1x8x128xbf16>,
    %123 = vector.broadcast %1 : vector<1x128xf32> to vector<8x128xf32>
    %124 = arith.addf %85, %123 : vector<8x128xf32>
    %cst_62 = arith.constant dense<0.000000e+00> : vector<128xf32>
    %125 = vector.multi_reduction <add>, %124, %cst_62 [0] : vector<8x128xf32> to vector<128xf32>
    %126 = vector.shape_cast %125 : vector<128xf32> to vector<1x128xf32>
    %127 = arith.mulf %124, %124 : vector<8x128xf32>
    %cst_63 = arith.constant dense<0.000000e+00> : vector<128xf32>
    %128 = vector.multi_reduction <add>, %127, %cst_63 [0] : vector<8x128xf32> to vector<128xf32>
    %129 = vector.shape_cast %128 : vector<128xf32> to vector<1x128xf32>
    %130 = arith.addf %117, %126 : vector<1x128xf32>
    %131 = arith.addf %118, %129 : vector<1x128xf32>
    %132 = arith.truncf %124 : vector<8x128xf32> to vector<8x128xbf16>
    %c0_64 = arith.constant 0 : index
    %c3 = arith.constant 3 : index
    %c0_65 = arith.constant 0 : index
    %c0_66 = arith.constant 0 : index
    %133 = vector.load %arg5[%c0_64, %c3, %c0_65, %c0_66] : memref<1x4x8x128xbf16, #tpu.memory_space<vmem>>, vector<1x1x8x128xbf16>
    %134 = vector.shape_cast %133 : vector<1x1x8x128xbf16> to vector<8x128xbf16>
    %135 = vector.shape_cast %132 : vector<8x128xbf16> to vector<1x1x8x128xbf16>
    tpu.vector_store %arg5[%c0_64, %c3, %c0_65, %c0_66], %135 {strides = array<i32>} : memref<1x4x8x128xbf16, #tpu.memory_space<vmem>>, vector<1x1x8x128xbf16>,
    %136 = vector.shape_cast %130 : vector<1x128xf32> to vector<1x1x128xf32>
    %137 = vector.broadcast %136 : vector<1x1x128xf32> to vector<1x8x128xf32>
    %c0_67 = arith.constant 0 : index
    %c0_68 = arith.constant 0 : index
    %c0_69 = arith.constant 0 : index
    %138 = vector.load %arg6[%c0_67, %c0_68, %c0_69] : memref<1x8x128xf32, #tpu.memory_space<vmem>>, vector<1x8x128xf32>
    tpu.vector_store %arg6[%c0_67, %c0_68, %c0_69], %137 {strides = array<i32>} : memref<1x8x128xf32, #tpu.memory_space<vmem>>, vector<1x8x128xf32>,
    %139 = vector.shape_cast %131 : vector<1x128xf32> to vector<1x1x128xf32>
    %140 = vector.broadcast %139 : vector<1x1x128xf32> to vector<1x8x128xf32>
    %c0_70 = arith.constant 0 : index
    %c0_71 = arith.constant 0 : index
    %c0_72 = arith.constant 0 : index
    %141 = vector.load %arg7[%c0_70, %c0_71, %c0_72] : memref<1x8x128xf32, #tpu.memory_space<vmem>>, vector<1x8x128xf32>
    tpu.vector_store %arg7[%c0_70, %c0_71, %c0_72], %140 {strides = array<i32>} : memref<1x8x128xf32, #tpu.memory_space<vmem>>, vector<1x8x128xf32>,
    return
  }
  func.func @transform_0(%arg0: i32, %arg1: i32) -> (i32, i32, i32, i32) {
    %c0_i32 = arith.constant 0 : i32
    %c0_i32_0 = arith.constant 0 : i32
    %c0_i32_1 = arith.constant 0 : i32
    %c0_i32_2 = arith.constant 0 : i32
    return %arg0, %c0_i32, %c0_i32_0, %c0_i32_1 : i32, i32, i32, i32
  }
  func.func @transform_1(%arg0: i32, %arg1: i32) -> (i32, i32, i32, i32) {
    %c0_i32 = arith.constant 0 : i32
    %c0_i32_0 = arith.constant 0 : i32
    %c0_i32_1 = arith.constant 0 : i32
    %c0_i32_2 = arith.constant 0 : i32
    %c0_i32_3 = arith.constant 0 : i32
    return %c0_i32, %c0_i32_0, %c0_i32_1, %c0_i32_2 : i32, i32, i32, i32
  }
  func.func @transform_2(%arg0: i32, %arg1: i32) -> (i32, i32) {
    %c0_i32 = arith.constant 0 : i32
    %c0_i32_0 = arith.constant 0 : i32
    %c0_i32_1 = arith.constant 0 : i32
    return %c0_i32, %c0_i32_0 : i32, i32
  }
  func.func @transform_3(%arg0: i32, %arg1: i32) -> (i32, i32, i32, i32) {
    %c0_i32 = arith.constant 0 : i32
    %c0_i32_0 = arith.constant 0 : i32
    %c0_i32_1 = arith.constant 0 : i32
    return %arg0, %arg1, %c0_i32, %c0_i32_0 : i32, i32, i32, i32
  }
  func.func @transform_4(%arg0: i32, %arg1: i32) -> (i32, i32, i32) {
    %c2_i32 = arith.constant 2 : i32
    %0 = arith.muli %arg0, %c2_i32 : i32
    %1 = arith.addi %0, %arg1 : i32
    %c0_i32 = arith.constant 0 : i32
    %c0_i32_0 = arith.constant 0 : i32
    %c0_i32_1 = arith.constant 0 : i32
    return %1, %c0_i32, %c0_i32_0 : i32, i32, i32
  }
  func.func @transform_5(%arg0: i32, %arg1: i32) -> (i32, i32, i32) {
    %c2_i32 = arith.constant 2 : i32
    %0 = arith.muli %arg0, %c2_i32 : i32
    %1 = arith.addi %0, %arg1 : i32
    %c0_i32 = arith.constant 0 : i32
    %c0_i32_0 = arith.constant 0 : i32
    %c0_i32_1 = arith.constant 0 : i32
    return %1, %c0_i32, %c0_i32_0 : i32, i32, i32
  }
}

module attributes {stable_mosaic.version = 11 : i64} {
  func.func @_final_kernel(%arg0: i32, %arg1: memref<1x16x256xbf16, #tpu.memory_space<vmem>>, %arg2: memref<1x256xf32, #tpu.memory_space<vmem>>, %arg3: memref<1x256xf32, #tpu.memory_space<vmem>>, %arg4: memref<16x256xf32, #tpu.memory_space<vmem>>, %arg5: memref<1x1xf32, #tpu.memory_space<vmem>>, %arg6: memref<1x8x128xf32, #tpu.memory_space<vmem>>) attributes {dimension_semantics = [#tpu.dimension_semantics<parallel>], iteration_bounds = array<i64: 2>, scalar_prefetch = 0 : i64, scratch_operands = 0 : i64, tpu.core_type = #tpu.core_type<tc>, window_params = [{transform_indices = @transform_0, window_bounds = array<i64: 1, 16, 256>}, {pipeline_mode = #tpu.pipeline_mode<synchronous>, transform_indices = @transform_1, window_bounds = array<i64: 1, 256>}, {pipeline_mode = #tpu.pipeline_mode<synchronous>, transform_indices = @transform_2, window_bounds = array<i64: 1, 256>}, {pipeline_mode = #tpu.pipeline_mode<synchronous>, transform_indices = @transform_3, window_bounds = array<i64: 16, 256>}, {pipeline_mode = #tpu.pipeline_mode<synchronous>, transform_indices = @transform_4, window_bounds = array<i64: 1, 1>}, {transform_indices = @transform_5, window_bounds = array<i64: 1, 8, 128>}]} {
    %c0 = arith.constant 0 : index
    %c0_0 = arith.constant 0 : index
    %c0_1 = arith.constant 0 : index
    %0 = vector.load %arg1[%c0, %c0_0, %c0_1] : memref<1x16x256xbf16, #tpu.memory_space<vmem>>, vector<1x16x256xbf16>
    %1 = vector.shape_cast %0 : vector<1x16x256xbf16> to vector<16x256xbf16>
    %2 = arith.extf %1 : vector<16x256xbf16> to vector<16x256xf32>
    %c0_2 = arith.constant 0 : index
    %c0_3 = arith.constant 0 : index
    %3 = vector.load %arg2[%c0_2, %c0_3] : memref<1x256xf32, #tpu.memory_space<vmem>>, vector<1x256xf32>
    %4 = vector.broadcast %3 : vector<1x256xf32> to vector<16x256xf32>
    %5 = arith.mulf %2, %4 : vector<16x256xf32>
    %c0_4 = arith.constant 0 : index
    %c0_5 = arith.constant 0 : index
    %6 = vector.load %arg3[%c0_4, %c0_5] : memref<1x256xf32, #tpu.memory_space<vmem>>, vector<1x256xf32>
    %7 = vector.broadcast %6 : vector<1x256xf32> to vector<16x256xf32>
    %8 = arith.addf %5, %7 : vector<16x256xf32>
    %cst = arith.constant 2.000000e-01 : f32
    %9 = vector.broadcast %cst : f32 to vector<16x256xf32>
    %10 = arith.mulf %9, %8 : vector<16x256xf32>
    %11 = arith.maximumf %8, %10 : vector<16x256xf32>
    %c0_6 = arith.constant 0 : index
    %c0_7 = arith.constant 0 : index
    %12 = vector.load %arg4[%c0_6, %c0_7] : memref<16x256xf32, #tpu.memory_space<vmem>>, vector<16x256xf32>
    %13 = arith.mulf %11, %12 : vector<16x256xf32>
    %cst_8 = arith.constant dense<0.000000e+00> : vector<256xf32>
    %14 = vector.multi_reduction <add>, %13, %cst_8 [0] : vector<16x256xf32> to vector<256xf32>
    %15 = vector.shape_cast %14 : vector<256xf32> to vector<1x256xf32>
    %cst_9 = arith.constant dense<0.000000e+00> : vector<1xf32>
    %16 = vector.multi_reduction <add>, %15, %cst_9 [1] : vector<1x256xf32> to vector<1xf32>
    %17 = vector.shape_cast %16 : vector<1xf32> to vector<1x1xf32>
    %c0_10 = arith.constant 0 : index
    %c0_11 = arith.constant 0 : index
    %18 = vector.load %arg5[%c0_10, %c0_11] : memref<1x1xf32, #tpu.memory_space<vmem>>, vector<1x1xf32>
    %19 = arith.addf %17, %18 : vector<1x1xf32>
    %cst_12 = arith.constant 0.000000e+00 : f32
    %20 = vector.broadcast %cst_12 : f32 to vector<1x1xf32>
    %21 = arith.subf %20, %19 : vector<1x1xf32>
    %22 = math.exp %21 : vector<1x1xf32>
    %cst_13 = arith.constant 1.000000e+00 : f32
    %23 = vector.broadcast %cst_13 : f32 to vector<1x1xf32>
    %24 = arith.addf %23, %22 : vector<1x1xf32>
    %cst_14 = arith.constant 1.000000e+00 : f32
    %25 = vector.broadcast %cst_14 : f32 to vector<1x1xf32>
    %26 = arith.divf %25, %24 : vector<1x1xf32>
    %27 = vector.shape_cast %26 : vector<1x1xf32> to vector<1x1x1xf32>
    %28 = vector.broadcast %27 : vector<1x1x1xf32> to vector<1x8x128xf32>
    %c0_15 = arith.constant 0 : index
    %c0_16 = arith.constant 0 : index
    %c0_17 = arith.constant 0 : index
    %29 = vector.load %arg6[%c0_15, %c0_16, %c0_17] : memref<1x8x128xf32, #tpu.memory_space<vmem>>, vector<1x8x128xf32>
    tpu.vector_store %arg6[%c0_15, %c0_16, %c0_17], %28 {strides = array<i32>} : memref<1x8x128xf32, #tpu.memory_space<vmem>>, vector<1x8x128xf32>,
    return
  }
  func.func @transform_0(%arg0: i32) -> (i32, i32, i32) {
    %c0_i32 = arith.constant 0 : i32
    %c0_i32_0 = arith.constant 0 : i32
    %c0_i32_1 = arith.constant 0 : i32
    return %arg0, %c0_i32, %c0_i32_0 : i32, i32, i32
  }
  func.func @transform_1(%arg0: i32) -> (i32, i32) {
    %c0_i32 = arith.constant 0 : i32
    %c0_i32_0 = arith.constant 0 : i32
    %c0_i32_1 = arith.constant 0 : i32
    return %c0_i32, %c0_i32_0 : i32, i32
  }
  func.func @transform_2(%arg0: i32) -> (i32, i32) {
    %c0_i32 = arith.constant 0 : i32
    %c0_i32_0 = arith.constant 0 : i32
    %c0_i32_1 = arith.constant 0 : i32
    return %c0_i32, %c0_i32_0 : i32, i32
  }
  func.func @transform_3(%arg0: i32) -> (i32, i32) {
    %c0_i32 = arith.constant 0 : i32
    %c0_i32_0 = arith.constant 0 : i32
    %c0_i32_1 = arith.constant 0 : i32
    return %c0_i32, %c0_i32_0 : i32, i32
  }
  func.func @transform_4(%arg0: i32) -> (i32, i32) {
    %c0_i32 = arith.constant 0 : i32
    %c0_i32_0 = arith.constant 0 : i32
    %c0_i32_1 = arith.constant 0 : i32
    return %c0_i32, %c0_i32_0 : i32, i32
  }
  func.func @transform_5(%arg0: i32) -> (i32, i32, i32) {
    %c0_i32 = arith.constant 0 : i32
    %c0_i32_0 = arith.constant 0 : i32
    %c0_i32_1 = arith.constant 0 : i32
    return %arg0, %c0_i32, %c0_i32_0 : i32, i32, i32
  }
}

module attributes {stable_mosaic.version = 11 : i64} {
  func.func @kernel(%arg0: i32, %arg1: i32, %arg2: memref<1x5x5x512xbf16, #tpu.memory_space<vmem>>, %arg3: memref<2x2x512x256xbf16, #tpu.memory_space<vmem>>, %arg4: memref<1x256xf32, #tpu.memory_space<vmem>>, %arg5: memref<1x2x4x256xbf16, #tpu.memory_space<vmem>>, %arg6: memref<1x8x256xf32, #tpu.memory_space<vmem>>, %arg7: memref<1x8x256xf32, #tpu.memory_space<vmem>>) attributes {dimension_semantics = [#tpu.dimension_semantics<parallel>, #tpu.dimension_semantics<parallel>], iteration_bounds = array<i64: 2, 2>, scalar_prefetch = 0 : i64, scratch_operands = 0 : i64, tpu.core_type = #tpu.core_type<tc>, window_params = [{transform_indices = @transform_0, window_bounds = array<i64: 1, 5, 5, 512>}, {pipeline_mode = #tpu.pipeline_mode<synchronous>, transform_indices = @transform_1, window_bounds = array<i64: 2, 2, 512, 256>}, {pipeline_mode = #tpu.pipeline_mode<synchronous>, transform_indices = @transform_2, window_bounds = array<i64: 1, 256>}, {transform_indices = @transform_3, window_bounds = array<i64: 1, 2, 4, 256>}, {transform_indices = @transform_4, window_bounds = array<i64: 1, 8, 256>}, {transform_indices = @transform_5, window_bounds = array<i64: 1, 8, 256>}]} {
    %c2_i32 = arith.constant 2 : i32
    %0 = arith.muli %arg1, %c2_i32 : i32
    %c0 = arith.constant 0 : index
    %c0_0 = arith.constant 0 : index
    %1 = vector.load %arg4[%c0, %c0_0] : memref<1x256xf32, #tpu.memory_space<vmem>>, vector<1x256xf32>
    %c0_i32 = arith.constant 0 : i32
    %2 = arith.addi %0, %c0_i32 : i32
    %c0_1 = arith.constant 0 : index
    %3 = arith.index_cast %2 : i32 to index
    %c0_2 = arith.constant 0 : index
    %c0_3 = arith.constant 0 : index
    %4 = vector.load %arg2[%c0_1, %3, %c0_2, %c0_3] : memref<1x5x5x512xbf16, #tpu.memory_space<vmem>>, vector<1x2x4x512xbf16>
    %5 = vector.shape_cast %4 : vector<1x2x4x512xbf16> to vector<2x4x512xbf16>
    %c0_4 = arith.constant 0 : index
    %c0_5 = arith.constant 0 : index
    %c0_6 = arith.constant 0 : index
    %c0_7 = arith.constant 0 : index
    %6 = vector.load %arg3[%c0_4, %c0_5, %c0_6, %c0_7] : memref<2x2x512x256xbf16, #tpu.memory_space<vmem>>, vector<1x1x512x256xbf16>
    %7 = vector.shape_cast %6 : vector<1x1x512x256xbf16> to vector<512x256xbf16>
    %8 = vector.extract_strided_slice %5 {offsets = [0, 0, 0], sizes = [1, 4, 512], strides = [1, 1, 1]} : vector<2x4x512xbf16> to vector<1x4x512xbf16>
    %9 = vector.shape_cast %8 : vector<1x4x512xbf16> to vector<4x512xbf16>
    %cst = arith.constant dense<0.000000e+00> : vector<4x256xf32>
    %10 = tpu.matmul %9, %7, %cst {dimension_numbers = #tpu.dot_dimension_numbers<[1], [0], [0], [1], [0, 0, 1, 1], [], []>} : vector<4x512xbf16>, vector<512x256xbf16>, vector<4x256xf32> -> vector<4x256xf32>
    %11 = vector.extract_strided_slice %5 {offsets = [1, 0, 0], sizes = [1, 4, 512], strides = [1, 1, 1]} : vector<2x4x512xbf16> to vector<1x4x512xbf16>
    %12 = vector.shape_cast %11 : vector<1x4x512xbf16> to vector<4x512xbf16>
    %cst_8 = arith.constant dense<0.000000e+00> : vector<4x256xf32>
    %13 = tpu.matmul %12, %7, %cst_8 {dimension_numbers = #tpu.dot_dimension_numbers<[1], [0], [0], [1], [0, 0, 1, 1], [], []>} : vector<4x512xbf16>, vector<512x256xbf16>, vector<4x256xf32> -> vector<4x256xf32>
    %c0_i32_9 = arith.constant 0 : i32
    %14 = arith.addi %0, %c0_i32_9 : i32
    %c0_10 = arith.constant 0 : index
    %15 = arith.index_cast %14 : i32 to index
    %c1 = arith.constant 1 : index
    %c0_11 = arith.constant 0 : index
    %16 = vector.load %arg2[%c0_10, %15, %c1, %c0_11] : memref<1x5x5x512xbf16, #tpu.memory_space<vmem>>, vector<1x2x4x512xbf16>
    %17 = vector.shape_cast %16 : vector<1x2x4x512xbf16> to vector<2x4x512xbf16>
    %c0_12 = arith.constant 0 : index
    %c1_13 = arith.constant 1 : index
    %c0_14 = arith.constant 0 : index
    %c0_15 = arith.constant 0 : index
    %18 = vector.load %arg3[%c0_12, %c1_13, %c0_14, %c0_15] : memref<2x2x512x256xbf16, #tpu.memory_space<vmem>>, vector<1x1x512x256xbf16>
    %19 = vector.shape_cast %18 : vector<1x1x512x256xbf16> to vector<512x256xbf16>
    %20 = vector.extract_strided_slice %17 {offsets = [0, 0, 0], sizes = [1, 4, 512], strides = [1, 1, 1]} : vector<2x4x512xbf16> to vector<1x4x512xbf16>
    %21 = vector.shape_cast %20 : vector<1x4x512xbf16> to vector<4x512xbf16>
    %cst_16 = arith.constant dense<0.000000e+00> : vector<4x256xf32>
    %22 = tpu.matmul %21, %19, %cst_16 {dimension_numbers = #tpu.dot_dimension_numbers<[1], [0], [0], [1], [0, 0, 1, 1], [], []>} : vector<4x512xbf16>, vector<512x256xbf16>, vector<4x256xf32> -> vector<4x256xf32>
    %23 = arith.addf %10, %22 : vector<4x256xf32>
    %24 = vector.extract_strided_slice %17 {offsets = [1, 0, 0], sizes = [1, 4, 512], strides = [1, 1, 1]} : vector<2x4x512xbf16> to vector<1x4x512xbf16>
    %25 = vector.shape_cast %24 : vector<1x4x512xbf16> to vector<4x512xbf16>
    %cst_17 = arith.constant dense<0.000000e+00> : vector<4x256xf32>
    %26 = tpu.matmul %25, %19, %cst_17 {dimension_numbers = #tpu.dot_dimension_numbers<[1], [0], [0], [1], [0, 0, 1, 1], [], []>} : vector<4x512xbf16>, vector<512x256xbf16>, vector<4x256xf32> -> vector<4x256xf32>
    %27 = arith.addf %13, %26 : vector<4x256xf32>
    %c1_i32 = arith.constant 1 : i32
    %28 = arith.addi %0, %c1_i32 : i32
    %c0_18 = arith.constant 0 : index
    %29 = arith.index_cast %28 : i32 to index
    %c0_19 = arith.constant 0 : index
    %c0_20 = arith.constant 0 : index
    %30 = vector.load %arg2[%c0_18, %29, %c0_19, %c0_20] : memref<1x5x5x512xbf16, #tpu.memory_space<vmem>>, vector<1x2x4x512xbf16>
    %31 = vector.shape_cast %30 : vector<1x2x4x512xbf16> to vector<2x4x512xbf16>
    %c1_21 = arith.constant 1 : index
    %c0_22 = arith.constant 0 : index
    %c0_23 = arith.constant 0 : index
    %c0_24 = arith.constant 0 : index
    %32 = vector.load %arg3[%c1_21, %c0_22, %c0_23, %c0_24] : memref<2x2x512x256xbf16, #tpu.memory_space<vmem>>, vector<1x1x512x256xbf16>
    %33 = vector.shape_cast %32 : vector<1x1x512x256xbf16> to vector<512x256xbf16>
    %34 = vector.extract_strided_slice %31 {offsets = [0, 0, 0], sizes = [1, 4, 512], strides = [1, 1, 1]} : vector<2x4x512xbf16> to vector<1x4x512xbf16>
    %35 = vector.shape_cast %34 : vector<1x4x512xbf16> to vector<4x512xbf16>
    %cst_25 = arith.constant dense<0.000000e+00> : vector<4x256xf32>
    %36 = tpu.matmul %35, %33, %cst_25 {dimension_numbers = #tpu.dot_dimension_numbers<[1], [0], [0], [1], [0, 0, 1, 1], [], []>} : vector<4x512xbf16>, vector<512x256xbf16>, vector<4x256xf32> -> vector<4x256xf32>
    %37 = arith.addf %23, %36 : vector<4x256xf32>
    %38 = vector.extract_strided_slice %31 {offsets = [1, 0, 0], sizes = [1, 4, 512], strides = [1, 1, 1]} : vector<2x4x512xbf16> to vector<1x4x512xbf16>
    %39 = vector.shape_cast %38 : vector<1x4x512xbf16> to vector<4x512xbf16>
    %cst_26 = arith.constant dense<0.000000e+00> : vector<4x256xf32>
    %40 = tpu.matmul %39, %33, %cst_26 {dimension_numbers = #tpu.dot_dimension_numbers<[1], [0], [0], [1], [0, 0, 1, 1], [], []>} : vector<4x512xbf16>, vector<512x256xbf16>, vector<4x256xf32> -> vector<4x256xf32>
    %41 = arith.addf %27, %40 : vector<4x256xf32>
    %c1_i32_27 = arith.constant 1 : i32
    %42 = arith.addi %0, %c1_i32_27 : i32
    %c0_28 = arith.constant 0 : index
    %43 = arith.index_cast %42 : i32 to index
    %c1_29 = arith.constant 1 : index
    %c0_30 = arith.constant 0 : index
    %44 = vector.load %arg2[%c0_28, %43, %c1_29, %c0_30] : memref<1x5x5x512xbf16, #tpu.memory_space<vmem>>, vector<1x2x4x512xbf16>
    %45 = vector.shape_cast %44 : vector<1x2x4x512xbf16> to vector<2x4x512xbf16>
    %c1_31 = arith.constant 1 : index
    %c1_32 = arith.constant 1 : index
    %c0_33 = arith.constant 0 : index
    %c0_34 = arith.constant 0 : index
    %46 = vector.load %arg3[%c1_31, %c1_32, %c0_33, %c0_34] : memref<2x2x512x256xbf16, #tpu.memory_space<vmem>>, vector<1x1x512x256xbf16>
    %47 = vector.shape_cast %46 : vector<1x1x512x256xbf16> to vector<512x256xbf16>
    %48 = vector.extract_strided_slice %45 {offsets = [0, 0, 0], sizes = [1, 4, 512], strides = [1, 1, 1]} : vector<2x4x512xbf16> to vector<1x4x512xbf16>
    %49 = vector.shape_cast %48 : vector<1x4x512xbf16> to vector<4x512xbf16>
    %cst_35 = arith.constant dense<0.000000e+00> : vector<4x256xf32>
    %50 = tpu.matmul %49, %47, %cst_35 {dimension_numbers = #tpu.dot_dimension_numbers<[1], [0], [0], [1], [0, 0, 1, 1], [], []>} : vector<4x512xbf16>, vector<512x256xbf16>, vector<4x256xf32> -> vector<4x256xf32>
    %51 = arith.addf %37, %50 : vector<4x256xf32>
    %52 = vector.extract_strided_slice %45 {offsets = [1, 0, 0], sizes = [1, 4, 512], strides = [1, 1, 1]} : vector<2x4x512xbf16> to vector<1x4x512xbf16>
    %53 = vector.shape_cast %52 : vector<1x4x512xbf16> to vector<4x512xbf16>
    %cst_36 = arith.constant dense<0.000000e+00> : vector<4x256xf32>
    %54 = tpu.matmul %53, %47, %cst_36 {dimension_numbers = #tpu.dot_dimension_numbers<[1], [0], [0], [1], [0, 0, 1, 1], [], []>} : vector<4x512xbf16>, vector<512x256xbf16>, vector<4x256xf32> -> vector<4x256xf32>
    %55 = arith.addf %41, %54 : vector<4x256xf32>
    %56 = vector.broadcast %1 : vector<1x256xf32> to vector<4x256xf32>
    %57 = arith.addf %51, %56 : vector<4x256xf32>
    %cst_37 = arith.constant dense<0.000000e+00> : vector<256xf32>
    %58 = vector.multi_reduction <add>, %57, %cst_37 [0] : vector<4x256xf32> to vector<256xf32>
    %59 = vector.shape_cast %58 : vector<256xf32> to vector<1x256xf32>
    %60 = arith.mulf %57, %57 : vector<4x256xf32>
    %cst_38 = arith.constant dense<0.000000e+00> : vector<256xf32>
    %61 = vector.multi_reduction <add>, %60, %cst_38 [0] : vector<4x256xf32> to vector<256xf32>
    %62 = vector.shape_cast %61 : vector<256xf32> to vector<1x256xf32>
    %63 = arith.truncf %57 : vector<4x256xf32> to vector<4x256xbf16>
    %c0_39 = arith.constant 0 : index
    %c0_40 = arith.constant 0 : index
    %c0_41 = arith.constant 0 : index
    %c0_42 = arith.constant 0 : index
    %64 = vector.load %arg5[%c0_39, %c0_40, %c0_41, %c0_42] : memref<1x2x4x256xbf16, #tpu.memory_space<vmem>>, vector<1x1x4x256xbf16>
    %65 = vector.shape_cast %64 : vector<1x1x4x256xbf16> to vector<4x256xbf16>
    %66 = vector.shape_cast %63 : vector<4x256xbf16> to vector<1x1x4x256xbf16>
    tpu.vector_store %arg5[%c0_39, %c0_40, %c0_41, %c0_42], %66 {strides = array<i32>} : memref<1x2x4x256xbf16, #tpu.memory_space<vmem>>, vector<1x1x4x256xbf16>,
    %67 = vector.broadcast %1 : vector<1x256xf32> to vector<4x256xf32>
    %68 = arith.addf %55, %67 : vector<4x256xf32>
    %cst_43 = arith.constant dense<0.000000e+00> : vector<256xf32>
    %69 = vector.multi_reduction <add>, %68, %cst_43 [0] : vector<4x256xf32> to vector<256xf32>
    %70 = vector.shape_cast %69 : vector<256xf32> to vector<1x256xf32>
    %71 = arith.mulf %68, %68 : vector<4x256xf32>
    %cst_44 = arith.constant dense<0.000000e+00> : vector<256xf32>
    %72 = vector.multi_reduction <add>, %71, %cst_44 [0] : vector<4x256xf32> to vector<256xf32>
    %73 = vector.shape_cast %72 : vector<256xf32> to vector<1x256xf32>
    %74 = arith.addf %59, %70 : vector<1x256xf32>
    %75 = arith.addf %62, %73 : vector<1x256xf32>
    %76 = arith.truncf %68 : vector<4x256xf32> to vector<4x256xbf16>
    %c0_45 = arith.constant 0 : index
    %c1_46 = arith.constant 1 : index
    %c0_47 = arith.constant 0 : index
    %c0_48 = arith.constant 0 : index
    %77 = vector.load %arg5[%c0_45, %c1_46, %c0_47, %c0_48] : memref<1x2x4x256xbf16, #tpu.memory_space<vmem>>, vector<1x1x4x256xbf16>
    %78 = vector.shape_cast %77 : vector<1x1x4x256xbf16> to vector<4x256xbf16>
    %79 = vector.shape_cast %76 : vector<4x256xbf16> to vector<1x1x4x256xbf16>
    tpu.vector_store %arg5[%c0_45, %c1_46, %c0_47, %c0_48], %79 {strides = array<i32>} : memref<1x2x4x256xbf16, #tpu.memory_space<vmem>>, vector<1x1x4x256xbf16>,
    %80 = vector.shape_cast %74 : vector<1x256xf32> to vector<1x1x256xf32>
    %81 = vector.broadcast %80 : vector<1x1x256xf32> to vector<1x8x256xf32>
    %c0_49 = arith.constant 0 : index
    %c0_50 = arith.constant 0 : index
    %c0_51 = arith.constant 0 : index
    %82 = vector.load %arg6[%c0_49, %c0_50, %c0_51] : memref<1x8x256xf32, #tpu.memory_space<vmem>>, vector<1x8x256xf32>
    tpu.vector_store %arg6[%c0_49, %c0_50, %c0_51], %81 {strides = array<i32>} : memref<1x8x256xf32, #tpu.memory_space<vmem>>, vector<1x8x256xf32>,
    %83 = vector.shape_cast %75 : vector<1x256xf32> to vector<1x1x256xf32>
    %84 = vector.broadcast %83 : vector<1x1x256xf32> to vector<1x8x256xf32>
    %c0_52 = arith.constant 0 : index
    %c0_53 = arith.constant 0 : index
    %c0_54 = arith.constant 0 : index
    %85 = vector.load %arg7[%c0_52, %c0_53, %c0_54] : memref<1x8x256xf32, #tpu.memory_space<vmem>>, vector<1x8x256xf32>
    tpu.vector_store %arg7[%c0_52, %c0_53, %c0_54], %84 {strides = array<i32>} : memref<1x8x256xf32, #tpu.memory_space<vmem>>, vector<1x8x256xf32>,
    return
  }
  func.func @transform_0(%arg0: i32, %arg1: i32) -> (i32, i32, i32, i32) {
    %c0_i32 = arith.constant 0 : i32
    %c0_i32_0 = arith.constant 0 : i32
    %c0_i32_1 = arith.constant 0 : i32
    %c0_i32_2 = arith.constant 0 : i32
    return %arg0, %c0_i32, %c0_i32_0, %c0_i32_1 : i32, i32, i32, i32
  }
  func.func @transform_1(%arg0: i32, %arg1: i32) -> (i32, i32, i32, i32) {
    %c0_i32 = arith.constant 0 : i32
    %c0_i32_0 = arith.constant 0 : i32
    %c0_i32_1 = arith.constant 0 : i32
    %c0_i32_2 = arith.constant 0 : i32
    %c0_i32_3 = arith.constant 0 : i32
    return %c0_i32, %c0_i32_0, %c0_i32_1, %c0_i32_2 : i32, i32, i32, i32
  }
  func.func @transform_2(%arg0: i32, %arg1: i32) -> (i32, i32) {
    %c0_i32 = arith.constant 0 : i32
    %c0_i32_0 = arith.constant 0 : i32
    %c0_i32_1 = arith.constant 0 : i32
    return %c0_i32, %c0_i32_0 : i32, i32
  }
  func.func @transform_3(%arg0: i32, %arg1: i32) -> (i32, i32, i32, i32) {
    %c0_i32 = arith.constant 0 : i32
    %c0_i32_0 = arith.constant 0 : i32
    %c0_i32_1 = arith.constant 0 : i32
    return %arg0, %arg1, %c0_i32, %c0_i32_0 : i32, i32, i32, i32
  }
  func.func @transform_4(%arg0: i32, %arg1: i32) -> (i32, i32, i32) {
    %c2_i32 = arith.constant 2 : i32
    %0 = arith.muli %arg0, %c2_i32 : i32
    %1 = arith.addi %0, %arg1 : i32
    %c0_i32 = arith.constant 0 : i32
    %c0_i32_0 = arith.constant 0 : i32
    %c0_i32_1 = arith.constant 0 : i32
    return %1, %c0_i32, %c0_i32_0 : i32, i32, i32
  }
  func.func @transform_5(%arg0: i32, %arg1: i32) -> (i32, i32, i32) {
    %c2_i32 = arith.constant 2 : i32
    %0 = arith.muli %arg0, %c2_i32 : i32
    %1 = arith.addi %0, %arg1 : i32
    %c0_i32 = arith.constant 0 : i32
    %c0_i32_0 = arith.constant 0 : i32
    %c0_i32_1 = arith.constant 0 : i32
    return %1, %c0_i32, %c0_i32_0 : i32, i32, i32
  }
}

</mosaic_0001>

<llo_original>
// kernel: discriminator_forward.4
$region0: #{discriminator_forward.4}
  #allocation0 [shape = 'u32[]', space=smem, size = 0x4, offset = 0x4, fixed_abs, tag = 'smem constant byte address 0x4 - core index']
  #allocation1 [shape = 'u32[144,128]{1,0:T(1,128)}', space=vmem, size = 0x12000, scoped, tag = 'internal scratch']
  %s0 = inlined_call_operand.vmem [shape: bf16[2,17,17,256], index: 0, kind: input, shape index: {}]
  %s1 = inlined_call_operand.vmem [shape: bf16[2,2,256,128], index: 1, kind: input, shape index: {}]
  %s2 = inlined_call_operand.vmem [shape: f32[1,128], index: 2, kind: input, shape index: {}]
  %s3 = inlined_call_operand.vmem [shape: bf16[2,16,16,128], index: 3, kind: output, shape index: {}]
  %s4 = sld [smem:[#allocation0]]
  $region45: #{discriminator_forward.4} parent=0
    _
  %s6 = ssub.s32 1, %s4
  %s7 = scalar_select 0, %s6, %s4
  loop: start=0, step=1, limit=6
  $region2: #{discriminator_forward.4} parent=0 // loop_pre_header
    _
  $region3: #{discriminator_forward.4} parent=0 // loop_header
    %s9 = sphi 0, %s13
    %p10 = scmp.ge.s32.totalorder %s9, 6
    %s16 = sphi 0, %s28
    %s17 = sphi 0, %s24
    %s18 = sphi 0, %s16
    %s19 = sphi 0, %s17
    %s20 = sphi 0, %s18
    %s21 = sphi 0, %s19
    %s31 = sphi 0, %s33
    %s34 = sphi 0, %s31
    %s35 = sphi 0, %s34
    %s51 = sphi 0, %s35
    %s55 = sphi 0, %s55
    %s57 = sphi 0, %s55
    %s58 = sphi 0, %s57
    %s72 = sphi 0, %s58
    %s76 = sphi 0, %s76
    %s78 = sphi 0, %s76
    %s79 = sphi 0, %s78
    %s93 = sphi 0, %s79
    %s101 = sphi 0, %s103
    %s104 = sphi 0, %s101
    %s105 = sphi 0, %s104
    %s121 = sphi 0, %s105
  $region4: #{discriminator_forward.4} parent=0 // loop_header_branch
    %12 = sbr.rel (%p10) target = $region8
  $region5: #{discriminator_forward.4} parent=0 // loop_body
    %s14 = ssub.s32 %s9, 1
    %s15 = ssub.s32 %s9, 2
    %s22 = sadd.s32 1, %s17
    %p23 = scmp.ge.s32.totalorder %s22, 2
    %s24 = scalar_select %p23, 0, %s22
    %s25 = sadd.s32 1, %s16
    %s26 = scalar_select %p23, %s25, %s16
    %p27 = scmp.ge.s32.totalorder %s26, 2
    %s28 = scalar_select %p27, 0, %s26
    %s29 = ssub.s32 %s16, %s28
    %p30 = scmp.eq.s32.totalorder %s29, 0
    %s32 = sadd.s32 %s31, 1
    %s33 = scalar_select %p30, %s31, %s32
    %p36 = pneg %p30
    %p37 = scmp.eq.s32.totalorder %s9, 3
    %p38 = por %p36, %p37
    %p39 = scmp.ne.s32.totalorder %s31, %s34
    %p40 = scmp.eq.s32.totalorder %s9, 0
    %p41 = por %p39, %p40
    %p42 = scmp.ne.s32.totalorder %s31, %s34
    %p43 = scmp.eq.s32.totalorder %s14, 3
    %p44 = por %p42, %p43
    %p45 = scmp.ne.s32.totalorder %s34, %s35
    %p46 = scmp.eq.s32.totalorder %s14, 0
    %p47 = por %p45, %p46
    %p48 = scmp.ne.s32.totalorder %s34, %s35
    %p49 = scmp.eq.s32.totalorder %s15, 3
    %p50 = por %p48, %p49
    %p52 = scmp.ne.s32.totalorder %s35, %s51
    %p53 = scmp.eq.s32.totalorder %s15, 0
    %p54 = por %p52, %p53
    %s56 = sadd.s32 %s55, 1
    %p59 = scmp.eq.s32.totalorder %s9, 3
    %p60 = scmp.ne.s32.totalorder %s55, %s57
    %p61 = scmp.eq.s32.totalorder %s9, 0
    %p62 = por %p60, %p61
    %p63 = scmp.ne.s32.totalorder %s55, %s57
    %p64 = scmp.eq.s32.totalorder %s14, 3
    %p65 = por %p63, %p64
    %p66 = scmp.ne.s32.totalorder %s57, %s58
    %p67 = scmp.eq.s32.totalorder %s14, 0
    %p68 = por %p66, %p67
    %p69 = scmp.ne.s32.totalorder %s57, %s58
    %p70 = scmp.eq.s32.totalorder %s15, 3
    %p71 = por %p69, %p70
    %p73 = scmp.ne.s32.totalorder %s58, %s72
    %p74 = scmp.eq.s32.totalorder %s15, 0
    %p75 = por %p73, %p74
    %s77 = sadd.s32 %s76, 1
    %p80 = scmp.eq.s32.totalorder %s9, 3
    %p81 = scmp.ne.s32.totalorder %s76, %s78
    %p82 = scmp.eq.s32.totalorder %s9, 0
    %p83 = por %p81, %p82
    %p84 = scmp.ne.s32.totalorder %s76, %s78
    %p85 = scmp.eq.s32.totalorder %s14, 3
    %p86 = por %p84, %p85
    %p87 = scmp.ne.s32.totalorder %s78, %s79
    %p88 = scmp.eq.s32.totalorder %s14, 0
    %p89 = por %p87, %p88
    %p90 = scmp.ne.s32.totalorder %s78, %s79
    %p91 = scmp.eq.s32.totalorder %s15, 3
    %p92 = por %p90, %p91
    %p94 = scmp.ne.s32.totalorder %s79, %s93
    %p95 = scmp.eq.s32.totalorder %s15, 0
    %p96 = por %p94, %p95
    %s97 = ssub.s32 %s16, %s28
    %s98 = ssub.s32 %s17, %s24
    %s99 = sor.u32 %s97, %s98
    %p100 = scmp.eq.s32.totalorder %s99, 0
    %s102 = sadd.s32 %s101, 1
    %s103 = scalar_select %p100, %s101, %s102
    %p106 = pneg %p100
    %p107 = scmp.eq.s32.totalorder %s9, 3
    %p108 = por %p106, %p107
    %p109 = scmp.ne.s32.totalorder %s101, %s104
    %p110 = scmp.eq.s32.totalorder %s9, 0
    %p111 = por %p109, %p110
    %p112 = scmp.ne.s32.totalorder %s101, %s104
    %p113 = scmp.eq.s32.totalorder %s14, 3
    %p114 = por %p112, %p113
    %p115 = scmp.ne.s32.totalorder %s104, %s105
    %p116 = scmp.eq.s32.totalorder %s14, 0
    %p117 = por %p115, %p116
    %p118 = scmp.ne.s32.totalorder %s104, %s105
    %p119 = scmp.eq.s32.totalorder %s15, 3
    %p120 = por %p118, %p119
    %p122 = scmp.ne.s32.totalorder %s105, %s121
    %p123 = scmp.eq.s32.totalorder %s15, 0
    %p124 = por %p122, %p123
    %p125 = scmp.le.s32.totalorder 1, %s9
    %p126 = scmp.lt.s32.totalorder %s9, 5
    %p127 = pnand %p125, %p126
    %p128 = pneg %p127
    // Predicated region
    $region9: #{discriminator_forward.4} parent=5 // pred_check
      _
    $region10: #{discriminator_forward.4} parent=5 // pred_check_branch
      %130 = sbr.rel (%p127) target = $region12
    $region11: #{discriminator_forward.4} parent=5 // pred_region
      %s131 = ssub.s32 %s9, 1
      // Predicated region
      $region13: #{discriminator_forward.4} parent=11 // pred_check
        %p132 = pneg %p68
      $region14: #{discriminator_forward.4} parent=11 // pred_check_branch
        %134 = sbr.rel (%p132) target = $region16
      $region15: #{discriminator_forward.4} parent=11 // pred_region
        _
      $region16: #{discriminator_forward.4} parent=11 // pred_fallthru
        _
      // Predicated region
      $region17: #{discriminator_forward.4} parent=11 // pred_check
        %p135 = pneg %p89
      $region18: #{discriminator_forward.4} parent=11 // pred_check_branch
        %137 = sbr.rel (%p135) target = $region20
      $region19: #{discriminator_forward.4} parent=11 // pred_region
        _
      $region20: #{discriminator_forward.4} parent=11 // pred_fallthru
        _
    $region12: #{discriminator_forward.4} parent=5 // pred_fallthru
      _
    %p138 = scmp.lt.s32.totalorder %s9, 4
    // Predicated region
    $region21: #{discriminator_forward.4} parent=5 // pred_check
      %p139 = pneg %p138
    $region22: #{discriminator_forward.4} parent=5 // pred_check_branch
      %141 = sbr.rel (%p139) target = $region24
    $region23: #{discriminator_forward.4} parent=5 // pred_region
      // Predicated region
      $region25: #{discriminator_forward.4} parent=23 // pred_check
        %p142 = pneg %p41
      $region26: #{discriminator_forward.4} parent=23 // pred_check_branch
        %144 = sbr.rel (%p142) target = $region28
      $region27: #{discriminator_forward.4} parent=23 // pred_region
        %p145 = scmp.lt.s32.totalorder %s16, 1
        %s146 = scalar_select %p145, %s16, 1
        %s147 = smul.addr %s146, 102
        %s148 = smul.addr %s147, 4
        %s149 = scalar_lea.vmem %s0, %s148
      $region28: #{discriminator_forward.4} parent=23 // pred_fallthru
        _
    $region24: #{discriminator_forward.4} parent=5 // pred_fallthru
      _
    %p150 = scmp.le.s32.totalorder 1, %s9
    %p151 = scmp.lt.s32.totalorder %s9, 5
    %p152 = pnand %p150, %p151
    %p153 = pneg %p152
    // Predicated region
    $region29: #{discriminator_forward.4} parent=5 // pred_check
      _
    $region30: #{discriminator_forward.4} parent=5 // pred_check_branch
      %155 = sbr.rel (%p152) target = $region32
    $region31: #{discriminator_forward.4} parent=5 // pred_region
      %s156 = ssub.s32 %s9, 1
      %p157 = scmp.lt.s32.totalorder %s18, 1
      %s158 = scalar_select %p157, %s18, 1
      %s159 = smul.addr %s158, 102
      %s160 = smul.addr %s159, 4
      %s161 = scalar_lea.vmem %s0, %s160
      %p162 = pneg %p47
      %p163 = pneg %p44
      %p164 = pneg %p68
      %p165 = pneg %p65
      %p166 = pneg %p89
      %p167 = pneg %p86
      %p168 = pneg %p117
      %p169 = pneg %p114
      %s170 = smul.u32 8, %s19
      %p171 = scmp.lt.s32.totalorder %s18, 1
      %s172 = scalar_select %p171, %s18, 1
      %p173 = scmp.lt.s32.totalorder %s170, 15
      %s174 = scalar_select %p173, %s170, 15
      %s175 = smul.addr %s174, 2
      %s176 = smul.addr %s172, 32
      %s177 = sadd.s32 %s175, %s176
      %s178 = smul.addr %s177, 4
      %s179 = scalar_lea.vmem %s3, %s178
      %p180 = scmp.lt.s32.totalorder %s18, 1
      %s181 = scalar_select %p180, %s18, 1
      %s182 = smul.addr %s181, 102
      %s183 = smul.addr %s182, 4
      %s184 = scalar_lea.vmem %s0, %s183
      %s185 = smul.u32 8, %s19
      %p186 = scmp.lt.s32.totalorder %s18, 1
      %s187 = scalar_select %p186, %s18, 1
      %p188 = scmp.lt.s32.totalorder %s185, 15
      %s189 = scalar_select %p188, %s185, 15
      %s190 = smul.addr %s189, 2
      %s191 = smul.addr %s187, 32
      %s192 = sadd.s32 %s190, %s191
      %s193 = smul.addr %s192, 4
      %s194 = scalar_lea.vmem %s3, %s193
      %s195 = smul.u32 8, %s19
      %s197 = smul.u32 %s19, 8
      %v198 = vld [vmem:[%s2] sm:$0x1]
      %s199 = smul.u32 %s197, 6
      %s200 = smul.addr %s199, 4
      %s201 = scalar_lea.vmem %s184, %s200
      %v202 = vld [vmem:[%s201] sm:$0xff]
      %v203 = vld [vmem:[%s201 + $0x8] sm:$0xff]
      %v204 = vld [vmem:[%s201 + $0x18] sm:$0xff]
      %v205 = vld [vmem:[%s201 + $0x20] sm:$0xff]
      %v206 = vld [vmem:[%s201 + $0x30] sm:$0xff]
      %v207 = vld [vmem:[%s201 + $0x38] sm:$0xff]
      %v208 = vld [vmem:[%s201 + $0x48] sm:$0xff]
      %v209 = vld [vmem:[%s201 + $0x50] sm:$0xff]
      %v210 = vld [vmem:[%s201 + $0x60] sm:$0xff]
      %v211 = vld [vmem:[%s201 + $0x68] sm:$0xff]
      %v212 = vld [vmem:[%s201 + $0x78] sm:$0xff]
      %v213 = vld [vmem:[%s201 + $0x80] sm:$0xff]
      %v214 = vld [vmem:[%s201 + $0x90] sm:$0xff]
      %v215 = vld [vmem:[%s201 + $0x98] sm:$0xff]
      %v216 = vld [vmem:[%s201 + $0xa8] sm:$0xff]
      %v217 = vld [vmem:[%s201 + $0xb0] sm:$0xff]
      %v218 = vld [vmem:[%s1] sm:$0xf]
      %v219 = vld [vmem:[%s1 + $0x4] sm:$0xf]
      %v220 = vld [vmem:[%s1 + $0x8] sm:$0xf]
      %v221 = vld [vmem:[%s1 + $0xc] sm:$0xf]
      %v222 = vld [vmem:[%s1 + $0x10] sm:$0xf]
      %v223 = vld [vmem:[%s1 + $0x14] sm:$0xf]
      %v224 = vld [vmem:[%s1 + $0x18] sm:$0xf]
      %v225 = vld [vmem:[%s1 + $0x1c] sm:$0xf]
      %v226 = vld [vmem:[%s1 + $0x20] sm:$0xf]
      %v227 = vld [vmem:[%s1 + $0x24] sm:$0xf]
      %v228 = vld [vmem:[%s1 + $0x28] sm:$0xf]
      %v229 = vld [vmem:[%s1 + $0x2c] sm:$0xf]
      %v230 = vld [vmem:[%s1 + $0x30] sm:$0xf]
      %v231 = vld [vmem:[%s1 + $0x34] sm:$0xf]
      %v232 = vld [vmem:[%s1 + $0x38] sm:$0xf]
      %v233 = vld [vmem:[%s1 + $0x3c] sm:$0xf]
      %v234 = vld [vmem:[%s1 + $0x40] sm:$0xf]
      %v235 = vld [vmem:[%s1 + $0x44] sm:$0xf]
      %v236 = vld [vmem:[%s1 + $0x48] sm:$0xf]
      %v237 = vld [vmem:[%s1 + $0x4c] sm:$0xf]
      %v238 = vld [vmem:[%s1 + $0x50] sm:$0xf]
      %v239 = vld [vmem:[%s1 + $0x54] sm:$0xf]
      %v240 = vld [vmem:[%s1 + $0x58] sm:$0xf]
      %v241 = vld [vmem:[%s1 + $0x5c] sm:$0xf]
      %v242 = vld [vmem:[%s1 + $0x60] sm:$0xf]
      %v243 = vld [vmem:[%s1 + $0x64] sm:$0xf]
      %v244 = vld [vmem:[%s1 + $0x68] sm:$0xf]
      %v245 = vld [vmem:[%s1 + $0x6c] sm:$0xf]
      %v246 = vld [vmem:[%s1 + $0x70] sm:$0xf]
      %v247 = vld [vmem:[%s1 + $0x74] sm:$0xf]
      %v248 = vld [vmem:[%s1 + $0x78] sm:$0xf]
      %v249 = vld [vmem:[%s1 + $0x7c] sm:$0xf]
      %v250 = vld [vmem:[%s201 + $0x10] sm:$0x11]
      %v251 = vld [vmem:[%s201 + $0x28] sm:$0x11]
      %v252 = vld [vmem:[%s201 + $0x40] sm:$0x11]
      %v253 = vld [vmem:[%s201 + $0x58] sm:$0x11]
      %v254 = vld [vmem:[%s201 + $0x70] sm:$0x11]
      %v255 = vld [vmem:[%s201 + $0x88] sm:$0x11]
      %v256 = vld [vmem:[%s201 + $0xa0] sm:$0x11]
      %v257 = vld [vmem:[%s201 + $0xb8] sm:$0x11]
      %s258 = scalar_lea.vmem %s1, 128
      %v259 = vld [vmem:[%s258] sm:$0xf]
      %v260 = vld [vmem:[%s258 + $0x4] sm:$0xf]
      %v261 = vld [vmem:[%s258 + $0x8] sm:$0xf]
      %v262 = vld [vmem:[%s258 + $0xc] sm:$0xf]
      %v263 = vld [vmem:[%s258 + $0x10] sm:$0xf]
      %v264 = vld [vmem:[%s258 + $0x14] sm:$0xf]
      %v265 = vld [vmem:[%s258 + $0x18] sm:$0xf]
      %v266 = vld [vmem:[%s258 + $0x1c] sm:$0xf]
      %v267 = vld [vmem:[%s258 + $0x20] sm:$0xf]
      %v268 = vld [vmem:[%s258 + $0x24] sm:$0xf]
      %v269 = vld [vmem:[%s258 + $0x28] sm:$0xf]
      %v270 = vld [vmem:[%s258 + $0x2c] sm:$0xf]
      %v271 = vld [vmem:[%s258 + $0x30] sm:$0xf]
      %v272 = vld [vmem:[%s258 + $0x34] sm:$0xf]
      %v273 = vld [vmem:[%s258 + $0x38] sm:$0xf]
      %v274 = vld [vmem:[%s258 + $0x3c] sm:$0xf]
      %v275 = vld [vmem:[%s258 + $0x40] sm:$0xf]
      %v276 = vld [vmem:[%s258 + $0x44] sm:$0xf]
      %v277 = vld [vmem:[%s258 + $0x48] sm:$0xf]
      %v278 = vld [vmem:[%s258 + $0x4c] sm:$0xf]
      %v279 = vld [vmem:[%s258 + $0x50] sm:$0xf]
      %v280 = vld [vmem:[%s258 + $0x54] sm:$0xf]
      %v281 = vld [vmem:[%s258 + $0x58] sm:$0xf]
      %v282 = vld [vmem:[%s258 + $0x5c] sm:$0xf]
      %v283 = vld [vmem:[%s258 + $0x60] sm:$0xf]
      %v284 = vld [vmem:[%s258 + $0x64] sm:$0xf]
      %v285 = vld [vmem:[%s258 + $0x68] sm:$0xf]
      %v286 = vld [vmem:[%s258 + $0x6c] sm:$0xf]
      %v287 = vld [vmem:[%s258 + $0x70] sm:$0xf]
      %v288 = vld [vmem:[%s258 + $0x74] sm:$0xf]
      %v289 = vld [vmem:[%s258 + $0x78] sm:$0xf]
      %v290 = vld [vmem:[%s258 + $0x7c] sm:$0xf]
      %v294 = vunpack.c.l.b16 %v202
      %v295 = vunpack.c.h.b16 %v202
      %v296 = vunpack.c.l.b16 %v203
      %v297 = vunpack.c.h.b16 %v203
      %v298 = vunpack.c.l.b16 %v250
      %v299 = vunpack.c.h.b16 %v250
      %v300 = vpack.c.b16 %v296, %v294
      %v301 = vpack.c.b16 %v297, %v295
      %v302 = vpack.c.b16 %v298, %v298
      %v303 = vpack.c.b16 %v299, %v299
      %vm304 = vsmask.f32 7424
      %v306 = vshrl.u32 %v300, 16
      %v308 = vshll.u32 %v300, 16
      %v310 = vrot.slane %v308, 1
      %v311 = vor.u32 %v306, %v310
      %v313 = vshll.u32 %v302, 16
      %v315 = vrot.slane %v313, 1
      %v316 = vsel %vm304, %v311, %v315
      %v318 = vshrl.u32 %v301, 16
      %v320 = vshll.u32 %v301, 16
      %v322 = vrot.slane %v320, 1
      %v323 = vor.u32 %v318, %v322
      %v325 = vshll.u32 %v303, 16
      %v327 = vrot.slane %v325, 1
      %v328 = vsel %vm304, %v323, %v327
      %v363 = vunpack.c.l.b16 %v259
      %v364 = vunpack.c.l.b16 %v260
      %v365 = vunpack.c.l.b16 %v261
      %v366 = vunpack.c.l.b16 %v262
      %v367 = vunpack.c.l.b16 %v263
      %v368 = vunpack.c.l.b16 %v264
      %v369 = vunpack.c.l.b16 %v265
      %v370 = vunpack.c.l.b16 %v266
      %v371 = vunpack.c.l.b16 %v267
      %v372 = vunpack.c.l.b16 %v268
      %v373 = vunpack.c.l.b16 %v269
      %v374 = vunpack.c.l.b16 %v270
      %v375 = vunpack.c.l.b16 %v271
      %v376 = vunpack.c.l.b16 %v272
      %v377 = vunpack.c.l.b16 %v273
      %v378 = vunpack.c.l.b16 %v274
      %v379 = vunpack.c.l.b16 %v275
      %v380 = vunpack.c.l.b16 %v276
      %v381 = vunpack.c.l.b16 %v277
      %v382 = vunpack.c.l.b16 %v278
      %v383 = vunpack.c.l.b16 %v279
      %v384 = vunpack.c.l.b16 %v280
      %v385 = vunpack.c.l.b16 %v281
      %v386 = vunpack.c.l.b16 %v282
      %v387 = vunpack.c.l.b16 %v283
      %v388 = vunpack.c.l.b16 %v284
      %v389 = vunpack.c.l.b16 %v285
      %v390 = vunpack.c.l.b16 %v286
      %v391 = vunpack.c.l.b16 %v287
      %v392 = vunpack.c.l.b16 %v288
      %v393 = vunpack.c.l.b16 %v289
      %v394 = vunpack.c.l.b16 %v290
      %v395 = vpack.c.b16 %v364, %v363
      %v396 = vpack.c.b16 %v366, %v365
      %v397 = vpack.c.b16 %v368, %v367
      %v398 = vpack.c.b16 %v370, %v369
      %v399 = vpack.c.b16 %v372, %v371
      %v400 = vpack.c.b16 %v374, %v373
      %v401 = vpack.c.b16 %v376, %v375
      %v402 = vpack.c.b16 %v378, %v377
      %v403 = vpack.c.b16 %v380, %v379
      %v404 = vpack.c.b16 %v382, %v381
      %v405 = vpack.c.b16 %v384, %v383
      %v406 = vpack.c.b16 %v386, %v385
      %v407 = vpack.c.b16 %v388, %v387
      %v408 = vpack.c.b16 %v390, %v389
      %v409 = vpack.c.b16 %v392, %v391
      %v410 = vpack.c.b16 %v394, %v393
      %427 = vmatprep.subr.bf16.mxu0 0
      %428 = vmatpush1.bf16.msra.mxu0 %v395
      %429 = vmatprep.subr.bf16.mxu0 0
      %430 = vmatpush1.bf16.msra.mxu0 %v396
      %431 = vmatprep.subr.bf16.mxu0 0
      %432 = vmatpush1.bf16.msra.mxu0 %v397
      %433 = vmatprep.subr.bf16.mxu0 0
      %434 = vmatpush1.bf16.msra.mxu0 %v398
      %435 = vmatprep.subr.bf16.mxu0 0
      %436 = vmatpush1.bf16.msra.mxu0 %v399
      %437 = vmatprep.subr.bf16.mxu0 0
      %438 = vmatpush1.bf16.msra.mxu0 %v400
      %439 = vmatprep.subr.bf16.mxu0 0
      %440 = vmatpush1.bf16.msra.mxu0 %v401
      %441 = vmatprep.subr.bf16.mxu0 0
      %442 = vmatpush1.bf16.msra.mxu0 %v402
      %443 = vmatprep.subr.bf16.mxu0 0
      %444 = vmatpush1.bf16.msra.mxu0 %v403
      %445 = vmatprep.subr.bf16.mxu0 0
      %446 = vmatpush1.bf16.msra.mxu0 %v404
      %447 = vmatprep.subr.bf16.mxu0 0
      %448 = vmatpush1.bf16.msra.mxu0 %v405
      %449 = vmatprep.subr.bf16.mxu0 0
      %450 = vmatpush1.bf16.msra.mxu0 %v406
      %451 = vmatprep.subr.bf16.mxu0 0
      %452 = vmatpush1.bf16.msra.mxu0 %v407
      %453 = vmatprep.subr.bf16.mxu0 0
      %454 = vmatpush1.bf16.msra.mxu0 %v408
      %455 = vmatprep.subr.bf16.mxu0 0
      %456 = vmatpush1.bf16.msra.mxu0 %v409
      %457 = vmatprep.subr.bf16.mxu0 0
      %458 = vmatpush1.bf16.msra.mxu0 %v410
      %459 = vmatprep.mubr.bf16.mxu0 %v328
      %460 = vmatmul.mubr.bf16.gmra.mrb[0].mxu0 %v316
      %v461 = vpop.f32.mrb[0].mxu0
      %v462 = vadd.f32 0.0, %v461
      %v463 = vpop.f32.mrb[0].mxu0
      %v464 = vpop.f32.mrb[0].mxu0
      %v465 = vadd.f32 0.0, %v464
      %v466 = vpop.f32.mrb[0].mxu0
      %467 = vdwg.mxu0
      %v502 = vunpack.c.l.b16 %v218
      %v503 = vunpack.c.l.b16 %v219
      %v504 = vunpack.c.l.b16 %v220
      %v505 = vunpack.c.l.b16 %v221
      %v506 = vunpack.c.l.b16 %v222
      %v507 = vunpack.c.l.b16 %v223
      %v508 = vunpack.c.l.b16 %v224
      %v509 = vunpack.c.l.b16 %v225
      %v510 = vunpack.c.l.b16 %v226
      %v511 = vunpack.c.l.b16 %v227
      %v512 = vunpack.c.l.b16 %v228
      %v513 = vunpack.c.l.b16 %v229
      %v514 = vunpack.c.l.b16 %v230
      %v515 = vunpack.c.l.b16 %v231
      %v516 = vunpack.c.l.b16 %v232
      %v517 = vunpack.c.l.b16 %v233
      %v518 = vunpack.c.l.b16 %v234
      %v519 = vunpack.c.l.b16 %v235
      %v520 = vunpack.c.l.b16 %v236
      %v521 = vunpack.c.l.b16 %v237
      %v522 = vunpack.c.l.b16 %v238
      %v523 = vunpack.c.l.b16 %v239
      %v524 = vunpack.c.l.b16 %v240
      %v525 = vunpack.c.l.b16 %v241
      %v526 = vunpack.c.l.b16 %v242
      %v527 = vunpack.c.l.b16 %v243
      %v528 = vunpack.c.l.b16 %v244
      %v529 = vunpack.c.l.b16 %v245
      %v530 = vunpack.c.l.b16 %v246
      %v531 = vunpack.c.l.b16 %v247
      %v532 = vunpack.c.l.b16 %v248
      %v533 = vunpack.c.l.b16 %v249
      %v534 = vpack.c.b16 %v503, %v502
      %v535 = vpack.c.b16 %v505, %v504
      %v536 = vpack.c.b16 %v507, %v506
      %v537 = vpack.c.b16 %v509, %v508
      %v538 = vpack.c.b16 %v511, %v510
      %v539 = vpack.c.b16 %v513, %v512
      %v540 = vpack.c.b16 %v515, %v514
      %v541 = vpack.c.b16 %v517, %v516
      %v542 = vpack.c.b16 %v519, %v518
      %v543 = vpack.c.b16 %v521, %v520
      %v544 = vpack.c.b16 %v523, %v522
      %v545 = vpack.c.b16 %v525, %v524
      %v546 = vpack.c.b16 %v527, %v526
      %v547 = vpack.c.b16 %v529, %v528
      %v548 = vpack.c.b16 %v531, %v530
      %v549 = vpack.c.b16 %v533, %v532
      %566 = vmatprep.subr.bf16.mxu0 0
      %567 = vmatpush1.bf16.msra.mxu0 %v534
      %568 = vmatprep.subr.bf16.mxu0 0
      %569 = vmatpush1.bf16.msra.mxu0 %v535
      %570 = vmatprep.subr.bf16.mxu0 0
      %571 = vmatpush1.bf16.msra.mxu0 %v536
      %572 = vmatprep.subr.bf16.mxu0 0
      %573 = vmatpush1.bf16.msra.mxu0 %v537
      %574 = vmatprep.subr.bf16.mxu0 0
      %575 = vmatpush1.bf16.msra.mxu0 %v538
      %576 = vmatprep.subr.bf16.mxu0 0
      %577 = vmatpush1.bf16.msra.mxu0 %v539
      %578 = vmatprep.subr.bf16.mxu0 0
      %579 = vmatpush1.bf16.msra.mxu0 %v540
      %580 = vmatprep.subr.bf16.mxu0 0
      %581 = vmatpush1.bf16.msra.mxu0 %v541
      %582 = vmatprep.subr.bf16.mxu0 0
      %583 = vmatpush1.bf16.msra.mxu0 %v542
      %584 = vmatprep.subr.bf16.mxu0 0
      %585 = vmatpush1.bf16.msra.mxu0 %v543
      %586 = vmatprep.subr.bf16.mxu0 0
      %587 = vmatpush1.bf16.msra.mxu0 %v544
      %588 = vmatprep.subr.bf16.mxu0 0
      %589 = vmatpush1.bf16.msra.mxu0 %v545
      %590 = vmatprep.subr.bf16.mxu0 0
      %591 = vmatpush1.bf16.msra.mxu0 %v546
      %592 = vmatprep.subr.bf16.mxu0 0
      %593 = vmatpush1.bf16.msra.mxu0 %v547
      %594 = vmatprep.subr.bf16.mxu0 0
      %595 = vmatpush1.bf16.msra.mxu0 %v548
      %596 = vmatprep.subr.bf16.mxu0 0
      %597 = vmatpush1.bf16.msra.mxu0 %v549
      %598 = vmatprep.mubr.bf16.mxu0 %v301
      %599 = vmatmul.mubr.bf16.gmra.mrb[0].mxu0 %v300
      %v600 = vpop.f32.mrb[0].mxu0
      %v601 = vadd.f32 %v462, %v600
      %v602 = vpop.f32.mrb[0].mxu0
      %v603 = vpop.f32.mrb[0].mxu0
      %v604 = vadd.f32 %v465, %v603
      %v605 = vpop.f32.mrb[0].mxu0
      %606 = vdwg.mxu0
      %v610 = vunpack.c.l.b16 %v204
      %v611 = vunpack.c.h.b16 %v204
      %v612 = vunpack.c.l.b16 %v205
      %v613 = vunpack.c.h.b16 %v205
      %v614 = vunpack.c.l.b16 %v251
      %v615 = vunpack.c.h.b16 %v251
      %v616 = vpack.c.b16 %v612, %v610
      %v617 = vpack.c.b16 %v613, %v611
      %v618 = vpack.c.b16 %v614, %v614
      %v619 = vpack.c.b16 %v615, %v615
      %v621 = vshrl.u32 %v616, 16
      %v623 = vshll.u32 %v616, 16
      %v625 = vrot.slane %v623, 1
      %v626 = vor.u32 %v621, %v625
      %v628 = vshll.u32 %v618, 16
      %v630 = vrot.slane %v628, 1
      %v631 = vsel %vm304, %v626, %v630
      %v633 = vshrl.u32 %v617, 16
      %v635 = vshll.u32 %v617, 16
      %v637 = vrot.slane %v635, 1
      %v638 = vor.u32 %v633, %v637
      %v640 = vshll.u32 %v619, 16
      %v642 = vrot.slane %v640, 1
      %v643 = vsel %vm304, %v638, %v642
      %646 = vmatprep.subr.bf16.mxu0 0
      %647 = vmatpush1.bf16.msra.mxu0 %v395
      %648 = vmatprep.subr.bf16.mxu0 0
      %649 = vmatpush1.bf16.msra.mxu0 %v396
      %650 = vmatprep.subr.bf16.mxu0 0
      %651 = vmatpush1.bf16.msra.mxu0 %v397
      %652 = vmatprep.subr.bf16.mxu0 0
      %653 = vmatpush1.bf16.msra.mxu0 %v398
      %654 = vmatprep.subr.bf16.mxu0 0
      %655 = vmatpush1.bf16.msra.mxu0 %v399
      %656 = vmatprep.subr.bf16.mxu0 0
      %657 = vmatpush1.bf16.msra.mxu0 %v400
      %658 = vmatprep.subr.bf16.mxu0 0
      %659 = vmatpush1.bf16.msra.mxu0 %v401
      %660 = vmatprep.subr.bf16.mxu0 0
      %661 = vmatpush1.bf16.msra.mxu0 %v402
      %662 = vmatprep.subr.bf16.mxu0 0
      %663 = vmatpush1.bf16.msra.mxu0 %v403
      %664 = vmatprep.subr.bf16.mxu0 0
      %665 = vmatpush1.bf16.msra.mxu0 %v404
      %666 = vmatprep.subr.bf16.mxu0 0
      %667 = vmatpush1.bf16.msra.mxu0 %v405
      %668 = vmatprep.subr.bf16.mxu0 0
      %669 = vmatpush1.bf16.msra.mxu0 %v406
      %670 = vmatprep.subr.bf16.mxu0 0
      %671 = vmatpush1.bf16.msra.mxu0 %v407
      %672 = vmatprep.subr.bf16.mxu0 0
      %673 = vmatpush1.bf16.msra.mxu0 %v408
      %674 = vmatprep.subr.bf16.mxu0 0
      %675 = vmatpush1.bf16.msra.mxu0 %v409
      %676 = vmatprep.subr.bf16.mxu0 0
      %677 = vmatpush1.bf16.msra.mxu0 %v410
      %678 = vmatprep.mubr.bf16.mxu0 %v643
      %679 = vmatmul.mubr.bf16.gmra.mrb[0].mxu0 %v631
      %v680 = vpop.f32.mrb[0].mxu0
      %v681 = vadd.f32 0.0, %v680
      %v682 = vpop.f32.mrb[0].mxu0
      %v683 = vpop.f32.mrb[0].mxu0
      %v684 = vadd.f32 0.0, %v683
      %v685 = vpop.f32.mrb[0].mxu0
      %686 = vdwg.mxu0
      %689 = vmatprep.subr.bf16.mxu0 0
      %690 = vmatpush1.bf16.msra.mxu0 %v534
      %691 = vmatprep.subr.bf16.mxu0 0
      %692 = vmatpush1.bf16.msra.mxu0 %v535
      %693 = vmatprep.subr.bf16.mxu0 0
      %694 = vmatpush1.bf16.msra.mxu0 %v536
      %695 = vmatprep.subr.bf16.mxu0 0
      %696 = vmatpush1.bf16.msra.mxu0 %v537
      %697 = vmatprep.subr.bf16.mxu0 0
      %698 = vmatpush1.bf16.msra.mxu0 %v538
      %699 = vmatprep.subr.bf16.mxu0 0
      %700 = vmatpush1.bf16.msra.mxu0 %v539
      %701 = vmatprep.subr.bf16.mxu0 0
      %702 = vmatpush1.bf16.msra.mxu0 %v540
      %703 = vmatprep.subr.bf16.mxu0 0
      %704 = vmatpush1.bf16.msra.mxu0 %v541
      %705 = vmatprep.subr.bf16.mxu0 0
      %706 = vmatpush1.bf16.msra.mxu0 %v542
      %707 = vmatprep.subr.bf16.mxu0 0
      %708 = vmatpush1.bf16.msra.mxu0 %v543
      %709 = vmatprep.subr.bf16.mxu0 0
      %710 = vmatpush1.bf16.msra.mxu0 %v544
      %711 = vmatprep.subr.bf16.mxu0 0
      %712 = vmatpush1.bf16.msra.mxu0 %v545
      %713 = vmatprep.subr.bf16.mxu0 0
      %714 = vmatpush1.bf16.msra.mxu0 %v546
      %715 = vmatprep.subr.bf16.mxu0 0
      %716 = vmatpush1.bf16.msra.mxu0 %v547
      %717 = vmatprep.subr.bf16.mxu0 0
      %718 = vmatpush1.bf16.msra.mxu0 %v548
      %719 = vmatprep.subr.bf16.mxu0 0
      %720 = vmatpush1.bf16.msra.mxu0 %v549
      %721 = vmatprep.mubr.bf16.mxu0 %v617
      %722 = vmatmul.mubr.bf16.gmra.mrb[0].mxu0 %v616
      %v723 = vpop.f32.mrb[0].mxu0
      %v724 = vadd.f32 %v681, %v723
      %v725 = vpop.f32.mrb[0].mxu0
      %v726 = vpop.f32.mrb[0].mxu0
      %v727 = vadd.f32 %v684, %v726
      %v728 = vpop.f32.mrb[0].mxu0
      %729 = vdwg.mxu0
      %v733 = vunpack.c.l.b16 %v206
      %v734 = vunpack.c.h.b16 %v206
      %v735 = vunpack.c.l.b16 %v207
      %v736 = vunpack.c.h.b16 %v207
      %v737 = vunpack.c.l.b16 %v252
      %v738 = vunpack.c.h.b16 %v252
      %v739 = vpack.c.b16 %v735, %v733
      %v740 = vpack.c.b16 %v736, %v734
      %v741 = vpack.c.b16 %v737, %v737
      %v742 = vpack.c.b16 %v738, %v738
      %v744 = vshrl.u32 %v739, 16
      %v746 = vshll.u32 %v739, 16
      %v748 = vrot.slane %v746, 1
      %v749 = vor.u32 %v744, %v748
      %v751 = vshll.u32 %v741, 16
      %v753 = vrot.slane %v751, 1
      %v754 = vsel %vm304, %v749, %v753
      %v756 = vshrl.u32 %v740, 16
      %v758 = vshll.u32 %v740, 16
      %v760 = vrot.slane %v758, 1
      %v761 = vor.u32 %v756, %v760
      %v763 = vshll.u32 %v742, 16
      %v765 = vrot.slane %v763, 1
      %v766 = vsel %vm304, %v761, %v765
      %769 = vmatprep.subr.bf16.mxu0 0
      %770 = vmatpush1.bf16.msra.mxu0 %v395
      %771 = vmatprep.subr.bf16.mxu0 0
      %772 = vmatpush1.bf16.msra.mxu0 %v396
      %773 = vmatprep.subr.bf16.mxu0 0
      %774 = vmatpush1.bf16.msra.mxu0 %v397
      %775 = vmatprep.subr.bf16.mxu0 0
      %776 = vmatpush1.bf16.msra.mxu0 %v398
      %777 = vmatprep.subr.bf16.mxu0 0
      %778 = vmatpush1.bf16.msra.mxu0 %v399
      %779 = vmatprep.subr.bf16.mxu0 0
      %780 = vmatpush1.bf16.msra.mxu0 %v400
      %781 = vmatprep.subr.bf16.mxu0 0
      %782 = vmatpush1.bf16.msra.mxu0 %v401
      %783 = vmatprep.subr.bf16.mxu0 0
      %784 = vmatpush1.bf16.msra.mxu0 %v402
      %785 = vmatprep.subr.bf16.mxu0 0
      %786 = vmatpush1.bf16.msra.mxu0 %v403
      %787 = vmatprep.subr.bf16.mxu0 0
      %788 = vmatpush1.bf16.msra.mxu0 %v404
      %789 = vmatprep.subr.bf16.mxu0 0
      %790 = vmatpush1.bf16.msra.mxu0 %v405
      %791 = vmatprep.subr.bf16.mxu0 0
      %792 = vmatpush1.bf16.msra.mxu0 %v406
      %793 = vmatprep.subr.bf16.mxu0 0
      %794 = vmatpush1.bf16.msra.mxu0 %v407
      %795 = vmatprep.subr.bf16.mxu0 0
      %796 = vmatpush1.bf16.msra.mxu0 %v408
      %797 = vmatprep.subr.bf16.mxu0 0
      %798 = vmatpush1.bf16.msra.mxu0 %v409
      %799 = vmatprep.subr.bf16.mxu0 0
      %800 = vmatpush1.bf16.msra.mxu0 %v410
      %801 = vmatprep.mubr.bf16.mxu0 %v766
      %802 = vmatmul.mubr.bf16.gmra.mrb[0].mxu0 %v754
      %v803 = vpop.f32.mrb[0].mxu0
      %v804 = vadd.f32 0.0, %v803
      %v805 = vpop.f32.mrb[0].mxu0
      %v806 = vpop.f32.mrb[0].mxu0
      %v807 = vadd.f32 0.0, %v806
      %v808 = vpop.f32.mrb[0].mxu0
      %809 = vdwg.mxu0
      %812 = vmatprep.subr.bf16.mxu0 0
      %813 = vmatpush1.bf16.msra.mxu0 %v534
      %814 = vmatprep.subr.bf16.mxu0 0
      %815 = vmatpush1.bf16.msra.mxu0 %v535
      %816 = vmatprep.subr.bf16.mxu0 0
      %817 = vmatpush1.bf16.msra.mxu0 %v536
      %818 = vmatprep.subr.bf16.mxu0 0
      %819 = vmatpush1.bf16.msra.mxu0 %v537
      %820 = vmatprep.subr.bf16.mxu0 0
      %821 = vmatpush1.bf16.msra.mxu0 %v538
      %822 = vmatprep.subr.bf16.mxu0 0
      %823 = vmatpush1.bf16.msra.mxu0 %v539
      %824 = vmatprep.subr.bf16.mxu0 0
      %825 = vmatpush1.bf16.msra.mxu0 %v540
      %826 = vmatprep.subr.bf16.mxu0 0
      %827 = vmatpush1.bf16.msra.mxu0 %v541
      %828 = vmatprep.subr.bf16.mxu0 0
      %829 = vmatpush1.bf16.msra.mxu0 %v542
      %830 = vmatprep.subr.bf16.mxu0 0
      %831 = vmatpush1.bf16.msra.mxu0 %v543
      %832 = vmatprep.subr.bf16.mxu0 0
      %833 = vmatpush1.bf16.msra.mxu0 %v544
      %834 = vmatprep.subr.bf16.mxu0 0
      %835 = vmatpush1.bf16.msra.mxu0 %v545
      %836 = vmatprep.subr.bf16.mxu0 0
      %837 = vmatpush1.bf16.msra.mxu0 %v546
      %838 = vmatprep.subr.bf16.mxu0 0
      %839 = vmatpush1.bf16.msra.mxu0 %v547
      %840 = vmatprep.subr.bf16.mxu0 0
      %841 = vmatpush1.bf16.msra.mxu0 %v548
      %842 = vmatprep.subr.bf16.mxu0 0
      %843 = vmatpush1.bf16.msra.mxu0 %v549
      %844 = vmatprep.mubr.bf16.mxu0 %v740
      %845 = vmatmul.mubr.bf16.gmra.mrb[0].mxu0 %v739
      %v846 = vpop.f32.mrb[0].mxu0
      %v847 = vadd.f32 %v804, %v846
      %v848 = vpop.f32.mrb[0].mxu0
      %v849 = vpop.f32.mrb[0].mxu0
      %v850 = vadd.f32 %v807, %v849
      %v851 = vpop.f32.mrb[0].mxu0
      %852 = vdwg.mxu0
      %v856 = vunpack.c.l.b16 %v208
      %v857 = vunpack.c.h.b16 %v208
      %v858 = vunpack.c.l.b16 %v209
      %v859 = vunpack.c.h.b16 %v209
      %v860 = vunpack.c.l.b16 %v253
      %v861 = vunpack.c.h.b16 %v253
      %v862 = vpack.c.b16 %v858, %v856
      %v863 = vpack.c.b16 %v859, %v857
      %v864 = vpack.c.b16 %v860, %v860
      %v865 = vpack.c.b16 %v861, %v861
      %v867 = vshrl.u32 %v862, 16
      %v869 = vshll.u32 %v862, 16
      %v871 = vrot.slane %v869, 1
      %v872 = vor.u32 %v867, %v871
      %v874 = vshll.u32 %v864, 16
      %v876 = vrot.slane %v874, 1
      %v877 = vsel %vm304, %v872, %v876
      %v879 = vshrl.u32 %v863, 16
      %v881 = vshll.u32 %v863, 16
      %v883 = vrot.slane %v881, 1
      %v884 = vor.u32 %v879, %v883
      %v886 = vshll.u32 %v865, 16
      %v888 = vrot.slane %v886, 1
      %v889 = vsel %vm304, %v884, %v888
      %892 = vmatprep.subr.bf16.mxu0 0
      %893 = vmatpush1.bf16.msra.mxu0 %v395
      %894 = vmatprep.subr.bf16.mxu0 0
      %895 = vmatpush1.bf16.msra.mxu0 %v396
      %896 = vmatprep.subr.bf16.mxu0 0
      %897 = vmatpush1.bf16.msra.mxu0 %v397
      %898 = vmatprep.subr.bf16.mxu0 0
      %899 = vmatpush1.bf16.msra.mxu0 %v398
      %900 = vmatprep.subr.bf16.mxu0 0
      %901 = vmatpush1.bf16.msra.mxu0 %v399
      %902 = vmatprep.subr.bf16.mxu0 0
      %903 = vmatpush1.bf16.msra.mxu0 %v400
      %904 = vmatprep.subr.bf16.mxu0 0
      %905 = vmatpush1.bf16.msra.mxu0 %v401
      %906 = vmatprep.subr.bf16.mxu0 0
      %907 = vmatpush1.bf16.msra.mxu0 %v402
      %908 = vmatprep.subr.bf16.mxu0 0
      %909 = vmatpush1.bf16.msra.mxu0 %v403
      %910 = vmatprep.subr.bf16.mxu0 0
      %911 = vmatpush1.bf16.msra.mxu0 %v404
      %912 = vmatprep.subr.bf16.mxu0 0
      %913 = vmatpush1.bf16.msra.mxu0 %v405
      %914 = vmatprep.subr.bf16.mxu0 0
      %915 = vmatpush1.bf16.msra.mxu0 %v406
      %916 = vmatprep.subr.bf16.mxu0 0
      %917 = vmatpush1.bf16.msra.mxu0 %v407
      %918 = vmatprep.subr.bf16.mxu0 0
      %919 = vmatpush1.bf16.msra.mxu0 %v408
      %920 = vmatprep.subr.bf16.mxu0 0
      %921 = vmatpush1.bf16.msra.mxu0 %v409
      %922 = vmatprep.subr.bf16.mxu0 0
      %923 = vmatpush1.bf16.msra.mxu0 %v410
      %924 = vmatprep.mubr.bf16.mxu0 %v889
      %925 = vmatmul.mubr.bf16.gmra.mrb[0].mxu0 %v877
      %v926 = vpop.f32.mrb[0].mxu0
      %v927 = vadd.f32 0.0, %v926
      %v928 = vpop.f32.mrb[0].mxu0
      %v929 = vpop.f32.mrb[0].mxu0
      %v930 = vadd.f32 0.0, %v929
      %v931 = vpop.f32.mrb[0].mxu0
      %932 = vdwg.mxu0
      %935 = vmatprep.subr.bf16.mxu0 0
      %936 = vmatpush1.bf16.msra.mxu0 %v534
      %937 = vmatprep.subr.bf16.mxu0 0
      %938 = vmatpush1.bf16.msra.mxu0 %v535
      %939 = vmatprep.subr.bf16.mxu0 0
      %940 = vmatpush1.bf16.msra.mxu0 %v536
      %941 = vmatprep.subr.bf16.mxu0 0
      %942 = vmatpush1.bf16.msra.mxu0 %v537
      %943 = vmatprep.subr.bf16.mxu0 0
      %944 = vmatpush1.bf16.msra.mxu0 %v538
      %945 = vmatprep.subr.bf16.mxu0 0
      %946 = vmatpush1.bf16.msra.mxu0 %v539
      %947 = vmatprep.subr.bf16.mxu0 0
      %948 = vmatpush1.bf16.msra.mxu0 %v540
      %949 = vmatprep.subr.bf16.mxu0 0
      %950 = vmatpush1.bf16.msra.mxu0 %v541
      %951 = vmatprep.subr.bf16.mxu0 0
      %952 = vmatpush1.bf16.msra.mxu0 %v542
      %953 = vmatprep.subr.bf16.mxu0 0
      %954 = vmatpush1.bf16.msra.mxu0 %v543
      %955 = vmatprep.subr.bf16.mxu0 0
      %956 = vmatpush1.bf16.msra.mxu0 %v544
      %957 = vmatprep.subr.bf16.mxu0 0
      %958 = vmatpush1.bf16.msra.mxu0 %v545
      %959 = vmatprep.subr.bf16.mxu0 0
      %960 = vmatpush1.bf16.msra.mxu0 %v546
      %961 = vmatprep.subr.bf16.mxu0 0
      %962 = vmatpush1.bf16.msra.mxu0 %v547
      %963 = vmatprep.subr.bf16.mxu0 0
      %964 = vmatpush1.bf16.msra.mxu0 %v548
      %965 = vmatprep.subr.bf16.mxu0 0
      %966 = vmatpush1.bf16.msra.mxu0 %v549
      %967 = vmatprep.mubr.bf16.mxu0 %v863
      %968 = vmatmul.mubr.bf16.gmra.mrb[0].mxu0 %v862
      %v969 = vpop.f32.mrb[0].mxu0
      %v970 = vadd.f32 %v927, %v969
      %v971 = vpop.f32.mrb[0].mxu0
      %v972 = vpop.f32.mrb[0].mxu0
      %v973 = vadd.f32 %v930, %v972
      %v974 = vpop.f32.mrb[0].mxu0
      %975 = vdwg.mxu0
      %v979 = vunpack.c.l.b16 %v210
      %v980 = vunpack.c.h.b16 %v210
      %v981 = vunpack.c.l.b16 %v211
      %v982 = vunpack.c.h.b16 %v211
      %v983 = vunpack.c.l.b16 %v254
      %v984 = vunpack.c.h.b16 %v254
      %v985 = vpack.c.b16 %v981, %v979
      %v986 = vpack.c.b16 %v982, %v980
      %v987 = vpack.c.b16 %v983, %v983
      %v988 = vpack.c.b16 %v984, %v984
      %v990 = vshrl.u32 %v985, 16
      %v992 = vshll.u32 %v985, 16
      %v994 = vrot.slane %v992, 1
      %v995 = vor.u32 %v990, %v994
      %v997 = vshll.u32 %v987, 16
      %v999 = vrot.slane %v997, 1
      %v1000 = vsel %vm304, %v995, %v999
      %v1002 = vshrl.u32 %v986, 16
      %v1004 = vshll.u32 %v986, 16
      %v1006 = vrot.slane %v1004, 1
      %v1007 = vor.u32 %v1002, %v1006
      %v1009 = vshll.u32 %v988, 16
      %v1011 = vrot.slane %v1009, 1
      %v1012 = vsel %vm304, %v1007, %v1011
      %1015 = vmatprep.subr.bf16.mxu0 0
      %1016 = vmatpush1.bf16.msra.mxu0 %v395
      %1017 = vmatprep.subr.bf16.mxu0 0
      %1018 = vmatpush1.bf16.msra.mxu0 %v396
      %1019 = vmatprep.subr.bf16.mxu0 0
      %1020 = vmatpush1.bf16.msra.mxu0 %v397
      %1021 = vmatprep.subr.bf16.mxu0 0
      %1022 = vmatpush1.bf16.msra.mxu0 %v398
      %1023 = vmatprep.subr.bf16.mxu0 0
      %1024 = vmatpush1.bf16.msra.mxu0 %v399
      %1025 = vmatprep.subr.bf16.mxu0 0
      %1026 = vmatpush1.bf16.msra.mxu0 %v400
      %1027 = vmatprep.subr.bf16.mxu0 0
      %1028 = vmatpush1.bf16.msra.mxu0 %v401
      %1029 = vmatprep.subr.bf16.mxu0 0
      %1030 = vmatpush1.bf16.msra.mxu0 %v402
      %1031 = vmatprep.subr.bf16.mxu0 0
      %1032 = vmatpush1.bf16.msra.mxu0 %v403
      %1033 = vmatprep.subr.bf16.mxu0 0
      %1034 = vmatpush1.bf16.msra.mxu0 %v404
      %1035 = vmatprep.subr.bf16.mxu0 0
      %1036 = vmatpush1.bf16.msra.mxu0 %v405
      %1037 = vmatprep.subr.bf16.mxu0 0
      %1038 = vmatpush1.bf16.msra.mxu0 %v406
      %1039 = vmatprep.subr.bf16.mxu0 0
      %1040 = vmatpush1.bf16.msra.mxu0 %v407
      %1041 = vmatprep.subr.bf16.mxu0 0
      %1042 = vmatpush1.bf16.msra.mxu0 %v408
      %1043 = vmatprep.subr.bf16.mxu0 0
      %1044 = vmatpush1.bf16.msra.mxu0 %v409
      %1045 = vmatprep.subr.bf16.mxu0 0
      %1046 = vmatpush1.bf16.msra.mxu0 %v410
      %1047 = vmatprep.mubr.bf16.mxu0 %v1012
      %1048 = vmatmul.mubr.bf16.gmra.mrb[0].mxu0 %v1000
      %v1049 = vpop.f32.mrb[0].mxu0
      %v1050 = vadd.f32 0.0, %v1049
      %v1051 = vpop.f32.mrb[0].mxu0
      %v1052 = vpop.f32.mrb[0].mxu0
      %v1053 = vadd.f32 0.0, %v1052
      %v1054 = vpop.f32.mrb[0].mxu0
      %1055 = vdwg.mxu0
      %1058 = vmatprep.subr.bf16.mxu0 0
      %1059 = vmatpush1.bf16.msra.mxu0 %v534
      %1060 = vmatprep.subr.bf16.mxu0 0
      %1061 = vmatpush1.bf16.msra.mxu0 %v535
      %1062 = vmatprep.subr.bf16.mxu0 0
      %1063 = vmatpush1.bf16.msra.mxu0 %v536
      %1064 = vmatprep.subr.bf16.mxu0 0
      %1065 = vmatpush1.bf16.msra.mxu0 %v537
      %1066 = vmatprep.subr.bf16.mxu0 0
      %1067 = vmatpush1.bf16.msra.mxu0 %v538
      %1068 = vmatprep.subr.bf16.mxu0 0
      %1069 = vmatpush1.bf16.msra.mxu0 %v539
      %1070 = vmatprep.subr.bf16.mxu0 0
      %1071 = vmatpush1.bf16.msra.mxu0 %v540
      %1072 = vmatprep.subr.bf16.mxu0 0
      %1073 = vmatpush1.bf16.msra.mxu0 %v541
      %1074 = vmatprep.subr.bf16.mxu0 0
      %1075 = vmatpush1.bf16.msra.mxu0 %v542
      %1076 = vmatprep.subr.bf16.mxu0 0
      %1077 = vmatpush1.bf16.msra.mxu0 %v543
      %1078 = vmatprep.subr.bf16.mxu0 0
      %1079 = vmatpush1.bf16.msra.mxu0 %v544
      %1080 = vmatprep.subr.bf16.mxu0 0
      %1081 = vmatpush1.bf16.msra.mxu0 %v545
      %1082 = vmatprep.subr.bf16.mxu0 0
      %1083 = vmatpush1.bf16.msra.mxu0 %v546
      %1084 = vmatprep.subr.bf16.mxu0 0
      %1085 = vmatpush1.bf16.msra.mxu0 %v547
      %1086 = vmatprep.subr.bf16.mxu0 0
      %1087 = vmatpush1.bf16.msra.mxu0 %v548
      %1088 = vmatprep.subr.bf16.mxu0 0
      %1089 = vmatpush1.bf16.msra.mxu0 %v549
      %1090 = vmatprep.mubr.bf16.mxu0 %v986
      %1091 = vmatmul.mubr.bf16.gmra.mrb[0].mxu0 %v985
      %v1092 = vpop.f32.mrb[0].mxu0
      %v1093 = vadd.f32 %v1050, %v1092
      %v1094 = vpop.f32.mrb[0].mxu0
      %v1095 = vpop.f32.mrb[0].mxu0
      %v1096 = vadd.f32 %v1053, %v1095
      %v1097 = vpop.f32.mrb[0].mxu0
      %1098 = vdwg.mxu0
      %v1102 = vunpack.c.l.b16 %v212
      %v1103 = vunpack.c.h.b16 %v212
      %v1104 = vunpack.c.l.b16 %v213
      %v1105 = vunpack.c.h.b16 %v213
      %v1106 = vunpack.c.l.b16 %v255
      %v1107 = vunpack.c.h.b16 %v255
      %v1108 = vpack.c.b16 %v1104, %v1102
      %v1109 = vpack.c.b16 %v1105, %v1103
      %v1110 = vpack.c.b16 %v1106, %v1106
      %v1111 = vpack.c.b16 %v1107, %v1107
      %v1113 = vshrl.u32 %v1108, 16
      %v1115 = vshll.u32 %v1108, 16
      %v1117 = vrot.slane %v1115, 1
      %v1118 = vor.u32 %v1113, %v1117
      %v1120 = vshll.u32 %v1110, 16
      %v1122 = vrot.slane %v1120, 1
      %v1123 = vsel %vm304, %v1118, %v1122
      %v1125 = vshrl.u32 %v1109, 16
      %v1127 = vshll.u32 %v1109, 16
      %v1129 = vrot.slane %v1127, 1
      %v1130 = vor.u32 %v1125, %v1129
      %v1132 = vshll.u32 %v1111, 16
      %v1134 = vrot.slane %v1132, 1
      %v1135 = vsel %vm304, %v1130, %v1134
      %1138 = vmatprep.subr.bf16.mxu0 0
      %1139 = vmatpush1.bf16.msra.mxu0 %v395
      %1140 = vmatprep.subr.bf16.mxu0 0
      %1141 = vmatpush1.bf16.msra.mxu0 %v396
      %1142 = vmatprep.subr.bf16.mxu0 0
      %1143 = vmatpush1.bf16.msra.mxu0 %v397
      %1144 = vmatprep.subr.bf16.mxu0 0
      %1145 = vmatpush1.bf16.msra.mxu0 %v398
      %1146 = vmatprep.subr.bf16.mxu0 0
      %1147 = vmatpush1.bf16.msra.mxu0 %v399
      %1148 = vmatprep.subr.bf16.mxu0 0
      %1149 = vmatpush1.bf16.msra.mxu0 %v400
      %1150 = vmatprep.subr.bf16.mxu0 0
      %1151 = vmatpush1.bf16.msra.mxu0 %v401
      %1152 = vmatprep.subr.bf16.mxu0 0
      %1153 = vmatpush1.bf16.msra.mxu0 %v402
      %1154 = vmatprep.subr.bf16.mxu0 0
      %1155 = vmatpush1.bf16.msra.mxu0 %v403
      %1156 = vmatprep.subr.bf16.mxu0 0
      %1157 = vmatpush1.bf16.msra.mxu0 %v404
      %1158 = vmatprep.subr.bf16.mxu0 0
      %1159 = vmatpush1.bf16.msra.mxu0 %v405
      %1160 = vmatprep.subr.bf16.mxu0 0
      %1161 = vmatpush1.bf16.msra.mxu0 %v406
      %1162 = vmatprep.subr.bf16.mxu0 0
      %1163 = vmatpush1.bf16.msra.mxu0 %v407
      %1164 = vmatprep.subr.bf16.mxu0 0
      %1165 = vmatpush1.bf16.msra.mxu0 %v408
      %1166 = vmatprep.subr.bf16.mxu0 0
      %1167 = vmatpush1.bf16.msra.mxu0 %v409
      %1168 = vmatprep.subr.bf16.mxu0 0
      %1169 = vmatpush1.bf16.msra.mxu0 %v410
      %1170 = vmatprep.mubr.bf16.mxu0 %v1135
      %1171 = vmatmul.mubr.bf16.gmra.mrb[0].mxu0 %v1123
      %v1172 = vpop.f32.mrb[0].mxu0
      %v1173 = vadd.f32 0.0, %v1172
      %v1174 = vpop.f32.mrb[0].mxu0
      %v1175 = vpop.f32.mrb[0].mxu0
      %v1176 = vadd.f32 0.0, %v1175
      %v1177 = vpop.f32.mrb[0].mxu0
      %1178 = vdwg.mxu0
      %1181 = vmatprep.subr.bf16.mxu0 0
      %1182 = vmatpush1.bf16.msra.mxu0 %v534
      %1183 = vmatprep.subr.bf16.mxu0 0
      %1184 = vmatpush1.bf16.msra.mxu0 %v535
      %1185 = vmatprep.subr.bf16.mxu0 0
      %1186 = vmatpush1.bf16.msra.mxu0 %v536
      %1187 = vmatprep.subr.bf16.mxu0 0
      %1188 = vmatpush1.bf16.msra.mxu0 %v537
      %1189 = vmatprep.subr.bf16.mxu0 0
      %1190 = vmatpush1.bf16.msra.mxu0 %v538
      %1191 = vmatprep.subr.bf16.mxu0 0
      %1192 = vmatpush1.bf16.msra.mxu0 %v539
      %1193 = vmatprep.subr.bf16.mxu0 0
      %1194 = vmatpush1.bf16.msra.mxu0 %v540
      %1195 = vmatprep.subr.bf16.mxu0 0
      %1196 = vmatpush1.bf16.msra.mxu0 %v541
      %1197 = vmatprep.subr.bf16.mxu0 0
      %1198 = vmatpush1.bf16.msra.mxu0 %v542
      %1199 = vmatprep.subr.bf16.mxu0 0
      %1200 = vmatpush1.bf16.msra.mxu0 %v543
      %1201 = vmatprep.subr.bf16.mxu0 0
      %1202 = vmatpush1.bf16.msra.mxu0 %v544
      %1203 = vmatprep.subr.bf16.mxu0 0
      %1204 = vmatpush1.bf16.msra.mxu0 %v545
      %1205 = vmatprep.subr.bf16.mxu0 0
      %1206 = vmatpush1.bf16.msra.mxu0 %v546
      %1207 = vmatprep.subr.bf16.mxu0 0
      %1208 = vmatpush1.bf16.msra.mxu0 %v547
      %1209 = vmatprep.subr.bf16.mxu0 0
      %1210 = vmatpush1.bf16.msra.mxu0 %v548
      %1211 = vmatprep.subr.bf16.mxu0 0
      %1212 = vmatpush1.bf16.msra.mxu0 %v549
      %1213 = vmatprep.mubr.bf16.mxu0 %v1109
      %1214 = vmatmul.mubr.bf16.gmra.mrb[0].mxu0 %v1108
      %v1215 = vpop.f32.mrb[0].mxu0
      %v1216 = vadd.f32 %v1173, %v1215
      %v1217 = vpop.f32.mrb[0].mxu0
      %v1218 = vpop.f32.mrb[0].mxu0
      %v1219 = vadd.f32 %v1176, %v1218
      %v1220 = vpop.f32.mrb[0].mxu0
      %1221 = vdwg.mxu0
      %v1225 = vunpack.c.l.b16 %v214
      %v1226 = vunpack.c.h.b16 %v214
      %v1227 = vunpack.c.l.b16 %v215
      %v1228 = vunpack.c.h.b16 %v215
      %v1229 = vunpack.c.l.b16 %v256
      %v1230 = vunpack.c.h.b16 %v256
      %v1231 = vpack.c.b16 %v1227, %v1225
      %v1232 = vpack.c.b16 %v1228, %v1226
      %v1233 = vpack.c.b16 %v1229, %v1229
      %v1234 = vpack.c.b16 %v1230, %v1230
      %v1236 = vshrl.u32 %v1231, 16
      %v1238 = vshll.u32 %v1231, 16
      %v1240 = vrot.slane %v1238, 1
      %v1241 = vor.u32 %v1236, %v1240
      %v1243 = vshll.u32 %v1233, 16
      %v1245 = vrot.slane %v1243, 1
      %v1246 = vsel %vm304, %v1241, %v1245
      %v1248 = vshrl.u32 %v1232, 16
      %v1250 = vshll.u32 %v1232, 16
      %v1252 = vrot.slane %v1250, 1
      %v1253 = vor.u32 %v1248, %v1252
      %v1255 = vshll.u32 %v1234, 16
      %v1257 = vrot.slane %v1255, 1
      %v1258 = vsel %vm304, %v1253, %v1257
      %1261 = vmatprep.subr.bf16.mxu0 0
      %1262 = vmatpush1.bf16.msra.mxu0 %v395
      %1263 = vmatprep.subr.bf16.mxu0 0
      %1264 = vmatpush1.bf16.msra.mxu0 %v396
      %1265 = vmatprep.subr.bf16.mxu0 0
      %1266 = vmatpush1.bf16.msra.mxu0 %v397
      %1267 = vmatprep.subr.bf16.mxu0 0
      %1268 = vmatpush1.bf16.msra.mxu0 %v398
      %1269 = vmatprep.subr.bf16.mxu0 0
      %1270 = vmatpush1.bf16.msra.mxu0 %v399
      %1271 = vmatprep.subr.bf16.mxu0 0
      %1272 = vmatpush1.bf16.msra.mxu0 %v400
      %1273 = vmatprep.subr.bf16.mxu0 0
      %1274 = vmatpush1.bf16.msra.mxu0 %v401
      %1275 = vmatprep.subr.bf16.mxu0 0
      %1276 = vmatpush1.bf16.msra.mxu0 %v402
      %1277 = vmatprep.subr.bf16.mxu0 0
      %1278 = vmatpush1.bf16.msra.mxu0 %v403
      %1279 = vmatprep.subr.bf16.mxu0 0
      %1280 = vmatpush1.bf16.msra.mxu0 %v404
      %1281 = vmatprep.subr.bf16.mxu0 0
      %1282 = vmatpush1.bf16.msra.mxu0 %v405
      %1283 = vmatprep.subr.bf16.mxu0 0
      %1284 = vmatpush1.bf16.msra.mxu0 %v406
      %1285 = vmatprep.subr.bf16.mxu0 0
      %1286 = vmatpush1.bf16.msra.mxu0 %v407
      %1287 = vmatprep.subr.bf16.mxu0 0
      %1288 = vmatpush1.bf16.msra.mxu0 %v408
      %1289 = vmatprep.subr.bf16.mxu0 0
      %1290 = vmatpush1.bf16.msra.mxu0 %v409
      %1291 = vmatprep.subr.bf16.mxu0 0
      %1292 = vmatpush1.bf16.msra.mxu0 %v410
      %1293 = vmatprep.mubr.bf16.mxu0 %v1258
      %1294 = vmatmul.mubr.bf16.gmra.mrb[0].mxu0 %v1246
      %v1295 = vpop.f32.mrb[0].mxu0
      %v1296 = vadd.f32 0.0, %v1295
      %v1297 = vpop.f32.mrb[0].mxu0
      %v1298 = vpop.f32.mrb[0].mxu0
      %v1299 = vadd.f32 0.0, %v1298
      %v1300 = vpop.f32.mrb[0].mxu0
      %1301 = vdwg.mxu0
      %1304 = vmatprep.subr.bf16.mxu0 0
      %1305 = vmatpush1.bf16.msra.mxu0 %v534
      %1306 = vmatprep.subr.bf16.mxu0 0
      %1307 = vmatpush1.bf16.msra.mxu0 %v535
      %1308 = vmatprep.subr.bf16.mxu0 0
      %1309 = vmatpush1.bf16.msra.mxu0 %v536
      %1310 = vmatprep.subr.bf16.mxu0 0
      %1311 = vmatpush1.bf16.msra.mxu0 %v537
      %1312 = vmatprep.subr.bf16.mxu0 0
      %1313 = vmatpush1.bf16.msra.mxu0 %v538
      %1314 = vmatprep.subr.bf16.mxu0 0
      %1315 = vmatpush1.bf16.msra.mxu0 %v539
      %1316 = vmatprep.subr.bf16.mxu0 0
      %1317 = vmatpush1.bf16.msra.mxu0 %v540
      %1318 = vmatprep.subr.bf16.mxu0 0
      %1319 = vmatpush1.bf16.msra.mxu0 %v541
      %1320 = vmatprep.subr.bf16.mxu0 0
      %1321 = vmatpush1.bf16.msra.mxu0 %v542
      %1322 = vmatprep.subr.bf16.mxu0 0
      %1323 = vmatpush1.bf16.msra.mxu0 %v543
      %1324 = vmatprep.subr.bf16.mxu0 0
      %1325 = vmatpush1.bf16.msra.mxu0 %v544
      %1326 = vmatprep.subr.bf16.mxu0 0
      %1327 = vmatpush1.bf16.msra.mxu0 %v545
      %1328 = vmatprep.subr.bf16.mxu0 0
      %1329 = vmatpush1.bf16.msra.mxu0 %v546
      %1330 = vmatprep.subr.bf16.mxu0 0
      %1331 = vmatpush1.bf16.msra.mxu0 %v547
      %1332 = vmatprep.subr.bf16.mxu0 0
      %1333 = vmatpush1.bf16.msra.mxu0 %v548
      %1334 = vmatprep.subr.bf16.mxu0 0
      %1335 = vmatpush1.bf16.msra.mxu0 %v549
      %1336 = vmatprep.mubr.bf16.mxu0 %v1232
      %1337 = vmatmul.mubr.bf16.gmra.mrb[0].mxu0 %v1231
      %v1338 = vpop.f32.mrb[0].mxu0
      %v1339 = vadd.f32 %v1296, %v1338
      %v1340 = vpop.f32.mrb[0].mxu0
      %v1341 = vpop.f32.mrb[0].mxu0
      %v1342 = vadd.f32 %v1299, %v1341
      %v1343 = vpop.f32.mrb[0].mxu0
      %1344 = vdwg.mxu0
      %v1348 = vunpack.c.l.b16 %v216
      %v1349 = vunpack.c.h.b16 %v216
      %v1350 = vunpack.c.l.b16 %v217
      %v1351 = vunpack.c.h.b16 %v217
      %v1352 = vunpack.c.l.b16 %v257
      %v1353 = vunpack.c.h.b16 %v257
      %v1354 = vpack.c.b16 %v1350, %v1348
      %v1355 = vpack.c.b16 %v1351, %v1349
      %v1356 = vpack.c.b16 %v1352, %v1352
      %v1357 = vpack.c.b16 %v1353, %v1353
      %v1359 = vshrl.u32 %v1354, 16
      %v1361 = vshll.u32 %v1354, 16
      %v1363 = vrot.slane %v1361, 1
      %v1364 = vor.u32 %v1359, %v1363
      %v1366 = vshll.u32 %v1356, 16
      %v1368 = vrot.slane %v1366, 1
      %v1369 = vsel %vm304, %v1364, %v1368
      %v1371 = vshrl.u32 %v1355, 16
      %v1373 = vshll.u32 %v1355, 16
      %v1375 = vrot.slane %v1373, 1
      %v1376 = vor.u32 %v1371, %v1375
      %v1378 = vshll.u32 %v1357, 16
      %v1380 = vrot.slane %v1378, 1
      %v1381 = vsel %vm304, %v1376, %v1380
      %1384 = vmatprep.subr.bf16.mxu0 0
      %1385 = vmatpush1.bf16.msra.mxu0 %v395
      %1386 = vmatprep.subr.bf16.mxu0 0
      %1387 = vmatpush1.bf16.msra.mxu0 %v396
      %1388 = vmatprep.subr.bf16.mxu0 0
      %1389 = vmatpush1.bf16.msra.mxu0 %v397
      %1390 = vmatprep.subr.bf16.mxu0 0
      %1391 = vmatpush1.bf16.msra.mxu0 %v398
      %1392 = vmatprep.subr.bf16.mxu0 0
      %1393 = vmatpush1.bf16.msra.mxu0 %v399
      %1394 = vmatprep.subr.bf16.mxu0 0
      %1395 = vmatpush1.bf16.msra.mxu0 %v400
      %1396 = vmatprep.subr.bf16.mxu0 0
      %1397 = vmatpush1.bf16.msra.mxu0 %v401
      %1398 = vmatprep.subr.bf16.mxu0 0
      %1399 = vmatpush1.bf16.msra.mxu0 %v402
      %1400 = vmatprep.subr.bf16.mxu0 0
      %1401 = vmatpush1.bf16.msra.mxu0 %v403
      %1402 = vmatprep.subr.bf16.mxu0 0
      %1403 = vmatpush1.bf16.msra.mxu0 %v404
      %1404 = vmatprep.subr.bf16.mxu0 0
      %1405 = vmatpush1.bf16.msra.mxu0 %v405
      %1406 = vmatprep.subr.bf16.mxu0 0
      %1407 = vmatpush1.bf16.msra.mxu0 %v406
      %1408 = vmatprep.subr.bf16.mxu0 0
      %1409 = vmatpush1.bf16.msra.mxu0 %v407
      %1410 = vmatprep.subr.bf16.mxu0 0
      %1411 = vmatpush1.bf16.msra.mxu0 %v408
      %1412 = vmatprep.subr.bf16.mxu0 0
      %1413 = vmatpush1.bf16.msra.mxu0 %v409
      %1414 = vmatprep.subr.bf16.mxu0 0
      %1415 = vmatpush1.bf16.msra.mxu0 %v410
      %1416 = vmatprep.mubr.bf16.mxu0 %v1381
      %1417 = vmatmul.mubr.bf16.gmra.mrb[0].mxu0 %v1369
      %v1418 = vpop.f32.mrb[0].mxu0
      %v1419 = vadd.f32 0.0, %v1418
      %v1420 = vpop.f32.mrb[0].mxu0
      %v1421 = vpop.f32.mrb[0].mxu0
      %v1422 = vadd.f32 0.0, %v1421
      %v1423 = vpop.f32.mrb[0].mxu0
      %1424 = vdwg.mxu0
      %1427 = vmatprep.subr.bf16.mxu0 0
      %1428 = vmatpush1.bf16.msra.mxu0 %v534
      %1429 = vmatprep.subr.bf16.mxu0 0
      %1430 = vmatpush1.bf16.msra.mxu0 %v535
      %1431 = vmatprep.subr.bf16.mxu0 0
      %1432 = vmatpush1.bf16.msra.mxu0 %v536
      %1433 = vmatprep.subr.bf16.mxu0 0
      %1434 = vmatpush1.bf16.msra.mxu0 %v537
      %1435 = vmatprep.subr.bf16.mxu0 0
      %1436 = vmatpush1.bf16.msra.mxu0 %v538
      %1437 = vmatprep.subr.bf16.mxu0 0
      %1438 = vmatpush1.bf16.msra.mxu0 %v539
      %1439 = vmatprep.subr.bf16.mxu0 0
      %1440 = vmatpush1.bf16.msra.mxu0 %v540
      %1441 = vmatprep.subr.bf16.mxu0 0
      %1442 = vmatpush1.bf16.msra.mxu0 %v541
      %1443 = vmatprep.subr.bf16.mxu0 0
      %1444 = vmatpush1.bf16.msra.mxu0 %v542
      %1445 = vmatprep.subr.bf16.mxu0 0
      %1446 = vmatpush1.bf16.msra.mxu0 %v543
      %1447 = vmatprep.subr.bf16.mxu0 0
      %1448 = vmatpush1.bf16.msra.mxu0 %v544
      %1449 = vmatprep.subr.bf16.mxu0 0
      %1450 = vmatpush1.bf16.msra.mxu0 %v545
      %1451 = vmatprep.subr.bf16.mxu0 0
      %1452 = vmatpush1.bf16.msra.mxu0 %v546
      %1453 = vmatprep.subr.bf16.mxu0 0
      %1454 = vmatpush1.bf16.msra.mxu0 %v547
      %1455 = vmatprep.subr.bf16.mxu0 0
      %1456 = vmatpush1.bf16.msra.mxu0 %v548
      %1457 = vmatprep.subr.bf16.mxu0 0
      %1458 = vmatpush1.bf16.msra.mxu0 %v549
      %1459 = vmatprep.mubr.bf16.mxu0 %v1355
      %1460 = vmatmul.mubr.bf16.gmra.mrb[0].mxu0 %v1354
      %v1461 = vpop.f32.mrb[0].mxu0
      %v1462 = vadd.f32 %v1419, %v1461
      %v1463 = vpop.f32.mrb[0].mxu0
      %v1464 = vpop.f32.mrb[0].mxu0
      %v1465 = vadd.f32 %v1422, %v1464
      %v1466 = vpop.f32.mrb[0].mxu0
      %1467 = vdwg.mxu0
      %s1468 = sadd.s32 %s197, 1
      %s1469 = smul.u32 %s1468, 6
      %s1470 = smul.addr %s1469, 4
      %s1471 = scalar_lea.vmem %s184, %s1470
      %v1472 = vld [vmem:[%s1471] sm:$0xff]
      %v1473 = vld [vmem:[%s1471 + $0x8] sm:$0xff]
      %v1474 = vld [vmem:[%s1471 + $0x18] sm:$0xff]
      %v1475 = vld [vmem:[%s1471 + $0x20] sm:$0xff]
      %v1476 = vld [vmem:[%s1471 + $0x30] sm:$0xff]
      %v1477 = vld [vmem:[%s1471 + $0x38] sm:$0xff]
      %v1478 = vld [vmem:[%s1471 + $0x48] sm:$0xff]
      %v1479 = vld [vmem:[%s1471 + $0x50] sm:$0xff]
      %v1480 = vld [vmem:[%s1471 + $0x60] sm:$0xff]
      %v1481 = vld [vmem:[%s1471 + $0x68] sm:$0xff]
      %v1482 = vld [vmem:[%s1471 + $0x78] sm:$0xff]
      %v1483 = vld [vmem:[%s1471 + $0x80] sm:$0xff]
      %v1484 = vld [vmem:[%s1471 + $0x90] sm:$0xff]
      %v1485 = vld [vmem:[%s1471 + $0x98] sm:$0xff]
      %v1486 = vld [vmem:[%s1471 + $0xa8] sm:$0xff]
      %v1487 = vld [vmem:[%s1471 + $0xb0] sm:$0xff]
      %s1488 = scalar_lea.vmem %s1, 256
      %v1489 = vld [vmem:[%s1488] sm:$0xf]
      %v1490 = vld [vmem:[%s1488 + $0x4] sm:$0xf]
      %v1491 = vld [vmem:[%s1488 + $0x8] sm:$0xf]
      %v1492 = vld [vmem:[%s1488 + $0xc] sm:$0xf]
      %v1493 = vld [vmem:[%s1488 + $0x10] sm:$0xf]
      %v1494 = vld [vmem:[%s1488 + $0x14] sm:$0xf]
      %v1495 = vld [vmem:[%s1488 + $0x18] sm:$0xf]
      %v1496 = vld [vmem:[%s1488 + $0x1c] sm:$0xf]
      %v1497 = vld [vmem:[%s1488 + $0x20] sm:$0xf]
      %v1498 = vld [vmem:[%s1488 + $0x24] sm:$0xf]
      %v1499 = vld [vmem:[%s1488 + $0x28] sm:$0xf]
      %v1500 = vld [vmem:[%s1488 + $0x2c] sm:$0xf]
      %v1501 = vld [vmem:[%s1488 + $0x30] sm:$0xf]
      %v1502 = vld [vmem:[%s1488 + $0x34] sm:$0xf]
      %v1503 = vld [vmem:[%s1488 + $0x38] sm:$0xf]
      %v1504 = vld [vmem:[%s1488 + $0x3c] sm:$0xf]
      %v1505 = vld [vmem:[%s1488 + $0x40] sm:$0xf]
      %v1506 = vld [vmem:[%s1488 + $0x44] sm:$0xf]
      %v1507 = vld [vmem:[%s1488 + $0x48] sm:$0xf]
      %v1508 = vld [vmem:[%s1488 + $0x4c] sm:$0xf]
      %v1509 = vld [vmem:[%s1488 + $0x50] sm:$0xf]
      %v1510 = vld [vmem:[%s1488 + $0x54] sm:$0xf]
      %v1511 = vld [vmem:[%s1488 + $0x58] sm:$0xf]
      %v1512 = vld [vmem:[%s1488 + $0x5c] sm:$0xf]
      %v1513 = vld [vmem:[%s1488 + $0x60] sm:$0xf]
      %v1514 = vld [vmem:[%s1488 + $0x64] sm:$0xf]
      %v1515 = vld [vmem:[%s1488 + $0x68] sm:$0xf]
      %v1516 = vld [vmem:[%s1488 + $0x6c] sm:$0xf]
      %v1517 = vld [vmem:[%s1488 + $0x70] sm:$0xf]
      %v1518 = vld [vmem:[%s1488 + $0x74] sm:$0xf]
      %v1519 = vld [vmem:[%s1488 + $0x78] sm:$0xf]
      %v1520 = vld [vmem:[%s1488 + $0x7c] sm:$0xf]
      %v1523 = vunpack.c.l.b16 %v1472
      %v1524 = vunpack.c.h.b16 %v1472
      %v1525 = vunpack.c.l.b16 %v1473
      %v1526 = vunpack.c.h.b16 %v1473
      %v1527 = vpack.c.b16 %v1525, %v1523
      %v1528 = vpack.c.b16 %v1526, %v1524
      %v1563 = vunpack.c.l.b16 %v1489
      %v1564 = vunpack.c.l.b16 %v1490
      %v1565 = vunpack.c.l.b16 %v1491
      %v1566 = vunpack.c.l.b16 %v1492
      %v1567 = vunpack.c.l.b16 %v1493
      %v1568 = vunpack.c.l.b16 %v1494
      %v1569 = vunpack.c.l.b16 %v1495
      %v1570 = vunpack.c.l.b16 %v1496
      %v1571 = vunpack.c.l.b16 %v1497
      %v1572 = vunpack.c.l.b16 %v1498
      %v1573 = vunpack.c.l.b16 %v1499
      %v1574 = vunpack.c.l.b16 %v1500
      %v1575 = vunpack.c.l.b16 %v1501
      %v1576 = vunpack.c.l.b16 %v1502
      %v1577 = vunpack.c.l.b16 %v1503
      %v1578 = vunpack.c.l.b16 %v1504
      %v1579 = vunpack.c.l.b16 %v1505
      %v1580 = vunpack.c.l.b16 %v1506
      %v1581 = vunpack.c.l.b16 %v1507
      %v1582 = vunpack.c.l.b16 %v1508
      %v1583 = vunpack.c.l.b16 %v1509
      %v1584 = vunpack.c.l.b16 %v1510
      %v1585 = vunpack.c.l.b16 %v1511
      %v1586 = vunpack.c.l.b16 %v1512
      %v1587 = vunpack.c.l.b16 %v1513
      %v1588 = vunpack.c.l.b16 %v1514
      %v1589 = vunpack.c.l.b16 %v1515
      %v1590 = vunpack.c.l.b16 %v1516
      %v1591 = vunpack.c.l.b16 %v1517
      %v1592 = vunpack.c.l.b16 %v1518
      %v1593 = vunpack.c.l.b16 %v1519
      %v1594 = vunpack.c.l.b16 %v1520
      %v1595 = vpack.c.b16 %v1564, %v1563
      %v1596 = vpack.c.b16 %v1566, %v1565
      %v1597 = vpack.c.b16 %v1568, %v1567
      %v1598 = vpack.c.b16 %v1570, %v1569
      %v1599 = vpack.c.b16 %v1572, %v1571
      %v1600 = vpack.c.b16 %v1574, %v1573
      %v1601 = vpack.c.b16 %v1576, %v1575
      %v1602 = vpack.c.b16 %v1578, %v1577
      %v1603 = vpack.c.b16 %v1580, %v1579
      %v1604 = vpack.c.b16 %v1582, %v1581
      %v1605 = vpack.c.b16 %v1584, %v1583
      %v1606 = vpack.c.b16 %v1586, %v1585
      %v1607 = vpack.c.b16 %v1588, %v1587
      %v1608 = vpack.c.b16 %v1590, %v1589
      %v1609 = vpack.c.b16 %v1592, %v1591
      %v1610 = vpack.c.b16 %v1594, %v1593
      %1627 = vmatprep.subr.bf16.mxu0 0
      %1628 = vmatpush1.bf16.msra.mxu0 %v1595
      %1629 = vmatprep.subr.bf16.mxu0 0
      %1630 = vmatpush1.bf16.msra.mxu0 %v1596
      %1631 = vmatprep.subr.bf16.mxu0 0
      %1632 = vmatpush1.bf16.msra.mxu0 %v1597
      %1633 = vmatprep.subr.bf16.mxu0 0
      %1634 = vmatpush1.bf16.msra.mxu0 %v1598
      %1635 = vmatprep.subr.bf16.mxu0 0
      %1636 = vmatpush1.bf16.msra.mxu0 %v1599
      %1637 = vmatprep.subr.bf16.mxu0 0
      %1638 = vmatpush1.bf16.msra.mxu0 %v1600
      %1639 = vmatprep.subr.bf16.mxu0 0
      %1640 = vmatpush1.bf16.msra.mxu0 %v1601
      %1641 = vmatprep.subr.bf16.mxu0 0
      %1642 = vmatpush1.bf16.msra.mxu0 %v1602
      %1643 = vmatprep.subr.bf16.mxu0 0
      %1644 = vmatpush1.bf16.msra.mxu0 %v1603
      %1645 = vmatprep.subr.bf16.mxu0 0
      %1646 = vmatpush1.bf16.msra.mxu0 %v1604
      %1647 = vmatprep.subr.bf16.mxu0 0
      %1648 = vmatpush1.bf16.msra.mxu0 %v1605
      %1649 = vmatprep.subr.bf16.mxu0 0
      %1650 = vmatpush1.bf16.msra.mxu0 %v1606
      %1651 = vmatprep.subr.bf16.mxu0 0
      %1652 = vmatpush1.bf16.msra.mxu0 %v1607
      %1653 = vmatprep.subr.bf16.mxu0 0
      %1654 = vmatpush1.bf16.msra.mxu0 %v1608
      %1655 = vmatprep.subr.bf16.mxu0 0
      %1656 = vmatpush1.bf16.msra.mxu0 %v1609
      %1657 = vmatprep.subr.bf16.mxu0 0
      %1658 = vmatpush1.bf16.msra.mxu0 %v1610
      %1659 = vmatprep.mubr.bf16.mxu0 %v1528
      %1660 = vmatmul.mubr.bf16.gmra.mrb[0].mxu0 %v1527
      %v1661 = vpop.f32.mrb[0].mxu0
      %v1662 = vadd.f32 0.0, %v1661
      %v1663 = vpop.f32.mrb[0].mxu0
      %v1664 = vpop.f32.mrb[0].mxu0
      %v1665 = vadd.f32 0.0, %v1664
      %v1666 = vpop.f32.mrb[0].mxu0
      %1667 = vdwg.mxu0
      %v1668 = vadd.f32 %v601, %v1662
      %v1669 = vadd.f32 %v604, %v1665
      %v1672 = vunpack.c.l.b16 %v1474
      %v1673 = vunpack.c.h.b16 %v1474
      %v1674 = vunpack.c.l.b16 %v1475
      %v1675 = vunpack.c.h.b16 %v1475
      %v1676 = vpack.c.b16 %v1674, %v1672
      %v1677 = vpack.c.b16 %v1675, %v1673
      %1680 = vmatprep.subr.bf16.mxu0 0
      %1681 = vmatpush1.bf16.msra.mxu0 %v1595
      %1682 = vmatprep.subr.bf16.mxu0 0
      %1683 = vmatpush1.bf16.msra.mxu0 %v1596
      %1684 = vmatprep.subr.bf16.mxu0 0
      %1685 = vmatpush1.bf16.msra.mxu0 %v1597
      %1686 = vmatprep.subr.bf16.mxu0 0
      %1687 = vmatpush1.bf16.msra.mxu0 %v1598
      %1688 = vmatprep.subr.bf16.mxu0 0
      %1689 = vmatpush1.bf16.msra.mxu0 %v1599
      %1690 = vmatprep.subr.bf16.mxu0 0
      %1691 = vmatpush1.bf16.msra.mxu0 %v1600
      %1692 = vmatprep.subr.bf16.mxu0 0
      %1693 = vmatpush1.bf16.msra.mxu0 %v1601
      %1694 = vmatprep.subr.bf16.mxu0 0
      %1695 = vmatpush1.bf16.msra.mxu0 %v1602
      %1696 = vmatprep.subr.bf16.mxu0 0
      %1697 = vmatpush1.bf16.msra.mxu0 %v1603
      %1698 = vmatprep.subr.bf16.mxu0 0
      %1699 = vmatpush1.bf16.msra.mxu0 %v1604
      %1700 = vmatprep.subr.bf16.mxu0 0
      %1701 = vmatpush1.bf16.msra.mxu0 %v1605
      %1702 = vmatprep.subr.bf16.mxu0 0
      %1703 = vmatpush1.bf16.msra.mxu0 %v1606
      %1704 = vmatprep.subr.bf16.mxu0 0
      %1705 = vmatpush1.bf16.msra.mxu0 %v1607
      %1706 = vmatprep.subr.bf16.mxu0 0
      %1707 = vmatpush1.bf16.msra.mxu0 %v1608
      %1708 = vmatprep.subr.bf16.mxu0 0
      %1709 = vmatpush1.bf16.msra.mxu0 %v1609
      %1710 = vmatprep.subr.bf16.mxu0 0
      %1711 = vmatpush1.bf16.msra.mxu0 %v1610
      %1712 = vmatprep.mubr.bf16.mxu0 %v1677
      %1713 = vmatmul.mubr.bf16.gmra.mrb[0].mxu0 %v1676
      %v1714 = vpop.f32.mrb[0].mxu0
      %v1715 = vadd.f32 0.0, %v1714
      %v1716 = vpop.f32.mrb[0].mxu0
      %v1717 = vpop.f32.mrb[0].mxu0
      %v1718 = vadd.f32 0.0, %v1717
      %v1719 = vpop.f32.mrb[0].mxu0
      %1720 = vdwg.mxu0
      %v1721 = vadd.f32 %v724, %v1715
      %v1722 = vadd.f32 %v727, %v1718
      %v1725 = vunpack.c.l.b16 %v1476
      %v1726 = vunpack.c.h.b16 %v1476
      %v1727 = vunpack.c.l.b16 %v1477
      %v1728 = vunpack.c.h.b16 %v1477
      %v1729 = vpack.c.b16 %v1727, %v1725
      %v1730 = vpack.c.b16 %v1728, %v1726
      %1733 = vmatprep.subr.bf16.mxu0 0
      %1734 = vmatpush1.bf16.msra.mxu0 %v1595
      %1735 = vmatprep.subr.bf16.mxu0 0
      %1736 = vmatpush1.bf16.msra.mxu0 %v1596
      %1737 = vmatprep.subr.bf16.mxu0 0
      %1738 = vmatpush1.bf16.msra.mxu0 %v1597
      %1739 = vmatprep.subr.bf16.mxu0 0
      %1740 = vmatpush1.bf16.msra.mxu0 %v1598
      %1741 = vmatprep.subr.bf16.mxu0 0
      %1742 = vmatpush1.bf16.msra.mxu0 %v1599
      %1743 = vmatprep.subr.bf16.mxu0 0
      %1744 = vmatpush1.bf16.msra.mxu0 %v1600
      %1745 = vmatprep.subr.bf16.mxu0 0
      %1746 = vmatpush1.bf16.msra.mxu0 %v1601
      %1747 = vmatprep.subr.bf16.mxu0 0
      %1748 = vmatpush1.bf16.msra.mxu0 %v1602
      %1749 = vmatprep.subr.bf16.mxu0 0
      %1750 = vmatpush1.bf16.msra.mxu0 %v1603
      %1751 = vmatprep.subr.bf16.mxu0 0
      %1752 = vmatpush1.bf16.msra.mxu0 %v1604
      %1753 = vmatprep.subr.bf16.mxu0 0
      %1754 = vmatpush1.bf16.msra.mxu0 %v1605
      %1755 = vmatprep.subr.bf16.mxu0 0
      %1756 = vmatpush1.bf16.msra.mxu0 %v1606
      %1757 = vmatprep.subr.bf16.mxu0 0
      %1758 = vmatpush1.bf16.msra.mxu0 %v1607
      %1759 = vmatprep.subr.bf16.mxu0 0
      %1760 = vmatpush1.bf16.msra.mxu0 %v1608
      %1761 = vmatprep.subr.bf16.mxu0 0
      %1762 = vmatpush1.bf16.msra.mxu0 %v1609
      %1763 = vmatprep.subr.bf16.mxu0 0
      %1764 = vmatpush1.bf16.msra.mxu0 %v1610
      %1765 = vmatprep.mubr.bf16.mxu0 %v1730
      %1766 = vmatmul.mubr.bf16.gmra.mrb[0].mxu0 %v1729
      %v1767 = vpop.f32.mrb[0].mxu0
      %v1768 = vadd.f32 0.0, %v1767
      %v1769 = vpop.f32.mrb[0].mxu0
      %v1770 = vpop.f32.mrb[0].mxu0
      %v1771 = vadd.f32 0.0, %v1770
      %v1772 = vpop.f32.mrb[0].mxu0
      %1773 = vdwg.mxu0
      %v1774 = vadd.f32 %v847, %v1768
      %v1775 = vadd.f32 %v850, %v1771
      %v1778 = vunpack.c.l.b16 %v1478
      %v1779 = vunpack.c.h.b16 %v1478
      %v1780 = vunpack.c.l.b16 %v1479
      %v1781 = vunpack.c.h.b16 %v1479
      %v1782 = vpack.c.b16 %v1780, %v1778
      %v1783 = vpack.c.b16 %v1781, %v1779
      %1786 = vmatprep.subr.bf16.mxu0 0
      %1787 = vmatpush1.bf16.msra.mxu0 %v1595
      %1788 = vmatprep.subr.bf16.mxu0 0
      %1789 = vmatpush1.bf16.msra.mxu0 %v1596
      %1790 = vmatprep.subr.bf16.mxu0 0
      %1791 = vmatpush1.bf16.msra.mxu0 %v1597
      %1792 = vmatprep.subr.bf16.mxu0 0
      %1793 = vmatpush1.bf16.msra.mxu0 %v1598
      %1794 = vmatprep.subr.bf16.mxu0 0
      %1795 = vmatpush1.bf16.msra.mxu0 %v1599
      %1796 = vmatprep.subr.bf16.mxu0 0
      %1797 = vmatpush1.bf16.msra.mxu0 %v1600
      %1798 = vmatprep.subr.bf16.mxu0 0
      %1799 = vmatpush1.bf16.msra.mxu0 %v1601
      %1800 = vmatprep.subr.bf16.mxu0 0
      %1801 = vmatpush1.bf16.msra.mxu0 %v1602
      %1802 = vmatprep.subr.bf16.mxu0 0
      %1803 = vmatpush1.bf16.msra.mxu0 %v1603
      %1804 = vmatprep.subr.bf16.mxu0 0
      %1805 = vmatpush1.bf16.msra.mxu0 %v1604
      %1806 = vmatprep.subr.bf16.mxu0 0
      %1807 = vmatpush1.bf16.msra.mxu0 %v1605
      %1808 = vmatprep.subr.bf16.mxu0 0
      %1809 = vmatpush1.bf16.msra.mxu0 %v1606
      %1810 = vmatprep.subr.bf16.mxu0 0
      %1811 = vmatpush1.bf16.msra.mxu0 %v1607
      %1812 = vmatprep.subr.bf16.mxu0 0
      %1813 = vmatpush1.bf16.msra.mxu0 %v1608
      %1814 = vmatprep.subr.bf16.mxu0 0
      %1815 = vmatpush1.bf16.msra.mxu0 %v1609
      %1816 = vmatprep.subr.bf16.mxu0 0
      %1817 = vmatpush1.bf16.msra.mxu0 %v1610
      %1818 = vmatprep.mubr.bf16.mxu0 %v1783
      %1819 = vmatmul.mubr.bf16.gmra.mrb[0].mxu0 %v1782
      %v1820 = vpop.f32.mrb[0].mxu0
      %v1821 = vadd.f32 0.0, %v1820
      %v1822 = vpop.f32.mrb[0].mxu0
      %v1823 = vpop.f32.mrb[0].mxu0
      %v1824 = vadd.f32 0.0, %v1823
      %v1825 = vpop.f32.mrb[0].mxu0
      %1826 = vdwg.mxu0
      %v1827 = vadd.f32 %v970, %v1821
      %v1828 = vadd.f32 %v973, %v1824
      %v1831 = vunpack.c.l.b16 %v1480
      %v1832 = vunpack.c.h.b16 %v1480
      %v1833 = vunpack.c.l.b16 %v1481
      %v1834 = vunpack.c.h.b16 %v1481
      %v1835 = vpack.c.b16 %v1833, %v1831
      %v1836 = vpack.c.b16 %v1834, %v1832
      %1839 = vmatprep.subr.bf16.mxu0 0
      %1840 = vmatpush1.bf16.msra.mxu0 %v1595
      %1841 = vmatprep.subr.bf16.mxu0 0
      %1842 = vmatpush1.bf16.msra.mxu0 %v1596
      %1843 = vmatprep.subr.bf16.mxu0 0
      %1844 = vmatpush1.bf16.msra.mxu0 %v1597
      %1845 = vmatprep.subr.bf16.mxu0 0
      %1846 = vmatpush1.bf16.msra.mxu0 %v1598
      %1847 = vmatprep.subr.bf16.mxu0 0
      %1848 = vmatpush1.bf16.msra.mxu0 %v1599
      %1849 = vmatprep.subr.bf16.mxu0 0
      %1850 = vmatpush1.bf16.msra.mxu0 %v1600
      %1851 = vmatprep.subr.bf16.mxu0 0
      %1852 = vmatpush1.bf16.msra.mxu0 %v1601
      %1853 = vmatprep.subr.bf16.mxu0 0
      %1854 = vmatpush1.bf16.msra.mxu0 %v1602
      %1855 = vmatprep.subr.bf16.mxu0 0
      %1856 = vmatpush1.bf16.msra.mxu0 %v1603
      %1857 = vmatprep.subr.bf16.mxu0 0
      %1858 = vmatpush1.bf16.msra.mxu0 %v1604
      %1859 = vmatprep.subr.bf16.mxu0 0
      %1860 = vmatpush1.bf16.msra.mxu0 %v1605
      %1861 = vmatprep.subr.bf16.mxu0 0
      %1862 = vmatpush1.bf16.msra.mxu0 %v1606
      %1863 = vmatprep.subr.bf16.mxu0 0
      %1864 = vmatpush1.bf16.msra.mxu0 %v1607
      %1865 = vmatprep.subr.bf16.mxu0 0
      %1866 = vmatpush1.bf16.msra.mxu0 %v1608
      %1867 = vmatprep.subr.bf16.mxu0 0
      %1868 = vmatpush1.bf16.msra.mxu0 %v1609
      %1869 = vmatprep.subr.bf16.mxu0 0
      %1870 = vmatpush1.bf16.msra.mxu0 %v1610
      %1871 = vmatprep.mubr.bf16.mxu0 %v1836
      %1872 = vmatmul.mubr.bf16.gmra.mrb[0].mxu0 %v1835
      %v1873 = vpop.f32.mrb[0].mxu0
      %v1874 = vadd.f32 0.0, %v1873
      %v1875 = vpop.f32.mrb[0].mxu0
      %v1876 = vpop.f32.mrb[0].mxu0
      %v1877 = vadd.f32 0.0, %v1876
      %v1878 = vpop.f32.mrb[0].mxu0
      %1879 = vdwg.mxu0
      %v1880 = vadd.f32 %v1093, %v1874
      %v1881 = vadd.f32 %v1096, %v1877
      %v1884 = vunpack.c.l.b16 %v1482
      %v1885 = vunpack.c.h.b16 %v1482
      %v1886 = vunpack.c.l.b16 %v1483
      %v1887 = vunpack.c.h.b16 %v1483
      %v1888 = vpack.c.b16 %v1886, %v1884
      %v1889 = vpack.c.b16 %v1887, %v1885
      %1892 = vmatprep.subr.bf16.mxu0 0
      %1893 = vmatpush1.bf16.msra.mxu0 %v1595
      %1894 = vmatprep.subr.bf16.mxu0 0
      %1895 = vmatpush1.bf16.msra.mxu0 %v1596
      %1896 = vmatprep.subr.bf16.mxu0 0
      %1897 = vmatpush1.bf16.msra.mxu0 %v1597
      %1898 = vmatprep.subr.bf16.mxu0 0
      %1899 = vmatpush1.bf16.msra.mxu0 %v1598
      %1900 = vmatprep.subr.bf16.mxu0 0
      %1901 = vmatpush1.bf16.msra.mxu0 %v1599
      %1902 = vmatprep.subr.bf16.mxu0 0
      %1903 = vmatpush1.bf16.msra.mxu0 %v1600
      %1904 = vmatprep.subr.bf16.mxu0 0
      %1905 = vmatpush1.bf16.msra.mxu0 %v1601
      %1906 = vmatprep.subr.bf16.mxu0 0
      %1907 = vmatpush1.bf16.msra.mxu0 %v1602
      %1908 = vmatprep.subr.bf16.mxu0 0
      %1909 = vmatpush1.bf16.msra.mxu0 %v1603
      %1910 = vmatprep.subr.bf16.mxu0 0
      %1911 = vmatpush1.bf16.msra.mxu0 %v1604
      %1912 = vmatprep.subr.bf16.mxu0 0
      %1913 = vmatpush1.bf16.msra.mxu0 %v1605
      %1914 = vmatprep.subr.bf16.mxu0 0
      %1915 = vmatpush1.bf16.msra.mxu0 %v1606
      %1916 = vmatprep.subr.bf16.mxu0 0
      %1917 = vmatpush1.bf16.msra.mxu0 %v1607
      %1918 = vmatprep.subr.bf16.mxu0 0
      %1919 = vmatpush1.bf16.msra.mxu0 %v1608
      %1920 = vmatprep.subr.bf16.mxu0 0
      %1921 = vmatpush1.bf16.msra.mxu0 %v1609
      %1922 = vmatprep.subr.bf16.mxu0 0
      %1923 = vmatpush1.bf16.msra.mxu0 %v1610
      %1924 = vmatprep.mubr.bf16.mxu0 %v1889
      %1925 = vmatmul.mubr.bf16.gmra.mrb[0].mxu0 %v1888
      %v1926 = vpop.f32.mrb[0].mxu0
      %v1927 = vadd.f32 0.0, %v1926
      %v1928 = vpop.f32.mrb[0].mxu0
      %v1929 = vpop.f32.mrb[0].mxu0
      %v1930 = vadd.f32 0.0, %v1929
      %v1931 = vpop.f32.mrb[0].mxu0
      %1932 = vdwg.mxu0
      %v1933 = vadd.f32 %v1216, %v1927
      %v1934 = vadd.f32 %v1219, %v1930
      %v1937 = vunpack.c.l.b16 %v1484
      %v1938 = vunpack.c.h.b16 %v1484
      %v1939 = vunpack.c.l.b16 %v1485
      %v1940 = vunpack.c.h.b16 %v1485
      %v1941 = vpack.c.b16 %v1939, %v1937
      %v1942 = vpack.c.b16 %v1940, %v1938
      %1945 = vmatprep.subr.bf16.mxu0 0
      %1946 = vmatpush1.bf16.msra.mxu0 %v1595
      %1947 = vmatprep.subr.bf16.mxu0 0
      %1948 = vmatpush1.bf16.msra.mxu0 %v1596
      %1949 = vmatprep.subr.bf16.mxu0 0
      %1950 = vmatpush1.bf16.msra.mxu0 %v1597
      %1951 = vmatprep.subr.bf16.mxu0 0
      %1952 = vmatpush1.bf16.msra.mxu0 %v1598
      %1953 = vmatprep.subr.bf16.mxu0 0
      %1954 = vmatpush1.bf16.msra.mxu0 %v1599
      %1955 = vmatprep.subr.bf16.mxu0 0
      %1956 = vmatpush1.bf16.msra.mxu0 %v1600
      %1957 = vmatprep.subr.bf16.mxu0 0
      %1958 = vmatpush1.bf16.msra.mxu0 %v1601
      %1959 = vmatprep.subr.bf16.mxu0 0
      %1960 = vmatpush1.bf16.msra.mxu0 %v1602
      %1961 = vmatprep.subr.bf16.mxu0 0
      %1962 = vmatpush1.bf16.msra.mxu0 %v1603
      %1963 = vmatprep.subr.bf16.mxu0 0
      %1964 = vmatpush1.bf16.msra.mxu0 %v1604
      %1965 = vmatprep.subr.bf16.mxu0 0
      %1966 = vmatpush1.bf16.msra.mxu0 %v1605
      %1967 = vmatprep.subr.bf16.mxu0 0
      %1968 = vmatpush1.bf16.msra.mxu0 %v1606
      %1969 = vmatprep.subr.bf16.mxu0 0
      %1970 = vmatpush1.bf16.msra.mxu0 %v1607
      %1971 = vmatprep.subr.bf16.mxu0 0
      %1972 = vmatpush1.bf16.msra.mxu0 %v1608
      %1973 = vmatprep.subr.bf16.mxu0 0
      %1974 = vmatpush1.bf16.msra.mxu0 %v1609
      %1975 = vmatprep.subr.bf16.mxu0 0
      %1976 = vmatpush1.bf16.msra.mxu0 %v1610
      %1977 = vmatprep.mubr.bf16.mxu0 %v1942
      %1978 = vmatmul.mubr.bf16.gmra.mrb[0].mxu0 %v1941
      %v1979 = vpop.f32.mrb[0].mxu0
      %v1980 = vadd.f32 0.0, %v1979
      %v1981 = vpop.f32.mrb[0].mxu0
      %v1982 = vpop.f32.mrb[0].mxu0
      %v1983 = vadd.f32 0.0, %v1982
      %v1984 = vpop.f32.mrb[0].mxu0
      %1985 = vdwg.mxu0
      %v1986 = vadd.f32 %v1339, %v1980
      %v1987 = vadd.f32 %v1342, %v1983
      %v1990 = vunpack.c.l.b16 %v1486
      %v1991 = vunpack.c.h.b16 %v1486
      %v1992 = vunpack.c.l.b16 %v1487
      %v1993 = vunpack.c.h.b16 %v1487
      %v1994 = vpack.c.b16 %v1992, %v1990
      %v1995 = vpack.c.b16 %v1993, %v1991
      %1998 = vmatprep.subr.bf16.mxu0 0
      %1999 = vmatpush1.bf16.msra.mxu0 %v1595
      %2000 = vmatprep.subr.bf16.mxu0 0
      %2001 = vmatpush1.bf16.msra.mxu0 %v1596
      %2002 = vmatprep.subr.bf16.mxu0 0
      %2003 = vmatpush1.bf16.msra.mxu0 %v1597
      %2004 = vmatprep.subr.bf16.mxu0 0
      %2005 = vmatpush1.bf16.msra.mxu0 %v1598
      %2006 = vmatprep.subr.bf16.mxu0 0
      %2007 = vmatpush1.bf16.msra.mxu0 %v1599
      %2008 = vmatprep.subr.bf16.mxu0 0
      %2009 = vmatpush1.bf16.msra.mxu0 %v1600
      %2010 = vmatprep.subr.bf16.mxu0 0
      %2011 = vmatpush1.bf16.msra.mxu0 %v1601
      %2012 = vmatprep.subr.bf16.mxu0 0
      %2013 = vmatpush1.bf16.msra.mxu0 %v1602
      %2014 = vmatprep.subr.bf16.mxu0 0
      %2015 = vmatpush1.bf16.msra.mxu0 %v1603
      %2016 = vmatprep.subr.bf16.mxu0 0
      %2017 = vmatpush1.bf16.msra.mxu0 %v1604
      %2018 = vmatprep.subr.bf16.mxu0 0
      %2019 = vmatpush1.bf16.msra.mxu0 %v1605
      %2020 = vmatprep.subr.bf16.mxu0 0
      %2021 = vmatpush1.bf16.msra.mxu0 %v1606
      %2022 = vmatprep.subr.bf16.mxu0 0
      %2023 = vmatpush1.bf16.msra.mxu0 %v1607
      %2024 = vmatprep.subr.bf16.mxu0 0
      %2025 = vmatpush1.bf16.msra.mxu0 %v1608
      %2026 = vmatprep.subr.bf16.mxu0 0
      %2027 = vmatpush1.bf16.msra.mxu0 %v1609
      %2028 = vmatprep.subr.bf16.mxu0 0
      %2029 = vmatpush1.bf16.msra.mxu0 %v1610
      %2030 = vmatprep.mubr.bf16.mxu0 %v1995
      %2031 = vmatmul.mubr.bf16.gmra.mrb[0].mxu0 %v1994
      %v2032 = vpop.f32.mrb[0].mxu0
      %v2033 = vadd.f32 0.0, %v2032
      %v2034 = vpop.f32.mrb[0].mxu0
      %v2035 = vpop.f32.mrb[0].mxu0
      %v2036 = vadd.f32 0.0, %v2035
      %v2037 = vpop.f32.mrb[0].mxu0
      %2038 = vdwg.mxu0
      %v2039 = vadd.f32 %v1462, %v2033
      %v2040 = vadd.f32 %v1465, %v2036
      %v2041 = vld [vmem:[%s1471] sm:$0xff]
      %v2042 = vld [vmem:[%s1471 + $0x8] sm:$0xff]
      %v2043 = vld [vmem:[%s1471 + $0x10] sm:$0x11]
      %v2044 = vld [vmem:[%s1471 + $0x18] sm:$0xff]
      %v2045 = vld [vmem:[%s1471 + $0x20] sm:$0xff]
      %v2046 = vld [vmem:[%s1471 + $0x28] sm:$0x11]
      %v2047 = vld [vmem:[%s1471 + $0x30] sm:$0xff]
      %v2048 = vld [vmem:[%s1471 + $0x38] sm:$0xff]
      %v2049 = vld [vmem:[%s1471 + $0x40] sm:$0x11]
      %v2050 = vld [vmem:[%s1471 + $0x48] sm:$0xff]
      %v2051 = vld [vmem:[%s1471 + $0x50] sm:$0xff]
      %v2052 = vld [vmem:[%s1471 + $0x58] sm:$0x11]
      %v2053 = vld [vmem:[%s1471 + $0x60] sm:$0xff]
      %v2054 = vld [vmem:[%s1471 + $0x68] sm:$0xff]
      %v2055 = vld [vmem:[%s1471 + $0x70] sm:$0x11]
      %v2056 = vld [vmem:[%s1471 + $0x78] sm:$0xff]
      %v2057 = vld [vmem:[%s1471 + $0x80] sm:$0xff]
      %v2058 = vld [vmem:[%s1471 + $0x88] sm:$0x11]
      %v2059 = vld [vmem:[%s1471 + $0x90] sm:$0xff]
      %v2060 = vld [vmem:[%s1471 + $0x98] sm:$0xff]
      %v2061 = vld [vmem:[%s1471 + $0xa0] sm:$0x11]
      %v2062 = vld [vmem:[%s1471 + $0xa8] sm:$0xff]
      %v2063 = vld [vmem:[%s1471 + $0xb0] sm:$0xff]
      %v2064 = vld [vmem:[%s1471 + $0xb8] sm:$0x11]
      %s2065 = scalar_lea.vmem %s1, 384
      %v2066 = vld [vmem:[%s2065] sm:$0xf]
      %v2067 = vld [vmem:[%s2065 + $0x4] sm:$0xf]
      %v2068 = vld [vmem:[%s2065 + $0x8] sm:$0xf]
      %v2069 = vld [vmem:[%s2065 + $0xc] sm:$0xf]
      %v2070 = vld [vmem:[%s2065 + $0x10] sm:$0xf]
      %v2071 = vld [vmem:[%s2065 + $0x14] sm:$0xf]
      %v2072 = vld [vmem:[%s2065 + $0x18] sm:$0xf]
      %v2073 = vld [vmem:[%s2065 + $0x1c] sm:$0xf]
      %v2074 = vld [vmem:[%s2065 + $0x20] sm:$0xf]
      %v2075 = vld [vmem:[%s2065 + $0x24] sm:$0xf]
      %v2076 = vld [vmem:[%s2065 + $0x28] sm:$0xf]
      %v2077 = vld [vmem:[%s2065 + $0x2c] sm:$0xf]
      %v2078 = vld [vmem:[%s2065 + $0x30] sm:$0xf]
      %v2079 = vld [vmem:[%s2065 + $0x34] sm:$0xf]
      %v2080 = vld [vmem:[%s2065 + $0x38] sm:$0xf]
      %v2081 = vld [vmem:[%s2065 + $0x3c] sm:$0xf]
      %v2082 = vld [vmem:[%s2065 + $0x40] sm:$0xf]
      %v2083 = vld [vmem:[%s2065 + $0x44] sm:$0xf]
      %v2084 = vld [vmem:[%s2065 + $0x48] sm:$0xf]
      %v2085 = vld [vmem:[%s2065 + $0x4c] sm:$0xf]
      %v2086 = vld [vmem:[%s2065 + $0x50] sm:$0xf]
      %v2087 = vld [vmem:[%s2065 + $0x54] sm:$0xf]
      %v2088 = vld [vmem:[%s2065 + $0x58] sm:$0xf]
      %v2089 = vld [vmem:[%s2065 + $0x5c] sm:$0xf]
      %v2090 = vld [vmem:[%s2065 + $0x60] sm:$0xf]
      %v2091 = vld [vmem:[%s2065 + $0x64] sm:$0xf]
      %v2092 = vld [vmem:[%s2065 + $0x68] sm:$0xf]
      %v2093 = vld [vmem:[%s2065 + $0x6c] sm:$0xf]
      %v2094 = vld [vmem:[%s2065 + $0x70] sm:$0xf]
      %v2095 = vld [vmem:[%s2065 + $0x74] sm:$0xf]
      %v2096 = vld [vmem:[%s2065 + $0x78] sm:$0xf]
      %v2097 = vld [vmem:[%s2065 + $0x7c] sm:$0xf]
      %v2101 = vunpack.c.l.b16 %v2041
      %v2102 = vunpack.c.h.b16 %v2041
      %v2103 = vunpack.c.l.b16 %v2042
      %v2104 = vunpack.c.h.b16 %v2042
      %v2105 = vunpack.c.l.b16 %v2043
      %v2106 = vunpack.c.h.b16 %v2043
      %v2107 = vpack.c.b16 %v2103, %v2101
      %v2108 = vpack.c.b16 %v2104, %v2102
      %v2109 = vpack.c.b16 %v2105, %v2105
      %v2110 = vpack.c.b16 %v2106, %v2106
      %v2112 = vshrl.u32 %v2107, 16
      %v2114 = vshll.u32 %v2107, 16
      %v2116 = vrot.slane %v2114, 1
      %v2117 = vor.u32 %v2112, %v2116
      %v2119 = vshll.u32 %v2109, 16
      %v2121 = vrot.slane %v2119, 1
      %v2122 = vsel %vm304, %v2117, %v2121
      %v2124 = vshrl.u32 %v2108, 16
      %v2126 = vshll.u32 %v2108, 16
      %v2128 = vrot.slane %v2126, 1
      %v2129 = vor.u32 %v2124, %v2128
      %v2131 = vshll.u32 %v2110, 16
      %v2133 = vrot.slane %v2131, 1
      %v2134 = vsel %vm304, %v2129, %v2133
      %v2169 = vunpack.c.l.b16 %v2066
      %v2170 = vunpack.c.l.b16 %v2067
      %v2171 = vunpack.c.l.b16 %v2068
      %v2172 = vunpack.c.l.b16 %v2069
      %v2173 = vunpack.c.l.b16 %v2070
      %v2174 = vunpack.c.l.b16 %v2071
      %v2175 = vunpack.c.l.b16 %v2072
      %v2176 = vunpack.c.l.b16 %v2073
      %v2177 = vunpack.c.l.b16 %v2074
      %v2178 = vunpack.c.l.b16 %v2075
      %v2179 = vunpack.c.l.b16 %v2076
      %v2180 = vunpack.c.l.b16 %v2077
      %v2181 = vunpack.c.l.b16 %v2078
      %v2182 = vunpack.c.l.b16 %v2079
      %v2183 = vunpack.c.l.b16 %v2080
      %v2184 = vunpack.c.l.b16 %v2081
      %v2185 = vunpack.c.l.b16 %v2082
      %v2186 = vunpack.c.l.b16 %v2083
      %v2187 = vunpack.c.l.b16 %v2084
      %v2188 = vunpack.c.l.b16 %v2085
      %v2189 = vunpack.c.l.b16 %v2086
      %v2190 = vunpack.c.l.b16 %v2087
      %v2191 = vunpack.c.l.b16 %v2088
      %v2192 = vunpack.c.l.b16 %v2089
      %v2193 = vunpack.c.l.b16 %v2090
      %v2194 = vunpack.c.l.b16 %v2091
      %v2195 = vunpack.c.l.b16 %v2092
      %v2196 = vunpack.c.l.b16 %v2093
      %v2197 = vunpack.c.l.b16 %v2094
      %v2198 = vunpack.c.l.b16 %v2095
      %v2199 = vunpack.c.l.b16 %v2096
      %v2200 = vunpack.c.l.b16 %v2097
      %v2201 = vpack.c.b16 %v2170, %v2169
      %v2202 = vpack.c.b16 %v2172, %v2171
      %v2203 = vpack.c.b16 %v2174, %v2173
      %v2204 = vpack.c.b16 %v2176, %v2175
      %v2205 = vpack.c.b16 %v2178, %v2177
      %v2206 = vpack.c.b16 %v2180, %v2179
      %v2207 = vpack.c.b16 %v2182, %v2181
      %v2208 = vpack.c.b16 %v2184, %v2183
      %v2209 = vpack.c.b16 %v2186, %v2185
      %v2210 = vpack.c.b16 %v2188, %v2187
      %v2211 = vpack.c.b16 %v2190, %v2189
      %v2212 = vpack.c.b16 %v2192, %v2191
      %v2213 = vpack.c.b16 %v2194, %v2193
      %v2214 = vpack.c.b16 %v2196, %v2195
      %v2215 = vpack.c.b16 %v2198, %v2197
      %v2216 = vpack.c.b16 %v2200, %v2199
      %2233 = vmatprep.subr.bf16.mxu0 0
      %2234 = vmatpush1.bf16.msra.mxu0 %v2201
      %2235 = vmatprep.subr.bf16.mxu0 0
      %2236 = vmatpush1.bf16.msra.mxu0 %v2202
      %2237 = vmatprep.subr.bf16.mxu0 0
      %2238 = vmatpush1.bf16.msra.mxu0 %v2203
      %2239 = vmatprep.subr.bf16.mxu0 0
      %2240 = vmatpush1.bf16.msra.mxu0 %v2204
      %2241 = vmatprep.subr.bf16.mxu0 0
      %2242 = vmatpush1.bf16.msra.mxu0 %v2205
      %2243 = vmatprep.subr.bf16.mxu0 0
      %2244 = vmatpush1.bf16.msra.mxu0 %v2206
      %2245 = vmatprep.subr.bf16.mxu0 0
      %2246 = vmatpush1.bf16.msra.mxu0 %v2207
      %2247 = vmatprep.subr.bf16.mxu0 0
      %2248 = vmatpush1.bf16.msra.mxu0 %v2208
      %2249 = vmatprep.subr.bf16.mxu0 0
      %2250 = vmatpush1.bf16.msra.mxu0 %v2209
      %2251 = vmatprep.subr.bf16.mxu0 0
      %2252 = vmatpush1.bf16.msra.mxu0 %v2210
      %2253 = vmatprep.subr.bf16.mxu0 0
      %2254 = vmatpush1.bf16.msra.mxu0 %v2211
      %2255 = vmatprep.subr.bf16.mxu0 0
      %2256 = vmatpush1.bf16.msra.mxu0 %v2212
      %2257 = vmatprep.subr.bf16.mxu0 0
      %2258 = vmatpush1.bf16.msra.mxu0 %v2213
      %2259 = vmatprep.subr.bf16.mxu0 0
      %2260 = vmatpush1.bf16.msra.mxu0 %v2214
      %2261 = vmatprep.subr.bf16.mxu0 0
      %2262 = vmatpush1.bf16.msra.mxu0 %v2215
      %2263 = vmatprep.subr.bf16.mxu0 0
      %2264 = vmatpush1.bf16.msra.mxu0 %v2216
      %2265 = vmatprep.mubr.bf16.mxu0 %v2134
      %2266 = vmatmul.mubr.bf16.gmra.mrb[0].mxu0 %v2122
      %v2267 = vpop.f32.mrb[0].mxu0
      %v2268 = vadd.f32 0.0, %v2267
      %v2269 = vpop.f32.mrb[0].mxu0
      %v2270 = vpop.f32.mrb[0].mxu0
      %v2271 = vadd.f32 0.0, %v2270
      %v2272 = vpop.f32.mrb[0].mxu0
      %2273 = vdwg.mxu0
      %v2274 = vadd.f32 %v1668, %v2268
      %v2275 = vadd.f32 %v1669, %v2271
      %v2279 = vunpack.c.l.b16 %v2044
      %v2280 = vunpack.c.h.b16 %v2044
      %v2281 = vunpack.c.l.b16 %v2045
      %v2282 = vunpack.c.h.b16 %v2045
      %v2283 = vunpack.c.l.b16 %v2046
      %v2284 = vunpack.c.h.b16 %v2046
      %v2285 = vpack.c.b16 %v2281, %v2279
      %v2286 = vpack.c.b16 %v2282, %v2280
      %v2287 = vpack.c.b16 %v2283, %v2283
      %v2288 = vpack.c.b16 %v2284, %v2284
      %v2290 = vshrl.u32 %v2285, 16
      %v2292 = vshll.u32 %v2285, 16
      %v2294 = vrot.slane %v2292, 1
      %v2295 = vor.u32 %v2290, %v2294
      %v2297 = vshll.u32 %v2287, 16
      %v2299 = vrot.slane %v2297, 1
      %v2300 = vsel %vm304, %v2295, %v2299
      %v2302 = vshrl.u32 %v2286, 16
      %v2304 = vshll.u32 %v2286, 16
      %v2306 = vrot.slane %v2304, 1
      %v2307 = vor.u32 %v2302, %v2306
      %v2309 = vshll.u32 %v2288, 16
      %v2311 = vrot.slane %v2309, 1
      %v2312 = vsel %vm304, %v2307, %v2311
      %2315 = vmatprep.subr.bf16.mxu0 0
      %2316 = vmatpush1.bf16.msra.mxu0 %v2201
      %2317 = vmatprep.subr.bf16.mxu0 0
      %2318 = vmatpush1.bf16.msra.mxu0 %v2202
      %2319 = vmatprep.subr.bf16.mxu0 0
      %2320 = vmatpush1.bf16.msra.mxu0 %v2203
      %2321 = vmatprep.subr.bf16.mxu0 0
      %2322 = vmatpush1.bf16.msra.mxu0 %v2204
      %2323 = vmatprep.subr.bf16.mxu0 0
      %2324 = vmatpush1.bf16.msra.mxu0 %v2205
      %2325 = vmatprep.subr.bf16.mxu0 0
      %2326 = vmatpush1.bf16.msra.mxu0 %v2206
      %2327 = vmatprep.subr.bf16.mxu0 0
      %2328 = vmatpush1.bf16.msra.mxu0 %v2207
      %2329 = vmatprep.subr.bf16.mxu0 0
      %2330 = vmatpush1.bf16.msra.mxu0 %v2208
      %2331 = vmatprep.subr.bf16.mxu0 0
      %2332 = vmatpush1.bf16.msra.mxu0 %v2209
      %2333 = vmatprep.subr.bf16.mxu0 0
      %2334 = vmatpush1.bf16.msra.mxu0 %v2210
      %2335 = vmatprep.subr.bf16.mxu0 0
      %2336 = vmatpush1.bf16.msra.mxu0 %v2211
      %2337 = vmatprep.subr.bf16.mxu0 0
      %2338 = vmatpush1.bf16.msra.mxu0 %v2212
      %2339 = vmatprep.subr.bf16.mxu0 0
      %2340 = vmatpush1.bf16.msra.mxu0 %v2213
      %2341 = vmatprep.subr.bf16.mxu0 0
      %2342 = vmatpush1.bf16.msra.mxu0 %v2214
      %2343 = vmatprep.subr.bf16.mxu0 0
      %2344 = vmatpush1.bf16.msra.mxu0 %v2215
      %2345 = vmatprep.subr.bf16.mxu0 0
      %2346 = vmatpush1.bf16.msra.mxu0 %v2216
      %2347 = vmatprep.mubr.bf16.mxu0 %v2312
      %2348 = vmatmul.mubr.bf16.gmra.mrb[0].mxu0 %v2300
      %v2349 = vpop.f32.mrb[0].mxu0
      %v2350 = vadd.f32 0.0, %v2349
      %v2351 = vpop.f32.mrb[0].mxu0
      %v2352 = vpop.f32.mrb[0].mxu0
      %v2353 = vadd.f32 0.0, %v2352
      %v2354 = vpop.f32.mrb[0].mxu0
      %2355 = vdwg.mxu0
      %v2356 = vadd.f32 %v1721, %v2350
      %v2357 = vadd.f32 %v1722, %v2353
      %v2361 = vunpack.c.l.b16 %v2047
      %v2362 = vunpack.c.h.b16 %v2047
      %v2363 = vunpack.c.l.b16 %v2048
      %v2364 = vunpack.c.h.b16 %v2048
      %v2365 = vunpack.c.l.b16 %v2049
      %v2366 = vunpack.c.h.b16 %v2049
      %v2367 = vpack.c.b16 %v2363, %v2361
      %v2368 = vpack.c.b16 %v2364, %v2362
      %v2369 = vpack.c.b16 %v2365, %v2365
      %v2370 = vpack.c.b16 %v2366, %v2366
      %v2372 = vshrl.u32 %v2367, 16
      %v2374 = vshll.u32 %v2367, 16
      %v2376 = vrot.slane %v2374, 1
      %v2377 = vor.u32 %v2372, %v2376
      %v2379 = vshll.u32 %v2369, 16
      %v2381 = vrot.slane %v2379, 1
      %v2382 = vsel %vm304, %v2377, %v2381
      %v2384 = vshrl.u32 %v2368, 16
      %v2386 = vshll.u32 %v2368, 16
      %v2388 = vrot.slane %v2386, 1
      %v2389 = vor.u32 %v2384, %v2388
      %v2391 = vshll.u32 %v2370, 16
      %v2393 = vrot.slane %v2391, 1
      %v2394 = vsel %vm304, %v2389, %v2393
      %2397 = vmatprep.subr.bf16.mxu0 0
      %2398 = vmatpush1.bf16.msra.mxu0 %v2201
      %2399 = vmatprep.subr.bf16.mxu0 0
      %2400 = vmatpush1.bf16.msra.mxu0 %v2202
      %2401 = vmatprep.subr.bf16.mxu0 0
      %2402 = vmatpush1.bf16.msra.mxu0 %v2203
      %2403 = vmatprep.subr.bf16.mxu0 0
      %2404 = vmatpush1.bf16.msra.mxu0 %v2204
      %2405 = vmatprep.subr.bf16.mxu0 0
      %2406 = vmatpush1.bf16.msra.mxu0 %v2205
      %2407 = vmatprep.subr.bf16.mxu0 0
      %2408 = vmatpush1.bf16.msra.mxu0 %v2206
      %2409 = vmatprep.subr.bf16.mxu0 0
      %2410 = vmatpush1.bf16.msra.mxu0 %v2207
      %2411 = vmatprep.subr.bf16.mxu0 0
      %2412 = vmatpush1.bf16.msra.mxu0 %v2208
      %2413 = vmatprep.subr.bf16.mxu0 0
      %2414 = vmatpush1.bf16.msra.mxu0 %v2209
      %2415 = vmatprep.subr.bf16.mxu0 0
      %2416 = vmatpush1.bf16.msra.mxu0 %v2210
      %2417 = vmatprep.subr.bf16.mxu0 0
      %2418 = vmatpush1.bf16.msra.mxu0 %v2211
      %2419 = vmatprep.subr.bf16.mxu0 0
      %2420 = vmatpush1.bf16.msra.mxu0 %v2212
      %2421 = vmatprep.subr.bf16.mxu0 0
      %2422 = vmatpush1.bf16.msra.mxu0 %v2213
      %2423 = vmatprep.subr.bf16.mxu0 0
      %2424 = vmatpush1.bf16.msra.mxu0 %v2214
      %2425 = vmatprep.subr.bf16.mxu0 0
      %2426 = vmatpush1.bf16.msra.mxu0 %v2215
      %2427 = vmatprep.subr.bf16.mxu0 0
      %2428 = vmatpush1.bf16.msra.mxu0 %v2216
      %2429 = vmatprep.mubr.bf16.mxu0 %v2394
      %2430 = vmatmul.mubr.bf16.gmra.mrb[0].mxu0 %v2382
      %v2431 = vpop.f32.mrb[0].mxu0
      %v2432 = vadd.f32 0.0, %v2431
      %v2433 = vpop.f32.mrb[0].mxu0
      %v2434 = vpop.f32.mrb[0].mxu0
      %v2435 = vadd.f32 0.0, %v2434
      %v2436 = vpop.f32.mrb[0].mxu0
      %2437 = vdwg.mxu0
      %v2438 = vadd.f32 %v1774, %v2432
      %v2439 = vadd.f32 %v1775, %v2435
      %v2443 = vunpack.c.l.b16 %v2050
      %v2444 = vunpack.c.h.b16 %v2050
      %v2445 = vunpack.c.l.b16 %v2051
      %v2446 = vunpack.c.h.b16 %v2051
      %v2447 = vunpack.c.l.b16 %v2052
      %v2448 = vunpack.c.h.b16 %v2052
      %v2449 = vpack.c.b16 %v2445, %v2443
      %v2450 = vpack.c.b16 %v2446, %v2444
      %v2451 = vpack.c.b16 %v2447, %v2447
      %v2452 = vpack.c.b16 %v2448, %v2448
      %v2454 = vshrl.u32 %v2449, 16
      %v2456 = vshll.u32 %v2449, 16
      %v2458 = vrot.slane %v2456, 1
      %v2459 = vor.u32 %v2454, %v2458
      %v2461 = vshll.u32 %v2451, 16
      %v2463 = vrot.slane %v2461, 1
      %v2464 = vsel %vm304, %v2459, %v2463
      %v2466 = vshrl.u32 %v2450, 16
      %v2468 = vshll.u32 %v2450, 16
      %v2470 = vrot.slane %v2468, 1
      %v2471 = vor.u32 %v2466, %v2470
      %v2473 = vshll.u32 %v2452, 16
      %v2475 = vrot.slane %v2473, 1
      %v2476 = vsel %vm304, %v2471, %v2475
      %2479 = vmatprep.subr.bf16.mxu0 0
      %2480 = vmatpush1.bf16.msra.mxu0 %v2201
      %2481 = vmatprep.subr.bf16.mxu0 0
      %2482 = vmatpush1.bf16.msra.mxu0 %v2202
      %2483 = vmatprep.subr.bf16.mxu0 0
      %2484 = vmatpush1.bf16.msra.mxu0 %v2203
      %2485 = vmatprep.subr.bf16.mxu0 0
      %2486 = vmatpush1.bf16.msra.mxu0 %v2204
      %2487 = vmatprep.subr.bf16.mxu0 0
      %2488 = vmatpush1.bf16.msra.mxu0 %v2205
      %2489 = vmatprep.subr.bf16.mxu0 0
      %2490 = vmatpush1.bf16.msra.mxu0 %v2206
      %2491 = vmatprep.subr.bf16.mxu0 0
      %2492 = vmatpush1.bf16.msra.mxu0 %v2207
      %2493 = vmatprep.subr.bf16.mxu0 0
      %2494 = vmatpush1.bf16.msra.mxu0 %v2208
      %2495 = vmatprep.subr.bf16.mxu0 0
      %2496 = vmatpush1.bf16.msra.mxu0 %v2209
      %2497 = vmatprep.subr.bf16.mxu0 0
      %2498 = vmatpush1.bf16.msra.mxu0 %v2210
      %2499 = vmatprep.subr.bf16.mxu0 0
      %2500 = vmatpush1.bf16.msra.mxu0 %v2211
      %2501 = vmatprep.subr.bf16.mxu0 0
      %2502 = vmatpush1.bf16.msra.mxu0 %v2212
      %2503 = vmatprep.subr.bf16.mxu0 0
      %2504 = vmatpush1.bf16.msra.mxu0 %v2213
      %2505 = vmatprep.subr.bf16.mxu0 0
      %2506 = vmatpush1.bf16.msra.mxu0 %v2214
      %2507 = vmatprep.subr.bf16.mxu0 0
      %2508 = vmatpush1.bf16.msra.mxu0 %v2215
      %2509 = vmatprep.subr.bf16.mxu0 0
      %2510 = vmatpush1.bf16.msra.mxu0 %v2216
      %2511 = vmatprep.mubr.bf16.mxu0 %v2476
      %2512 = vmatmul.mubr.bf16.gmra.mrb[0].mxu0 %v2464
      %v2513 = vpop.f32.mrb[0].mxu0
      %v2514 = vadd.f32 0.0, %v2513
      %v2515 = vpop.f32.mrb[0].mxu0
      %v2516 = vpop.f32.mrb[0].mxu0
      %v2517 = vadd.f32 0.0, %v2516
      %v2518 = vpop.f32.mrb[0].mxu0
      %2519 = vdwg.mxu0
      %v2520 = vadd.f32 %v1827, %v2514
      %v2521 = vadd.f32 %v1828, %v2517
      %v2525 = vunpack.c.l.b16 %v2053
      %v2526 = vunpack.c.h.b16 %v2053
      %v2527 = vunpack.c.l.b16 %v2054
      %v2528 = vunpack.c.h.b16 %v2054
      %v2529 = vunpack.c.l.b16 %v2055
      %v2530 = vunpack.c.h.b16 %v2055
      %v2531 = vpack.c.b16 %v2527, %v2525
      %v2532 = vpack.c.b16 %v2528, %v2526
      %v2533 = vpack.c.b16 %v2529, %v2529
      %v2534 = vpack.c.b16 %v2530, %v2530
      %v2536 = vshrl.u32 %v2531, 16
      %v2538 = vshll.u32 %v2531, 16
      %v2540 = vrot.slane %v2538, 1
      %v2541 = vor.u32 %v2536, %v2540
      %v2543 = vshll.u32 %v2533, 16
      %v2545 = vrot.slane %v2543, 1
      %v2546 = vsel %vm304, %v2541, %v2545
      %v2548 = vshrl.u32 %v2532, 16
      %v2550 = vshll.u32 %v2532, 16
      %v2552 = vrot.slane %v2550, 1
      %v2553 = vor.u32 %v2548, %v2552
      %v2555 = vshll.u32 %v2534, 16
      %v2557 = vrot.slane %v2555, 1
      %v2558 = vsel %vm304, %v2553, %v2557
      %2561 = vmatprep.subr.bf16.mxu0 0
      %2562 = vmatpush1.bf16.msra.mxu0 %v2201
      %2563 = vmatprep.subr.bf16.mxu0 0
      %2564 = vmatpush1.bf16.msra.mxu0 %v2202
      %2565 = vmatprep.subr.bf16.mxu0 0
      %2566 = vmatpush1.bf16.msra.mxu0 %v2203
      %2567 = vmatprep.subr.bf16.mxu0 0
      %2568 = vmatpush1.bf16.msra.mxu0 %v2204
      %2569 = vmatprep.subr.bf16.mxu0 0
      %2570 = vmatpush1.bf16.msra.mxu0 %v2205
      %2571 = vmatprep.subr.bf16.mxu0 0
      %2572 = vmatpush1.bf16.msra.mxu0 %v2206
      %2573 = vmatprep.subr.bf16.mxu0 0
      %2574 = vmatpush1.bf16.msra.mxu0 %v2207
      %2575 = vmatprep.subr.bf16.mxu0 0
      %2576 = vmatpush1.bf16.msra.mxu0 %v2208
      %2577 = vmatprep.subr.bf16.mxu0 0
      %2578 = vmatpush1.bf16.msra.mxu0 %v2209
      %2579 = vmatprep.subr.bf16.mxu0 0
      %2580 = vmatpush1.bf16.msra.mxu0 %v2210
      %2581 = vmatprep.subr.bf16.mxu0 0
      %2582 = vmatpush1.bf16.msra.mxu0 %v2211
      %2583 = vmatprep.subr.bf16.mxu0 0
      %2584 = vmatpush1.bf16.msra.mxu0 %v2212
      %2585 = vmatprep.subr.bf16.mxu0 0
      %2586 = vmatpush1.bf16.msra.mxu0 %v2213
      %2587 = vmatprep.subr.bf16.mxu0 0
      %2588 = vmatpush1.bf16.msra.mxu0 %v2214
      %2589 = vmatprep.subr.bf16.mxu0 0
      %2590 = vmatpush1.bf16.msra.mxu0 %v2215
      %2591 = vmatprep.subr.bf16.mxu0 0
      %2592 = vmatpush1.bf16.msra.mxu0 %v2216
      %2593 = vmatprep.mubr.bf16.mxu0 %v2558
      %2594 = vmatmul.mubr.bf16.gmra.mrb[0].mxu0 %v2546
      %v2595 = vpop.f32.mrb[0].mxu0
      %v2596 = vadd.f32 0.0, %v2595
      %v2597 = vpop.f32.mrb[0].mxu0
      %v2598 = vpop.f32.mrb[0].mxu0
      %v2599 = vadd.f32 0.0, %v2598
      %v2600 = vpop.f32.mrb[0].mxu0
      %2601 = vdwg.mxu0
      %v2602 = vadd.f32 %v1880, %v2596
      %v2603 = vadd.f32 %v1881, %v2599
      %v2607 = vunpack.c.l.b16 %v2056
      %v2608 = vunpack.c.h.b16 %v2056
      %v2609 = vunpack.c.l.b16 %v2057
      %v2610 = vunpack.c.h.b16 %v2057
      %v2611 = vunpack.c.l.b16 %v2058
      %v2612 = vunpack.c.h.b16 %v2058
      %v2613 = vpack.c.b16 %v2609, %v2607
      %v2614 = vpack.c.b16 %v2610, %v2608
      %v2615 = vpack.c.b16 %v2611, %v2611
      %v2616 = vpack.c.b16 %v2612, %v2612
      %v2618 = vshrl.u32 %v2613, 16
      %v2620 = vshll.u32 %v2613, 16
      %v2622 = vrot.slane %v2620, 1
      %v2623 = vor.u32 %v2618, %v2622
      %v2625 = vshll.u32 %v2615, 16
      %v2627 = vrot.slane %v2625, 1
      %v2628 = vsel %vm304, %v2623, %v2627
      %v2630 = vshrl.u32 %v2614, 16
      %v2632 = vshll.u32 %v2614, 16
      %v2634 = vrot.slane %v2632, 1
      %v2635 = vor.u32 %v2630, %v2634
      %v2637 = vshll.u32 %v2616, 16
      %v2639 = vrot.slane %v2637, 1
      %v2640 = vsel %vm304, %v2635, %v2639
      %2643 = vmatprep.subr.bf16.mxu0 0
      %2644 = vmatpush1.bf16.msra.mxu0 %v2201
      %2645 = vmatprep.subr.bf16.mxu0 0
      %2646 = vmatpush1.bf16.msra.mxu0 %v2202
      %2647 = vmatprep.subr.bf16.mxu0 0
      %2648 = vmatpush1.bf16.msra.mxu0 %v2203
      %2649 = vmatprep.subr.bf16.mxu0 0
      %2650 = vmatpush1.bf16.msra.mxu0 %v2204
      %2651 = vmatprep.subr.bf16.mxu0 0
      %2652 = vmatpush1.bf16.msra.mxu0 %v2205
      %2653 = vmatprep.subr.bf16.mxu0 0
      %2654 = vmatpush1.bf16.msra.mxu0 %v2206
      %2655 = vmatprep.subr.bf16.mxu0 0
      %2656 = vmatpush1.bf16.msra.mxu0 %v2207
      %2657 = vmatprep.subr.bf16.mxu0 0
      %2658 = vmatpush1.bf16.msra.mxu0 %v2208
      %2659 = vmatprep.subr.bf16.mxu0 0
      %2660 = vmatpush1.bf16.msra.mxu0 %v2209
      %2661 = vmatprep.subr.bf16.mxu0 0
      %2662 = vmatpush1.bf16.msra.mxu0 %v2210
      %2663 = vmatprep.subr.bf16.mxu0 0
      %2664 = vmatpush1.bf16.msra.mxu0 %v2211
      %2665 = vmatprep.subr.bf16.mxu0 0
      %2666 = vmatpush1.bf16.msra.mxu0 %v2212
      %2667 = vmatprep.subr.bf16.mxu0 0
      %2668 = vmatpush1.bf16.msra.mxu0 %v2213
      %2669 = vmatprep.subr.bf16.mxu0 0
      %2670 = vmatpush1.bf16.msra.mxu0 %v2214
      %2671 = vmatprep.subr.bf16.mxu0 0
      %2672 = vmatpush1.bf16.msra.mxu0 %v2215
      %2673 = vmatprep.subr.bf16.mxu0 0
      %2674 = vmatpush1.bf16.msra.mxu0 %v2216
      %2675 = vmatprep.mubr.bf16.mxu0 %v2640
      %2676 = vmatmul.mubr.bf16.gmra.mrb[0].mxu0 %v2628
      %v2677 = vpop.f32.mrb[0].mxu0
      %v2678 = vadd.f32 0.0, %v2677
      %v2679 = vpop.f32.mrb[0].mxu0
      %v2680 = vpop.f32.mrb[0].mxu0
      %v2681 = vadd.f32 0.0, %v2680
      %v2682 = vpop.f32.mrb[0].mxu0
      %2683 = vdwg.mxu0
      %v2684 = vadd.f32 %v1933, %v2678
      %v2685 = vadd.f32 %v1934, %v2681
      %v2689 = vunpack.c.l.b16 %v2059
      %v2690 = vunpack.c.h.b16 %v2059
      %v2691 = vunpack.c.l.b16 %v2060
      %v2692 = vunpack.c.h.b16 %v2060
      %v2693 = vunpack.c.l.b16 %v2061
      %v2694 = vunpack.c.h.b16 %v2061
      %v2695 = vpack.c.b16 %v2691, %v2689
      %v2696 = vpack.c.b16 %v2692, %v2690
      %v2697 = vpack.c.b16 %v2693, %v2693
      %v2698 = vpack.c.b16 %v2694, %v2694
      %v2700 = vshrl.u32 %v2695, 16
      %v2702 = vshll.u32 %v2695, 16
      %v2704 = vrot.slane %v2702, 1
      %v2705 = vor.u32 %v2700, %v2704
      %v2707 = vshll.u32 %v2697, 16
      %v2709 = vrot.slane %v2707, 1
      %v2710 = vsel %vm304, %v2705, %v2709
      %v2712 = vshrl.u32 %v2696, 16
      %v2714 = vshll.u32 %v2696, 16
      %v2716 = vrot.slane %v2714, 1
      %v2717 = vor.u32 %v2712, %v2716
      %v2719 = vshll.u32 %v2698, 16
      %v2721 = vrot.slane %v2719, 1
      %v2722 = vsel %vm304, %v2717, %v2721
      %2725 = vmatprep.subr.bf16.mxu0 0
      %2726 = vmatpush1.bf16.msra.mxu0 %v2201
      %2727 = vmatprep.subr.bf16.mxu0 0
      %2728 = vmatpush1.bf16.msra.mxu0 %v2202
      %2729 = vmatprep.subr.bf16.mxu0 0
      %2730 = vmatpush1.bf16.msra.mxu0 %v2203
      %2731 = vmatprep.subr.bf16.mxu0 0
      %2732 = vmatpush1.bf16.msra.mxu0 %v2204
      %2733 = vmatprep.subr.bf16.mxu0 0
      %2734 = vmatpush1.bf16.msra.mxu0 %v2205
      %2735 = vmatprep.subr.bf16.mxu0 0
      %2736 = vmatpush1.bf16.msra.mxu0 %v2206
      %2737 = vmatprep.subr.bf16.mxu0 0
      %2738 = vmatpush1.bf16.msra.mxu0 %v2207
      %2739 = vmatprep.subr.bf16.mxu0 0
      %2740 = vmatpush1.bf16.msra.mxu0 %v2208
      %2741 = vmatprep.subr.bf16.mxu0 0
      %2742 = vmatpush1.bf16.msra.mxu0 %v2209
      %2743 = vmatprep.subr.bf16.mxu0 0
      %2744 = vmatpush1.bf16.msra.mxu0 %v2210
      %2745 = vmatprep.subr.bf16.mxu0 0
      %2746 = vmatpush1.bf16.msra.mxu0 %v2211
      %2747 = vmatprep.subr.bf16.mxu0 0
      %2748 = vmatpush1.bf16.msra.mxu0 %v2212
      %2749 = vmatprep.subr.bf16.mxu0 0
      %2750 = vmatpush1.bf16.msra.mxu0 %v2213
      %2751 = vmatprep.subr.bf16.mxu0 0
      %2752 = vmatpush1.bf16.msra.mxu0 %v2214
      %2753 = vmatprep.subr.bf16.mxu0 0
      %2754 = vmatpush1.bf16.msra.mxu0 %v2215
      %2755 = vmatprep.subr.bf16.mxu0 0
      %2756 = vmatpush1.bf16.msra.mxu0 %v2216
      %2757 = vmatprep.mubr.bf16.mxu0 %v2722
      %2758 = vmatmul.mubr.bf16.gmra.mrb[0].mxu0 %v2710
      %v2759 = vpop.f32.mrb[0].mxu0
      %v2760 = vadd.f32 0.0, %v2759
      %v2761 = vpop.f32.mrb[0].mxu0
      %v2762 = vpop.f32.mrb[0].mxu0
      %v2763 = vadd.f32 0.0, %v2762
      %v2764 = vpop.f32.mrb[0].mxu0
      %2765 = vdwg.mxu0
      %v2766 = vadd.f32 %v1986, %v2760
      %v2767 = vadd.f32 %v1987, %v2763
      %v2771 = vunpack.c.l.b16 %v2062
      %v2772 = vunpack.c.h.b16 %v2062
      %v2773 = vunpack.c.l.b16 %v2063
      %v2774 = vunpack.c.h.b16 %v2063
      %v2775 = vunpack.c.l.b16 %v2064
      %v2776 = vunpack.c.h.b16 %v2064
      %v2777 = vpack.c.b16 %v2773, %v2771
      %v2778 = vpack.c.b16 %v2774, %v2772
      %v2779 = vpack.c.b16 %v2775, %v2775
      %v2780 = vpack.c.b16 %v2776, %v2776
      %v2782 = vshrl.u32 %v2777, 16
      %v2784 = vshll.u32 %v2777, 16
      %v2786 = vrot.slane %v2784, 1
      %v2787 = vor.u32 %v2782, %v2786
      %v2789 = vshll.u32 %v2779, 16
      %v2791 = vrot.slane %v2789, 1
      %v2792 = vsel %vm304, %v2787, %v2791
      %v2794 = vshrl.u32 %v2778, 16
      %v2796 = vshll.u32 %v2778, 16
      %v2798 = vrot.slane %v2796, 1
      %v2799 = vor.u32 %v2794, %v2798
      %v2801 = vshll.u32 %v2780, 16
      %v2803 = vrot.slane %v2801, 1
      %v2804 = vsel %vm304, %v2799, %v2803
      %2807 = vmatprep.subr.bf16.mxu0 0
      %2808 = vmatpush1.bf16.msra.mxu0 %v2201
      %2809 = vmatprep.subr.bf16.mxu0 0
      %2810 = vmatpush1.bf16.msra.mxu0 %v2202
      %2811 = vmatprep.subr.bf16.mxu0 0
      %2812 = vmatpush1.bf16.msra.mxu0 %v2203
      %2813 = vmatprep.subr.bf16.mxu0 0
      %2814 = vmatpush1.bf16.msra.mxu0 %v2204
      %2815 = vmatprep.subr.bf16.mxu0 0
      %2816 = vmatpush1.bf16.msra.mxu0 %v2205
      %2817 = vmatprep.subr.bf16.mxu0 0
      %2818 = vmatpush1.bf16.msra.mxu0 %v2206
      %2819 = vmatprep.subr.bf16.mxu0 0
      %2820 = vmatpush1.bf16.msra.mxu0 %v2207
      %2821 = vmatprep.subr.bf16.mxu0 0
      %2822 = vmatpush1.bf16.msra.mxu0 %v2208
      %2823 = vmatprep.subr.bf16.mxu0 0
      %2824 = vmatpush1.bf16.msra.mxu0 %v2209
      %2825 = vmatprep.subr.bf16.mxu0 0
      %2826 = vmatpush1.bf16.msra.mxu0 %v2210
      %2827 = vmatprep.subr.bf16.mxu0 0
      %2828 = vmatpush1.bf16.msra.mxu0 %v2211
      %2829 = vmatprep.subr.bf16.mxu0 0
      %2830 = vmatpush1.bf16.msra.mxu0 %v2212
      %2831 = vmatprep.subr.bf16.mxu0 0
      %2832 = vmatpush1.bf16.msra.mxu0 %v2213
      %2833 = vmatprep.subr.bf16.mxu0 0
      %2834 = vmatpush1.bf16.msra.mxu0 %v2214
      %2835 = vmatprep.subr.bf16.mxu0 0
      %2836 = vmatpush1.bf16.msra.mxu0 %v2215
      %2837 = vmatprep.subr.bf16.mxu0 0
      %2838 = vmatpush1.bf16.msra.mxu0 %v2216
      %2839 = vmatprep.mubr.bf16.mxu0 %v2804
      %2840 = vmatmul.mubr.bf16.gmra.mrb[0].mxu0 %v2792
      %v2841 = vpop.f32.mrb[0].mxu0
      %v2842 = vadd.f32 0.0, %v2841
      %v2843 = vpop.f32.mrb[0].mxu0
      %v2844 = vpop.f32.mrb[0].mxu0
      %v2845 = vadd.f32 0.0, %v2844
      %v2846 = vpop.f32.mrb[0].mxu0
      %2847 = vdwg.mxu0
      %v2848 = vadd.f32 %v2039, %v2842
      %v2849 = vadd.f32 %v2040, %v2845
      %v2851 = vlaneseq
      %v2852 = vshrl.u32 %v2851, 7
      %v2853 = vsub.s32 0, %v2852
      %v2854 = vrot.slane %v198, %v2853
      %v2856 = vadd.f32 %v2274, %v2854
      %v2857 = vadd.f32 %v2275, %v2854
      %v2858 = vmul.f32 %v2856, 0.2
      %v2859 = vmul.f32 %v2857, 0.2
      %v2860 = vmax.f32 %v2856, %v2858
      %v2861 = vmax.f32 %v2857, %v2859
      %v2862 = vpack.c.bf16 %v2861, %v2860
      %v2864 = vunpack.c.l.b16 %v2862
      %v2865 = vunpack.c.h.b16 %v2862
      %v2866 = vpack.c.b16 %v2864, %v2864
      %v2867 = vpack.c.b16 %v2865, %v2865
      %2870 = vst [vmem:[%s194] sm:$0xf] %v2866
      %2871 = vst [vmem:[%s194 + $0x4] sm:$0xf] %v2867
      %v2872 = vadd.f32 %v2356, %v2854
      %v2873 = vadd.f32 %v2357, %v2854
      %v2874 = vmul.f32 %v2872, 0.2
      %v2875 = vmul.f32 %v2873, 0.2
      %v2876 = vmax.f32 %v2872, %v2874
      %v2877 = vmax.f32 %v2873, %v2875
      %v2878 = vpack.c.bf16 %v2877, %v2876
      %v2880 = vunpack.c.l.b16 %v2878
      %v2881 = vunpack.c.h.b16 %v2878
      %v2882 = vpack.c.b16 %v2880, %v2880
      %v2883 = vpack.c.b16 %v2881, %v2881
      %s2886 = scalar_lea.vmem %s194, 8
      %2887 = vst [vmem:[%s2886] sm:$0xf] %v2882
      %2888 = vst [vmem:[%s2886 + $0x4] sm:$0xf] %v2883
      %v2889 = vadd.f32 %v2438, %v2854
      %v2890 = vadd.f32 %v2439, %v2854
      %v2891 = vmul.f32 %v2889, 0.2
      %v2892 = vmul.f32 %v2890, 0.2
      %v2893 = vmax.f32 %v2889, %v2891
      %v2894 = vmax.f32 %v2890, %v2892
      %v2895 = vpack.c.bf16 %v2894, %v2893
      %v2897 = vunpack.c.l.b16 %v2895
      %v2898 = vunpack.c.h.b16 %v2895
      %v2899 = vpack.c.b16 %v2897, %v2897
      %v2900 = vpack.c.b16 %v2898, %v2898
      %s2903 = scalar_lea.vmem %s194, 16
      %2904 = vst [vmem:[%s2903] sm:$0xf] %v2899
      %2905 = vst [vmem:[%s2903 + $0x4] sm:$0xf] %v2900
      %v2906 = vadd.f32 %v2520, %v2854
      %v2907 = vadd.f32 %v2521, %v2854
      %v2908 = vmul.f32 %v2906, 0.2
      %v2909 = vmul.f32 %v2907, 0.2
      %v2910 = vmax.f32 %v2906, %v2908
      %v2911 = vmax.f32 %v2907, %v2909
      %v2912 = vpack.c.bf16 %v2911, %v2910
      %v2914 = vunpack.c.l.b16 %v2912
      %v2915 = vunpack.c.h.b16 %v2912
      %v2916 = vpack.c.b16 %v2914, %v2914
      %v2917 = vpack.c.b16 %v2915, %v2915
      %s2920 = scalar_lea.vmem %s194, 24
      %2921 = vst [vmem:[%s2920] sm:$0xf] %v2916
      %2922 = vst [vmem:[%s2920 + $0x4] sm:$0xf] %v2917
      %v2923 = vadd.f32 %v2602, %v2854
      %v2924 = vadd.f32 %v2603, %v2854
      %v2925 = vmul.f32 %v2923, 0.2
      %v2926 = vmul.f32 %v2924, 0.2
      %v2927 = vmax.f32 %v2923, %v2925
      %v2928 = vmax.f32 %v2924, %v2926
      %v2929 = vpack.c.bf16 %v2928, %v2927
      %v2931 = vunpack.c.l.b16 %v2929
      %v2932 = vunpack.c.h.b16 %v2929
      %v2933 = vpack.c.b16 %v2931, %v2931
      %v2934 = vpack.c.b16 %v2932, %v2932
      %s2937 = scalar_lea.vmem %s194, 32
      %2938 = vst [vmem:[%s2937] sm:$0xf] %v2933
      %2939 = vst [vmem:[%s2937 + $0x4] sm:$0xf] %v2934
      %v2940 = vadd.f32 %v2684, %v2854
      %v2941 = vadd.f32 %v2685, %v2854
      %v2942 = vmul.f32 %v2940, 0.2
      %v2943 = vmul.f32 %v2941, 0.2
      %v2944 = vmax.f32 %v2940, %v2942
      %v2945 = vmax.f32 %v2941, %v2943
      %v2946 = vpack.c.bf16 %v2945, %v2944
      %v2948 = vunpack.c.l.b16 %v2946
      %v2949 = vunpack.c.h.b16 %v2946
      %v2950 = vpack.c.b16 %v2948, %v2948
      %v2951 = vpack.c.b16 %v2949, %v2949
      %s2954 = scalar_lea.vmem %s194, 40
      %2955 = vst [vmem:[%s2954] sm:$0xf] %v2950
      %2956 = vst [vmem:[%s2954 + $0x4] sm:$0xf] %v2951
      %v2957 = vadd.f32 %v2766, %v2854
      %v2958 = vadd.f32 %v2767, %v2854
      %v2959 = vmul.f32 %v2957, 0.2
      %v2960 = vmul.f32 %v2958, 0.2
      %v2961 = vmax.f32 %v2957, %v2959
      %v2962 = vmax.f32 %v2958, %v2960
      %v2963 = vpack.c.bf16 %v2962, %v2961
      %v2965 = vunpack.c.l.b16 %v2963
      %v2966 = vunpack.c.h.b16 %v2963
      %v2967 = vpack.c.b16 %v2965, %v2965
      %v2968 = vpack.c.b16 %v2966, %v2966
      %s2971 = scalar_lea.vmem %s194, 48
      %2972 = vst [vmem:[%s2971] sm:$0xf] %v2967
      %2973 = vst [vmem:[%s2971 + $0x4] sm:$0xf] %v2968
      %v2974 = vadd.f32 %v2848, %v2854
      %v2975 = vadd.f32 %v2849, %v2854
      %v2976 = vmul.f32 %v2974, 0.2
      %v2977 = vmul.f32 %v2975, 0.2
      %v2978 = vmax.f32 %v2974, %v2976
      %v2979 = vmax.f32 %v2975, %v2977
      %v2980 = vpack.c.bf16 %v2979, %v2978
      %v2982 = vunpack.c.l.b16 %v2980
      %v2983 = vunpack.c.h.b16 %v2980
      %v2984 = vpack.c.b16 %v2982, %v2982
      %v2985 = vpack.c.b16 %v2983, %v2983
      %s2988 = scalar_lea.vmem %s194, 56
      %2989 = vst [vmem:[%s2988] sm:$0xf] %v2984
      %2990 = vst [vmem:[%s2988 + $0x4] sm:$0xf] %v2985
      %s2991 = smul.u32 8, %s19
      %p2992 = scmp.lt.s32.totalorder %s18, 1
      %s2993 = scalar_select %p2992, %s18, 1
      %p2994 = scmp.lt.s32.totalorder %s2991, 15
      %s2995 = scalar_select %p2994, %s2991, 15
      %s2996 = smul.addr %s2995, 2
      %s2997 = smul.addr %s2993, 32
      %s2998 = sadd.s32 %s2996, %s2997
      %s2999 = smul.addr %s2998, 4
      %s3000 = scalar_lea.vmem %s3, %s2999
      // Predicated region
      $region33: #{discriminator_forward.4} parent=31 // pred_check
        %p3001 = pneg %p114
      $region34: #{discriminator_forward.4} parent=31 // pred_check_branch
        %3003 = sbr.rel (%p3001) target = $region36
      $region35: #{discriminator_forward.4} parent=31 // pred_region
        %s3004 = smul.u32 8, %s19
      $region36: #{discriminator_forward.4} parent=31 // pred_fallthru
        _
    $region32: #{discriminator_forward.4} parent=5 // pred_fallthru
      _
    %p3005 = scmp.le.s32.totalorder 2, %s9
    // Predicated region
    $region37: #{discriminator_forward.4} parent=5 // pred_check
      %p3006 = pneg %p3005
    $region38: #{discriminator_forward.4} parent=5 // pred_check_branch
      %3008 = sbr.rel (%p3006) target = $region40
    $region39: #{discriminator_forward.4} parent=5 // pred_region
      %s3009 = ssub.s32 %s9, 2
      // Predicated region
      $region41: #{discriminator_forward.4} parent=39 // pred_check
        %p3010 = pneg %p120
      $region42: #{discriminator_forward.4} parent=39 // pred_check_branch
        %3012 = sbr.rel (%p3010) target = $region44
      $region43: #{discriminator_forward.4} parent=39 // pred_region
        %s3013 = smul.u32 8, %s21
        %p3014 = scmp.lt.s32.totalorder %s20, 1
        %s3015 = scalar_select %p3014, %s20, 1
        %p3016 = scmp.lt.s32.totalorder %s3013, 15
        %s3017 = scalar_select %p3016, %s3013, 15
        %s3018 = smul.addr %s3017, 2
        %s3019 = smul.addr %s3015, 32
        %s3020 = sadd.s32 %s3018, %s3019
        %s3021 = smul.addr %s3020, 4
        %s3022 = scalar_lea.vmem %s3, %s3021
      $region44: #{discriminator_forward.4} parent=39 // pred_fallthru
        _
    $region40: #{discriminator_forward.4} parent=5 // pred_fallthru
      _
  $region6: #{discriminator_forward.4} parent=0 // loop_footer
    %s13 = sadd.s32 1, %s9
  $region7: #{discriminator_forward.4} parent=0 // loop_footer_branch
    %8 = sbr.rel target = $region3
  $region8: #{discriminator_forward.4} parent=0 // loop_exit
    _

// kernel: discriminator_forward.5
$region0: #{discriminator_forward.5}
  #allocation0 [shape = 'u32[]', space=smem, size = 0x4, offset = 0x4, fixed_abs, tag = 'smem constant byte address 0x4 - core index']
  #allocation1 [shape = 'u32[144,128]{1,0:T(1,128)}', space=vmem, size = 0x12000, scoped, tag = 'internal scratch']
  %s0 = inlined_call_operand.vmem [shape: bf16[2,9,9,512], index: 0, kind: input, shape index: {}]
  %s1 = inlined_call_operand.vmem [shape: bf16[2,2,512,128], index: 1, kind: input, shape index: {}]
  %s2 = inlined_call_operand.vmem [shape: f32[1,128], index: 2, kind: input, shape index: {}]
  %s3 = inlined_call_operand.vmem [shape: bf16[2,8,8,128], index: 3, kind: output, shape index: {0}]
  %s4 = inlined_call_operand.vmem [shape: f32[4,8,128], index: 4, kind: output, shape index: {1}]
  %s5 = inlined_call_operand.vmem [shape: f32[4,8,128], index: 5, kind: output, shape index: {2}]
  %6 = xla_tuple %s3, %s4, %s5
  %s7 = sld [smem:[#allocation0]]
  $region61: #{discriminator_forward.5} parent=0
    _
  %s9 = ssub.s32 1, %s7
  %s10 = scalar_select 0, %s9, %s7
  loop: start=0, step=1, limit=6
  $region2: #{discriminator_forward.5} parent=0 // loop_pre_header
    _
  $region3: #{discriminator_forward.5} parent=0 // loop_header
    %s12 = sphi 0, %s16
    %p13 = scmp.ge.s32.totalorder %s12, 6
    %s19 = sphi 0, %s31
    %s20 = sphi 0, %s27
    %s21 = sphi 0, %s19
    %s22 = sphi 0, %s20
    %s23 = sphi 0, %s21
    %s24 = sphi 0, %s22
    %s34 = sphi 0, %s36
    %s37 = sphi 0, %s34
    %s38 = sphi 0, %s37
    %s54 = sphi 0, %s38
    %s58 = sphi 0, %s58
    %s60 = sphi 0, %s58
    %s61 = sphi 0, %s60
    %s75 = sphi 0, %s61
    %s79 = sphi 0, %s79
    %s81 = sphi 0, %s79
    %s82 = sphi 0, %s81
    %s96 = sphi 0, %s82
    %s104 = sphi 0, %s106
    %s107 = sphi 0, %s104
    %s108 = sphi 0, %s107
    %s124 = sphi 0, %s108
    %s134 = sphi 0, %s136
    %s137 = sphi 0, %s134
    %s138 = sphi 0, %s137
    %s154 = sphi 0, %s138
    %s164 = sphi 0, %s166
    %s167 = sphi 0, %s164
    %s168 = sphi 0, %s167
    %s184 = sphi 0, %s168
  $region4: #{discriminator_forward.5} parent=0 // loop_header_branch
    %15 = sbr.rel (%p13) target = $region8
  $region5: #{discriminator_forward.5} parent=0 // loop_body
    %s17 = ssub.s32 %s12, 1
    %s18 = ssub.s32 %s12, 2
    %s25 = sadd.s32 1, %s20
    %p26 = scmp.ge.s32.totalorder %s25, 2
    %s27 = scalar_select %p26, 0, %s25
    %s28 = sadd.s32 1, %s19
    %s29 = scalar_select %p26, %s28, %s19
    %p30 = scmp.ge.s32.totalorder %s29, 2
    %s31 = scalar_select %p30, 0, %s29
    %s32 = ssub.s32 %s19, %s31
    %p33 = scmp.eq.s32.totalorder %s32, 0
    %s35 = sadd.s32 %s34, 1
    %s36 = scalar_select %p33, %s34, %s35
    %p39 = pneg %p33
    %p40 = scmp.eq.s32.totalorder %s12, 3
    %p41 = por %p39, %p40
    %p42 = scmp.ne.s32.totalorder %s34, %s37
    %p43 = scmp.eq.s32.totalorder %s12, 0
    %p44 = por %p42, %p43
    %p45 = scmp.ne.s32.totalorder %s34, %s37
    %p46 = scmp.eq.s32.totalorder %s17, 3
    %p47 = por %p45, %p46
    %p48 = scmp.ne.s32.totalorder %s37, %s38
    %p49 = scmp.eq.s32.totalorder %s17, 0
    %p50 = por %p48, %p49
    %p51 = scmp.ne.s32.totalorder %s37, %s38
    %p52 = scmp.eq.s32.totalorder %s18, 3
    %p53 = por %p51, %p52
    %p55 = scmp.ne.s32.totalorder %s38, %s54
    %p56 = scmp.eq.s32.totalorder %s18, 0
    %p57 = por %p55, %p56
    %s59 = sadd.s32 %s58, 1
    %p62 = scmp.eq.s32.totalorder %s12, 3
    %p63 = scmp.ne.s32.totalorder %s58, %s60
    %p64 = scmp.eq.s32.totalorder %s12, 0
    %p65 = por %p63, %p64
    %p66 = scmp.ne.s32.totalorder %s58, %s60
    %p67 = scmp.eq.s32.totalorder %s17, 3
    %p68 = por %p66, %p67
    %p69 = scmp.ne.s32.totalorder %s60, %s61
    %p70 = scmp.eq.s32.totalorder %s17, 0
    %p71 = por %p69, %p70
    %p72 = scmp.ne.s32.totalorder %s60, %s61
    %p73 = scmp.eq.s32.totalorder %s18, 3
    %p74 = por %p72, %p73
    %p76 = scmp.ne.s32.totalorder %s61, %s75
    %p77 = scmp.eq.s32.totalorder %s18, 0
    %p78 = por %p76, %p77
    %s80 = sadd.s32 %s79, 1
    %p83 = scmp.eq.s32.totalorder %s12, 3
    %p84 = scmp.ne.s32.totalorder %s79, %s81
    %p85 = scmp.eq.s32.totalorder %s12, 0
    %p86 = por %p84, %p85
    %p87 = scmp.ne.s32.totalorder %s79, %s81
    %p88 = scmp.eq.s32.totalorder %s17, 3
    %p89 = por %p87, %p88
    %p90 = scmp.ne.s32.totalorder %s81, %s82
    %p91 = scmp.eq.s32.totalorder %s17, 0
    %p92 = por %p90, %p91
    %p93 = scmp.ne.s32.totalorder %s81, %s82
    %p94 = scmp.eq.s32.totalorder %s18, 3
    %p95 = por %p93, %p94
    %p97 = scmp.ne.s32.totalorder %s82, %s96
    %p98 = scmp.eq.s32.totalorder %s18, 0
    %p99 = por %p97, %p98
    %s100 = ssub.s32 %s19, %s31
    %s101 = ssub.s32 %s20, %s27
    %s102 = sor.u32 %s100, %s101
    %p103 = scmp.eq.s32.totalorder %s102, 0
    %s105 = sadd.s32 %s104, 1
    %s106 = scalar_select %p103, %s104, %s105
    %p109 = pneg %p103
    %p110 = scmp.eq.s32.totalorder %s12, 3
    %p111 = por %p109, %p110
    %p112 = scmp.ne.s32.totalorder %s104, %s107
    %p113 = scmp.eq.s32.totalorder %s12, 0
    %p114 = por %p112, %p113
    %p115 = scmp.ne.s32.totalorder %s104, %s107
    %p116 = scmp.eq.s32.totalorder %s17, 3
    %p117 = por %p115, %p116
    %p118 = scmp.ne.s32.totalorder %s107, %s108
    %p119 = scmp.eq.s32.totalorder %s17, 0
    %p120 = por %p118, %p119
    %p121 = scmp.ne.s32.totalorder %s107, %s108
    %p122 = scmp.eq.s32.totalorder %s18, 3
    %p123 = por %p121, %p122
    %p125 = scmp.ne.s32.totalorder %s108, %s124
    %p126 = scmp.eq.s32.totalorder %s18, 0
    %p127 = por %p125, %p126
    %s128 = smul.u32 %s19, 2
    %s129 = sadd.s32 %s128, %s20
    %s130 = smul.u32 %s31, 2
    %s131 = sadd.s32 %s130, %s27
    %s132 = ssub.s32 %s129, %s131
    %p133 = scmp.eq.s32.totalorder %s132, 0
    %s135 = sadd.s32 %s134, 1
    %s136 = scalar_select %p133, %s134, %s135
    %p139 = pneg %p133
    %p140 = scmp.eq.s32.totalorder %s12, 3
    %p141 = por %p139, %p140
    %p142 = scmp.ne.s32.totalorder %s134, %s137
    %p143 = scmp.eq.s32.totalorder %s12, 0
    %p144 = por %p142, %p143
    %p145 = scmp.ne.s32.totalorder %s134, %s137
    %p146 = scmp.eq.s32.totalorder %s17, 3
    %p147 = por %p145, %p146
    %p148 = scmp.ne.s32.totalorder %s137, %s138
    %p149 = scmp.eq.s32.totalorder %s17, 0
    %p150 = por %p148, %p149
    %p151 = scmp.ne.s32.totalorder %s137, %s138
    %p152 = scmp.eq.s32.totalorder %s18, 3
    %p153 = por %p151, %p152
    %p155 = scmp.ne.s32.totalorder %s138, %s154
    %p156 = scmp.eq.s32.totalorder %s18, 0
    %p157 = por %p155, %p156
    %s158 = smul.u32 %s19, 2
    %s159 = sadd.s32 %s158, %s20
    %s160 = smul.u32 %s31, 2
    %s161 = sadd.s32 %s160, %s27
    %s162 = ssub.s32 %s159, %s161
    %p163 = scmp.eq.s32.totalorder %s162, 0
    %s165 = sadd.s32 %s164, 1
    %s166 = scalar_select %p163, %s164, %s165
    %p169 = pneg %p163
    %p170 = scmp.eq.s32.totalorder %s12, 3
    %p171 = por %p169, %p170
    %p172 = scmp.ne.s32.totalorder %s164, %s167
    %p173 = scmp.eq.s32.totalorder %s12, 0
    %p174 = por %p172, %p173
    %p175 = scmp.ne.s32.totalorder %s164, %s167
    %p176 = scmp.eq.s32.totalorder %s17, 3
    %p177 = por %p175, %p176
    %p178 = scmp.ne.s32.totalorder %s167, %s168
    %p179 = scmp.eq.s32.totalorder %s17, 0
    %p180 = por %p178, %p179
    %p181 = scmp.ne.s32.totalorder %s167, %s168
    %p182 = scmp.eq.s32.totalorder %s18, 3
    %p183 = por %p181, %p182
    %p185 = scmp.ne.s32.totalorder %s168, %s184
    %p186 = scmp.eq.s32.totalorder %s18, 0
    %p187 = por %p185, %p186
    %p188 = scmp.le.s32.totalorder 1, %s12
    %p189 = scmp.lt.s32.totalorder %s12, 5
    %p190 = pnand %p188, %p189
    %p191 = pneg %p190
    // Predicated region
    $region9: #{discriminator_forward.5} parent=5 // pred_check
      _
    $region10: #{discriminator_forward.5} parent=5 // pred_check_branch
      %193 = sbr.rel (%p190) target = $region12
    $region11: #{discriminator_forward.5} parent=5 // pred_region
      %s194 = ssub.s32 %s12, 1
      // Predicated region
      $region13: #{discriminator_forward.5} parent=11 // pred_check
        %p195 = pneg %p71
      $region14: #{discriminator_forward.5} parent=11 // pred_check_branch
        %197 = sbr.rel (%p195) target = $region16
      $region15: #{discriminator_forward.5} parent=11 // pred_region
        _
      $region16: #{discriminator_forward.5} parent=11 // pred_fallthru
        _
      // Predicated region
      $region17: #{discriminator_forward.5} parent=11 // pred_check
        %p198 = pneg %p92
      $region18: #{discriminator_forward.5} parent=11 // pred_check_branch
        %200 = sbr.rel (%p198) target = $region20
      $region19: #{discriminator_forward.5} parent=11 // pred_region
        _
      $region20: #{discriminator_forward.5} parent=11 // pred_fallthru
        _
    $region12: #{discriminator_forward.5} parent=5 // pred_fallthru
      _
    %p201 = scmp.lt.s32.totalorder %s12, 4
    // Predicated region
    $region21: #{discriminator_forward.5} parent=5 // pred_check
      %p202 = pneg %p201
    $region22: #{discriminator_forward.5} parent=5 // pred_check_branch
      %204 = sbr.rel (%p202) target = $region24
    $region23: #{discriminator_forward.5} parent=5 // pred_region
      // Predicated region
      $region25: #{discriminator_forward.5} parent=23 // pred_check
        %p205 = pneg %p44
      $region26: #{discriminator_forward.5} parent=23 // pred_check_branch
        %207 = sbr.rel (%p205) target = $region28
      $region27: #{discriminator_forward.5} parent=23 // pred_region
        %p208 = scmp.lt.s32.totalorder %s19, 1
        %s209 = scalar_select %p208, %s19, 1
        %s210 = smul.addr %s209, 72
        %s211 = smul.addr %s210, 4
        %s212 = scalar_lea.vmem %s0, %s211
      $region28: #{discriminator_forward.5} parent=23 // pred_fallthru
        _
    $region24: #{discriminator_forward.5} parent=5 // pred_fallthru
      _
    %p213 = scmp.le.s32.totalorder 1, %s12
    %p214 = scmp.lt.s32.totalorder %s12, 5
    %p215 = pnand %p213, %p214
    %p216 = pneg %p215
    // Predicated region
    $region29: #{discriminator_forward.5} parent=5 // pred_check
      _
    $region30: #{discriminator_forward.5} parent=5 // pred_check_branch
      %218 = sbr.rel (%p215) target = $region32
    $region31: #{discriminator_forward.5} parent=5 // pred_region
      %s219 = ssub.s32 %s12, 1
      %p220 = scmp.lt.s32.totalorder %s21, 1
      %s221 = scalar_select %p220, %s21, 1
      %s222 = smul.addr %s221, 72
      %s223 = smul.addr %s222, 4
      %s224 = scalar_lea.vmem %s0, %s223
      %p225 = pneg %p50
      %p226 = pneg %p47
      %p227 = pneg %p71
      %p228 = pneg %p68
      %p229 = pneg %p92
      %p230 = pneg %p89
      %p231 = pneg %p120
      %p232 = pneg %p117
      %s233 = smul.u32 4, %s22
      %p234 = scmp.lt.s32.totalorder %s21, 1
      %s235 = scalar_select %p234, %s21, 1
      %p236 = scmp.lt.s32.totalorder %s233, 7
      %s237 = scalar_select %p236, %s233, 7
      %s238 = smul.addr %s235, 8
      %s239 = sadd.s32 %s237, %s238
      %s240 = smul.addr %s239, 4
      %s241 = scalar_lea.vmem %s3, %s240
      %p242 = pneg %p150
      %p243 = pneg %p147
      %s244 = smul.u32 %s21, 2
      %s245 = sadd.s32 %s244, %s22
      %p246 = scmp.lt.s32.totalorder %s245, 3
      %s247 = scalar_select %p246, %s245, 3
      %s248 = smul.addr %s247, 8
      %s249 = scalar_lea.vmem %s4, %s248
      %p250 = pneg %p180
      %p251 = pneg %p177
      %s252 = smul.u32 %s21, 2
      %s253 = sadd.s32 %s252, %s22
      %p254 = scmp.lt.s32.totalorder %s253, 3
      %s255 = scalar_select %p254, %s253, 3
      %s256 = smul.addr %s255, 8
      %s257 = scalar_lea.vmem %s5, %s256
      %p258 = scmp.lt.s32.totalorder %s21, 1
      %s259 = scalar_select %p258, %s21, 1
      %s260 = smul.addr %s259, 72
      %s261 = smul.addr %s260, 4
      %s262 = scalar_lea.vmem %s0, %s261
      %s263 = smul.u32 4, %s22
      %p264 = scmp.lt.s32.totalorder %s21, 1
      %s265 = scalar_select %p264, %s21, 1
      %p266 = scmp.lt.s32.totalorder %s263, 7
      %s267 = scalar_select %p266, %s263, 7
      %s268 = smul.addr %s265, 8
      %s269 = sadd.s32 %s267, %s268
      %s270 = smul.addr %s269, 4
      %s271 = scalar_lea.vmem %s3, %s270
      %s272 = smul.u32 4, %s22
      %s273 = smul.u32 %s21, 2
      %s274 = sadd.s32 %s273, %s22
      %p275 = scmp.lt.s32.totalorder %s274, 3
      %s276 = scalar_select %p275, %s274, 3
      %s277 = smul.addr %s276, 8
      %s278 = scalar_lea.vmem %s4, %s277
      %s279 = smul.u32 %s21, 2
      %s280 = sadd.s32 %s279, %s22
      %s281 = smul.u32 %s21, 2
      %s282 = sadd.s32 %s281, %s22
      %p283 = scmp.lt.s32.totalorder %s282, 3
      %s284 = scalar_select %p283, %s282, 3
      %s285 = smul.addr %s284, 8
      %s286 = scalar_lea.vmem %s5, %s285
      %s287 = smul.u32 %s21, 2
      %s288 = sadd.s32 %s287, %s22
      %s290 = smul.u32 %s22, 4
      %v291 = vld [vmem:[%s2] sm:$0x1]
      %s292 = smul.u32 %s290, 8
      %s293 = smul.addr %s292, 4
      %s294 = scalar_lea.vmem %s262, %s293
      %v295 = vld [vmem:[%s294] sm:$0xff]
      %v296 = vld [vmem:[%s294 + $0x8] sm:$0xff]
      %v297 = vld [vmem:[%s294 + $0x20] sm:$0xff]
      %v298 = vld [vmem:[%s294 + $0x28] sm:$0xff]
      %v299 = vld [vmem:[%s294 + $0x40] sm:$0xff]
      %v300 = vld [vmem:[%s294 + $0x48] sm:$0xff]
      %v301 = vld [vmem:[%s294 + $0x60] sm:$0xff]
      %v302 = vld [vmem:[%s294 + $0x68] sm:$0xff]
      %v303 = vld [vmem:[%s1] sm:$0xf]
      %v304 = vld [vmem:[%s1 + $0x4] sm:$0xf]
      %v305 = vld [vmem:[%s1 + $0x8] sm:$0xf]
      %v306 = vld [vmem:[%s1 + $0xc] sm:$0xf]
      %v307 = vld [vmem:[%s1 + $0x10] sm:$0xf]
      %v308 = vld [vmem:[%s1 + $0x14] sm:$0xf]
      %v309 = vld [vmem:[%s1 + $0x18] sm:$0xf]
      %v310 = vld [vmem:[%s1 + $0x1c] sm:$0xf]
      %v311 = vld [vmem:[%s1 + $0x20] sm:$0xf]
      %v312 = vld [vmem:[%s1 + $0x24] sm:$0xf]
      %v313 = vld [vmem:[%s1 + $0x28] sm:$0xf]
      %v314 = vld [vmem:[%s1 + $0x2c] sm:$0xf]
      %v315 = vld [vmem:[%s1 + $0x30] sm:$0xf]
      %v316 = vld [vmem:[%s1 + $0x34] sm:$0xf]
      %v317 = vld [vmem:[%s1 + $0x38] sm:$0xf]
      %v318 = vld [vmem:[%s1 + $0x3c] sm:$0xf]
      %v319 = vld [vmem:[%s1 + $0x40] sm:$0xf]
      %v320 = vld [vmem:[%s1 + $0x44] sm:$0xf]
      %v321 = vld [vmem:[%s1 + $0x48] sm:$0xf]
      %v322 = vld [vmem:[%s1 + $0x4c] sm:$0xf]
      %v323 = vld [vmem:[%s1 + $0x50] sm:$0xf]
      %v324 = vld [vmem:[%s1 + $0x54] sm:$0xf]
      %v325 = vld [vmem:[%s1 + $0x58] sm:$0xf]
      %v326 = vld [vmem:[%s1 + $0x5c] sm:$0xf]
      %v327 = vld [vmem:[%s1 + $0x60] sm:$0xf]
      %v328 = vld [vmem:[%s1 + $0x64] sm:$0xf]
      %v329 = vld [vmem:[%s1 + $0x68] sm:$0xf]
      %v330 = vld [vmem:[%s1 + $0x6c] sm:$0xf]
      %v331 = vld [vmem:[%s1 + $0x70] sm:$0xf]
      %v332 = vld [vmem:[%s1 + $0x74] sm:$0xf]
      %v333 = vld [vmem:[%s1 + $0x78] sm:$0xf]
      %v334 = vld [vmem:[%s1 + $0x7c] sm:$0xf]
      %v335 = vld [vmem:[%s1 + $0x80] sm:$0xf]
      %v336 = vld [vmem:[%s1 + $0x84] sm:$0xf]
      %v337 = vld [vmem:[%s1 + $0x88] sm:$0xf]
      %v338 = vld [vmem:[%s1 + $0x8c] sm:$0xf]
      %v339 = vld [vmem:[%s1 + $0x90] sm:$0xf]
      %v340 = vld [vmem:[%s1 + $0x94] sm:$0xf]
      %v341 = vld [vmem:[%s1 + $0x98] sm:$0xf]
      %v342 = vld [vmem:[%s1 + $0x9c] sm:$0xf]
      %v343 = vld [vmem:[%s1 + $0xa0] sm:$0xf]
      %v344 = vld [vmem:[%s1 + $0xa4] sm:$0xf]
      %v345 = vld [vmem:[%s1 + $0xa8] sm:$0xf]
      %v346 = vld [vmem:[%s1 + $0xac] sm:$0xf]
      %v347 = vld [vmem:[%s1 + $0xb0] sm:$0xf]
      %v348 = vld [vmem:[%s1 + $0xb4] sm:$0xf]
      %v349 = vld [vmem:[%s1 + $0xb8] sm:$0xf]
      %v350 = vld [vmem:[%s1 + $0xbc] sm:$0xf]
      %v351 = vld [vmem:[%s1 + $0xc0] sm:$0xf]
      %v352 = vld [vmem:[%s1 + $0xc4] sm:$0xf]
      %v353 = vld [vmem:[%s1 + $0xc8] sm:$0xf]
      %v354 = vld [vmem:[%s1 + $0xcc] sm:$0xf]
      %v355 = vld [vmem:[%s1 + $0xd0] sm:$0xf]
      %v356 = vld [vmem:[%s1 + $0xd4] sm:$0xf]
      %v357 = vld [vmem:[%s1 + $0xd8] sm:$0xf]
      %v358 = vld [vmem:[%s1 + $0xdc] sm:$0xf]
      %v359 = vld [vmem:[%s1 + $0xe0] sm:$0xf]
      %v360 = vld [vmem:[%s1 + $0xe4] sm:$0xf]
      %v361 = vld [vmem:[%s1 + $0xe8] sm:$0xf]
      %v362 = vld [vmem:[%s1 + $0xec] sm:$0xf]
      %v363 = vld [vmem:[%s1 + $0xf0] sm:$0xf]
      %v364 = vld [vmem:[%s1 + $0xf4] sm:$0xf]
      %v365 = vld [vmem:[%s1 + $0xf8] sm:$0xf]
      %v366 = vld [vmem:[%s1 + $0xfc] sm:$0xf]
      %v367 = vld [vmem:[%s294 + $0x10] sm:$0x11]
      %v368 = vld [vmem:[%s294 + $0x18] sm:$0x11]
      %v369 = vld [vmem:[%s294 + $0x30] sm:$0x11]
      %v370 = vld [vmem:[%s294 + $0x38] sm:$0x11]
      %v371 = vld [vmem:[%s294 + $0x50] sm:$0x11]
      %v372 = vld [vmem:[%s294 + $0x58] sm:$0x11]
      %v373 = vld [vmem:[%s294 + $0x70] sm:$0x11]
      %v374 = vld [vmem:[%s294 + $0x78] sm:$0x11]
      %s375 = scalar_lea.vmem %s1, 256
      %v376 = vld [vmem:[%s375] sm:$0xf]
      %v377 = vld [vmem:[%s375 + $0x4] sm:$0xf]
      %v378 = vld [vmem:[%s375 + $0x8] sm:$0xf]
      %v379 = vld [vmem:[%s375 + $0xc] sm:$0xf]
      %v380 = vld [vmem:[%s375 + $0x10] sm:$0xf]
      %v381 = vld [vmem:[%s375 + $0x14] sm:$0xf]
      %v382 = vld [vmem:[%s375 + $0x18] sm:$0xf]
      %v383 = vld [vmem:[%s375 + $0x1c] sm:$0xf]
      %v384 = vld [vmem:[%s375 + $0x20] sm:$0xf]
      %v385 = vld [vmem:[%s375 + $0x24] sm:$0xf]
      %v386 = vld [vmem:[%s375 + $0x28] sm:$0xf]
      %v387 = vld [vmem:[%s375 + $0x2c] sm:$0xf]
      %v388 = vld [vmem:[%s375 + $0x30] sm:$0xf]
      %v389 = vld [vmem:[%s375 + $0x34] sm:$0xf]
      %v390 = vld [vmem:[%s375 + $0x38] sm:$0xf]
      %v391 = vld [vmem:[%s375 + $0x3c] sm:$0xf]
      %v392 = vld [vmem:[%s375 + $0x40] sm:$0xf]
      %v393 = vld [vmem:[%s375 + $0x44] sm:$0xf]
      %v394 = vld [vmem:[%s375 + $0x48] sm:$0xf]
      %v395 = vld [vmem:[%s375 + $0x4c] sm:$0xf]
      %v396 = vld [vmem:[%s375 + $0x50] sm:$0xf]
      %v397 = vld [vmem:[%s375 + $0x54] sm:$0xf]
      %v398 = vld [vmem:[%s375 + $0x58] sm:$0xf]
      %v399 = vld [vmem:[%s375 + $0x5c] sm:$0xf]
      %v400 = vld [vmem:[%s375 + $0x60] sm:$0xf]
      %v401 = vld [vmem:[%s375 + $0x64] sm:$0xf]
      %v402 = vld [vmem:[%s375 + $0x68] sm:$0xf]
      %v403 = vld [vmem:[%s375 + $0x6c] sm:$0xf]
      %v404 = vld [vmem:[%s375 + $0x70] sm:$0xf]
      %v405 = vld [vmem:[%s375 + $0x74] sm:$0xf]
      %v406 = vld [vmem:[%s375 + $0x78] sm:$0xf]
      %v407 = vld [vmem:[%s375 + $0x7c] sm:$0xf]
      %v408 = vld [vmem:[%s375 + $0x80] sm:$0xf]
      %v409 = vld [vmem:[%s375 + $0x84] sm:$0xf]
      %v410 = vld [vmem:[%s375 + $0x88] sm:$0xf]
      %v411 = vld [vmem:[%s375 + $0x8c] sm:$0xf]
      %v412 = vld [vmem:[%s375 + $0x90] sm:$0xf]
      %v413 = vld [vmem:[%s375 + $0x94] sm:$0xf]
      %v414 = vld [vmem:[%s375 + $0x98] sm:$0xf]
      %v415 = vld [vmem:[%s375 + $0x9c] sm:$0xf]
      %v416 = vld [vmem:[%s375 + $0xa0] sm:$0xf]
      %v417 = vld [vmem:[%s375 + $0xa4] sm:$0xf]
      %v418 = vld [vmem:[%s375 + $0xa8] sm:$0xf]
      %v419 = vld [vmem:[%s375 + $0xac] sm:$0xf]
      %v420 = vld [vmem:[%s375 + $0xb0] sm:$0xf]
      %v421 = vld [vmem:[%s375 + $0xb4] sm:$0xf]
      %v422 = vld [vmem:[%s375 + $0xb8] sm:$0xf]
      %v423 = vld [vmem:[%s375 + $0xbc] sm:$0xf]
      %v424 = vld [vmem:[%s375 + $0xc0] sm:$0xf]
      %v425 = vld [vmem:[%s375 + $0xc4] sm:$0xf]
      %v426 = vld [vmem:[%s375 + $0xc8] sm:$0xf]
      %v427 = vld [vmem:[%s375 + $0xcc] sm:$0xf]
      %v428 = vld [vmem:[%s375 + $0xd0] sm:$0xf]
      %v429 = vld [vmem:[%s375 + $0xd4] sm:$0xf]
      %v430 = vld [vmem:[%s375 + $0xd8] sm:$0xf]
      %v431 = vld [vmem:[%s375 + $0xdc] sm:$0xf]
      %v432 = vld [vmem:[%s375 + $0xe0] sm:$0xf]
      %v433 = vld [vmem:[%s375 + $0xe4] sm:$0xf]
      %v434 = vld [vmem:[%s375 + $0xe8] sm:$0xf]
      %v435 = vld [vmem:[%s375 + $0xec] sm:$0xf]
      %v436 = vld [vmem:[%s375 + $0xf0] sm:$0xf]
      %v437 = vld [vmem:[%s375 + $0xf4] sm:$0xf]
      %v438 = vld [vmem:[%s375 + $0xf8] sm:$0xf]
      %v439 = vld [vmem:[%s375 + $0xfc] sm:$0xf]
      %v444 = vunpack.c.l.b16 %v295
      %v445 = vunpack.c.h.b16 %v295
      %v446 = vunpack.c.l.b16 %v296
      %v447 = vunpack.c.h.b16 %v296
      %v448 = vunpack.c.l.b16 %v367
      %v449 = vunpack.c.h.b16 %v367
      %v450 = vunpack.c.l.b16 %v368
      %v451 = vunpack.c.h.b16 %v368
      %v452 = vpack.c.b16 %v448, %v444
      %v453 = vpack.c.b16 %v449, %v445
      %v454 = vpack.c.b16 %v450, %v446
      %v455 = vpack.c.b16 %v451, %v447
      %v457 = vshrl.u32 %v452, 16
      %v459 = vshll.u32 %v452, 16
      %v461 = vrot.slane %v459, 1
      %v462 = vor.u32 %v457, %v461
      %v464 = vshrl.u32 %v453, 16
      %v466 = vshll.u32 %v453, 16
      %v468 = vrot.slane %v466, 1
      %v469 = vor.u32 %v464, %v468
      %v471 = vshrl.u32 %v454, 16
      %v473 = vshll.u32 %v454, 16
      %v475 = vrot.slane %v473, 1
      %v476 = vor.u32 %v471, %v475
      %v478 = vshrl.u32 %v455, 16
      %v480 = vshll.u32 %v455, 16
      %v482 = vrot.slane %v480, 1
      %v483 = vor.u32 %v478, %v482
      %v552 = vunpack.c.l.b16 %v376
      %v553 = vunpack.c.l.b16 %v377
      %v554 = vunpack.c.l.b16 %v378
      %v555 = vunpack.c.l.b16 %v379
      %v556 = vunpack.c.l.b16 %v380
      %v557 = vunpack.c.l.b16 %v381
      %v558 = vunpack.c.l.b16 %v382
      %v559 = vunpack.c.l.b16 %v383
      %v560 = vunpack.c.l.b16 %v384
      %v561 = vunpack.c.l.b16 %v385
      %v562 = vunpack.c.l.b16 %v386
      %v563 = vunpack.c.l.b16 %v387
      %v564 = vunpack.c.l.b16 %v388
      %v565 = vunpack.c.l.b16 %v389
      %v566 = vunpack.c.l.b16 %v390
      %v567 = vunpack.c.l.b16 %v391
      %v568 = vunpack.c.l.b16 %v392
      %v569 = vunpack.c.l.b16 %v393
      %v570 = vunpack.c.l.b16 %v394
      %v571 = vunpack.c.l.b16 %v395
      %v572 = vunpack.c.l.b16 %v396
      %v573 = vunpack.c.l.b16 %v397
      %v574 = vunpack.c.l.b16 %v398
      %v575 = vunpack.c.l.b16 %v399
      %v576 = vunpack.c.l.b16 %v400
      %v577 = vunpack.c.l.b16 %v401
      %v578 = vunpack.c.l.b16 %v402
      %v579 = vunpack.c.l.b16 %v403
      %v580 = vunpack.c.l.b16 %v404
      %v581 = vunpack.c.l.b16 %v405
      %v582 = vunpack.c.l.b16 %v406
      %v583 = vunpack.c.l.b16 %v407
      %v584 = vunpack.c.l.b16 %v408
      %v585 = vunpack.c.l.b16 %v409
      %v586 = vunpack.c.l.b16 %v410
      %v587 = vunpack.c.l.b16 %v411
      %v588 = vunpack.c.l.b16 %v412
      %v589 = vunpack.c.l.b16 %v413
      %v590 = vunpack.c.l.b16 %v414
      %v591 = vunpack.c.l.b16 %v415
      %v592 = vunpack.c.l.b16 %v416
      %v593 = vunpack.c.l.b16 %v417
      %v594 = vunpack.c.l.b16 %v418
      %v595 = vunpack.c.l.b16 %v419
      %v596 = vunpack.c.l.b16 %v420
      %v597 = vunpack.c.l.b16 %v421
      %v598 = vunpack.c.l.b16 %v422
      %v599 = vunpack.c.l.b16 %v423
      %v600 = vunpack.c.l.b16 %v424
      %v601 = vunpack.c.l.b16 %v425
      %v602 = vunpack.c.l.b16 %v426
      %v603 = vunpack.c.l.b16 %v427
      %v604 = vunpack.c.l.b16 %v428
      %v605 = vunpack.c.l.b16 %v429
      %v606 = vunpack.c.l.b16 %v430
      %v607 = vunpack.c.l.b16 %v431
      %v608 = vunpack.c.l.b16 %v432
      %v609 = vunpack.c.l.b16 %v433
      %v610 = vunpack.c.l.b16 %v434
      %v611 = vunpack.c.l.b16 %v435
      %v612 = vunpack.c.l.b16 %v436
      %v613 = vunpack.c.l.b16 %v437
      %v614 = vunpack.c.l.b16 %v438
      %v615 = vunpack.c.l.b16 %v439
      %v616 = vpack.c.b16 %v553, %v552
      %v617 = vpack.c.b16 %v555, %v554
      %v618 = vpack.c.b16 %v557, %v556
      %v619 = vpack.c.b16 %v559, %v558
      %v620 = vpack.c.b16 %v561, %v560
      %v621 = vpack.c.b16 %v563, %v562
      %v622 = vpack.c.b16 %v565, %v564
      %v623 = vpack.c.b16 %v567, %v566
      %v624 = vpack.c.b16 %v569, %v568
      %v625 = vpack.c.b16 %v571, %v570
      %v626 = vpack.c.b16 %v573, %v572
      %v627 = vpack.c.b16 %v575, %v574
      %v628 = vpack.c.b16 %v577, %v576
      %v629 = vpack.c.b16 %v579, %v578
      %v630 = vpack.c.b16 %v581, %v580
      %v631 = vpack.c.b16 %v583, %v582
      %v632 = vpack.c.b16 %v585, %v584
      %v633 = vpack.c.b16 %v587, %v586
      %v634 = vpack.c.b16 %v589, %v588
      %v635 = vpack.c.b16 %v591, %v590
      %v636 = vpack.c.b16 %v593, %v592
      %v637 = vpack.c.b16 %v595, %v594
      %v638 = vpack.c.b16 %v597, %v596
      %v639 = vpack.c.b16 %v599, %v598
      %v640 = vpack.c.b16 %v601, %v600
      %v641 = vpack.c.b16 %v603, %v602
      %v642 = vpack.c.b16 %v605, %v604
      %v643 = vpack.c.b16 %v607, %v606
      %v644 = vpack.c.b16 %v609, %v608
      %v645 = vpack.c.b16 %v611, %v610
      %v646 = vpack.c.b16 %v613, %v612
      %v647 = vpack.c.b16 %v615, %v614
      %680 = vmatprep.subr.bf16.mxu0 0
      %681 = vmatpush1.bf16.msra.mxu0 %v616
      %682 = vmatprep.subr.bf16.mxu0 0
      %683 = vmatpush1.bf16.msra.mxu0 %v617
      %684 = vmatprep.subr.bf16.mxu0 0
      %685 = vmatpush1.bf16.msra.mxu0 %v618
      %686 = vmatprep.subr.bf16.mxu0 0
      %687 = vmatpush1.bf16.msra.mxu0 %v619
      %688 = vmatprep.subr.bf16.mxu0 0
      %689 = vmatpush1.bf16.msra.mxu0 %v620
      %690 = vmatprep.subr.bf16.mxu0 0
      %691 = vmatpush1.bf16.msra.mxu0 %v621
      %692 = vmatprep.subr.bf16.mxu0 0
      %693 = vmatpush1.bf16.msra.mxu0 %v622
      %694 = vmatprep.subr.bf16.mxu0 0
      %695 = vmatpush1.bf16.msra.mxu0 %v623
      %696 = vmatprep.subr.bf16.mxu0 0
      %697 = vmatpush1.bf16.msra.mxu0 %v624
      %698 = vmatprep.subr.bf16.mxu0 0
      %699 = vmatpush1.bf16.msra.mxu0 %v625
      %700 = vmatprep.subr.bf16.mxu0 0
      %701 = vmatpush1.bf16.msra.mxu0 %v626
      %702 = vmatprep.subr.bf16.mxu0 0
      %703 = vmatpush1.bf16.msra.mxu0 %v627
      %704 = vmatprep.subr.bf16.mxu0 0
      %705 = vmatpush1.bf16.msra.mxu0 %v628
      %706 = vmatprep.subr.bf16.mxu0 0
      %707 = vmatpush1.bf16.msra.mxu0 %v629
      %708 = vmatprep.subr.bf16.mxu0 0
      %709 = vmatpush1.bf16.msra.mxu0 %v630
      %710 = vmatprep.subr.bf16.mxu0 0
      %711 = vmatpush1.bf16.msra.mxu0 %v631
      %712 = vmatprep.mubr.bf16.mxu0 %v469
      %713 = vmatmul.mubr.bf16.gmra.mrb[0].mxu0 %v462
      %v714 = vpop.f32.mrb[0].mxu0
      %v715 = vadd.f32 0.0, %v714
      %v716 = vpop.f32.mrb[0].mxu0
      %v717 = vpop.f32.mrb[0].mxu0
      %v718 = vpop.f32.mrb[0].mxu0
      %719 = vdwg.mxu0
      %720 = vmatprep.subr.bf16.mxu0 0
      %721 = vmatpush1.bf16.msra.mxu0 %v632
      %722 = vmatprep.subr.bf16.mxu0 0
      %723 = vmatpush1.bf16.msra.mxu0 %v633
      %724 = vmatprep.subr.bf16.mxu0 0
      %725 = vmatpush1.bf16.msra.mxu0 %v634
      %726 = vmatprep.subr.bf16.mxu0 0
      %727 = vmatpush1.bf16.msra.mxu0 %v635
      %728 = vmatprep.subr.bf16.mxu0 0
      %729 = vmatpush1.bf16.msra.mxu0 %v636
      %730 = vmatprep.subr.bf16.mxu0 0
      %731 = vmatpush1.bf16.msra.mxu0 %v637
      %732 = vmatprep.subr.bf16.mxu0 0
      %733 = vmatpush1.bf16.msra.mxu0 %v638
      %734 = vmatprep.subr.bf16.mxu0 0
      %735 = vmatpush1.bf16.msra.mxu0 %v639
      %736 = vmatprep.subr.bf16.mxu0 0
      %737 = vmatpush1.bf16.msra.mxu0 %v640
      %738 = vmatprep.subr.bf16.mxu0 0
      %739 = vmatpush1.bf16.msra.mxu0 %v641
      %740 = vmatprep.subr.bf16.mxu0 0
      %741 = vmatpush1.bf16.msra.mxu0 %v642
      %742 = vmatprep.subr.bf16.mxu0 0
      %743 = vmatpush1.bf16.msra.mxu0 %v643
      %744 = vmatprep.subr.bf16.mxu0 0
      %745 = vmatpush1.bf16.msra.mxu0 %v644
      %746 = vmatprep.subr.bf16.mxu0 0
      %747 = vmatpush1.bf16.msra.mxu0 %v645
      %748 = vmatprep.subr.bf16.mxu0 0
      %749 = vmatpush1.bf16.msra.mxu0 %v646
      %750 = vmatprep.subr.bf16.mxu0 0
      %751 = vmatpush1.bf16.msra.mxu0 %v647
      %752 = vmatprep.mubr.bf16.mxu0 %v483
      %753 = vmatmul.mubr.bf16.gmra.mrb[0].mxu0 %v476
      %v754 = vpop.f32.mrb[0].mxu0
      %v755 = vadd.f32 %v715, %v754
      %v756 = vpop.f32.mrb[0].mxu0
      %v757 = vpop.f32.mrb[0].mxu0
      %v758 = vpop.f32.mrb[0].mxu0
      %759 = vdwg.mxu0
      %v760 = vpack.c.b16 %v444, %v444
      %v761 = vpack.c.b16 %v445, %v445
      %v762 = vpack.c.b16 %v446, %v446
      %v763 = vpack.c.b16 %v447, %v447
      %v832 = vunpack.c.l.b16 %v303
      %v833 = vunpack.c.l.b16 %v304
      %v834 = vunpack.c.l.b16 %v305
      %v835 = vunpack.c.l.b16 %v306
      %v836 = vunpack.c.l.b16 %v307
      %v837 = vunpack.c.l.b16 %v308
      %v838 = vunpack.c.l.b16 %v309
      %v839 = vunpack.c.l.b16 %v310
      %v840 = vunpack.c.l.b16 %v311
      %v841 = vunpack.c.l.b16 %v312
      %v842 = vunpack.c.l.b16 %v313
      %v843 = vunpack.c.l.b16 %v314
      %v844 = vunpack.c.l.b16 %v315
      %v845 = vunpack.c.l.b16 %v316
      %v846 = vunpack.c.l.b16 %v317
      %v847 = vunpack.c.l.b16 %v318
      %v848 = vunpack.c.l.b16 %v319
      %v849 = vunpack.c.l.b16 %v320
      %v850 = vunpack.c.l.b16 %v321
      %v851 = vunpack.c.l.b16 %v322
      %v852 = vunpack.c.l.b16 %v323
      %v853 = vunpack.c.l.b16 %v324
      %v854 = vunpack.c.l.b16 %v325
      %v855 = vunpack.c.l.b16 %v326
      %v856 = vunpack.c.l.b16 %v327
      %v857 = vunpack.c.l.b16 %v328
      %v858 = vunpack.c.l.b16 %v329
      %v859 = vunpack.c.l.b16 %v330
      %v860 = vunpack.c.l.b16 %v331
      %v861 = vunpack.c.l.b16 %v332
      %v862 = vunpack.c.l.b16 %v333
      %v863 = vunpack.c.l.b16 %v334
      %v864 = vunpack.c.l.b16 %v335
      %v865 = vunpack.c.l.b16 %v336
      %v866 = vunpack.c.l.b16 %v337
      %v867 = vunpack.c.l.b16 %v338
      %v868 = vunpack.c.l.b16 %v339
      %v869 = vunpack.c.l.b16 %v340
      %v870 = vunpack.c.l.b16 %v341
      %v871 = vunpack.c.l.b16 %v342
      %v872 = vunpack.c.l.b16 %v343
      %v873 = vunpack.c.l.b16 %v344
      %v874 = vunpack.c.l.b16 %v345
      %v875 = vunpack.c.l.b16 %v346
      %v876 = vunpack.c.l.b16 %v347
      %v877 = vunpack.c.l.b16 %v348
      %v878 = vunpack.c.l.b16 %v349
      %v879 = vunpack.c.l.b16 %v350
      %v880 = vunpack.c.l.b16 %v351
      %v881 = vunpack.c.l.b16 %v352
      %v882 = vunpack.c.l.b16 %v353
      %v883 = vunpack.c.l.b16 %v354
      %v884 = vunpack.c.l.b16 %v355
      %v885 = vunpack.c.l.b16 %v356
      %v886 = vunpack.c.l.b16 %v357
      %v887 = vunpack.c.l.b16 %v358
      %v888 = vunpack.c.l.b16 %v359
      %v889 = vunpack.c.l.b16 %v360
      %v890 = vunpack.c.l.b16 %v361
      %v891 = vunpack.c.l.b16 %v362
      %v892 = vunpack.c.l.b16 %v363
      %v893 = vunpack.c.l.b16 %v364
      %v894 = vunpack.c.l.b16 %v365
      %v895 = vunpack.c.l.b16 %v366
      %v896 = vpack.c.b16 %v833, %v832
      %v897 = vpack.c.b16 %v835, %v834
      %v898 = vpack.c.b16 %v837, %v836
      %v899 = vpack.c.b16 %v839, %v838
      %v900 = vpack.c.b16 %v841, %v840
      %v901 = vpack.c.b16 %v843, %v842
      %v902 = vpack.c.b16 %v845, %v844
      %v903 = vpack.c.b16 %v847, %v846
      %v904 = vpack.c.b16 %v849, %v848
      %v905 = vpack.c.b16 %v851, %v850
      %v906 = vpack.c.b16 %v853, %v852
      %v907 = vpack.c.b16 %v855, %v854
      %v908 = vpack.c.b16 %v857, %v856
      %v909 = vpack.c.b16 %v859, %v858
      %v910 = vpack.c.b16 %v861, %v860
      %v911 = vpack.c.b16 %v863, %v862
      %v912 = vpack.c.b16 %v865, %v864
      %v913 = vpack.c.b16 %v867, %v866
      %v914 = vpack.c.b16 %v869, %v868
      %v915 = vpack.c.b16 %v871, %v870
      %v916 = vpack.c.b16 %v873, %v872
      %v917 = vpack.c.b16 %v875, %v874
      %v918 = vpack.c.b16 %v877, %v876
      %v919 = vpack.c.b16 %v879, %v878
      %v920 = vpack.c.b16 %v881, %v880
      %v921 = vpack.c.b16 %v883, %v882
      %v922 = vpack.c.b16 %v885, %v884
      %v923 = vpack.c.b16 %v887, %v886
      %v924 = vpack.c.b16 %v889, %v888
      %v925 = vpack.c.b16 %v891, %v890
      %v926 = vpack.c.b16 %v893, %v892
      %v927 = vpack.c.b16 %v895, %v894
      %960 = vmatprep.subr.bf16.mxu0 0
      %961 = vmatpush1.bf16.msra.mxu0 %v896
      %962 = vmatprep.subr.bf16.mxu0 0
      %963 = vmatpush1.bf16.msra.mxu0 %v897
      %964 = vmatprep.subr.bf16.mxu0 0
      %965 = vmatpush1.bf16.msra.mxu0 %v898
      %966 = vmatprep.subr.bf16.mxu0 0
      %967 = vmatpush1.bf16.msra.mxu0 %v899
      %968 = vmatprep.subr.bf16.mxu0 0
      %969 = vmatpush1.bf16.msra.mxu0 %v900
      %970 = vmatprep.subr.bf16.mxu0 0
      %971 = vmatpush1.bf16.msra.mxu0 %v901
      %972 = vmatprep.subr.bf16.mxu0 0
      %973 = vmatpush1.bf16.msra.mxu0 %v902
      %974 = vmatprep.subr.bf16.mxu0 0
      %975 = vmatpush1.bf16.msra.mxu0 %v903
      %976 = vmatprep.subr.bf16.mxu0 0
      %977 = vmatpush1.bf16.msra.mxu0 %v904
      %978 = vmatprep.subr.bf16.mxu0 0
      %979 = vmatpush1.bf16.msra.mxu0 %v905
      %980 = vmatprep.subr.bf16.mxu0 0
      %981 = vmatpush1.bf16.msra.mxu0 %v906
      %982 = vmatprep.subr.bf16.mxu0 0
      %983 = vmatpush1.bf16.msra.mxu0 %v907
      %984 = vmatprep.subr.bf16.mxu0 0
      %985 = vmatpush1.bf16.msra.mxu0 %v908
      %986 = vmatprep.subr.bf16.mxu0 0
      %987 = vmatpush1.bf16.msra.mxu0 %v909
      %988 = vmatprep.subr.bf16.mxu0 0
      %989 = vmatpush1.bf16.msra.mxu0 %v910
      %990 = vmatprep.subr.bf16.mxu0 0
      %991 = vmatpush1.bf16.msra.mxu0 %v911
      %992 = vmatprep.mubr.bf16.mxu0 %v761
      %993 = vmatmul.mubr.bf16.gmra.mrb[0].mxu0 %v760
      %v994 = vpop.f32.mrb[0].mxu0
      %v995 = vadd.f32 %v755, %v994
      %v996 = vpop.f32.mrb[0].mxu0
      %v997 = vpop.f32.mrb[0].mxu0
      %v998 = vpop.f32.mrb[0].mxu0
      %999 = vdwg.mxu0
      %1000 = vmatprep.subr.bf16.mxu0 0
      %1001 = vmatpush1.bf16.msra.mxu0 %v912
      %1002 = vmatprep.subr.bf16.mxu0 0
      %1003 = vmatpush1.bf16.msra.mxu0 %v913
      %1004 = vmatprep.subr.bf16.mxu0 0
      %1005 = vmatpush1.bf16.msra.mxu0 %v914
      %1006 = vmatprep.subr.bf16.mxu0 0
      %1007 = vmatpush1.bf16.msra.mxu0 %v915
      %1008 = vmatprep.subr.bf16.mxu0 0
      %1009 = vmatpush1.bf16.msra.mxu0 %v916
      %1010 = vmatprep.subr.bf16.mxu0 0
      %1011 = vmatpush1.bf16.msra.mxu0 %v917
      %1012 = vmatprep.subr.bf16.mxu0 0
      %1013 = vmatpush1.bf16.msra.mxu0 %v918
      %1014 = vmatprep.subr.bf16.mxu0 0
      %1015 = vmatpush1.bf16.msra.mxu0 %v919
      %1016 = vmatprep.subr.bf16.mxu0 0
      %1017 = vmatpush1.bf16.msra.mxu0 %v920
      %1018 = vmatprep.subr.bf16.mxu0 0
      %1019 = vmatpush1.bf16.msra.mxu0 %v921
      %1020 = vmatprep.subr.bf16.mxu0 0
      %1021 = vmatpush1.bf16.msra.mxu0 %v922
      %1022 = vmatprep.subr.bf16.mxu0 0
      %1023 = vmatpush1.bf16.msra.mxu0 %v923
      %1024 = vmatprep.subr.bf16.mxu0 0
      %1025 = vmatpush1.bf16.msra.mxu0 %v924
      %1026 = vmatprep.subr.bf16.mxu0 0
      %1027 = vmatpush1.bf16.msra.mxu0 %v925
      %1028 = vmatprep.subr.bf16.mxu0 0
      %1029 = vmatpush1.bf16.msra.mxu0 %v926
      %1030 = vmatprep.subr.bf16.mxu0 0
      %1031 = vmatpush1.bf16.msra.mxu0 %v927
      %1032 = vmatprep.mubr.bf16.mxu0 %v763
      %1033 = vmatmul.mubr.bf16.gmra.mrb[0].mxu0 %v762
      %v1034 = vpop.f32.mrb[0].mxu0
      %v1035 = vadd.f32 %v995, %v1034
      %v1036 = vpop.f32.mrb[0].mxu0
      %v1037 = vpop.f32.mrb[0].mxu0
      %v1038 = vpop.f32.mrb[0].mxu0
      %1039 = vdwg.mxu0
      %v1044 = vunpack.c.l.b16 %v297
      %v1045 = vunpack.c.h.b16 %v297
      %v1046 = vunpack.c.l.b16 %v298
      %v1047 = vunpack.c.h.b16 %v298
      %v1048 = vunpack.c.l.b16 %v369
      %v1049 = vunpack.c.h.b16 %v369
      %v1050 = vunpack.c.l.b16 %v370
      %v1051 = vunpack.c.h.b16 %v370
      %v1052 = vpack.c.b16 %v1048, %v1044
      %v1053 = vpack.c.b16 %v1049, %v1045
      %v1054 = vpack.c.b16 %v1050, %v1046
      %v1055 = vpack.c.b16 %v1051, %v1047
      %v1057 = vshrl.u32 %v1052, 16
      %v1059 = vshll.u32 %v1052, 16
      %v1061 = vrot.slane %v1059, 1
      %v1062 = vor.u32 %v1057, %v1061
      %v1064 = vshrl.u32 %v1053, 16
      %v1066 = vshll.u32 %v1053, 16
      %v1068 = vrot.slane %v1066, 1
      %v1069 = vor.u32 %v1064, %v1068
      %v1071 = vshrl.u32 %v1054, 16
      %v1073 = vshll.u32 %v1054, 16
      %v1075 = vrot.slane %v1073, 1
      %v1076 = vor.u32 %v1071, %v1075
      %v1078 = vshrl.u32 %v1055, 16
      %v1080 = vshll.u32 %v1055, 16
      %v1082 = vrot.slane %v1080, 1
      %v1083 = vor.u32 %v1078, %v1082
      %1088 = vmatprep.subr.bf16.mxu0 0
      %1089 = vmatpush1.bf16.msra.mxu0 %v616
      %1090 = vmatprep.subr.bf16.mxu0 0
      %1091 = vmatpush1.bf16.msra.mxu0 %v617
      %1092 = vmatprep.subr.bf16.mxu0 0
      %1093 = vmatpush1.bf16.msra.mxu0 %v618
      %1094 = vmatprep.subr.bf16.mxu0 0
      %1095 = vmatpush1.bf16.msra.mxu0 %v619
      %1096 = vmatprep.subr.bf16.mxu0 0
      %1097 = vmatpush1.bf16.msra.mxu0 %v620
      %1098 = vmatprep.subr.bf16.mxu0 0
      %1099 = vmatpush1.bf16.msra.mxu0 %v621
      %1100 = vmatprep.subr.bf16.mxu0 0
      %1101 = vmatpush1.bf16.msra.mxu0 %v622
      %1102 = vmatprep.subr.bf16.mxu0 0
      %1103 = vmatpush1.bf16.msra.mxu0 %v623
      %1104 = vmatprep.subr.bf16.mxu0 0
      %1105 = vmatpush1.bf16.msra.mxu0 %v624
      %1106 = vmatprep.subr.bf16.mxu0 0
      %1107 = vmatpush1.bf16.msra.mxu0 %v625
      %1108 = vmatprep.subr.bf16.mxu0 0
      %1109 = vmatpush1.bf16.msra.mxu0 %v626
      %1110 = vmatprep.subr.bf16.mxu0 0
      %1111 = vmatpush1.bf16.msra.mxu0 %v627
      %1112 = vmatprep.subr.bf16.mxu0 0
      %1113 = vmatpush1.bf16.msra.mxu0 %v628
      %1114 = vmatprep.subr.bf16.mxu0 0
      %1115 = vmatpush1.bf16.msra.mxu0 %v629
      %1116 = vmatprep.subr.bf16.mxu0 0
      %1117 = vmatpush1.bf16.msra.mxu0 %v630
      %1118 = vmatprep.subr.bf16.mxu0 0
      %1119 = vmatpush1.bf16.msra.mxu0 %v631
      %1120 = vmatprep.mubr.bf16.mxu0 %v1069
      %1121 = vmatmul.mubr.bf16.gmra.mrb[0].mxu0 %v1062
      %v1122 = vpop.f32.mrb[0].mxu0
      %v1123 = vadd.f32 0.0, %v1122
      %v1124 = vpop.f32.mrb[0].mxu0
      %v1125 = vpop.f32.mrb[0].mxu0
      %v1126 = vpop.f32.mrb[0].mxu0
      %1127 = vdwg.mxu0
      %1128 = vmatprep.subr.bf16.mxu0 0
      %1129 = vmatpush1.bf16.msra.mxu0 %v632
      %1130 = vmatprep.subr.bf16.mxu0 0
      %1131 = vmatpush1.bf16.msra.mxu0 %v633
      %1132 = vmatprep.subr.bf16.mxu0 0
      %1133 = vmatpush1.bf16.msra.mxu0 %v634
      %1134 = vmatprep.subr.bf16.mxu0 0
      %1135 = vmatpush1.bf16.msra.mxu0 %v635
      %1136 = vmatprep.subr.bf16.mxu0 0
      %1137 = vmatpush1.bf16.msra.mxu0 %v636
      %1138 = vmatprep.subr.bf16.mxu0 0
      %1139 = vmatpush1.bf16.msra.mxu0 %v637
      %1140 = vmatprep.subr.bf16.mxu0 0
      %1141 = vmatpush1.bf16.msra.mxu0 %v638
      %1142 = vmatprep.subr.bf16.mxu0 0
      %1143 = vmatpush1.bf16.msra.mxu0 %v639
      %1144 = vmatprep.subr.bf16.mxu0 0
      %1145 = vmatpush1.bf16.msra.mxu0 %v640
      %1146 = vmatprep.subr.bf16.mxu0 0
      %1147 = vmatpush1.bf16.msra.mxu0 %v641
      %1148 = vmatprep.subr.bf16.mxu0 0
      %1149 = vmatpush1.bf16.msra.mxu0 %v642
      %1150 = vmatprep.subr.bf16.mxu0 0
      %1151 = vmatpush1.bf16.msra.mxu0 %v643
      %1152 = vmatprep.subr.bf16.mxu0 0
      %1153 = vmatpush1.bf16.msra.mxu0 %v644
      %1154 = vmatprep.subr.bf16.mxu0 0
      %1155 = vmatpush1.bf16.msra.mxu0 %v645
      %1156 = vmatprep.subr.bf16.mxu0 0
      %1157 = vmatpush1.bf16.msra.mxu0 %v646
      %1158 = vmatprep.subr.bf16.mxu0 0
      %1159 = vmatpush1.bf16.msra.mxu0 %v647
      %1160 = vmatprep.mubr.bf16.mxu0 %v1083
      %1161 = vmatmul.mubr.bf16.gmra.mrb[0].mxu0 %v1076
      %v1162 = vpop.f32.mrb[0].mxu0
      %v1163 = vadd.f32 %v1123, %v1162
      %v1164 = vpop.f32.mrb[0].mxu0
      %v1165 = vpop.f32.mrb[0].mxu0
      %v1166 = vpop.f32.mrb[0].mxu0
      %1167 = vdwg.mxu0
      %v1168 = vpack.c.b16 %v1044, %v1044
      %v1169 = vpack.c.b16 %v1045, %v1045
      %v1170 = vpack.c.b16 %v1046, %v1046
      %v1171 = vpack.c.b16 %v1047, %v1047
      %1176 = vmatprep.subr.bf16.mxu0 0
      %1177 = vmatpush1.bf16.msra.mxu0 %v896
      %1178 = vmatprep.subr.bf16.mxu0 0
      %1179 = vmatpush1.bf16.msra.mxu0 %v897
      %1180 = vmatprep.subr.bf16.mxu0 0
      %1181 = vmatpush1.bf16.msra.mxu0 %v898
      %1182 = vmatprep.subr.bf16.mxu0 0
      %1183 = vmatpush1.bf16.msra.mxu0 %v899
      %1184 = vmatprep.subr.bf16.mxu0 0
      %1185 = vmatpush1.bf16.msra.mxu0 %v900
      %1186 = vmatprep.subr.bf16.mxu0 0
      %1187 = vmatpush1.bf16.msra.mxu0 %v901
      %1188 = vmatprep.subr.bf16.mxu0 0
      %1189 = vmatpush1.bf16.msra.mxu0 %v902
      %1190 = vmatprep.subr.bf16.mxu0 0
      %1191 = vmatpush1.bf16.msra.mxu0 %v903
      %1192 = vmatprep.subr.bf16.mxu0 0
      %1193 = vmatpush1.bf16.msra.mxu0 %v904
      %1194 = vmatprep.subr.bf16.mxu0 0
      %1195 = vmatpush1.bf16.msra.mxu0 %v905
      %1196 = vmatprep.subr.bf16.mxu0 0
      %1197 = vmatpush1.bf16.msra.mxu0 %v906
      %1198 = vmatprep.subr.bf16.mxu0 0
      %1199 = vmatpush1.bf16.msra.mxu0 %v907
      %1200 = vmatprep.subr.bf16.mxu0 0
      %1201 = vmatpush1.bf16.msra.mxu0 %v908
      %1202 = vmatprep.subr.bf16.mxu0 0
      %1203 = vmatpush1.bf16.msra.mxu0 %v909
      %1204 = vmatprep.subr.bf16.mxu0 0
      %1205 = vmatpush1.bf16.msra.mxu0 %v910
      %1206 = vmatprep.subr.bf16.mxu0 0
      %1207 = vmatpush1.bf16.msra.mxu0 %v911
      %1208 = vmatprep.mubr.bf16.mxu0 %v1169
      %1209 = vmatmul.mubr.bf16.gmra.mrb[0].mxu0 %v1168
      %v1210 = vpop.f32.mrb[0].mxu0
      %v1211 = vadd.f32 %v1163, %v1210
      %v1212 = vpop.f32.mrb[0].mxu0
      %v1213 = vpop.f32.mrb[0].mxu0
      %v1214 = vpop.f32.mrb[0].mxu0
      %1215 = vdwg.mxu0
      %1216 = vmatprep.subr.bf16.mxu0 0
      %1217 = vmatpush1.bf16.msra.mxu0 %v912
      %1218 = vmatprep.subr.bf16.mxu0 0
      %1219 = vmatpush1.bf16.msra.mxu0 %v913
      %1220 = vmatprep.subr.bf16.mxu0 0
      %1221 = vmatpush1.bf16.msra.mxu0 %v914
      %1222 = vmatprep.subr.bf16.mxu0 0
      %1223 = vmatpush1.bf16.msra.mxu0 %v915
      %1224 = vmatprep.subr.bf16.mxu0 0
      %1225 = vmatpush1.bf16.msra.mxu0 %v916
      %1226 = vmatprep.subr.bf16.mxu0 0
      %1227 = vmatpush1.bf16.msra.mxu0 %v917
      %1228 = vmatprep.subr.bf16.mxu0 0
      %1229 = vmatpush1.bf16.msra.mxu0 %v918
      %1230 = vmatprep.subr.bf16.mxu0 0
      %1231 = vmatpush1.bf16.msra.mxu0 %v919
      %1232 = vmatprep.subr.bf16.mxu0 0
      %1233 = vmatpush1.bf16.msra.mxu0 %v920
      %1234 = vmatprep.subr.bf16.mxu0 0
      %1235 = vmatpush1.bf16.msra.mxu0 %v921
      %1236 = vmatprep.subr.bf16.mxu0 0
      %1237 = vmatpush1.bf16.msra.mxu0 %v922
      %1238 = vmatprep.subr.bf16.mxu0 0
      %1239 = vmatpush1.bf16.msra.mxu0 %v923
      %1240 = vmatprep.subr.bf16.mxu0 0
      %1241 = vmatpush1.bf16.msra.mxu0 %v924
      %1242 = vmatprep.subr.bf16.mxu0 0
      %1243 = vmatpush1.bf16.msra.mxu0 %v925
      %1244 = vmatprep.subr.bf16.mxu0 0
      %1245 = vmatpush1.bf16.msra.mxu0 %v926
      %1246 = vmatprep.subr.bf16.mxu0 0
      %1247 = vmatpush1.bf16.msra.mxu0 %v927
      %1248 = vmatprep.mubr.bf16.mxu0 %v1171
      %1249 = vmatmul.mubr.bf16.gmra.mrb[0].mxu0 %v1170
      %v1250 = vpop.f32.mrb[0].mxu0
      %v1251 = vadd.f32 %v1211, %v1250
      %v1252 = vpop.f32.mrb[0].mxu0
      %v1253 = vpop.f32.mrb[0].mxu0
      %v1254 = vpop.f32.mrb[0].mxu0
      %1255 = vdwg.mxu0
      %v1260 = vunpack.c.l.b16 %v299
      %v1261 = vunpack.c.h.b16 %v299
      %v1262 = vunpack.c.l.b16 %v300
      %v1263 = vunpack.c.h.b16 %v300
      %v1264 = vunpack.c.l.b16 %v371
      %v1265 = vunpack.c.h.b16 %v371
      %v1266 = vunpack.c.l.b16 %v372
      %v1267 = vunpack.c.h.b16 %v372
      %v1268 = vpack.c.b16 %v1264, %v1260
      %v1269 = vpack.c.b16 %v1265, %v1261
      %v1270 = vpack.c.b16 %v1266, %v1262
      %v1271 = vpack.c.b16 %v1267, %v1263
      %v1273 = vshrl.u32 %v1268, 16
      %v1275 = vshll.u32 %v1268, 16
      %v1277 = vrot.slane %v1275, 1
      %v1278 = vor.u32 %v1273, %v1277
      %v1280 = vshrl.u32 %v1269, 16
      %v1282 = vshll.u32 %v1269, 16
      %v1284 = vrot.slane %v1282, 1
      %v1285 = vor.u32 %v1280, %v1284
      %v1287 = vshrl.u32 %v1270, 16
      %v1289 = vshll.u32 %v1270, 16
      %v1291 = vrot.slane %v1289, 1
      %v1292 = vor.u32 %v1287, %v1291
      %v1294 = vshrl.u32 %v1271, 16
      %v1296 = vshll.u32 %v1271, 16
      %v1298 = vrot.slane %v1296, 1
      %v1299 = vor.u32 %v1294, %v1298
      %1304 = vmatprep.subr.bf16.mxu0 0
      %1305 = vmatpush1.bf16.msra.mxu0 %v616
      %1306 = vmatprep.subr.bf16.mxu0 0
      %1307 = vmatpush1.bf16.msra.mxu0 %v617
      %1308 = vmatprep.subr.bf16.mxu0 0
      %1309 = vmatpush1.bf16.msra.mxu0 %v618
      %1310 = vmatprep.subr.bf16.mxu0 0
      %1311 = vmatpush1.bf16.msra.mxu0 %v619
      %1312 = vmatprep.subr.bf16.mxu0 0
      %1313 = vmatpush1.bf16.msra.mxu0 %v620
      %1314 = vmatprep.subr.bf16.mxu0 0
      %1315 = vmatpush1.bf16.msra.mxu0 %v621
      %1316 = vmatprep.subr.bf16.mxu0 0
      %1317 = vmatpush1.bf16.msra.mxu0 %v622
      %1318 = vmatprep.subr.bf16.mxu0 0
      %1319 = vmatpush1.bf16.msra.mxu0 %v623
      %1320 = vmatprep.subr.bf16.mxu0 0
      %1321 = vmatpush1.bf16.msra.mxu0 %v624
      %1322 = vmatprep.subr.bf16.mxu0 0
      %1323 = vmatpush1.bf16.msra.mxu0 %v625
      %1324 = vmatprep.subr.bf16.mxu0 0
      %1325 = vmatpush1.bf16.msra.mxu0 %v626
      %1326 = vmatprep.subr.bf16.mxu0 0
      %1327 = vmatpush1.bf16.msra.mxu0 %v627
      %1328 = vmatprep.subr.bf16.mxu0 0
      %1329 = vmatpush1.bf16.msra.mxu0 %v628
      %1330 = vmatprep.subr.bf16.mxu0 0
      %1331 = vmatpush1.bf16.msra.mxu0 %v629
      %1332 = vmatprep.subr.bf16.mxu0 0
      %1333 = vmatpush1.bf16.msra.mxu0 %v630
      %1334 = vmatprep.subr.bf16.mxu0 0
      %1335 = vmatpush1.bf16.msra.mxu0 %v631
      %1336 = vmatprep.mubr.bf16.mxu0 %v1285
      %1337 = vmatmul.mubr.bf16.gmra.mrb[0].mxu0 %v1278
      %v1338 = vpop.f32.mrb[0].mxu0
      %v1339 = vadd.f32 0.0, %v1338
      %v1340 = vpop.f32.mrb[0].mxu0
      %v1341 = vpop.f32.mrb[0].mxu0
      %v1342 = vpop.f32.mrb[0].mxu0
      %1343 = vdwg.mxu0
      %1344 = vmatprep.subr.bf16.mxu0 0
      %1345 = vmatpush1.bf16.msra.mxu0 %v632
      %1346 = vmatprep.subr.bf16.mxu0 0
      %1347 = vmatpush1.bf16.msra.mxu0 %v633
      %1348 = vmatprep.subr.bf16.mxu0 0
      %1349 = vmatpush1.bf16.msra.mxu0 %v634
      %1350 = vmatprep.subr.bf16.mxu0 0
      %1351 = vmatpush1.bf16.msra.mxu0 %v635
      %1352 = vmatprep.subr.bf16.mxu0 0
      %1353 = vmatpush1.bf16.msra.mxu0 %v636
      %1354 = vmatprep.subr.bf16.mxu0 0
      %1355 = vmatpush1.bf16.msra.mxu0 %v637
      %1356 = vmatprep.subr.bf16.mxu0 0
      %1357 = vmatpush1.bf16.msra.mxu0 %v638
      %1358 = vmatprep.subr.bf16.mxu0 0
      %1359 = vmatpush1.bf16.msra.mxu0 %v639
      %1360 = vmatprep.subr.bf16.mxu0 0
      %1361 = vmatpush1.bf16.msra.mxu0 %v640
      %1362 = vmatprep.subr.bf16.mxu0 0
      %1363 = vmatpush1.bf16.msra.mxu0 %v641
      %1364 = vmatprep.subr.bf16.mxu0 0
      %1365 = vmatpush1.bf16.msra.mxu0 %v642
      %1366 = vmatprep.subr.bf16.mxu0 0
      %1367 = vmatpush1.bf16.msra.mxu0 %v643
      %1368 = vmatprep.subr.bf16.mxu0 0
      %1369 = vmatpush1.bf16.msra.mxu0 %v644
      %1370 = vmatprep.subr.bf16.mxu0 0
      %1371 = vmatpush1.bf16.msra.mxu0 %v645
      %1372 = vmatprep.subr.bf16.mxu0 0
      %1373 = vmatpush1.bf16.msra.mxu0 %v646
      %1374 = vmatprep.subr.bf16.mxu0 0
      %1375 = vmatpush1.bf16.msra.mxu0 %v647
      %1376 = vmatprep.mubr.bf16.mxu0 %v1299
      %1377 = vmatmul.mubr.bf16.gmra.mrb[0].mxu0 %v1292
      %v1378 = vpop.f32.mrb[0].mxu0
      %v1379 = vadd.f32 %v1339, %v1378
      %v1380 = vpop.f32.mrb[0].mxu0
      %v1381 = vpop.f32.mrb[0].mxu0
      %v1382 = vpop.f32.mrb[0].mxu0
      %1383 = vdwg.mxu0
      %v1384 = vpack.c.b16 %v1260, %v1260
      %v1385 = vpack.c.b16 %v1261, %v1261
      %v1386 = vpack.c.b16 %v1262, %v1262
      %v1387 = vpack.c.b16 %v1263, %v1263
      %1392 = vmatprep.subr.bf16.mxu0 0
      %1393 = vmatpush1.bf16.msra.mxu0 %v896
      %1394 = vmatprep.subr.bf16.mxu0 0
      %1395 = vmatpush1.bf16.msra.mxu0 %v897
      %1396 = vmatprep.subr.bf16.mxu0 0
      %1397 = vmatpush1.bf16.msra.mxu0 %v898
      %1398 = vmatprep.subr.bf16.mxu0 0
      %1399 = vmatpush1.bf16.msra.mxu0 %v899
      %1400 = vmatprep.subr.bf16.mxu0 0
      %1401 = vmatpush1.bf16.msra.mxu0 %v900
      %1402 = vmatprep.subr.bf16.mxu0 0
      %1403 = vmatpush1.bf16.msra.mxu0 %v901
      %1404 = vmatprep.subr.bf16.mxu0 0
      %1405 = vmatpush1.bf16.msra.mxu0 %v902
      %1406 = vmatprep.subr.bf16.mxu0 0
      %1407 = vmatpush1.bf16.msra.mxu0 %v903
      %1408 = vmatprep.subr.bf16.mxu0 0
      %1409 = vmatpush1.bf16.msra.mxu0 %v904
      %1410 = vmatprep.subr.bf16.mxu0 0
      %1411 = vmatpush1.bf16.msra.mxu0 %v905
      %1412 = vmatprep.subr.bf16.mxu0 0
      %1413 = vmatpush1.bf16.msra.mxu0 %v906
      %1414 = vmatprep.subr.bf16.mxu0 0
      %1415 = vmatpush1.bf16.msra.mxu0 %v907
      %1416 = vmatprep.subr.bf16.mxu0 0
      %1417 = vmatpush1.bf16.msra.mxu0 %v908
      %1418 = vmatprep.subr.bf16.mxu0 0
      %1419 = vmatpush1.bf16.msra.mxu0 %v909
      %1420 = vmatprep.subr.bf16.mxu0 0
      %1421 = vmatpush1.bf16.msra.mxu0 %v910
      %1422 = vmatprep.subr.bf16.mxu0 0
      %1423 = vmatpush1.bf16.msra.mxu0 %v911
      %1424 = vmatprep.mubr.bf16.mxu0 %v1385
      %1425 = vmatmul.mubr.bf16.gmra.mrb[0].mxu0 %v1384
      %v1426 = vpop.f32.mrb[0].mxu0
      %v1427 = vadd.f32 %v1379, %v1426
      %v1428 = vpop.f32.mrb[0].mxu0
      %v1429 = vpop.f32.mrb[0].mxu0
      %v1430 = vpop.f32.mrb[0].mxu0
      %1431 = vdwg.mxu0
      %1432 = vmatprep.subr.bf16.mxu0 0
      %1433 = vmatpush1.bf16.msra.mxu0 %v912
      %1434 = vmatprep.subr.bf16.mxu0 0
      %1435 = vmatpush1.bf16.msra.mxu0 %v913
      %1436 = vmatprep.subr.bf16.mxu0 0
      %1437 = vmatpush1.bf16.msra.mxu0 %v914
      %1438 = vmatprep.subr.bf16.mxu0 0
      %1439 = vmatpush1.bf16.msra.mxu0 %v915
      %1440 = vmatprep.subr.bf16.mxu0 0
      %1441 = vmatpush1.bf16.msra.mxu0 %v916
      %1442 = vmatprep.subr.bf16.mxu0 0
      %1443 = vmatpush1.bf16.msra.mxu0 %v917
      %1444 = vmatprep.subr.bf16.mxu0 0
      %1445 = vmatpush1.bf16.msra.mxu0 %v918
      %1446 = vmatprep.subr.bf16.mxu0 0
      %1447 = vmatpush1.bf16.msra.mxu0 %v919
      %1448 = vmatprep.subr.bf16.mxu0 0
      %1449 = vmatpush1.bf16.msra.mxu0 %v920
      %1450 = vmatprep.subr.bf16.mxu0 0
      %1451 = vmatpush1.bf16.msra.mxu0 %v921
      %1452 = vmatprep.subr.bf16.mxu0 0
      %1453 = vmatpush1.bf16.msra.mxu0 %v922
      %1454 = vmatprep.subr.bf16.mxu0 0
      %1455 = vmatpush1.bf16.msra.mxu0 %v923
      %1456 = vmatprep.subr.bf16.mxu0 0
      %1457 = vmatpush1.bf16.msra.mxu0 %v924
      %1458 = vmatprep.subr.bf16.mxu0 0
      %1459 = vmatpush1.bf16.msra.mxu0 %v925
      %1460 = vmatprep.subr.bf16.mxu0 0
      %1461 = vmatpush1.bf16.msra.mxu0 %v926
      %1462 = vmatprep.subr.bf16.mxu0 0
      %1463 = vmatpush1.bf16.msra.mxu0 %v927
      %1464 = vmatprep.mubr.bf16.mxu0 %v1387
      %1465 = vmatmul.mubr.bf16.gmra.mrb[0].mxu0 %v1386
      %v1466 = vpop.f32.mrb[0].mxu0
      %v1467 = vadd.f32 %v1427, %v1466
      %v1468 = vpop.f32.mrb[0].mxu0
      %v1469 = vpop.f32.mrb[0].mxu0
      %v1470 = vpop.f32.mrb[0].mxu0
      %1471 = vdwg.mxu0
      %v1476 = vunpack.c.l.b16 %v301
      %v1477 = vunpack.c.h.b16 %v301
      %v1478 = vunpack.c.l.b16 %v302
      %v1479 = vunpack.c.h.b16 %v302
      %v1480 = vunpack.c.l.b16 %v373
      %v1481 = vunpack.c.h.b16 %v373
      %v1482 = vunpack.c.l.b16 %v374
      %v1483 = vunpack.c.h.b16 %v374
      %v1484 = vpack.c.b16 %v1480, %v1476
      %v1485 = vpack.c.b16 %v1481, %v1477
      %v1486 = vpack.c.b16 %v1482, %v1478
      %v1487 = vpack.c.b16 %v1483, %v1479
      %v1489 = vshrl.u32 %v1484, 16
      %v1491 = vshll.u32 %v1484, 16
      %v1493 = vrot.slane %v1491, 1
      %v1494 = vor.u32 %v1489, %v1493
      %v1496 = vshrl.u32 %v1485, 16
      %v1498 = vshll.u32 %v1485, 16
      %v1500 = vrot.slane %v1498, 1
      %v1501 = vor.u32 %v1496, %v1500
      %v1503 = vshrl.u32 %v1486, 16
      %v1505 = vshll.u32 %v1486, 16
      %v1507 = vrot.slane %v1505, 1
      %v1508 = vor.u32 %v1503, %v1507
      %v1510 = vshrl.u32 %v1487, 16
      %v1512 = vshll.u32 %v1487, 16
      %v1514 = vrot.slane %v1512, 1
      %v1515 = vor.u32 %v1510, %v1514
      %1520 = vmatprep.subr.bf16.mxu0 0
      %1521 = vmatpush1.bf16.msra.mxu0 %v616
      %1522 = vmatprep.subr.bf16.mxu0 0
      %1523 = vmatpush1.bf16.msra.mxu0 %v617
      %1524 = vmatprep.subr.bf16.mxu0 0
      %1525 = vmatpush1.bf16.msra.mxu0 %v618
      %1526 = vmatprep.subr.bf16.mxu0 0
      %1527 = vmatpush1.bf16.msra.mxu0 %v619
      %1528 = vmatprep.subr.bf16.mxu0 0
      %1529 = vmatpush1.bf16.msra.mxu0 %v620
      %1530 = vmatprep.subr.bf16.mxu0 0
      %1531 = vmatpush1.bf16.msra.mxu0 %v621
      %1532 = vmatprep.subr.bf16.mxu0 0
      %1533 = vmatpush1.bf16.msra.mxu0 %v622
      %1534 = vmatprep.subr.bf16.mxu0 0
      %1535 = vmatpush1.bf16.msra.mxu0 %v623
      %1536 = vmatprep.subr.bf16.mxu0 0
      %1537 = vmatpush1.bf16.msra.mxu0 %v624
      %1538 = vmatprep.subr.bf16.mxu0 0
      %1539 = vmatpush1.bf16.msra.mxu0 %v625
      %1540 = vmatprep.subr.bf16.mxu0 0
      %1541 = vmatpush1.bf16.msra.mxu0 %v626
      %1542 = vmatprep.subr.bf16.mxu0 0
      %1543 = vmatpush1.bf16.msra.mxu0 %v627
      %1544 = vmatprep.subr.bf16.mxu0 0
      %1545 = vmatpush1.bf16.msra.mxu0 %v628
      %1546 = vmatprep.subr.bf16.mxu0 0
      %1547 = vmatpush1.bf16.msra.mxu0 %v629
      %1548 = vmatprep.subr.bf16.mxu0 0
      %1549 = vmatpush1.bf16.msra.mxu0 %v630
      %1550 = vmatprep.subr.bf16.mxu0 0
      %1551 = vmatpush1.bf16.msra.mxu0 %v631
      %1552 = vmatprep.mubr.bf16.mxu0 %v1501
      %1553 = vmatmul.mubr.bf16.gmra.mrb[0].mxu0 %v1494
      %v1554 = vpop.f32.mrb[0].mxu0
      %v1555 = vadd.f32 0.0, %v1554
      %v1556 = vpop.f32.mrb[0].mxu0
      %v1557 = vpop.f32.mrb[0].mxu0
      %v1558 = vpop.f32.mrb[0].mxu0
      %1559 = vdwg.mxu0
      %1560 = vmatprep.subr.bf16.mxu0 0
      %1561 = vmatpush1.bf16.msra.mxu0 %v632
      %1562 = vmatprep.subr.bf16.mxu0 0
      %1563 = vmatpush1.bf16.msra.mxu0 %v633
      %1564 = vmatprep.subr.bf16.mxu0 0
      %1565 = vmatpush1.bf16.msra.mxu0 %v634
      %1566 = vmatprep.subr.bf16.mxu0 0
      %1567 = vmatpush1.bf16.msra.mxu0 %v635
      %1568 = vmatprep.subr.bf16.mxu0 0
      %1569 = vmatpush1.bf16.msra.mxu0 %v636
      %1570 = vmatprep.subr.bf16.mxu0 0
      %1571 = vmatpush1.bf16.msra.mxu0 %v637
      %1572 = vmatprep.subr.bf16.mxu0 0
      %1573 = vmatpush1.bf16.msra.mxu0 %v638
      %1574 = vmatprep.subr.bf16.mxu0 0
      %1575 = vmatpush1.bf16.msra.mxu0 %v639
      %1576 = vmatprep.subr.bf16.mxu0 0
      %1577 = vmatpush1.bf16.msra.mxu0 %v640
      %1578 = vmatprep.subr.bf16.mxu0 0
      %1579 = vmatpush1.bf16.msra.mxu0 %v641
      %1580 = vmatprep.subr.bf16.mxu0 0
      %1581 = vmatpush1.bf16.msra.mxu0 %v642
      %1582 = vmatprep.subr.bf16.mxu0 0
      %1583 = vmatpush1.bf16.msra.mxu0 %v643
      %1584 = vmatprep.subr.bf16.mxu0 0
      %1585 = vmatpush1.bf16.msra.mxu0 %v644
      %1586 = vmatprep.subr.bf16.mxu0 0
      %1587 = vmatpush1.bf16.msra.mxu0 %v645
      %1588 = vmatprep.subr.bf16.mxu0 0
      %1589 = vmatpush1.bf16.msra.mxu0 %v646
      %1590 = vmatprep.subr.bf16.mxu0 0
      %1591 = vmatpush1.bf16.msra.mxu0 %v647
      %1592 = vmatprep.mubr.bf16.mxu0 %v1515
      %1593 = vmatmul.mubr.bf16.gmra.mrb[0].mxu0 %v1508
      %v1594 = vpop.f32.mrb[0].mxu0
      %v1595 = vadd.f32 %v1555, %v1594
      %v1596 = vpop.f32.mrb[0].mxu0
      %v1597 = vpop.f32.mrb[0].mxu0
      %v1598 = vpop.f32.mrb[0].mxu0
      %1599 = vdwg.mxu0
      %v1600 = vpack.c.b16 %v1476, %v1476
      %v1601 = vpack.c.b16 %v1477, %v1477
      %v1602 = vpack.c.b16 %v1478, %v1478
      %v1603 = vpack.c.b16 %v1479, %v1479
      %1608 = vmatprep.subr.bf16.mxu0 0
      %1609 = vmatpush1.bf16.msra.mxu0 %v896
      %1610 = vmatprep.subr.bf16.mxu0 0
      %1611 = vmatpush1.bf16.msra.mxu0 %v897
      %1612 = vmatprep.subr.bf16.mxu0 0
      %1613 = vmatpush1.bf16.msra.mxu0 %v898
      %1614 = vmatprep.subr.bf16.mxu0 0
      %1615 = vmatpush1.bf16.msra.mxu0 %v899
      %1616 = vmatprep.subr.bf16.mxu0 0
      %1617 = vmatpush1.bf16.msra.mxu0 %v900
      %1618 = vmatprep.subr.bf16.mxu0 0
      %1619 = vmatpush1.bf16.msra.mxu0 %v901
      %1620 = vmatprep.subr.bf16.mxu0 0
      %1621 = vmatpush1.bf16.msra.mxu0 %v902
      %1622 = vmatprep.subr.bf16.mxu0 0
      %1623 = vmatpush1.bf16.msra.mxu0 %v903
      %1624 = vmatprep.subr.bf16.mxu0 0
      %1625 = vmatpush1.bf16.msra.mxu0 %v904
      %1626 = vmatprep.subr.bf16.mxu0 0
      %1627 = vmatpush1.bf16.msra.mxu0 %v905
      %1628 = vmatprep.subr.bf16.mxu0 0
      %1629 = vmatpush1.bf16.msra.mxu0 %v906
      %1630 = vmatprep.subr.bf16.mxu0 0
      %1631 = vmatpush1.bf16.msra.mxu0 %v907
      %1632 = vmatprep.subr.bf16.mxu0 0
      %1633 = vmatpush1.bf16.msra.mxu0 %v908
      %1634 = vmatprep.subr.bf16.mxu0 0
      %1635 = vmatpush1.bf16.msra.mxu0 %v909
      %1636 = vmatprep.subr.bf16.mxu0 0
      %1637 = vmatpush1.bf16.msra.mxu0 %v910
      %1638 = vmatprep.subr.bf16.mxu0 0
      %1639 = vmatpush1.bf16.msra.mxu0 %v911
      %1640 = vmatprep.mubr.bf16.mxu0 %v1601
      %1641 = vmatmul.mubr.bf16.gmra.mrb[0].mxu0 %v1600
      %v1642 = vpop.f32.mrb[0].mxu0
      %v1643 = vadd.f32 %v1595, %v1642
      %v1644 = vpop.f32.mrb[0].mxu0
      %v1645 = vpop.f32.mrb[0].mxu0
      %v1646 = vpop.f32.mrb[0].mxu0
      %1647 = vdwg.mxu0
      %1648 = vmatprep.subr.bf16.mxu0 0
      %1649 = vmatpush1.bf16.msra.mxu0 %v912
      %1650 = vmatprep.subr.bf16.mxu0 0
      %1651 = vmatpush1.bf16.msra.mxu0 %v913
      %1652 = vmatprep.subr.bf16.mxu0 0
      %1653 = vmatpush1.bf16.msra.mxu0 %v914
      %1654 = vmatprep.subr.bf16.mxu0 0
      %1655 = vmatpush1.bf16.msra.mxu0 %v915
      %1656 = vmatprep.subr.bf16.mxu0 0
      %1657 = vmatpush1.bf16.msra.mxu0 %v916
      %1658 = vmatprep.subr.bf16.mxu0 0
      %1659 = vmatpush1.bf16.msra.mxu0 %v917
      %1660 = vmatprep.subr.bf16.mxu0 0
      %1661 = vmatpush1.bf16.msra.mxu0 %v918
      %1662 = vmatprep.subr.bf16.mxu0 0
      %1663 = vmatpush1.bf16.msra.mxu0 %v919
      %1664 = vmatprep.subr.bf16.mxu0 0
      %1665 = vmatpush1.bf16.msra.mxu0 %v920
      %1666 = vmatprep.subr.bf16.mxu0 0
      %1667 = vmatpush1.bf16.msra.mxu0 %v921
      %1668 = vmatprep.subr.bf16.mxu0 0
      %1669 = vmatpush1.bf16.msra.mxu0 %v922
      %1670 = vmatprep.subr.bf16.mxu0 0
      %1671 = vmatpush1.bf16.msra.mxu0 %v923
      %1672 = vmatprep.subr.bf16.mxu0 0
      %1673 = vmatpush1.bf16.msra.mxu0 %v924
      %1674 = vmatprep.subr.bf16.mxu0 0
      %1675 = vmatpush1.bf16.msra.mxu0 %v925
      %1676 = vmatprep.subr.bf16.mxu0 0
      %1677 = vmatpush1.bf16.msra.mxu0 %v926
      %1678 = vmatprep.subr.bf16.mxu0 0
      %1679 = vmatpush1.bf16.msra.mxu0 %v927
      %1680 = vmatprep.mubr.bf16.mxu0 %v1603
      %1681 = vmatmul.mubr.bf16.gmra.mrb[0].mxu0 %v1602
      %v1682 = vpop.f32.mrb[0].mxu0
      %v1683 = vadd.f32 %v1643, %v1682
      %v1684 = vpop.f32.mrb[0].mxu0
      %v1685 = vpop.f32.mrb[0].mxu0
      %v1686 = vpop.f32.mrb[0].mxu0
      %1687 = vdwg.mxu0
      %s1688 = sadd.s32 %s290, 1
      %s1689 = smul.u32 %s1688, 8
      %s1690 = smul.addr %s1689, 4
      %s1691 = scalar_lea.vmem %s262, %s1690
      %v1692 = vld [vmem:[%s1691] sm:$0xff]
      %v1693 = vld [vmem:[%s1691 + $0x8] sm:$0xff]
      %v1694 = vld [vmem:[%s1691 + $0x20] sm:$0xff]
      %v1695 = vld [vmem:[%s1691 + $0x28] sm:$0xff]
      %v1696 = vld [vmem:[%s1691 + $0x40] sm:$0xff]
      %v1697 = vld [vmem:[%s1691 + $0x48] sm:$0xff]
      %v1698 = vld [vmem:[%s1691 + $0x60] sm:$0xff]
      %v1699 = vld [vmem:[%s1691 + $0x68] sm:$0xff]
      %s1700 = scalar_lea.vmem %s1, 512
      %v1701 = vld [vmem:[%s1700] sm:$0xf]
      %v1702 = vld [vmem:[%s1700 + $0x4] sm:$0xf]
      %v1703 = vld [vmem:[%s1700 + $0x8] sm:$0xf]
      %v1704 = vld [vmem:[%s1700 + $0xc] sm:$0xf]
      %v1705 = vld [vmem:[%s1700 + $0x10] sm:$0xf]
      %v1706 = vld [vmem:[%s1700 + $0x14] sm:$0xf]
      %v1707 = vld [vmem:[%s1700 + $0x18] sm:$0xf]
      %v1708 = vld [vmem:[%s1700 + $0x1c] sm:$0xf]
      %v1709 = vld [vmem:[%s1700 + $0x20] sm:$0xf]
      %v1710 = vld [vmem:[%s1700 + $0x24] sm:$0xf]
      %v1711 = vld [vmem:[%s1700 + $0x28] sm:$0xf]
      %v1712 = vld [vmem:[%s1700 + $0x2c] sm:$0xf]
      %v1713 = vld [vmem:[%s1700 + $0x30] sm:$0xf]
      %v1714 = vld [vmem:[%s1700 + $0x34] sm:$0xf]
      %v1715 = vld [vmem:[%s1700 + $0x38] sm:$0xf]
      %v1716 = vld [vmem:[%s1700 + $0x3c] sm:$0xf]
      %v1717 = vld [vmem:[%s1700 + $0x40] sm:$0xf]
      %v1718 = vld [vmem:[%s1700 + $0x44] sm:$0xf]
      %v1719 = vld [vmem:[%s1700 + $0x48] sm:$0xf]
      %v1720 = vld [vmem:[%s1700 + $0x4c] sm:$0xf]
      %v1721 = vld [vmem:[%s1700 + $0x50] sm:$0xf]
      %v1722 = vld [vmem:[%s1700 + $0x54] sm:$0xf]
      %v1723 = vld [vmem:[%s1700 + $0x58] sm:$0xf]
      %v1724 = vld [vmem:[%s1700 + $0x5c] sm:$0xf]
      %v1725 = vld [vmem:[%s1700 + $0x60] sm:$0xf]
      %v1726 = vld [vmem:[%s1700 + $0x64] sm:$0xf]
      %v1727 = vld [vmem:[%s1700 + $0x68] sm:$0xf]
      %v1728 = vld [vmem:[%s1700 + $0x6c] sm:$0xf]
      %v1729 = vld [vmem:[%s1700 + $0x70] sm:$0xf]
      %v1730 = vld [vmem:[%s1700 + $0x74] sm:$0xf]
      %v1731 = vld [vmem:[%s1700 + $0x78] sm:$0xf]
      %v1732 = vld [vmem:[%s1700 + $0x7c] sm:$0xf]
      %v1733 = vld [vmem:[%s1700 + $0x80] sm:$0xf]
      %v1734 = vld [vmem:[%s1700 + $0x84] sm:$0xf]
      %v1735 = vld [vmem:[%s1700 + $0x88] sm:$0xf]
      %v1736 = vld [vmem:[%s1700 + $0x8c] sm:$0xf]
      %v1737 = vld [vmem:[%s1700 + $0x90] sm:$0xf]
      %v1738 = vld [vmem:[%s1700 + $0x94] sm:$0xf]
      %v1739 = vld [vmem:[%s1700 + $0x98] sm:$0xf]
      %v1740 = vld [vmem:[%s1700 + $0x9c] sm:$0xf]
      %v1741 = vld [vmem:[%s1700 + $0xa0] sm:$0xf]
      %v1742 = vld [vmem:[%s1700 + $0xa4] sm:$0xf]
      %v1743 = vld [vmem:[%s1700 + $0xa8] sm:$0xf]
      %v1744 = vld [vmem:[%s1700 + $0xac] sm:$0xf]
      %v1745 = vld [vmem:[%s1700 + $0xb0] sm:$0xf]
      %v1746 = vld [vmem:[%s1700 + $0xb4] sm:$0xf]
      %v1747 = vld [vmem:[%s1700 + $0xb8] sm:$0xf]
      %v1748 = vld [vmem:[%s1700 + $0xbc] sm:$0xf]
      %v1749 = vld [vmem:[%s1700 + $0xc0] sm:$0xf]
      %v1750 = vld [vmem:[%s1700 + $0xc4] sm:$0xf]
      %v1751 = vld [vmem:[%s1700 + $0xc8] sm:$0xf]
      %v1752 = vld [vmem:[%s1700 + $0xcc] sm:$0xf]
      %v1753 = vld [vmem:[%s1700 + $0xd0] sm:$0xf]
      %v1754 = vld [vmem:[%s1700 + $0xd4] sm:$0xf]
      %v1755 = vld [vmem:[%s1700 + $0xd8] sm:$0xf]
      %v1756 = vld [vmem:[%s1700 + $0xdc] sm:$0xf]
      %v1757 = vld [vmem:[%s1700 + $0xe0] sm:$0xf]
      %v1758 = vld [vmem:[%s1700 + $0xe4] sm:$0xf]
      %v1759 = vld [vmem:[%s1700 + $0xe8] sm:$0xf]
      %v1760 = vld [vmem:[%s1700 + $0xec] sm:$0xf]
      %v1761 = vld [vmem:[%s1700 + $0xf0] sm:$0xf]
      %v1762 = vld [vmem:[%s1700 + $0xf4] sm:$0xf]
      %v1763 = vld [vmem:[%s1700 + $0xf8] sm:$0xf]
      %v1764 = vld [vmem:[%s1700 + $0xfc] sm:$0xf]
      %v1767 = vunpack.c.l.b16 %v1692
      %v1768 = vunpack.c.h.b16 %v1692
      %v1769 = vunpack.c.l.b16 %v1693
      %v1770 = vunpack.c.h.b16 %v1693
      %v1771 = vpack.c.b16 %v1767, %v1767
      %v1772 = vpack.c.b16 %v1768, %v1768
      %v1773 = vpack.c.b16 %v1769, %v1769
      %v1774 = vpack.c.b16 %v1770, %v1770
      %v1843 = vunpack.c.l.b16 %v1701
      %v1844 = vunpack.c.l.b16 %v1702
      %v1845 = vunpack.c.l.b16 %v1703
      %v1846 = vunpack.c.l.b16 %v1704
      %v1847 = vunpack.c.l.b16 %v1705
      %v1848 = vunpack.c.l.b16 %v1706
      %v1849 = vunpack.c.l.b16 %v1707
      %v1850 = vunpack.c.l.b16 %v1708
      %v1851 = vunpack.c.l.b16 %v1709
      %v1852 = vunpack.c.l.b16 %v1710
      %v1853 = vunpack.c.l.b16 %v1711
      %v1854 = vunpack.c.l.b16 %v1712
      %v1855 = vunpack.c.l.b16 %v1713
      %v1856 = vunpack.c.l.b16 %v1714
      %v1857 = vunpack.c.l.b16 %v1715
      %v1858 = vunpack.c.l.b16 %v1716
      %v1859 = vunpack.c.l.b16 %v1717
      %v1860 = vunpack.c.l.b16 %v1718
      %v1861 = vunpack.c.l.b16 %v1719
      %v1862 = vunpack.c.l.b16 %v1720
      %v1863 = vunpack.c.l.b16 %v1721
      %v1864 = vunpack.c.l.b16 %v1722
      %v1865 = vunpack.c.l.b16 %v1723
      %v1866 = vunpack.c.l.b16 %v1724
      %v1867 = vunpack.c.l.b16 %v1725
      %v1868 = vunpack.c.l.b16 %v1726
      %v1869 = vunpack.c.l.b16 %v1727
      %v1870 = vunpack.c.l.b16 %v1728
      %v1871 = vunpack.c.l.b16 %v1729
      %v1872 = vunpack.c.l.b16 %v1730
      %v1873 = vunpack.c.l.b16 %v1731
      %v1874 = vunpack.c.l.b16 %v1732
      %v1875 = vunpack.c.l.b16 %v1733
      %v1876 = vunpack.c.l.b16 %v1734
      %v1877 = vunpack.c.l.b16 %v1735
      %v1878 = vunpack.c.l.b16 %v1736
      %v1879 = vunpack.c.l.b16 %v1737
      %v1880 = vunpack.c.l.b16 %v1738
      %v1881 = vunpack.c.l.b16 %v1739
      %v1882 = vunpack.c.l.b16 %v1740
      %v1883 = vunpack.c.l.b16 %v1741
      %v1884 = vunpack.c.l.b16 %v1742
      %v1885 = vunpack.c.l.b16 %v1743
      %v1886 = vunpack.c.l.b16 %v1744
      %v1887 = vunpack.c.l.b16 %v1745
      %v1888 = vunpack.c.l.b16 %v1746
      %v1889 = vunpack.c.l.b16 %v1747
      %v1890 = vunpack.c.l.b16 %v1748
      %v1891 = vunpack.c.l.b16 %v1749
      %v1892 = vunpack.c.l.b16 %v1750
      %v1893 = vunpack.c.l.b16 %v1751
      %v1894 = vunpack.c.l.b16 %v1752
      %v1895 = vunpack.c.l.b16 %v1753
      %v1896 = vunpack.c.l.b16 %v1754
      %v1897 = vunpack.c.l.b16 %v1755
      %v1898 = vunpack.c.l.b16 %v1756
      %v1899 = vunpack.c.l.b16 %v1757
      %v1900 = vunpack.c.l.b16 %v1758
      %v1901 = vunpack.c.l.b16 %v1759
      %v1902 = vunpack.c.l.b16 %v1760
      %v1903 = vunpack.c.l.b16 %v1761
      %v1904 = vunpack.c.l.b16 %v1762
      %v1905 = vunpack.c.l.b16 %v1763
      %v1906 = vunpack.c.l.b16 %v1764
      %v1907 = vpack.c.b16 %v1844, %v1843
      %v1908 = vpack.c.b16 %v1846, %v1845
      %v1909 = vpack.c.b16 %v1848, %v1847
      %v1910 = vpack.c.b16 %v1850, %v1849
      %v1911 = vpack.c.b16 %v1852, %v1851
      %v1912 = vpack.c.b16 %v1854, %v1853
      %v1913 = vpack.c.b16 %v1856, %v1855
      %v1914 = vpack.c.b16 %v1858, %v1857
      %v1915 = vpack.c.b16 %v1860, %v1859
      %v1916 = vpack.c.b16 %v1862, %v1861
      %v1917 = vpack.c.b16 %v1864, %v1863
      %v1918 = vpack.c.b16 %v1866, %v1865
      %v1919 = vpack.c.b16 %v1868, %v1867
      %v1920 = vpack.c.b16 %v1870, %v1869
      %v1921 = vpack.c.b16 %v1872, %v1871
      %v1922 = vpack.c.b16 %v1874, %v1873
      %v1923 = vpack.c.b16 %v1876, %v1875
      %v1924 = vpack.c.b16 %v1878, %v1877
      %v1925 = vpack.c.b16 %v1880, %v1879
      %v1926 = vpack.c.b16 %v1882, %v1881
      %v1927 = vpack.c.b16 %v1884, %v1883
      %v1928 = vpack.c.b16 %v1886, %v1885
      %v1929 = vpack.c.b16 %v1888, %v1887
      %v1930 = vpack.c.b16 %v1890, %v1889
      %v1931 = vpack.c.b16 %v1892, %v1891
      %v1932 = vpack.c.b16 %v1894, %v1893
      %v1933 = vpack.c.b16 %v1896, %v1895
      %v1934 = vpack.c.b16 %v1898, %v1897
      %v1935 = vpack.c.b16 %v1900, %v1899
      %v1936 = vpack.c.b16 %v1902, %v1901
      %v1937 = vpack.c.b16 %v1904, %v1903
      %v1938 = vpack.c.b16 %v1906, %v1905
      %1971 = vmatprep.subr.bf16.mxu0 0
      %1972 = vmatpush1.bf16.msra.mxu0 %v1907
      %1973 = vmatprep.subr.bf16.mxu0 0
      %1974 = vmatpush1.bf16.msra.mxu0 %v1908
      %1975 = vmatprep.subr.bf16.mxu0 0
      %1976 = vmatpush1.bf16.msra.mxu0 %v1909
      %1977 = vmatprep.subr.bf16.mxu0 0
      %1978 = vmatpush1.bf16.msra.mxu0 %v1910
      %1979 = vmatprep.subr.bf16.mxu0 0
      %1980 = vmatpush1.bf16.msra.mxu0 %v1911
      %1981 = vmatprep.subr.bf16.mxu0 0
      %1982 = vmatpush1.bf16.msra.mxu0 %v1912
      %1983 = vmatprep.subr.bf16.mxu0 0
      %1984 = vmatpush1.bf16.msra.mxu0 %v1913
      %1985 = vmatprep.subr.bf16.mxu0 0
      %1986 = vmatpush1.bf16.msra.mxu0 %v1914
      %1987 = vmatprep.subr.bf16.mxu0 0
      %1988 = vmatpush1.bf16.msra.mxu0 %v1915
      %1989 = vmatprep.subr.bf16.mxu0 0
      %1990 = vmatpush1.bf16.msra.mxu0 %v1916
      %1991 = vmatprep.subr.bf16.mxu0 0
      %1992 = vmatpush1.bf16.msra.mxu0 %v1917
      %1993 = vmatprep.subr.bf16.mxu0 0
      %1994 = vmatpush1.bf16.msra.mxu0 %v1918
      %1995 = vmatprep.subr.bf16.mxu0 0
      %1996 = vmatpush1.bf16.msra.mxu0 %v1919
      %1997 = vmatprep.subr.bf16.mxu0 0
      %1998 = vmatpush1.bf16.msra.mxu0 %v1920
      %1999 = vmatprep.subr.bf16.mxu0 0
      %2000 = vmatpush1.bf16.msra.mxu0 %v1921
      %2001 = vmatprep.subr.bf16.mxu0 0
      %2002 = vmatpush1.bf16.msra.mxu0 %v1922
      %2003 = vmatprep.mubr.bf16.mxu0 %v1772
      %2004 = vmatmul.mubr.bf16.gmra.mrb[0].mxu0 %v1771
      %v2005 = vpop.f32.mrb[0].mxu0
      %v2006 = vadd.f32 0.0, %v2005
      %v2007 = vpop.f32.mrb[0].mxu0
      %v2008 = vpop.f32.mrb[0].mxu0
      %v2009 = vpop.f32.mrb[0].mxu0
      %2010 = vdwg.mxu0
      %2011 = vmatprep.subr.bf16.mxu0 0
      %2012 = vmatpush1.bf16.msra.mxu0 %v1923
      %2013 = vmatprep.subr.bf16.mxu0 0
      %2014 = vmatpush1.bf16.msra.mxu0 %v1924
      %2015 = vmatprep.subr.bf16.mxu0 0
      %2016 = vmatpush1.bf16.msra.mxu0 %v1925
      %2017 = vmatprep.subr.bf16.mxu0 0
      %2018 = vmatpush1.bf16.msra.mxu0 %v1926
      %2019 = vmatprep.subr.bf16.mxu0 0
      %2020 = vmatpush1.bf16.msra.mxu0 %v1927
      %2021 = vmatprep.subr.bf16.mxu0 0
      %2022 = vmatpush1.bf16.msra.mxu0 %v1928
      %2023 = vmatprep.subr.bf16.mxu0 0
      %2024 = vmatpush1.bf16.msra.mxu0 %v1929
      %2025 = vmatprep.subr.bf16.mxu0 0
      %2026 = vmatpush1.bf16.msra.mxu0 %v1930
      %2027 = vmatprep.subr.bf16.mxu0 0
      %2028 = vmatpush1.bf16.msra.mxu0 %v1931
      %2029 = vmatprep.subr.bf16.mxu0 0
      %2030 = vmatpush1.bf16.msra.mxu0 %v1932
      %2031 = vmatprep.subr.bf16.mxu0 0
      %2032 = vmatpush1.bf16.msra.mxu0 %v1933
      %2033 = vmatprep.subr.bf16.mxu0 0
      %2034 = vmatpush1.bf16.msra.mxu0 %v1934
      %2035 = vmatprep.subr.bf16.mxu0 0
      %2036 = vmatpush1.bf16.msra.mxu0 %v1935
      %2037 = vmatprep.subr.bf16.mxu0 0
      %2038 = vmatpush1.bf16.msra.mxu0 %v1936
      %2039 = vmatprep.subr.bf16.mxu0 0
      %2040 = vmatpush1.bf16.msra.mxu0 %v1937
      %2041 = vmatprep.subr.bf16.mxu0 0
      %2042 = vmatpush1.bf16.msra.mxu0 %v1938
      %2043 = vmatprep.mubr.bf16.mxu0 %v1774
      %2044 = vmatmul.mubr.bf16.gmra.mrb[0].mxu0 %v1773
      %v2045 = vpop.f32.mrb[0].mxu0
      %v2046 = vadd.f32 %v2006, %v2045
      %v2047 = vpop.f32.mrb[0].mxu0
      %v2048 = vpop.f32.mrb[0].mxu0
      %v2049 = vpop.f32.mrb[0].mxu0
      %2050 = vdwg.mxu0
      %v2051 = vadd.f32 %v1035, %v2046
      %v2054 = vunpack.c.l.b16 %v1694
      %v2055 = vunpack.c.h.b16 %v1694
      %v2056 = vunpack.c.l.b16 %v1695
      %v2057 = vunpack.c.h.b16 %v1695
      %v2058 = vpack.c.b16 %v2054, %v2054
      %v2059 = vpack.c.b16 %v2055, %v2055
      %v2060 = vpack.c.b16 %v2056, %v2056
      %v2061 = vpack.c.b16 %v2057, %v2057
      %2066 = vmatprep.subr.bf16.mxu0 0
      %2067 = vmatpush1.bf16.msra.mxu0 %v1907
      %2068 = vmatprep.subr.bf16.mxu0 0
      %2069 = vmatpush1.bf16.msra.mxu0 %v1908
      %2070 = vmatprep.subr.bf16.mxu0 0
      %2071 = vmatpush1.bf16.msra.mxu0 %v1909
      %2072 = vmatprep.subr.bf16.mxu0 0
      %2073 = vmatpush1.bf16.msra.mxu0 %v1910
      %2074 = vmatprep.subr.bf16.mxu0 0
      %2075 = vmatpush1.bf16.msra.mxu0 %v1911
      %2076 = vmatprep.subr.bf16.mxu0 0
      %2077 = vmatpush1.bf16.msra.mxu0 %v1912
      %2078 = vmatprep.subr.bf16.mxu0 0
      %2079 = vmatpush1.bf16.msra.mxu0 %v1913
      %2080 = vmatprep.subr.bf16.mxu0 0
      %2081 = vmatpush1.bf16.msra.mxu0 %v1914
      %2082 = vmatprep.subr.bf16.mxu0 0
      %2083 = vmatpush1.bf16.msra.mxu0 %v1915
      %2084 = vmatprep.subr.bf16.mxu0 0
      %2085 = vmatpush1.bf16.msra.mxu0 %v1916
      %2086 = vmatprep.subr.bf16.mxu0 0
      %2087 = vmatpush1.bf16.msra.mxu0 %v1917
      %2088 = vmatprep.subr.bf16.mxu0 0
      %2089 = vmatpush1.bf16.msra.mxu0 %v1918
      %2090 = vmatprep.subr.bf16.mxu0 0
      %2091 = vmatpush1.bf16.msra.mxu0 %v1919
      %2092 = vmatprep.subr.bf16.mxu0 0
      %2093 = vmatpush1.bf16.msra.mxu0 %v1920
      %2094 = vmatprep.subr.bf16.mxu0 0
      %2095 = vmatpush1.bf16.msra.mxu0 %v1921
      %2096 = vmatprep.subr.bf16.mxu0 0
      %2097 = vmatpush1.bf16.msra.mxu0 %v1922
      %2098 = vmatprep.mubr.bf16.mxu0 %v2059
      %2099 = vmatmul.mubr.bf16.gmra.mrb[0].mxu0 %v2058
      %v2100 = vpop.f32.mrb[0].mxu0
      %v2101 = vadd.f32 0.0, %v2100
      %v2102 = vpop.f32.mrb[0].mxu0
      %v2103 = vpop.f32.mrb[0].mxu0
      %v2104 = vpop.f32.mrb[0].mxu0
      %2105 = vdwg.mxu0
      %2106 = vmatprep.subr.bf16.mxu0 0
      %2107 = vmatpush1.bf16.msra.mxu0 %v1923
      %2108 = vmatprep.subr.bf16.mxu0 0
      %2109 = vmatpush1.bf16.msra.mxu0 %v1924
      %2110 = vmatprep.subr.bf16.mxu0 0
      %2111 = vmatpush1.bf16.msra.mxu0 %v1925
      %2112 = vmatprep.subr.bf16.mxu0 0
      %2113 = vmatpush1.bf16.msra.mxu0 %v1926
      %2114 = vmatprep.subr.bf16.mxu0 0
      %2115 = vmatpush1.bf16.msra.mxu0 %v1927
      %2116 = vmatprep.subr.bf16.mxu0 0
      %2117 = vmatpush1.bf16.msra.mxu0 %v1928
      %2118 = vmatprep.subr.bf16.mxu0 0
      %2119 = vmatpush1.bf16.msra.mxu0 %v1929
      %2120 = vmatprep.subr.bf16.mxu0 0
      %2121 = vmatpush1.bf16.msra.mxu0 %v1930
      %2122 = vmatprep.subr.bf16.mxu0 0
      %2123 = vmatpush1.bf16.msra.mxu0 %v1931
      %2124 = vmatprep.subr.bf16.mxu0 0
      %2125 = vmatpush1.bf16.msra.mxu0 %v1932
      %2126 = vmatprep.subr.bf16.mxu0 0
      %2127 = vmatpush1.bf16.msra.mxu0 %v1933
      %2128 = vmatprep.subr.bf16.mxu0 0
      %2129 = vmatpush1.bf16.msra.mxu0 %v1934
      %2130 = vmatprep.subr.bf16.mxu0 0
      %2131 = vmatpush1.bf16.msra.mxu0 %v1935
      %2132 = vmatprep.subr.bf16.mxu0 0
      %2133 = vmatpush1.bf16.msra.mxu0 %v1936
      %2134 = vmatprep.subr.bf16.mxu0 0
      %2135 = vmatpush1.bf16.msra.mxu0 %v1937
      %2136 = vmatprep.subr.bf16.mxu0 0
      %2137 = vmatpush1.bf16.msra.mxu0 %v1938
      %2138 = vmatprep.mubr.bf16.mxu0 %v2061
      %2139 = vmatmul.mubr.bf16.gmra.mrb[0].mxu0 %v2060
      %v2140 = vpop.f32.mrb[0].mxu0
      %v2141 = vadd.f32 %v2101, %v2140
      %v2142 = vpop.f32.mrb[0].mxu0
      %v2143 = vpop.f32.mrb[0].mxu0
      %v2144 = vpop.f32.mrb[0].mxu0
      %2145 = vdwg.mxu0
      %v2146 = vadd.f32 %v1251, %v2141
      %v2149 = vunpack.c.l.b16 %v1696
      %v2150 = vunpack.c.h.b16 %v1696
      %v2151 = vunpack.c.l.b16 %v1697
      %v2152 = vunpack.c.h.b16 %v1697
      %v2153 = vpack.c.b16 %v2149, %v2149
      %v2154 = vpack.c.b16 %v2150, %v2150
      %v2155 = vpack.c.b16 %v2151, %v2151
      %v2156 = vpack.c.b16 %v2152, %v2152
      %2161 = vmatprep.subr.bf16.mxu0 0
      %2162 = vmatpush1.bf16.msra.mxu0 %v1907
      %2163 = vmatprep.subr.bf16.mxu0 0
      %2164 = vmatpush1.bf16.msra.mxu0 %v1908
      %2165 = vmatprep.subr.bf16.mxu0 0
      %2166 = vmatpush1.bf16.msra.mxu0 %v1909
      %2167 = vmatprep.subr.bf16.mxu0 0
      %2168 = vmatpush1.bf16.msra.mxu0 %v1910
      %2169 = vmatprep.subr.bf16.mxu0 0
      %2170 = vmatpush1.bf16.msra.mxu0 %v1911
      %2171 = vmatprep.subr.bf16.mxu0 0
      %2172 = vmatpush1.bf16.msra.mxu0 %v1912
      %2173 = vmatprep.subr.bf16.mxu0 0
      %2174 = vmatpush1.bf16.msra.mxu0 %v1913
      %2175 = vmatprep.subr.bf16.mxu0 0
      %2176 = vmatpush1.bf16.msra.mxu0 %v1914
      %2177 = vmatprep.subr.bf16.mxu0 0
      %2178 = vmatpush1.bf16.msra.mxu0 %v1915
      %2179 = vmatprep.subr.bf16.mxu0 0
      %2180 = vmatpush1.bf16.msra.mxu0 %v1916
      %2181 = vmatprep.subr.bf16.mxu0 0
      %2182 = vmatpush1.bf16.msra.mxu0 %v1917
      %2183 = vmatprep.subr.bf16.mxu0 0
      %2184 = vmatpush1.bf16.msra.mxu0 %v1918
      %2185 = vmatprep.subr.bf16.mxu0 0
      %2186 = vmatpush1.bf16.msra.mxu0 %v1919
      %2187 = vmatprep.subr.bf16.mxu0 0
      %2188 = vmatpush1.bf16.msra.mxu0 %v1920
      %2189 = vmatprep.subr.bf16.mxu0 0
      %2190 = vmatpush1.bf16.msra.mxu0 %v1921
      %2191 = vmatprep.subr.bf16.mxu0 0
      %2192 = vmatpush1.bf16.msra.mxu0 %v1922
      %2193 = vmatprep.mubr.bf16.mxu0 %v2154
      %2194 = vmatmul.mubr.bf16.gmra.mrb[0].mxu0 %v2153
      %v2195 = vpop.f32.mrb[0].mxu0
      %v2196 = vadd.f32 0.0, %v2195
      %v2197 = vpop.f32.mrb[0].mxu0
      %v2198 = vpop.f32.mrb[0].mxu0
      %v2199 = vpop.f32.mrb[0].mxu0
      %2200 = vdwg.mxu0
      %2201 = vmatprep.subr.bf16.mxu0 0
      %2202 = vmatpush1.bf16.msra.mxu0 %v1923
      %2203 = vmatprep.subr.bf16.mxu0 0
      %2204 = vmatpush1.bf16.msra.mxu0 %v1924
      %2205 = vmatprep.subr.bf16.mxu0 0
      %2206 = vmatpush1.bf16.msra.mxu0 %v1925
      %2207 = vmatprep.subr.bf16.mxu0 0
      %2208 = vmatpush1.bf16.msra.mxu0 %v1926
      %2209 = vmatprep.subr.bf16.mxu0 0
      %2210 = vmatpush1.bf16.msra.mxu0 %v1927
      %2211 = vmatprep.subr.bf16.mxu0 0
      %2212 = vmatpush1.bf16.msra.mxu0 %v1928
      %2213 = vmatprep.subr.bf16.mxu0 0
      %2214 = vmatpush1.bf16.msra.mxu0 %v1929
      %2215 = vmatprep.subr.bf16.mxu0 0
      %2216 = vmatpush1.bf16.msra.mxu0 %v1930
      %2217 = vmatprep.subr.bf16.mxu0 0
      %2218 = vmatpush1.bf16.msra.mxu0 %v1931
      %2219 = vmatprep.subr.bf16.mxu0 0
      %2220 = vmatpush1.bf16.msra.mxu0 %v1932
      %2221 = vmatprep.subr.bf16.mxu0 0
      %2222 = vmatpush1.bf16.msra.mxu0 %v1933
      %2223 = vmatprep.subr.bf16.mxu0 0
      %2224 = vmatpush1.bf16.msra.mxu0 %v1934
      %2225 = vmatprep.subr.bf16.mxu0 0
      %2226 = vmatpush1.bf16.msra.mxu0 %v1935
      %2227 = vmatprep.subr.bf16.mxu0 0
      %2228 = vmatpush1.bf16.msra.mxu0 %v1936
      %2229 = vmatprep.subr.bf16.mxu0 0
      %2230 = vmatpush1.bf16.msra.mxu0 %v1937
      %2231 = vmatprep.subr.bf16.mxu0 0
      %2232 = vmatpush1.bf16.msra.mxu0 %v1938
      %2233 = vmatprep.mubr.bf16.mxu0 %v2156
      %2234 = vmatmul.mubr.bf16.gmra.mrb[0].mxu0 %v2155
      %v2235 = vpop.f32.mrb[0].mxu0
      %v2236 = vadd.f32 %v2196, %v2235
      %v2237 = vpop.f32.mrb[0].mxu0
      %v2238 = vpop.f32.mrb[0].mxu0
      %v2239 = vpop.f32.mrb[0].mxu0
      %2240 = vdwg.mxu0
      %v2241 = vadd.f32 %v1467, %v2236
      %v2244 = vunpack.c.l.b16 %v1698
      %v2245 = vunpack.c.h.b16 %v1698
      %v2246 = vunpack.c.l.b16 %v1699
      %v2247 = vunpack.c.h.b16 %v1699
      %v2248 = vpack.c.b16 %v2244, %v2244
      %v2249 = vpack.c.b16 %v2245, %v2245
      %v2250 = vpack.c.b16 %v2246, %v2246
      %v2251 = vpack.c.b16 %v2247, %v2247
      %2256 = vmatprep.subr.bf16.mxu0 0
      %2257 = vmatpush1.bf16.msra.mxu0 %v1907
      %2258 = vmatprep.subr.bf16.mxu0 0
      %2259 = vmatpush1.bf16.msra.mxu0 %v1908
      %2260 = vmatprep.subr.bf16.mxu0 0
      %2261 = vmatpush1.bf16.msra.mxu0 %v1909
      %2262 = vmatprep.subr.bf16.mxu0 0
      %2263 = vmatpush1.bf16.msra.mxu0 %v1910
      %2264 = vmatprep.subr.bf16.mxu0 0
      %2265 = vmatpush1.bf16.msra.mxu0 %v1911
      %2266 = vmatprep.subr.bf16.mxu0 0
      %2267 = vmatpush1.bf16.msra.mxu0 %v1912
      %2268 = vmatprep.subr.bf16.mxu0 0
      %2269 = vmatpush1.bf16.msra.mxu0 %v1913
      %2270 = vmatprep.subr.bf16.mxu0 0
      %2271 = vmatpush1.bf16.msra.mxu0 %v1914
      %2272 = vmatprep.subr.bf16.mxu0 0
      %2273 = vmatpush1.bf16.msra.mxu0 %v1915
      %2274 = vmatprep.subr.bf16.mxu0 0
      %2275 = vmatpush1.bf16.msra.mxu0 %v1916
      %2276 = vmatprep.subr.bf16.mxu0 0
      %2277 = vmatpush1.bf16.msra.mxu0 %v1917
      %2278 = vmatprep.subr.bf16.mxu0 0
      %2279 = vmatpush1.bf16.msra.mxu0 %v1918
      %2280 = vmatprep.subr.bf16.mxu0 0
      %2281 = vmatpush1.bf16.msra.mxu0 %v1919
      %2282 = vmatprep.subr.bf16.mxu0 0
      %2283 = vmatpush1.bf16.msra.mxu0 %v1920
      %2284 = vmatprep.subr.bf16.mxu0 0
      %2285 = vmatpush1.bf16.msra.mxu0 %v1921
      %2286 = vmatprep.subr.bf16.mxu0 0
      %2287 = vmatpush1.bf16.msra.mxu0 %v1922
      %2288 = vmatprep.mubr.bf16.mxu0 %v2249
      %2289 = vmatmul.mubr.bf16.gmra.mrb[0].mxu0 %v2248
      %v2290 = vpop.f32.mrb[0].mxu0
      %v2291 = vadd.f32 0.0, %v2290
      %v2292 = vpop.f32.mrb[0].mxu0
      %v2293 = vpop.f32.mrb[0].mxu0
      %v2294 = vpop.f32.mrb[0].mxu0
      %2295 = vdwg.mxu0
      %2296 = vmatprep.subr.bf16.mxu0 0
      %2297 = vmatpush1.bf16.msra.mxu0 %v1923
      %2298 = vmatprep.subr.bf16.mxu0 0
      %2299 = vmatpush1.bf16.msra.mxu0 %v1924
      %2300 = vmatprep.subr.bf16.mxu0 0
      %2301 = vmatpush1.bf16.msra.mxu0 %v1925
      %2302 = vmatprep.subr.bf16.mxu0 0
      %2303 = vmatpush1.bf16.msra.mxu0 %v1926
      %2304 = vmatprep.subr.bf16.mxu0 0
      %2305 = vmatpush1.bf16.msra.mxu0 %v1927
      %2306 = vmatprep.subr.bf16.mxu0 0
      %2307 = vmatpush1.bf16.msra.mxu0 %v1928
      %2308 = vmatprep.subr.bf16.mxu0 0
      %2309 = vmatpush1.bf16.msra.mxu0 %v1929
      %2310 = vmatprep.subr.bf16.mxu0 0
      %2311 = vmatpush1.bf16.msra.mxu0 %v1930
      %2312 = vmatprep.subr.bf16.mxu0 0
      %2313 = vmatpush1.bf16.msra.mxu0 %v1931
      %2314 = vmatprep.subr.bf16.mxu0 0
      %2315 = vmatpush1.bf16.msra.mxu0 %v1932
      %2316 = vmatprep.subr.bf16.mxu0 0
      %2317 = vmatpush1.bf16.msra.mxu0 %v1933
      %2318 = vmatprep.subr.bf16.mxu0 0
      %2319 = vmatpush1.bf16.msra.mxu0 %v1934
      %2320 = vmatprep.subr.bf16.mxu0 0
      %2321 = vmatpush1.bf16.msra.mxu0 %v1935
      %2322 = vmatprep.subr.bf16.mxu0 0
      %2323 = vmatpush1.bf16.msra.mxu0 %v1936
      %2324 = vmatprep.subr.bf16.mxu0 0
      %2325 = vmatpush1.bf16.msra.mxu0 %v1937
      %2326 = vmatprep.subr.bf16.mxu0 0
      %2327 = vmatpush1.bf16.msra.mxu0 %v1938
      %2328 = vmatprep.mubr.bf16.mxu0 %v2251
      %2329 = vmatmul.mubr.bf16.gmra.mrb[0].mxu0 %v2250
      %v2330 = vpop.f32.mrb[0].mxu0
      %v2331 = vadd.f32 %v2291, %v2330
      %v2332 = vpop.f32.mrb[0].mxu0
      %v2333 = vpop.f32.mrb[0].mxu0
      %v2334 = vpop.f32.mrb[0].mxu0
      %2335 = vdwg.mxu0
      %v2336 = vadd.f32 %v1683, %v2331
      %v2337 = vld [vmem:[%s1691] sm:$0xff]
      %v2338 = vld [vmem:[%s1691 + $0x8] sm:$0xff]
      %v2339 = vld [vmem:[%s1691 + $0x10] sm:$0x11]
      %v2340 = vld [vmem:[%s1691 + $0x18] sm:$0x11]
      %v2341 = vld [vmem:[%s1691 + $0x20] sm:$0xff]
      %v2342 = vld [vmem:[%s1691 + $0x28] sm:$0xff]
      %v2343 = vld [vmem:[%s1691 + $0x30] sm:$0x11]
      %v2344 = vld [vmem:[%s1691 + $0x38] sm:$0x11]
      %v2345 = vld [vmem:[%s1691 + $0x40] sm:$0xff]
      %v2346 = vld [vmem:[%s1691 + $0x48] sm:$0xff]
      %v2347 = vld [vmem:[%s1691 + $0x50] sm:$0x11]
      %v2348 = vld [vmem:[%s1691 + $0x58] sm:$0x11]
      %v2349 = vld [vmem:[%s1691 + $0x60] sm:$0xff]
      %v2350 = vld [vmem:[%s1691 + $0x68] sm:$0xff]
      %v2351 = vld [vmem:[%s1691 + $0x70] sm:$0x11]
      %v2352 = vld [vmem:[%s1691 + $0x78] sm:$0x11]
      %s2353 = scalar_lea.vmem %s1, 768
      %v2354 = vld [vmem:[%s2353] sm:$0xf]
      %v2355 = vld [vmem:[%s2353 + $0x4] sm:$0xf]
      %v2356 = vld [vmem:[%s2353 + $0x8] sm:$0xf]
      %v2357 = vld [vmem:[%s2353 + $0xc] sm:$0xf]
      %v2358 = vld [vmem:[%s2353 + $0x10] sm:$0xf]
      %v2359 = vld [vmem:[%s2353 + $0x14] sm:$0xf]
      %v2360 = vld [vmem:[%s2353 + $0x18] sm:$0xf]
      %v2361 = vld [vmem:[%s2353 + $0x1c] sm:$0xf]
      %v2362 = vld [vmem:[%s2353 + $0x20] sm:$0xf]
      %v2363 = vld [vmem:[%s2353 + $0x24] sm:$0xf]
      %v2364 = vld [vmem:[%s2353 + $0x28] sm:$0xf]
      %v2365 = vld [vmem:[%s2353 + $0x2c] sm:$0xf]
      %v2366 = vld [vmem:[%s2353 + $0x30] sm:$0xf]
      %v2367 = vld [vmem:[%s2353 + $0x34] sm:$0xf]
      %v2368 = vld [vmem:[%s2353 + $0x38] sm:$0xf]
      %v2369 = vld [vmem:[%s2353 + $0x3c] sm:$0xf]
      %v2370 = vld [vmem:[%s2353 + $0x40] sm:$0xf]
      %v2371 = vld [vmem:[%s2353 + $0x44] sm:$0xf]
      %v2372 = vld [vmem:[%s2353 + $0x48] sm:$0xf]
      %v2373 = vld [vmem:[%s2353 + $0x4c] sm:$0xf]
      %v2374 = vld [vmem:[%s2353 + $0x50] sm:$0xf]
      %v2375 = vld [vmem:[%s2353 + $0x54] sm:$0xf]
      %v2376 = vld [vmem:[%s2353 + $0x58] sm:$0xf]
      %v2377 = vld [vmem:[%s2353 + $0x5c] sm:$0xf]
      %v2378 = vld [vmem:[%s2353 + $0x60] sm:$0xf]
      %v2379 = vld [vmem:[%s2353 + $0x64] sm:$0xf]
      %v2380 = vld [vmem:[%s2353 + $0x68] sm:$0xf]
      %v2381 = vld [vmem:[%s2353 + $0x6c] sm:$0xf]
      %v2382 = vld [vmem:[%s2353 + $0x70] sm:$0xf]
      %v2383 = vld [vmem:[%s2353 + $0x74] sm:$0xf]
      %v2384 = vld [vmem:[%s2353 + $0x78] sm:$0xf]
      %v2385 = vld [vmem:[%s2353 + $0x7c] sm:$0xf]
      %v2386 = vld [vmem:[%s2353 + $0x80] sm:$0xf]
      %v2387 = vld [vmem:[%s2353 + $0x84] sm:$0xf]
      %v2388 = vld [vmem:[%s2353 + $0x88] sm:$0xf]
      %v2389 = vld [vmem:[%s2353 + $0x8c] sm:$0xf]
      %v2390 = vld [vmem:[%s2353 + $0x90] sm:$0xf]
      %v2391 = vld [vmem:[%s2353 + $0x94] sm:$0xf]
      %v2392 = vld [vmem:[%s2353 + $0x98] sm:$0xf]
      %v2393 = vld [vmem:[%s2353 + $0x9c] sm:$0xf]
      %v2394 = vld [vmem:[%s2353 + $0xa0] sm:$0xf]
      %v2395 = vld [vmem:[%s2353 + $0xa4] sm:$0xf]
      %v2396 = vld [vmem:[%s2353 + $0xa8] sm:$0xf]
      %v2397 = vld [vmem:[%s2353 + $0xac] sm:$0xf]
      %v2398 = vld [vmem:[%s2353 + $0xb0] sm:$0xf]
      %v2399 = vld [vmem:[%s2353 + $0xb4] sm:$0xf]
      %v2400 = vld [vmem:[%s2353 + $0xb8] sm:$0xf]
      %v2401 = vld [vmem:[%s2353 + $0xbc] sm:$0xf]
      %v2402 = vld [vmem:[%s2353 + $0xc0] sm:$0xf]
      %v2403 = vld [vmem:[%s2353 + $0xc4] sm:$0xf]
      %v2404 = vld [vmem:[%s2353 + $0xc8] sm:$0xf]
      %v2405 = vld [vmem:[%s2353 + $0xcc] sm:$0xf]
      %v2406 = vld [vmem:[%s2353 + $0xd0] sm:$0xf]
      %v2407 = vld [vmem:[%s2353 + $0xd4] sm:$0xf]
      %v2408 = vld [vmem:[%s2353 + $0xd8] sm:$0xf]
      %v2409 = vld [vmem:[%s2353 + $0xdc] sm:$0xf]
      %v2410 = vld [vmem:[%s2353 + $0xe0] sm:$0xf]
      %v2411 = vld [vmem:[%s2353 + $0xe4] sm:$0xf]
      %v2412 = vld [vmem:[%s2353 + $0xe8] sm:$0xf]
      %v2413 = vld [vmem:[%s2353 + $0xec] sm:$0xf]
      %v2414 = vld [vmem:[%s2353 + $0xf0] sm:$0xf]
      %v2415 = vld [vmem:[%s2353 + $0xf4] sm:$0xf]
      %v2416 = vld [vmem:[%s2353 + $0xf8] sm:$0xf]
      %v2417 = vld [vmem:[%s2353 + $0xfc] sm:$0xf]
      %v2422 = vunpack.c.l.b16 %v2337
      %v2423 = vunpack.c.h.b16 %v2337
      %v2424 = vunpack.c.l.b16 %v2338
      %v2425 = vunpack.c.h.b16 %v2338
      %v2426 = vunpack.c.l.b16 %v2339
      %v2427 = vunpack.c.h.b16 %v2339
      %v2428 = vunpack.c.l.b16 %v2340
      %v2429 = vunpack.c.h.b16 %v2340
      %v2430 = vpack.c.b16 %v2426, %v2422
      %v2431 = vpack.c.b16 %v2427, %v2423
      %v2432 = vpack.c.b16 %v2428, %v2424
      %v2433 = vpack.c.b16 %v2429, %v2425
      %v2435 = vshrl.u32 %v2430, 16
      %v2437 = vshll.u32 %v2430, 16
      %v2439 = vrot.slane %v2437, 1
      %v2440 = vor.u32 %v2435, %v2439
      %v2442 = vshrl.u32 %v2431, 16
      %v2444 = vshll.u32 %v2431, 16
      %v2446 = vrot.slane %v2444, 1
      %v2447 = vor.u32 %v2442, %v2446
      %v2449 = vshrl.u32 %v2432, 16
      %v2451 = vshll.u32 %v2432, 16
      %v2453 = vrot.slane %v2451, 1
      %v2454 = vor.u32 %v2449, %v2453
      %v2456 = vshrl.u32 %v2433, 16
      %v2458 = vshll.u32 %v2433, 16
      %v2460 = vrot.slane %v2458, 1
      %v2461 = vor.u32 %v2456, %v2460
      %v2530 = vunpack.c.l.b16 %v2354
      %v2531 = vunpack.c.l.b16 %v2355
      %v2532 = vunpack.c.l.b16 %v2356
      %v2533 = vunpack.c.l.b16 %v2357
      %v2534 = vunpack.c.l.b16 %v2358
      %v2535 = vunpack.c.l.b16 %v2359
      %v2536 = vunpack.c.l.b16 %v2360
      %v2537 = vunpack.c.l.b16 %v2361
      %v2538 = vunpack.c.l.b16 %v2362
      %v2539 = vunpack.c.l.b16 %v2363
      %v2540 = vunpack.c.l.b16 %v2364
      %v2541 = vunpack.c.l.b16 %v2365
      %v2542 = vunpack.c.l.b16 %v2366
      %v2543 = vunpack.c.l.b16 %v2367
      %v2544 = vunpack.c.l.b16 %v2368
      %v2545 = vunpack.c.l.b16 %v2369
      %v2546 = vunpack.c.l.b16 %v2370
      %v2547 = vunpack.c.l.b16 %v2371
      %v2548 = vunpack.c.l.b16 %v2372
      %v2549 = vunpack.c.l.b16 %v2373
      %v2550 = vunpack.c.l.b16 %v2374
      %v2551 = vunpack.c.l.b16 %v2375
      %v2552 = vunpack.c.l.b16 %v2376
      %v2553 = vunpack.c.l.b16 %v2377
      %v2554 = vunpack.c.l.b16 %v2378
      %v2555 = vunpack.c.l.b16 %v2379
      %v2556 = vunpack.c.l.b16 %v2380
      %v2557 = vunpack.c.l.b16 %v2381
      %v2558 = vunpack.c.l.b16 %v2382
      %v2559 = vunpack.c.l.b16 %v2383
      %v2560 = vunpack.c.l.b16 %v2384
      %v2561 = vunpack.c.l.b16 %v2385
      %v2562 = vunpack.c.l.b16 %v2386
      %v2563 = vunpack.c.l.b16 %v2387
      %v2564 = vunpack.c.l.b16 %v2388
      %v2565 = vunpack.c.l.b16 %v2389
      %v2566 = vunpack.c.l.b16 %v2390
      %v2567 = vunpack.c.l.b16 %v2391
      %v2568 = vunpack.c.l.b16 %v2392
      %v2569 = vunpack.c.l.b16 %v2393
      %v2570 = vunpack.c.l.b16 %v2394
      %v2571 = vunpack.c.l.b16 %v2395
      %v2572 = vunpack.c.l.b16 %v2396
      %v2573 = vunpack.c.l.b16 %v2397
      %v2574 = vunpack.c.l.b16 %v2398
      %v2575 = vunpack.c.l.b16 %v2399
      %v2576 = vunpack.c.l.b16 %v2400
      %v2577 = vunpack.c.l.b16 %v2401
      %v2578 = vunpack.c.l.b16 %v2402
      %v2579 = vunpack.c.l.b16 %v2403
      %v2580 = vunpack.c.l.b16 %v2404
      %v2581 = vunpack.c.l.b16 %v2405
      %v2582 = vunpack.c.l.b16 %v2406
      %v2583 = vunpack.c.l.b16 %v2407
      %v2584 = vunpack.c.l.b16 %v2408
      %v2585 = vunpack.c.l.b16 %v2409
      %v2586 = vunpack.c.l.b16 %v2410
      %v2587 = vunpack.c.l.b16 %v2411
      %v2588 = vunpack.c.l.b16 %v2412
      %v2589 = vunpack.c.l.b16 %v2413
      %v2590 = vunpack.c.l.b16 %v2414
      %v2591 = vunpack.c.l.b16 %v2415
      %v2592 = vunpack.c.l.b16 %v2416
      %v2593 = vunpack.c.l.b16 %v2417
      %v2594 = vpack.c.b16 %v2531, %v2530
      %v2595 = vpack.c.b16 %v2533, %v2532
      %v2596 = vpack.c.b16 %v2535, %v2534
      %v2597 = vpack.c.b16 %v2537, %v2536
      %v2598 = vpack.c.b16 %v2539, %v2538
      %v2599 = vpack.c.b16 %v2541, %v2540
      %v2600 = vpack.c.b16 %v2543, %v2542
      %v2601 = vpack.c.b16 %v2545, %v2544
      %v2602 = vpack.c.b16 %v2547, %v2546
      %v2603 = vpack.c.b16 %v2549, %v2548
      %v2604 = vpack.c.b16 %v2551, %v2550
      %v2605 = vpack.c.b16 %v2553, %v2552
      %v2606 = vpack.c.b16 %v2555, %v2554
      %v2607 = vpack.c.b16 %v2557, %v2556
      %v2608 = vpack.c.b16 %v2559, %v2558
      %v2609 = vpack.c.b16 %v2561, %v2560
      %v2610 = vpack.c.b16 %v2563, %v2562
      %v2611 = vpack.c.b16 %v2565, %v2564
      %v2612 = vpack.c.b16 %v2567, %v2566
      %v2613 = vpack.c.b16 %v2569, %v2568
      %v2614 = vpack.c.b16 %v2571, %v2570
      %v2615 = vpack.c.b16 %v2573, %v2572
      %v2616 = vpack.c.b16 %v2575, %v2574
      %v2617 = vpack.c.b16 %v2577, %v2576
      %v2618 = vpack.c.b16 %v2579, %v2578
      %v2619 = vpack.c.b16 %v2581, %v2580
      %v2620 = vpack.c.b16 %v2583, %v2582
      %v2621 = vpack.c.b16 %v2585, %v2584
      %v2622 = vpack.c.b16 %v2587, %v2586
      %v2623 = vpack.c.b16 %v2589, %v2588
      %v2624 = vpack.c.b16 %v2591, %v2590
      %v2625 = vpack.c.b16 %v2593, %v2592
      %2658 = vmatprep.subr.bf16.mxu0 0
      %2659 = vmatpush1.bf16.msra.mxu0 %v2594
      %2660 = vmatprep.subr.bf16.mxu0 0
      %2661 = vmatpush1.bf16.msra.mxu0 %v2595
      %2662 = vmatprep.subr.bf16.mxu0 0
      %2663 = vmatpush1.bf16.msra.mxu0 %v2596
      %2664 = vmatprep.subr.bf16.mxu0 0
      %2665 = vmatpush1.bf16.msra.mxu0 %v2597
      %2666 = vmatprep.subr.bf16.mxu0 0
      %2667 = vmatpush1.bf16.msra.mxu0 %v2598
      %2668 = vmatprep.subr.bf16.mxu0 0
      %2669 = vmatpush1.bf16.msra.mxu0 %v2599
      %2670 = vmatprep.subr.bf16.mxu0 0
      %2671 = vmatpush1.bf16.msra.mxu0 %v2600
      %2672 = vmatprep.subr.bf16.mxu0 0
      %2673 = vmatpush1.bf16.msra.mxu0 %v2601
      %2674 = vmatprep.subr.bf16.mxu0 0
      %2675 = vmatpush1.bf16.msra.mxu0 %v2602
      %2676 = vmatprep.subr.bf16.mxu0 0
      %2677 = vmatpush1.bf16.msra.mxu0 %v2603
      %2678 = vmatprep.subr.bf16.mxu0 0
      %2679 = vmatpush1.bf16.msra.mxu0 %v2604
      %2680 = vmatprep.subr.bf16.mxu0 0
      %2681 = vmatpush1.bf16.msra.mxu0 %v2605
      %2682 = vmatprep.subr.bf16.mxu0 0
      %2683 = vmatpush1.bf16.msra.mxu0 %v2606
      %2684 = vmatprep.subr.bf16.mxu0 0
      %2685 = vmatpush1.bf16.msra.mxu0 %v2607
      %2686 = vmatprep.subr.bf16.mxu0 0
      %2687 = vmatpush1.bf16.msra.mxu0 %v2608
      %2688 = vmatprep.subr.bf16.mxu0 0
      %2689 = vmatpush1.bf16.msra.mxu0 %v2609
      %2690 = vmatprep.mubr.bf16.mxu0 %v2447
      %2691 = vmatmul.mubr.bf16.gmra.mrb[0].mxu0 %v2440
      %v2692 = vpop.f32.mrb[0].mxu0
      %v2693 = vadd.f32 0.0, %v2692
      %v2694 = vpop.f32.mrb[0].mxu0
      %v2695 = vpop.f32.mrb[0].mxu0
      %v2696 = vpop.f32.mrb[0].mxu0
      %2697 = vdwg.mxu0
      %2698 = vmatprep.subr.bf16.mxu0 0
      %2699 = vmatpush1.bf16.msra.mxu0 %v2610
      %2700 = vmatprep.subr.bf16.mxu0 0
      %2701 = vmatpush1.bf16.msra.mxu0 %v2611
      %2702 = vmatprep.subr.bf16.mxu0 0
      %2703 = vmatpush1.bf16.msra.mxu0 %v2612
      %2704 = vmatprep.subr.bf16.mxu0 0
      %2705 = vmatpush1.bf16.msra.mxu0 %v2613
      %2706 = vmatprep.subr.bf16.mxu0 0
      %2707 = vmatpush1.bf16.msra.mxu0 %v2614
      %2708 = vmatprep.subr.bf16.mxu0 0
      %2709 = vmatpush1.bf16.msra.mxu0 %v2615
      %2710 = vmatprep.subr.bf16.mxu0 0
      %2711 = vmatpush1.bf16.msra.mxu0 %v2616
      %2712 = vmatprep.subr.bf16.mxu0 0
      %2713 = vmatpush1.bf16.msra.mxu0 %v2617
      %2714 = vmatprep.subr.bf16.mxu0 0
      %2715 = vmatpush1.bf16.msra.mxu0 %v2618
      %2716 = vmatprep.subr.bf16.mxu0 0
      %2717 = vmatpush1.bf16.msra.mxu0 %v2619
      %2718 = vmatprep.subr.bf16.mxu0 0
      %2719 = vmatpush1.bf16.msra.mxu0 %v2620
      %2720 = vmatprep.subr.bf16.mxu0 0
      %2721 = vmatpush1.bf16.msra.mxu0 %v2621
      %2722 = vmatprep.subr.bf16.mxu0 0
      %2723 = vmatpush1.bf16.msra.mxu0 %v2622
      %2724 = vmatprep.subr.bf16.mxu0 0
      %2725 = vmatpush1.bf16.msra.mxu0 %v2623
      %2726 = vmatprep.subr.bf16.mxu0 0
      %2727 = vmatpush1.bf16.msra.mxu0 %v2624
      %2728 = vmatprep.subr.bf16.mxu0 0
      %2729 = vmatpush1.bf16.msra.mxu0 %v2625
      %2730 = vmatprep.mubr.bf16.mxu0 %v2461
      %2731 = vmatmul.mubr.bf16.gmra.mrb[0].mxu0 %v2454
      %v2732 = vpop.f32.mrb[0].mxu0
      %v2733 = vadd.f32 %v2693, %v2732
      %v2734 = vpop.f32.mrb[0].mxu0
      %v2735 = vpop.f32.mrb[0].mxu0
      %v2736 = vpop.f32.mrb[0].mxu0
      %2737 = vdwg.mxu0
      %v2738 = vadd.f32 %v2051, %v2733
      %v2743 = vunpack.c.l.b16 %v2341
      %v2744 = vunpack.c.h.b16 %v2341
      %v2745 = vunpack.c.l.b16 %v2342
      %v2746 = vunpack.c.h.b16 %v2342
      %v2747 = vunpack.c.l.b16 %v2343
      %v2748 = vunpack.c.h.b16 %v2343
      %v2749 = vunpack.c.l.b16 %v2344
      %v2750 = vunpack.c.h.b16 %v2344
      %v2751 = vpack.c.b16 %v2747, %v2743
      %v2752 = vpack.c.b16 %v2748, %v2744
      %v2753 = vpack.c.b16 %v2749, %v2745
      %v2754 = vpack.c.b16 %v2750, %v2746
      %v2756 = vshrl.u32 %v2751, 16
      %v2758 = vshll.u32 %v2751, 16
      %v2760 = vrot.slane %v2758, 1
      %v2761 = vor.u32 %v2756, %v2760
      %v2763 = vshrl.u32 %v2752, 16
      %v2765 = vshll.u32 %v2752, 16
      %v2767 = vrot.slane %v2765, 1
      %v2768 = vor.u32 %v2763, %v2767
      %v2770 = vshrl.u32 %v2753, 16
      %v2772 = vshll.u32 %v2753, 16
      %v2774 = vrot.slane %v2772, 1
      %v2775 = vor.u32 %v2770, %v2774
      %v2777 = vshrl.u32 %v2754, 16
      %v2779 = vshll.u32 %v2754, 16
      %v2781 = vrot.slane %v2779, 1
      %v2782 = vor.u32 %v2777, %v2781
      %2787 = vmatprep.subr.bf16.mxu0 0
      %2788 = vmatpush1.bf16.msra.mxu0 %v2594
      %2789 = vmatprep.subr.bf16.mxu0 0
      %2790 = vmatpush1.bf16.msra.mxu0 %v2595
      %2791 = vmatprep.subr.bf16.mxu0 0
      %2792 = vmatpush1.bf16.msra.mxu0 %v2596
      %2793 = vmatprep.subr.bf16.mxu0 0
      %2794 = vmatpush1.bf16.msra.mxu0 %v2597
      %2795 = vmatprep.subr.bf16.mxu0 0
      %2796 = vmatpush1.bf16.msra.mxu0 %v2598
      %2797 = vmatprep.subr.bf16.mxu0 0
      %2798 = vmatpush1.bf16.msra.mxu0 %v2599
      %2799 = vmatprep.subr.bf16.mxu0 0
      %2800 = vmatpush1.bf16.msra.mxu0 %v2600
      %2801 = vmatprep.subr.bf16.mxu0 0
      %2802 = vmatpush1.bf16.msra.mxu0 %v2601
      %2803 = vmatprep.subr.bf16.mxu0 0
      %2804 = vmatpush1.bf16.msra.mxu0 %v2602
      %2805 = vmatprep.subr.bf16.mxu0 0
      %2806 = vmatpush1.bf16.msra.mxu0 %v2603
      %2807 = vmatprep.subr.bf16.mxu0 0
      %2808 = vmatpush1.bf16.msra.mxu0 %v2604
      %2809 = vmatprep.subr.bf16.mxu0 0
      %2810 = vmatpush1.bf16.msra.mxu0 %v2605
      %2811 = vmatprep.subr.bf16.mxu0 0
      %2812 = vmatpush1.bf16.msra.mxu0 %v2606
      %2813 = vmatprep.subr.bf16.mxu0 0
      %2814 = vmatpush1.bf16.msra.mxu0 %v2607
      %2815 = vmatprep.subr.bf16.mxu0 0
      %2816 = vmatpush1.bf16.msra.mxu0 %v2608
      %2817 = vmatprep.subr.bf16.mxu0 0
      %2818 = vmatpush1.bf16.msra.mxu0 %v2609
      %2819 = vmatprep.mubr.bf16.mxu0 %v2768
      %2820 = vmatmul.mubr.bf16.gmra.mrb[0].mxu0 %v2761
      %v2821 = vpop.f32.mrb[0].mxu0
      %v2822 = vadd.f32 0.0, %v2821
      %v2823 = vpop.f32.mrb[0].mxu0
      %v2824 = vpop.f32.mrb[0].mxu0
      %v2825 = vpop.f32.mrb[0].mxu0
      %2826 = vdwg.mxu0
      %2827 = vmatprep.subr.bf16.mxu0 0
      %2828 = vmatpush1.bf16.msra.mxu0 %v2610
      %2829 = vmatprep.subr.bf16.mxu0 0
      %2830 = vmatpush1.bf16.msra.mxu0 %v2611
      %2831 = vmatprep.subr.bf16.mxu0 0
      %2832 = vmatpush1.bf16.msra.mxu0 %v2612
      %2833 = vmatprep.subr.bf16.mxu0 0
      %2834 = vmatpush1.bf16.msra.mxu0 %v2613
      %2835 = vmatprep.subr.bf16.mxu0 0
      %2836 = vmatpush1.bf16.msra.mxu0 %v2614
      %2837 = vmatprep.subr.bf16.mxu0 0
      %2838 = vmatpush1.bf16.msra.mxu0 %v2615
      %2839 = vmatprep.subr.bf16.mxu0 0
      %2840 = vmatpush1.bf16.msra.mxu0 %v2616
      %2841 = vmatprep.subr.bf16.mxu0 0
      %2842 = vmatpush1.bf16.msra.mxu0 %v2617
      %2843 = vmatprep.subr.bf16.mxu0 0
      %2844 = vmatpush1.bf16.msra.mxu0 %v2618
      %2845 = vmatprep.subr.bf16.mxu0 0
      %2846 = vmatpush1.bf16.msra.mxu0 %v2619
      %2847 = vmatprep.subr.bf16.mxu0 0
      %2848 = vmatpush1.bf16.msra.mxu0 %v2620
      %2849 = vmatprep.subr.bf16.mxu0 0
      %2850 = vmatpush1.bf16.msra.mxu0 %v2621
      %2851 = vmatprep.subr.bf16.mxu0 0
      %2852 = vmatpush1.bf16.msra.mxu0 %v2622
      %2853 = vmatprep.subr.bf16.mxu0 0
      %2854 = vmatpush1.bf16.msra.mxu0 %v2623
      %2855 = vmatprep.subr.bf16.mxu0 0
      %2856 = vmatpush1.bf16.msra.mxu0 %v2624
      %2857 = vmatprep.subr.bf16.mxu0 0
      %2858 = vmatpush1.bf16.msra.mxu0 %v2625
      %2859 = vmatprep.mubr.bf16.mxu0 %v2782
      %2860 = vmatmul.mubr.bf16.gmra.mrb[0].mxu0 %v2775
      %v2861 = vpop.f32.mrb[0].mxu0
      %v2862 = vadd.f32 %v2822, %v2861
      %v2863 = vpop.f32.mrb[0].mxu0
      %v2864 = vpop.f32.mrb[0].mxu0
      %v2865 = vpop.f32.mrb[0].mxu0
      %2866 = vdwg.mxu0
      %v2867 = vadd.f32 %v2146, %v2862
      %v2872 = vunpack.c.l.b16 %v2345
      %v2873 = vunpack.c.h.b16 %v2345
      %v2874 = vunpack.c.l.b16 %v2346
      %v2875 = vunpack.c.h.b16 %v2346
      %v2876 = vunpack.c.l.b16 %v2347
      %v2877 = vunpack.c.h.b16 %v2347
      %v2878 = vunpack.c.l.b16 %v2348
      %v2879 = vunpack.c.h.b16 %v2348
      %v2880 = vpack.c.b16 %v2876, %v2872
      %v2881 = vpack.c.b16 %v2877, %v2873
      %v2882 = vpack.c.b16 %v2878, %v2874
      %v2883 = vpack.c.b16 %v2879, %v2875
      %v2885 = vshrl.u32 %v2880, 16
      %v2887 = vshll.u32 %v2880, 16
      %v2889 = vrot.slane %v2887, 1
      %v2890 = vor.u32 %v2885, %v2889
      %v2892 = vshrl.u32 %v2881, 16
      %v2894 = vshll.u32 %v2881, 16
      %v2896 = vrot.slane %v2894, 1
      %v2897 = vor.u32 %v2892, %v2896
      %v2899 = vshrl.u32 %v2882, 16
      %v2901 = vshll.u32 %v2882, 16
      %v2903 = vrot.slane %v2901, 1
      %v2904 = vor.u32 %v2899, %v2903
      %v2906 = vshrl.u32 %v2883, 16
      %v2908 = vshll.u32 %v2883, 16
      %v2910 = vrot.slane %v2908, 1
      %v2911 = vor.u32 %v2906, %v2910
      %2916 = vmatprep.subr.bf16.mxu0 0
      %2917 = vmatpush1.bf16.msra.mxu0 %v2594
      %2918 = vmatprep.subr.bf16.mxu0 0
      %2919 = vmatpush1.bf16.msra.mxu0 %v2595
      %2920 = vmatprep.subr.bf16.mxu0 0
      %2921 = vmatpush1.bf16.msra.mxu0 %v2596
      %2922 = vmatprep.subr.bf16.mxu0 0
      %2923 = vmatpush1.bf16.msra.mxu0 %v2597
      %2924 = vmatprep.subr.bf16.mxu0 0
      %2925 = vmatpush1.bf16.msra.mxu0 %v2598
      %2926 = vmatprep.subr.bf16.mxu0 0
      %2927 = vmatpush1.bf16.msra.mxu0 %v2599
      %2928 = vmatprep.subr.bf16.mxu0 0
      %2929 = vmatpush1.bf16.msra.mxu0 %v2600
      %2930 = vmatprep.subr.bf16.mxu0 0
      %2931 = vmatpush1.bf16.msra.mxu0 %v2601
      %2932 = vmatprep.subr.bf16.mxu0 0
      %2933 = vmatpush1.bf16.msra.mxu0 %v2602
      %2934 = vmatprep.subr.bf16.mxu0 0
      %2935 = vmatpush1.bf16.msra.mxu0 %v2603
      %2936 = vmatprep.subr.bf16.mxu0 0
      %2937 = vmatpush1.bf16.msra.mxu0 %v2604
      %2938 = vmatprep.subr.bf16.mxu0 0
      %2939 = vmatpush1.bf16.msra.mxu0 %v2605
      %2940 = vmatprep.subr.bf16.mxu0 0
      %2941 = vmatpush1.bf16.msra.mxu0 %v2606
      %2942 = vmatprep.subr.bf16.mxu0 0
      %2943 = vmatpush1.bf16.msra.mxu0 %v2607
      %2944 = vmatprep.subr.bf16.mxu0 0
      %2945 = vmatpush1.bf16.msra.mxu0 %v2608
      %2946 = vmatprep.subr.bf16.mxu0 0
      %2947 = vmatpush1.bf16.msra.mxu0 %v2609
      %2948 = vmatprep.mubr.bf16.mxu0 %v2897
      %2949 = vmatmul.mubr.bf16.gmra.mrb[0].mxu0 %v2890
      %v2950 = vpop.f32.mrb[0].mxu0
      %v2951 = vadd.f32 0.0, %v2950
      %v2952 = vpop.f32.mrb[0].mxu0
      %v2953 = vpop.f32.mrb[0].mxu0
      %v2954 = vpop.f32.mrb[0].mxu0
      %2955 = vdwg.mxu0
      %2956 = vmatprep.subr.bf16.mxu0 0
      %2957 = vmatpush1.bf16.msra.mxu0 %v2610
      %2958 = vmatprep.subr.bf16.mxu0 0
      %2959 = vmatpush1.bf16.msra.mxu0 %v2611
      %2960 = vmatprep.subr.bf16.mxu0 0
      %2961 = vmatpush1.bf16.msra.mxu0 %v2612
      %2962 = vmatprep.subr.bf16.mxu0 0
      %2963 = vmatpush1.bf16.msra.mxu0 %v2613
      %2964 = vmatprep.subr.bf16.mxu0 0
      %2965 = vmatpush1.bf16.msra.mxu0 %v2614
      %2966 = vmatprep.subr.bf16.mxu0 0
      %2967 = vmatpush1.bf16.msra.mxu0 %v2615
      %2968 = vmatprep.subr.bf16.mxu0 0
      %2969 = vmatpush1.bf16.msra.mxu0 %v2616
      %2970 = vmatprep.subr.bf16.mxu0 0
      %2971 = vmatpush1.bf16.msra.mxu0 %v2617
      %2972 = vmatprep.subr.bf16.mxu0 0
      %2973 = vmatpush1.bf16.msra.mxu0 %v2618
      %2974 = vmatprep.subr.bf16.mxu0 0
      %2975 = vmatpush1.bf16.msra.mxu0 %v2619
      %2976 = vmatprep.subr.bf16.mxu0 0
      %2977 = vmatpush1.bf16.msra.mxu0 %v2620
      %2978 = vmatprep.subr.bf16.mxu0 0
      %2979 = vmatpush1.bf16.msra.mxu0 %v2621
      %2980 = vmatprep.subr.bf16.mxu0 0
      %2981 = vmatpush1.bf16.msra.mxu0 %v2622
      %2982 = vmatprep.subr.bf16.mxu0 0
      %2983 = vmatpush1.bf16.msra.mxu0 %v2623
      %2984 = vmatprep.subr.bf16.mxu0 0
      %2985 = vmatpush1.bf16.msra.mxu0 %v2624
      %2986 = vmatprep.subr.bf16.mxu0 0
      %2987 = vmatpush1.bf16.msra.mxu0 %v2625
      %2988 = vmatprep.mubr.bf16.mxu0 %v2911
      %2989 = vmatmul.mubr.bf16.gmra.mrb[0].mxu0 %v2904
      %v2990 = vpop.f32.mrb[0].mxu0
      %v2991 = vadd.f32 %v2951, %v2990
      %v2992 = vpop.f32.mrb[0].mxu0
      %v2993 = vpop.f32.mrb[0].mxu0
      %v2994 = vpop.f32.mrb[0].mxu0
      %2995 = vdwg.mxu0
      %v2996 = vadd.f32 %v2241, %v2991
      %v3001 = vunpack.c.l.b16 %v2349
      %v3002 = vunpack.c.h.b16 %v2349
      %v3003 = vunpack.c.l.b16 %v2350
      %v3004 = vunpack.c.h.b16 %v2350
      %v3005 = vunpack.c.l.b16 %v2351
      %v3006 = vunpack.c.h.b16 %v2351
      %v3007 = vunpack.c.l.b16 %v2352
      %v3008 = vunpack.c.h.b16 %v2352
      %v3009 = vpack.c.b16 %v3005, %v3001
      %v3010 = vpack.c.b16 %v3006, %v3002
      %v3011 = vpack.c.b16 %v3007, %v3003
      %v3012 = vpack.c.b16 %v3008, %v3004
      %v3014 = vshrl.u32 %v3009, 16
      %v3016 = vshll.u32 %v3009, 16
      %v3018 = vrot.slane %v3016, 1
      %v3019 = vor.u32 %v3014, %v3018
      %v3021 = vshrl.u32 %v3010, 16
      %v3023 = vshll.u32 %v3010, 16
      %v3025 = vrot.slane %v3023, 1
      %v3026 = vor.u32 %v3021, %v3025
      %v3028 = vshrl.u32 %v3011, 16
      %v3030 = vshll.u32 %v3011, 16
      %v3032 = vrot.slane %v3030, 1
      %v3033 = vor.u32 %v3028, %v3032
      %v3035 = vshrl.u32 %v3012, 16
      %v3037 = vshll.u32 %v3012, 16
      %v3039 = vrot.slane %v3037, 1
      %v3040 = vor.u32 %v3035, %v3039
      %3045 = vmatprep.subr.bf16.mxu0 0
      %3046 = vmatpush1.bf16.msra.mxu0 %v2594
      %3047 = vmatprep.subr.bf16.mxu0 0
      %3048 = vmatpush1.bf16.msra.mxu0 %v2595
      %3049 = vmatprep.subr.bf16.mxu0 0
      %3050 = vmatpush1.bf16.msra.mxu0 %v2596
      %3051 = vmatprep.subr.bf16.mxu0 0
      %3052 = vmatpush1.bf16.msra.mxu0 %v2597
      %3053 = vmatprep.subr.bf16.mxu0 0
      %3054 = vmatpush1.bf16.msra.mxu0 %v2598
      %3055 = vmatprep.subr.bf16.mxu0 0
      %3056 = vmatpush1.bf16.msra.mxu0 %v2599
      %3057 = vmatprep.subr.bf16.mxu0 0
      %3058 = vmatpush1.bf16.msra.mxu0 %v2600
      %3059 = vmatprep.subr.bf16.mxu0 0
      %3060 = vmatpush1.bf16.msra.mxu0 %v2601
      %3061 = vmatprep.subr.bf16.mxu0 0
      %3062 = vmatpush1.bf16.msra.mxu0 %v2602
      %3063 = vmatprep.subr.bf16.mxu0 0
      %3064 = vmatpush1.bf16.msra.mxu0 %v2603
      %3065 = vmatprep.subr.bf16.mxu0 0
      %3066 = vmatpush1.bf16.msra.mxu0 %v2604
      %3067 = vmatprep.subr.bf16.mxu0 0
      %3068 = vmatpush1.bf16.msra.mxu0 %v2605
      %3069 = vmatprep.subr.bf16.mxu0 0
      %3070 = vmatpush1.bf16.msra.mxu0 %v2606
      %3071 = vmatprep.subr.bf16.mxu0 0
      %3072 = vmatpush1.bf16.msra.mxu0 %v2607
      %3073 = vmatprep.subr.bf16.mxu0 0
      %3074 = vmatpush1.bf16.msra.mxu0 %v2608
      %3075 = vmatprep.subr.bf16.mxu0 0
      %3076 = vmatpush1.bf16.msra.mxu0 %v2609
      %3077 = vmatprep.mubr.bf16.mxu0 %v3026
      %3078 = vmatmul.mubr.bf16.gmra.mrb[0].mxu0 %v3019
      %v3079 = vpop.f32.mrb[0].mxu0
      %v3080 = vadd.f32 0.0, %v3079
      %v3081 = vpop.f32.mrb[0].mxu0
      %v3082 = vpop.f32.mrb[0].mxu0
      %v3083 = vpop.f32.mrb[0].mxu0
      %3084 = vdwg.mxu0
      %3085 = vmatprep.subr.bf16.mxu0 0
      %3086 = vmatpush1.bf16.msra.mxu0 %v2610
      %3087 = vmatprep.subr.bf16.mxu0 0
      %3088 = vmatpush1.bf16.msra.mxu0 %v2611
      %3089 = vmatprep.subr.bf16.mxu0 0
      %3090 = vmatpush1.bf16.msra.mxu0 %v2612
      %3091 = vmatprep.subr.bf16.mxu0 0
      %3092 = vmatpush1.bf16.msra.mxu0 %v2613
      %3093 = vmatprep.subr.bf16.mxu0 0
      %3094 = vmatpush1.bf16.msra.mxu0 %v2614
      %3095 = vmatprep.subr.bf16.mxu0 0
      %3096 = vmatpush1.bf16.msra.mxu0 %v2615
      %3097 = vmatprep.subr.bf16.mxu0 0
      %3098 = vmatpush1.bf16.msra.mxu0 %v2616
      %3099 = vmatprep.subr.bf16.mxu0 0
      %3100 = vmatpush1.bf16.msra.mxu0 %v2617
      %3101 = vmatprep.subr.bf16.mxu0 0
      %3102 = vmatpush1.bf16.msra.mxu0 %v2618
      %3103 = vmatprep.subr.bf16.mxu0 0
      %3104 = vmatpush1.bf16.msra.mxu0 %v2619
      %3105 = vmatprep.subr.bf16.mxu0 0
      %3106 = vmatpush1.bf16.msra.mxu0 %v2620
      %3107 = vmatprep.subr.bf16.mxu0 0
      %3108 = vmatpush1.bf16.msra.mxu0 %v2621
      %3109 = vmatprep.subr.bf16.mxu0 0
      %3110 = vmatpush1.bf16.msra.mxu0 %v2622
      %3111 = vmatprep.subr.bf16.mxu0 0
      %3112 = vmatpush1.bf16.msra.mxu0 %v2623
      %3113 = vmatprep.subr.bf16.mxu0 0
      %3114 = vmatpush1.bf16.msra.mxu0 %v2624
      %3115 = vmatprep.subr.bf16.mxu0 0
      %3116 = vmatpush1.bf16.msra.mxu0 %v2625
      %3117 = vmatprep.mubr.bf16.mxu0 %v3040
      %3118 = vmatmul.mubr.bf16.gmra.mrb[0].mxu0 %v3033
      %v3119 = vpop.f32.mrb[0].mxu0
      %v3120 = vadd.f32 %v3080, %v3119
      %v3121 = vpop.f32.mrb[0].mxu0
      %v3122 = vpop.f32.mrb[0].mxu0
      %v3123 = vpop.f32.mrb[0].mxu0
      %3124 = vdwg.mxu0
      %v3125 = vadd.f32 %v2336, %v3120
      %v3127 = vlaneseq
      %v3128 = vshrl.u32 %v3127, 7
      %v3129 = vsub.s32 0, %v3128
      %v3130 = vrot.slane %v291, %v3129
      %v3132 = vadd.f32 %v2738, %v3130
      %v3133 = vrot.slane %v3132, 4
      %v3134 = vadd.f32 %v3132, %v3133
      %v3135 = vrot.slane %v3134, 2
      %v3136 = vadd.f32 %v3134, %v3135
      %v3137 = vrot.slane %v3136, 1
      %v3138 = vadd.f32 %v3136, %v3137
      %v3139 = vmul.f32 %v3132, %v3132
      %v3140 = vrot.slane %v3139, 4
      %v3141 = vadd.f32 %v3139, %v3140
      %v3142 = vrot.slane %v3141, 2
      %v3143 = vadd.f32 %v3141, %v3142
      %v3144 = vrot.slane %v3143, 1
      %v3145 = vadd.f32 %v3143, %v3144
      %v3146 = vpack.c.bf16 %v3132, %v3132
      %3147 = vst [vmem:[%s271] sm:$0xf] %v3146
      %v3148 = vadd.f32 %v2867, %v3130
      %v3149 = vrot.slane %v3148, 4
      %v3150 = vadd.f32 %v3148, %v3149
      %v3151 = vrot.slane %v3150, 2
      %v3152 = vadd.f32 %v3150, %v3151
      %v3153 = vrot.slane %v3152, 1
      %v3154 = vadd.f32 %v3152, %v3153
      %v3155 = vmul.f32 %v3148, %v3148
      %v3156 = vrot.slane %v3155, 4
      %v3157 = vadd.f32 %v3155, %v3156
      %v3158 = vrot.slane %v3157, 2
      %v3159 = vadd.f32 %v3157, %v3158
      %v3160 = vrot.slane %v3159, 1
      %v3161 = vadd.f32 %v3159, %v3160
      %v3162 = vadd.f32 %v3138, %v3154
      %v3163 = vadd.f32 %v3145, %v3161
      %v3164 = vpack.c.bf16 %v3148, %v3148
      %s3165 = scalar_lea.vmem %s271, 4
      %3166 = vst [vmem:[%s3165] sm:$0xf] %v3164
      %v3167 = vadd.f32 %v2996, %v3130
      %v3168 = vrot.slane %v3167, 4
      %v3169 = vadd.f32 %v3167, %v3168
      %v3170 = vrot.slane %v3169, 2
      %v3171 = vadd.f32 %v3169, %v3170
      %v3172 = vrot.slane %v3171, 1
      %v3173 = vadd.f32 %v3171, %v3172
      %v3174 = vmul.f32 %v3167, %v3167
      %v3175 = vrot.slane %v3174, 4
      %v3176 = vadd.f32 %v3174, %v3175
      %v3177 = vrot.slane %v3176, 2
      %v3178 = vadd.f32 %v3176, %v3177
      %v3179 = vrot.slane %v3178, 1
      %v3180 = vadd.f32 %v3178, %v3179
      %v3181 = vadd.f32 %v3162, %v3173
      %v3182 = vadd.f32 %v3163, %v3180
      %v3183 = vpack.c.bf16 %v3167, %v3167
      %s3184 = scalar_lea.vmem %s271, 8
      %3185 = vst [vmem:[%s3184] sm:$0xf] %v3183
      %v3186 = vadd.f32 %v3125, %v3130
      %v3187 = vrot.slane %v3186, 4
      %v3188 = vadd.f32 %v3186, %v3187
      %v3189 = vrot.slane %v3188, 2
      %v3190 = vadd.f32 %v3188, %v3189
      %v3191 = vrot.slane %v3190, 1
      %v3192 = vadd.f32 %v3190, %v3191
      %v3193 = vmul.f32 %v3186, %v3186
      %v3194 = vrot.slane %v3193, 4
      %v3195 = vadd.f32 %v3193, %v3194
      %v3196 = vrot.slane %v3195, 2
      %v3197 = vadd.f32 %v3195, %v3196
      %v3198 = vrot.slane %v3197, 1
      %v3199 = vadd.f32 %v3197, %v3198
      %v3200 = vadd.f32 %v3181, %v3192
      %v3201 = vadd.f32 %v3182, %v3199
      %v3202 = vpack.c.bf16 %v3186, %v3186
      %s3203 = scalar_lea.vmem %s271, 12
      %3204 = vst [vmem:[%s3203] sm:$0xf] %v3202
      %3205 = vst [vmem:[%s278] sm:$0xff] %v3200
      %3206 = vst [vmem:[%s286] sm:$0xff] %v3201
      %s3207 = smul.u32 4, %s22
      %p3208 = scmp.lt.s32.totalorder %s21, 1
      %s3209 = scalar_select %p3208, %s21, 1
      %p3210 = scmp.lt.s32.totalorder %s3207, 7
      %s3211 = scalar_select %p3210, %s3207, 7
      %s3212 = smul.addr %s3209, 8
      %s3213 = sadd.s32 %s3211, %s3212
      %s3214 = smul.addr %s3213, 4
      %s3215 = scalar_lea.vmem %s3, %s3214
      %s3216 = smul.u32 %s21, 2
      %s3217 = sadd.s32 %s3216, %s22
      %p3218 = scmp.lt.s32.totalorder %s3217, 3
      %s3219 = scalar_select %p3218, %s3217, 3
      %s3220 = smul.addr %s3219, 8
      %s3221 = scalar_lea.vmem %s4, %s3220
      %s3222 = smul.u32 %s21, 2
      %s3223 = sadd.s32 %s3222, %s22
      %p3224 = scmp.lt.s32.totalorder %s3223, 3
      %s3225 = scalar_select %p3224, %s3223, 3
      %s3226 = smul.addr %s3225, 8
      %s3227 = scalar_lea.vmem %s5, %s3226
      // Predicated region
      $region33: #{discriminator_forward.5} parent=31 // pred_check
        %p3228 = pneg %p117
      $region34: #{discriminator_forward.5} parent=31 // pred_check_branch
        %3230 = sbr.rel (%p3228) target = $region36
      $region35: #{discriminator_forward.5} parent=31 // pred_region
        %s3231 = smul.u32 4, %s22
      $region36: #{discriminator_forward.5} parent=31 // pred_fallthru
        _
      // Predicated region
      $region37: #{discriminator_forward.5} parent=31 // pred_check
        %p3232 = pneg %p147
      $region38: #{discriminator_forward.5} parent=31 // pred_check_branch
        %3234 = sbr.rel (%p3232) target = $region40
      $region39: #{discriminator_forward.5} parent=31 // pred_region
        %s3235 = smul.u32 %s21, 2
        %s3236 = sadd.s32 %s3235, %s22
      $region40: #{discriminator_forward.5} parent=31 // pred_fallthru
        _
      // Predicated region
      $region41: #{discriminator_forward.5} parent=31 // pred_check
        %p3237 = pneg %p177
      $region42: #{discriminator_forward.5} parent=31 // pred_check_branch
        %3239 = sbr.rel (%p3237) target = $region44
      $region43: #{discriminator_forward.5} parent=31 // pred_region
        %s3240 = smul.u32 %s21, 2
        %s3241 = sadd.s32 %s3240, %s22
      $region44: #{discriminator_forward.5} parent=31 // pred_fallthru
        _
    $region32: #{discriminator_forward.5} parent=5 // pred_fallthru
      _
    %p3242 = scmp.le.s32.totalorder 2, %s12
    // Predicated region
    $region45: #{discriminator_forward.5} parent=5 // pred_check
      %p3243 = pneg %p3242
    $region46: #{discriminator_forward.5} parent=5 // pred_check_branch
      %3245 = sbr.rel (%p3243) target = $region48
    $region47: #{discriminator_forward.5} parent=5 // pred_region
      %s3246 = ssub.s32 %s12, 2
      // Predicated region
      $region49: #{discriminator_forward.5} parent=47 // pred_check
        %p3247 = pneg %p123
      $region50: #{discriminator_forward.5} parent=47 // pred_check_branch
        %3249 = sbr.rel (%p3247) target = $region52
      $region51: #{discriminator_forward.5} parent=47 // pred_region
        %s3250 = smul.u32 4, %s24
        %p3251 = scmp.lt.s32.totalorder %s23, 1
        %s3252 = scalar_select %p3251, %s23, 1
        %p3253 = scmp.lt.s32.totalorder %s3250, 7
        %s3254 = scalar_select %p3253, %s3250, 7
        %s3255 = smul.addr %s3252, 8
        %s3256 = sadd.s32 %s3254, %s3255
        %s3257 = smul.addr %s3256, 4
        %s3258 = scalar_lea.vmem %s3, %s3257
      $region52: #{discriminator_forward.5} parent=47 // pred_fallthru
        _
      // Predicated region
      $region53: #{discriminator_forward.5} parent=47 // pred_check
        %p3259 = pneg %p153
      $region54: #{discriminator_forward.5} parent=47 // pred_check_branch
        %3261 = sbr.rel (%p3259) target = $region56
      $region55: #{discriminator_forward.5} parent=47 // pred_region
        %s3262 = smul.u32 %s23, 2
        %s3263 = sadd.s32 %s3262, %s24
        %p3264 = scmp.lt.s32.totalorder %s3263, 3
        %s3265 = scalar_select %p3264, %s3263, 3
        %s3266 = smul.addr %s3265, 8
        %s3267 = scalar_lea.vmem %s4, %s3266
      $region56: #{discriminator_forward.5} parent=47 // pred_fallthru
        _
      // Predicated region
      $region57: #{discriminator_forward.5} parent=47 // pred_check
        %p3268 = pneg %p183
      $region58: #{discriminator_forward.5} parent=47 // pred_check_branch
        %3270 = sbr.rel (%p3268) target = $region60
      $region59: #{discriminator_forward.5} parent=47 // pred_region
        %s3271 = smul.u32 %s23, 2
        %s3272 = sadd.s32 %s3271, %s24
        %p3273 = scmp.lt.s32.totalorder %s3272, 3
        %s3274 = scalar_select %p3273, %s3272, 3
        %s3275 = smul.addr %s3274, 8
        %s3276 = scalar_lea.vmem %s5, %s3275
      $region60: #{discriminator_forward.5} parent=47 // pred_fallthru
        _
    $region48: #{discriminator_forward.5} parent=5 // pred_fallthru
      _
  $region6: #{discriminator_forward.5} parent=0 // loop_footer
    %s16 = sadd.s32 1, %s12
  $region7: #{discriminator_forward.5} parent=0 // loop_footer_branch
    %11 = sbr.rel target = $region3
  $region8: #{discriminator_forward.5} parent=0 // loop_exit
    _

// kernel: discriminator_forward.7
$region0: #{discriminator_forward.7}
  #allocation0 [shape = 'u32[]', space=smem, size = 0x4, offset = 0x4, fixed_abs, tag = 'smem constant byte address 0x4 - core index']
  #allocation1 [shape = 'u32[144,128]{1,0:T(1,128)}', space=vmem, size = 0x12000, scoped, tag = 'internal scratch']
  #allocation2 [shape = 'f32[1,1]{1,0:T(1,128)S(1)}', space=vmem, size = 0x200, scoped, tag = 'scoped memory for discriminator_forward.7']
  %s0 = inlined_call_operand.vmem [shape: bf16[2,16,256], index: 0, kind: input, shape index: {}]
  %s1 = inlined_call_operand.vmem [shape: f32[1,256], index: 1, kind: input, shape index: {}]
  %s2 = inlined_call_operand.vmem [shape: f32[1,256], index: 2, kind: input, shape index: {}]
  %s3 = inlined_call_operand.vmem [shape: f32[16,256], index: 3, kind: input, shape index: {}]
  %s4 = inlined_call_operand.<no memory space> [shape: f32[1,1], index: 4, kind: input, shape index: {}]
  %s5 = inlined_call_operand.vmem [shape: f32[2,8,128], index: 5, kind: output, shape index: {}]
  %s6 = sld [smem:[#allocation0]]
  $region53: #{discriminator_forward.7} parent=0
    _
  %s8 = ssub.s32 1, %s6
  %s9 = scalar_select 0, %s8, %s6
  %v10 = vstv %s4
  %11 = vst [vmem:[#allocation2] sm:$0x1] %v10
  loop: start=0, step=1, limit=4
  $region2: #{discriminator_forward.7} parent=0 // loop_pre_header
    _
  $region3: #{discriminator_forward.7} parent=0 // loop_header
    %s13 = sphi 0, %s17
    %p14 = scmp.ge.s32.totalorder %s13, 4
    %s23 = sphi 0, %s25
    %s26 = sphi 0, %s23
    %s27 = sphi 0, %s26
    %s43 = sphi 0, %s27
    %s47 = sphi 0, %s47
    %s49 = sphi 0, %s47
    %s50 = sphi 0, %s49
    %s64 = sphi 0, %s50
    %s68 = sphi 0, %s68
    %s70 = sphi 0, %s68
    %s71 = sphi 0, %s70
    %s85 = sphi 0, %s71
    %s89 = sphi 0, %s89
    %s91 = sphi 0, %s89
    %s92 = sphi 0, %s91
    %s106 = sphi 0, %s92
    %s110 = sphi 0, %s110
    %s112 = sphi 0, %s110
    %s113 = sphi 0, %s112
    %s127 = sphi 0, %s113
    %s133 = sphi 0, %s135
    %s136 = sphi 0, %s133
    %s137 = sphi 0, %s136
    %s153 = sphi 0, %s137
  $region4: #{discriminator_forward.7} parent=0 // loop_header_branch
    %16 = sbr.rel (%p14) target = $region8
  $region5: #{discriminator_forward.7} parent=0 // loop_body
    %s18 = ssub.s32 %s13, 1
    %s19 = ssub.s32 %s13, 2
    %s20 = sadd.s32 %s13, 1
    %s21 = ssub.s32 %s13, %s20
    %p22 = scmp.eq.s32.totalorder %s21, 0
    %s24 = sadd.s32 %s23, 1
    %s25 = scalar_select %p22, %s23, %s24
    %p28 = pneg %p22
    %p29 = scmp.eq.s32.totalorder %s13, 1
    %p30 = por %p28, %p29
    %p31 = scmp.ne.s32.totalorder %s23, %s26
    %p32 = scmp.eq.s32.totalorder %s13, 0
    %p33 = por %p31, %p32
    %p34 = scmp.ne.s32.totalorder %s23, %s26
    %p35 = scmp.eq.s32.totalorder %s18, 1
    %p36 = por %p34, %p35
    %p37 = scmp.ne.s32.totalorder %s26, %s27
    %p38 = scmp.eq.s32.totalorder %s18, 0
    %p39 = por %p37, %p38
    %p40 = scmp.ne.s32.totalorder %s26, %s27
    %p41 = scmp.eq.s32.totalorder %s19, 1
    %p42 = por %p40, %p41
    %p44 = scmp.ne.s32.totalorder %s27, %s43
    %p45 = scmp.eq.s32.totalorder %s19, 0
    %p46 = por %p44, %p45
    %s48 = sadd.s32 %s47, 1
    %p51 = scmp.eq.s32.totalorder %s13, 1
    %p52 = scmp.ne.s32.totalorder %s47, %s49
    %p53 = scmp.eq.s32.totalorder %s13, 0
    %p54 = por %p52, %p53
    %p55 = scmp.ne.s32.totalorder %s47, %s49
    %p56 = scmp.eq.s32.totalorder %s18, 1
    %p57 = por %p55, %p56
    %p58 = scmp.ne.s32.totalorder %s49, %s50
    %p59 = scmp.eq.s32.totalorder %s18, 0
    %p60 = por %p58, %p59
    %p61 = scmp.ne.s32.totalorder %s49, %s50
    %p62 = scmp.eq.s32.totalorder %s19, 1
    %p63 = por %p61, %p62
    %p65 = scmp.ne.s32.totalorder %s50, %s64
    %p66 = scmp.eq.s32.totalorder %s19, 0
    %p67 = por %p65, %p66
    %s69 = sadd.s32 %s68, 1
    %p72 = scmp.eq.s32.totalorder %s13, 1
    %p73 = scmp.ne.s32.totalorder %s68, %s70
    %p74 = scmp.eq.s32.totalorder %s13, 0
    %p75 = por %p73, %p74
    %p76 = scmp.ne.s32.totalorder %s68, %s70
    %p77 = scmp.eq.s32.totalorder %s18, 1
    %p78 = por %p76, %p77
    %p79 = scmp.ne.s32.totalorder %s70, %s71
    %p80 = scmp.eq.s32.totalorder %s18, 0
    %p81 = por %p79, %p80
    %p82 = scmp.ne.s32.totalorder %s70, %s71
    %p83 = scmp.eq.s32.totalorder %s19, 1
    %p84 = por %p82, %p83
    %p86 = scmp.ne.s32.totalorder %s71, %s85
    %p87 = scmp.eq.s32.totalorder %s19, 0
    %p88 = por %p86, %p87
    %s90 = sadd.s32 %s89, 1
    %p93 = scmp.eq.s32.totalorder %s13, 1
    %p94 = scmp.ne.s32.totalorder %s89, %s91
    %p95 = scmp.eq.s32.totalorder %s13, 0
    %p96 = por %p94, %p95
    %p97 = scmp.ne.s32.totalorder %s89, %s91
    %p98 = scmp.eq.s32.totalorder %s18, 1
    %p99 = por %p97, %p98
    %p100 = scmp.ne.s32.totalorder %s91, %s92
    %p101 = scmp.eq.s32.totalorder %s18, 0
    %p102 = por %p100, %p101
    %p103 = scmp.ne.s32.totalorder %s91, %s92
    %p104 = scmp.eq.s32.totalorder %s19, 1
    %p105 = por %p103, %p104
    %p107 = scmp.ne.s32.totalorder %s92, %s106
    %p108 = scmp.eq.s32.totalorder %s19, 0
    %p109 = por %p107, %p108
    %s111 = sadd.s32 %s110, 1
    %p114 = scmp.eq.s32.totalorder %s13, 1
    %p115 = scmp.ne.s32.totalorder %s110, %s112
    %p116 = scmp.eq.s32.totalorder %s13, 0
    %p117 = por %p115, %p116
    %p118 = scmp.ne.s32.totalorder %s110, %s112
    %p119 = scmp.eq.s32.totalorder %s18, 1
    %p120 = por %p118, %p119
    %p121 = scmp.ne.s32.totalorder %s112, %s113
    %p122 = scmp.eq.s32.totalorder %s18, 0
    %p123 = por %p121, %p122
    %p124 = scmp.ne.s32.totalorder %s112, %s113
    %p125 = scmp.eq.s32.totalorder %s19, 1
    %p126 = por %p124, %p125
    %p128 = scmp.ne.s32.totalorder %s113, %s127
    %p129 = scmp.eq.s32.totalorder %s19, 0
    %p130 = por %p128, %p129
    %s131 = ssub.s32 %s13, %s20
    %p132 = scmp.eq.s32.totalorder %s131, 0
    %s134 = sadd.s32 %s133, 1
    %s135 = scalar_select %p132, %s133, %s134
    %p138 = pneg %p132
    %p139 = scmp.eq.s32.totalorder %s13, 1
    %p140 = por %p138, %p139
    %p141 = scmp.ne.s32.totalorder %s133, %s136
    %p142 = scmp.eq.s32.totalorder %s13, 0
    %p143 = por %p141, %p142
    %p144 = scmp.ne.s32.totalorder %s133, %s136
    %p145 = scmp.eq.s32.totalorder %s18, 1
    %p146 = por %p144, %p145
    %p147 = scmp.ne.s32.totalorder %s136, %s137
    %p148 = scmp.eq.s32.totalorder %s18, 0
    %p149 = por %p147, %p148
    %p150 = scmp.ne.s32.totalorder %s136, %s137
    %p151 = scmp.eq.s32.totalorder %s19, 1
    %p152 = por %p150, %p151
    %p154 = scmp.ne.s32.totalorder %s137, %s153
    %p155 = scmp.eq.s32.totalorder %s19, 0
    %p156 = por %p154, %p155
    %p157 = scmp.le.s32.totalorder 1, %s13
    %p158 = scmp.lt.s32.totalorder %s13, 3
    %p159 = pnand %p157, %p158
    %p160 = pneg %p159
    // Predicated region
    $region9: #{discriminator_forward.7} parent=5 // pred_check
      _
    $region10: #{discriminator_forward.7} parent=5 // pred_check_branch
      %162 = sbr.rel (%p159) target = $region12
    $region11: #{discriminator_forward.7} parent=5 // pred_region
      %s163 = ssub.s32 %s13, 1
      // Predicated region
      $region13: #{discriminator_forward.7} parent=11 // pred_check
        %p164 = pneg %p60
      $region14: #{discriminator_forward.7} parent=11 // pred_check_branch
        %166 = sbr.rel (%p164) target = $region16
      $region15: #{discriminator_forward.7} parent=11 // pred_region
        _
      $region16: #{discriminator_forward.7} parent=11 // pred_fallthru
        _
      // Predicated region
      $region17: #{discriminator_forward.7} parent=11 // pred_check
        %p167 = pneg %p81
      $region18: #{discriminator_forward.7} parent=11 // pred_check_branch
        %169 = sbr.rel (%p167) target = $region20
      $region19: #{discriminator_forward.7} parent=11 // pred_region
        _
      $region20: #{discriminator_forward.7} parent=11 // pred_fallthru
        _
      // Predicated region
      $region21: #{discriminator_forward.7} parent=11 // pred_check
        %p170 = pneg %p102
      $region22: #{discriminator_forward.7} parent=11 // pred_check_branch
        %172 = sbr.rel (%p170) target = $region24
      $region23: #{discriminator_forward.7} parent=11 // pred_region
        _
      $region24: #{discriminator_forward.7} parent=11 // pred_fallthru
        _
      // Predicated region
      $region25: #{discriminator_forward.7} parent=11 // pred_check
        %p173 = pneg %p123
      $region26: #{discriminator_forward.7} parent=11 // pred_check_branch
        %175 = sbr.rel (%p173) target = $region28
      $region27: #{discriminator_forward.7} parent=11 // pred_region
        _
      $region28: #{discriminator_forward.7} parent=11 // pred_fallthru
        _
    $region12: #{discriminator_forward.7} parent=5 // pred_fallthru
      _
    %p176 = scmp.lt.s32.totalorder %s13, 2
    // Predicated region
    $region29: #{discriminator_forward.7} parent=5 // pred_check
      %p177 = pneg %p176
    $region30: #{discriminator_forward.7} parent=5 // pred_check_branch
      %179 = sbr.rel (%p177) target = $region32
    $region31: #{discriminator_forward.7} parent=5 // pred_region
      // Predicated region
      $region33: #{discriminator_forward.7} parent=31 // pred_check
        %p180 = pneg %p33
      $region34: #{discriminator_forward.7} parent=31 // pred_check_branch
        %182 = sbr.rel (%p180) target = $region36
      $region35: #{discriminator_forward.7} parent=31 // pred_region
        %p183 = scmp.lt.s32.totalorder %s13, 1
        %s184 = scalar_select %p183, %s13, 1
        %s185 = smul.addr %s184, 4
        %s186 = smul.addr %s185, 4
        %s187 = scalar_lea.vmem %s0, %s186
      $region36: #{discriminator_forward.7} parent=31 // pred_fallthru
        _
    $region32: #{discriminator_forward.7} parent=5 // pred_fallthru
      _
    %p188 = scmp.le.s32.totalorder 1, %s13
    %p189 = scmp.lt.s32.totalorder %s13, 3
    %p190 = pnand %p188, %p189
    %p191 = pneg %p190
    // Predicated region
    $region37: #{discriminator_forward.7} parent=5 // pred_check
      _
    $region38: #{discriminator_forward.7} parent=5 // pred_check_branch
      %193 = sbr.rel (%p190) target = $region40
    $region39: #{discriminator_forward.7} parent=5 // pred_region
      %s194 = ssub.s32 %s13, 1
      %p195 = scmp.lt.s32.totalorder %s18, 1
      %s196 = scalar_select %p195, %s18, 1
      %s197 = smul.addr %s196, 4
      %s198 = smul.addr %s197, 4
      %s199 = scalar_lea.vmem %s0, %s198
      %p200 = pneg %p39
      %p201 = pneg %p36
      %p202 = pneg %p60
      %p203 = pneg %p57
      %p204 = pneg %p81
      %p205 = pneg %p78
      %p206 = pneg %p102
      %p207 = pneg %p99
      %p208 = pneg %p123
      %p209 = pneg %p120
      %p210 = pneg %p149
      %p211 = pneg %p146
      %p212 = scmp.lt.s32.totalorder %s18, 1
      %s213 = scalar_select %p212, %s18, 1
      %s214 = smul.addr %s213, 8
      %s215 = scalar_lea.vmem %s5, %s214
      %p216 = scmp.lt.s32.totalorder %s18, 1
      %s217 = scalar_select %p216, %s18, 1
      %s218 = smul.addr %s217, 4
      %s219 = smul.addr %s218, 4
      %s220 = scalar_lea.vmem %s0, %s219
      %p221 = scmp.lt.s32.totalorder %s18, 1
      %s222 = scalar_select %p221, %s18, 1
      %s223 = smul.addr %s222, 8
      %s224 = scalar_lea.vmem %s5, %s223
      %v225 = vld [vmem:[%s220] sm:$0xff]
      %v226 = vld [vmem:[%s220 + $0x8] sm:$0xff]
      %v227 = vunpack.c.l.bf16 %v225
      %v228 = vunpack.c.h.bf16 %v225
      %v229 = vunpack.c.l.bf16 %v226
      %v230 = vunpack.c.h.bf16 %v226
      %v231 = vld [vmem:[%s1] sm:$0x3]
      %v233 = vlaneseq
      %v234 = vshrl.u32 %v233, 7
      %v235 = vsub.s32 0, %v234
      %v236 = vrot.slane %v231, %v235
      %v237 = vlaneseq
      %v238 = vshrl.u32 %v237, 7
      %v239 = vsub.s32 1, %v238
      %v240 = vrot.slane %v231, %v239
      %v243 = vmul.f32 %v227, %v236
      %v244 = vmul.f32 %v228, %v240
      %v245 = vmul.f32 %v229, %v236
      %v246 = vmul.f32 %v230, %v240
      %v247 = vld [vmem:[%s2] sm:$0x3]
      %v249 = vlaneseq
      %v250 = vshrl.u32 %v249, 7
      %v251 = vsub.s32 0, %v250
      %v252 = vrot.slane %v247, %v251
      %v253 = vlaneseq
      %v254 = vshrl.u32 %v253, 7
      %v255 = vsub.s32 1, %v254
      %v256 = vrot.slane %v247, %v255
      %v259 = vadd.f32 %v243, %v252
      %v260 = vadd.f32 %v244, %v256
      %v261 = vadd.f32 %v245, %v252
      %v262 = vadd.f32 %v246, %v256
      %v263 = vmul.f32 %v259, 0.2
      %v264 = vmul.f32 %v260, 0.2
      %v265 = vmul.f32 %v261, 0.2
      %v266 = vmul.f32 %v262, 0.2
      %v267 = vmax.f32 %v259, %v263
      %v268 = vmax.f32 %v260, %v264
      %v269 = vmax.f32 %v261, %v265
      %v270 = vmax.f32 %v262, %v266
      %v271 = vld [vmem:[%s3] sm:$0xff]
      %v272 = vld [vmem:[%s3 + $0x8] sm:$0xff]
      %v273 = vld [vmem:[%s3 + $0x10] sm:$0xff]
      %v274 = vld [vmem:[%s3 + $0x18] sm:$0xff]
      %v275 = vmul.f32 %v267, %v271
      %v276 = vmul.f32 %v268, %v272
      %v277 = vmul.f32 %v269, %v273
      %v278 = vmul.f32 %v270, %v274
      %v279 = vadd.f32 %v275, %v277
      %v280 = vrot.slane %v279, 4
      %v281 = vadd.f32 %v279, %v280
      %v282 = vrot.slane %v281, 2
      %v283 = vadd.f32 %v281, %v282
      %v284 = vrot.slane %v283, 1
      %v285 = vadd.f32 %v283, %v284
      %v286 = vadd.f32 %v276, %v278
      %v287 = vrot.slane %v286, 4
      %v288 = vadd.f32 %v286, %v287
      %v289 = vrot.slane %v288, 2
      %v290 = vadd.f32 %v288, %v289
      %v291 = vrot.slane %v290, 1
      %v292 = vadd.f32 %v290, %v291
      %v293 = vadd.f32 %v285, %v292
      %294 = vadd.xlane.f32.xlu0 %v293
      %v295 = vpop.xlane.xlu0 %294
      %v296 = vld [vmem:[#allocation2] sm:$0x1]
      %v297 = vadd.f32 %v295, %v296
      %v298 = vsub.f32 0.0, %v297
      %v299 = vmul.f32 %v298, 1.442695
      %v300 = vpow.pop %v299
      %v301 = vadd.f32 %v300, 1.0
      %v302 = vrcp.pop %v301
      %v303 = vmul.f32 1.0, %v302
      %v305 = vlaneseq
      %v306 = vshrl.u32 %v305, 7
      %v307 = vsub.s32 0, %v306
      %v308 = vrot.slane %v303, %v307
      %309 = vset.pattern.permute.xlu0 0
      %310 = vperm.xlu0 %309, %v308
      %v311 = vpop.permute.xlu0 %310
      %313 = vst [vmem:[%s224] sm:$0xff] %v311
      %p314 = scmp.lt.s32.totalorder %s18, 1
      %s315 = scalar_select %p314, %s18, 1
      %s316 = smul.addr %s315, 8
      %s317 = scalar_lea.vmem %s5, %s316
      // Predicated region
      $region41: #{discriminator_forward.7} parent=39 // pred_check
        %p318 = pneg %p146
      $region42: #{discriminator_forward.7} parent=39 // pred_check_branch
        %320 = sbr.rel (%p318) target = $region44
      $region43: #{discriminator_forward.7} parent=39 // pred_region
        _
      $region44: #{discriminator_forward.7} parent=39 // pred_fallthru
        _
    $region40: #{discriminator_forward.7} parent=5 // pred_fallthru
      _
    %p321 = scmp.le.s32.totalorder 2, %s13
    // Predicated region
    $region45: #{discriminator_forward.7} parent=5 // pred_check
      %p322 = pneg %p321
    $region46: #{discriminator_forward.7} parent=5 // pred_check_branch
      %324 = sbr.rel (%p322) target = $region48
    $region47: #{discriminator_forward.7} parent=5 // pred_region
      %s325 = ssub.s32 %s13, 2
      // Predicated region
      $region49: #{discriminator_forward.7} parent=47 // pred_check
        %p326 = pneg %p152
      $region50: #{discriminator_forward.7} parent=47 // pred_check_branch
        %328 = sbr.rel (%p326) target = $region52
      $region51: #{discriminator_forward.7} parent=47 // pred_region
        %p329 = scmp.lt.s32.totalorder %s19, 1
        %s330 = scalar_select %p329, %s19, 1
        %s331 = smul.addr %s330, 8
        %s332 = scalar_lea.vmem %s5, %s331
      $region52: #{discriminator_forward.7} parent=47 // pred_fallthru
        _
    $region48: #{discriminator_forward.7} parent=5 // pred_fallthru
      _
  $region6: #{discriminator_forward.7} parent=0 // loop_footer
    %s17 = sadd.s32 1, %s13
  $region7: #{discriminator_forward.7} parent=0 // loop_footer_branch
    %12 = sbr.rel target = $region3
  $region8: #{discriminator_forward.7} parent=0 // loop_exit
    _

// kernel: discriminator_forward.6
$region0: #{discriminator_forward.6}
  #allocation0 [shape = 'u32[]', space=smem, size = 0x4, offset = 0x4, fixed_abs, tag = 'smem constant byte address 0x4 - core index']
  #allocation1 [shape = 'u32[144,128]{1,0:T(1,128)}', space=vmem, size = 0x12000, scoped, tag = 'internal scratch']
  %s0 = inlined_call_operand.vmem [shape: bf16[2,5,5,512], index: 0, kind: input, shape index: {}]
  %s1 = inlined_call_operand.vmem [shape: bf16[2,2,512,256], index: 1, kind: input, shape index: {}]
  %s2 = inlined_call_operand.vmem [shape: f32[1,256], index: 2, kind: input, shape index: {}]
  %s3 = inlined_call_operand.vmem [shape: bf16[2,4,4,256], index: 3, kind: output, shape index: {0}]
  %s4 = inlined_call_operand.vmem [shape: f32[4,8,256], index: 4, kind: output, shape index: {1}]
  %s5 = inlined_call_operand.vmem [shape: f32[4,8,256], index: 5, kind: output, shape index: {2}]
  %6 = xla_tuple %s3, %s4, %s5
  %s7 = sld [smem:[#allocation0]]
  $region61: #{discriminator_forward.6} parent=0
    _
  %s9 = ssub.s32 1, %s7
  %s10 = scalar_select 0, %s9, %s7
  loop: start=0, step=1, limit=6
  $region2: #{discriminator_forward.6} parent=0 // loop_pre_header
    _
  $region3: #{discriminator_forward.6} parent=0 // loop_header
    %s12 = sphi 0, %s16
    %p13 = scmp.ge.s32.totalorder %s12, 6
    %s19 = sphi 0, %s31
    %s20 = sphi 0, %s27
    %s21 = sphi 0, %s19
    %s22 = sphi 0, %s20
    %s23 = sphi 0, %s21
    %s24 = sphi 0, %s22
    %s34 = sphi 0, %s36
    %s37 = sphi 0, %s34
    %s38 = sphi 0, %s37
    %s54 = sphi 0, %s38
    %s58 = sphi 0, %s58
    %s60 = sphi 0, %s58
    %s61 = sphi 0, %s60
    %s75 = sphi 0, %s61
    %s79 = sphi 0, %s79
    %s81 = sphi 0, %s79
    %s82 = sphi 0, %s81
    %s96 = sphi 0, %s82
    %s104 = sphi 0, %s106
    %s107 = sphi 0, %s104
    %s108 = sphi 0, %s107
    %s124 = sphi 0, %s108
    %s134 = sphi 0, %s136
    %s137 = sphi 0, %s134
    %s138 = sphi 0, %s137
    %s154 = sphi 0, %s138
    %s164 = sphi 0, %s166
    %s167 = sphi 0, %s164
    %s168 = sphi 0, %s167
    %s184 = sphi 0, %s168
  $region4: #{discriminator_forward.6} parent=0 // loop_header_branch
    %15 = sbr.rel (%p13) target = $region8
  $region5: #{discriminator_forward.6} parent=0 // loop_body
    %s17 = ssub.s32 %s12, 1
    %s18 = ssub.s32 %s12, 2
    %s25 = sadd.s32 1, %s20
    %p26 = scmp.ge.s32.totalorder %s25, 2
    %s27 = scalar_select %p26, 0, %s25
    %s28 = sadd.s32 1, %s19
    %s29 = scalar_select %p26, %s28, %s19
    %p30 = scmp.ge.s32.totalorder %s29, 2
    %s31 = scalar_select %p30, 0, %s29
    %s32 = ssub.s32 %s19, %s31
    %p33 = scmp.eq.s32.totalorder %s32, 0
    %s35 = sadd.s32 %s34, 1
    %s36 = scalar_select %p33, %s34, %s35
    %p39 = pneg %p33
    %p40 = scmp.eq.s32.totalorder %s12, 3
    %p41 = por %p39, %p40
    %p42 = scmp.ne.s32.totalorder %s34, %s37
    %p43 = scmp.eq.s32.totalorder %s12, 0
    %p44 = por %p42, %p43
    %p45 = scmp.ne.s32.totalorder %s34, %s37
    %p46 = scmp.eq.s32.totalorder %s17, 3
    %p47 = por %p45, %p46
    %p48 = scmp.ne.s32.totalorder %s37, %s38
    %p49 = scmp.eq.s32.totalorder %s17, 0
    %p50 = por %p48, %p49
    %p51 = scmp.ne.s32.totalorder %s37, %s38
    %p52 = scmp.eq.s32.totalorder %s18, 3
    %p53 = por %p51, %p52
    %p55 = scmp.ne.s32.totalorder %s38, %s54
    %p56 = scmp.eq.s32.totalorder %s18, 0
    %p57 = por %p55, %p56
    %s59 = sadd.s32 %s58, 1
    %p62 = scmp.eq.s32.totalorder %s12, 3
    %p63 = scmp.ne.s32.totalorder %s58, %s60
    %p64 = scmp.eq.s32.totalorder %s12, 0
    %p65 = por %p63, %p64
    %p66 = scmp.ne.s32.totalorder %s58, %s60
    %p67 = scmp.eq.s32.totalorder %s17, 3
    %p68 = por %p66, %p67
    %p69 = scmp.ne.s32.totalorder %s60, %s61
    %p70 = scmp.eq.s32.totalorder %s17, 0
    %p71 = por %p69, %p70
    %p72 = scmp.ne.s32.totalorder %s60, %s61
    %p73 = scmp.eq.s32.totalorder %s18, 3
    %p74 = por %p72, %p73
    %p76 = scmp.ne.s32.totalorder %s61, %s75
    %p77 = scmp.eq.s32.totalorder %s18, 0
    %p78 = por %p76, %p77
    %s80 = sadd.s32 %s79, 1
    %p83 = scmp.eq.s32.totalorder %s12, 3
    %p84 = scmp.ne.s32.totalorder %s79, %s81
    %p85 = scmp.eq.s32.totalorder %s12, 0
    %p86 = por %p84, %p85
    %p87 = scmp.ne.s32.totalorder %s79, %s81
    %p88 = scmp.eq.s32.totalorder %s17, 3
    %p89 = por %p87, %p88
    %p90 = scmp.ne.s32.totalorder %s81, %s82
    %p91 = scmp.eq.s32.totalorder %s17, 0
    %p92 = por %p90, %p91
    %p93 = scmp.ne.s32.totalorder %s81, %s82
    %p94 = scmp.eq.s32.totalorder %s18, 3
    %p95 = por %p93, %p94
    %p97 = scmp.ne.s32.totalorder %s82, %s96
    %p98 = scmp.eq.s32.totalorder %s18, 0
    %p99 = por %p97, %p98
    %s100 = ssub.s32 %s19, %s31
    %s101 = ssub.s32 %s20, %s27
    %s102 = sor.u32 %s100, %s101
    %p103 = scmp.eq.s32.totalorder %s102, 0
    %s105 = sadd.s32 %s104, 1
    %s106 = scalar_select %p103, %s104, %s105
    %p109 = pneg %p103
    %p110 = scmp.eq.s32.totalorder %s12, 3
    %p111 = por %p109, %p110
    %p112 = scmp.ne.s32.totalorder %s104, %s107
    %p113 = scmp.eq.s32.totalorder %s12, 0
    %p114 = por %p112, %p113
    %p115 = scmp.ne.s32.totalorder %s104, %s107
    %p116 = scmp.eq.s32.totalorder %s17, 3
    %p117 = por %p115, %p116
    %p118 = scmp.ne.s32.totalorder %s107, %s108
    %p119 = scmp.eq.s32.totalorder %s17, 0
    %p120 = por %p118, %p119
    %p121 = scmp.ne.s32.totalorder %s107, %s108
    %p122 = scmp.eq.s32.totalorder %s18, 3
    %p123 = por %p121, %p122
    %p125 = scmp.ne.s32.totalorder %s108, %s124
    %p126 = scmp.eq.s32.totalorder %s18, 0
    %p127 = por %p125, %p126
    %s128 = smul.u32 %s19, 2
    %s129 = sadd.s32 %s128, %s20
    %s130 = smul.u32 %s31, 2
    %s131 = sadd.s32 %s130, %s27
    %s132 = ssub.s32 %s129, %s131
    %p133 = scmp.eq.s32.totalorder %s132, 0
    %s135 = sadd.s32 %s134, 1
    %s136 = scalar_select %p133, %s134, %s135
    %p139 = pneg %p133
    %p140 = scmp.eq.s32.totalorder %s12, 3
    %p141 = por %p139, %p140
    %p142 = scmp.ne.s32.totalorder %s134, %s137
    %p143 = scmp.eq.s32.totalorder %s12, 0
    %p144 = por %p142, %p143
    %p145 = scmp.ne.s32.totalorder %s134, %s137
    %p146 = scmp.eq.s32.totalorder %s17, 3
    %p147 = por %p145, %p146
    %p148 = scmp.ne.s32.totalorder %s137, %s138
    %p149 = scmp.eq.s32.totalorder %s17, 0
    %p150 = por %p148, %p149
    %p151 = scmp.ne.s32.totalorder %s137, %s138
    %p152 = scmp.eq.s32.totalorder %s18, 3
    %p153 = por %p151, %p152
    %p155 = scmp.ne.s32.totalorder %s138, %s154
    %p156 = scmp.eq.s32.totalorder %s18, 0
    %p157 = por %p155, %p156
    %s158 = smul.u32 %s19, 2
    %s159 = sadd.s32 %s158, %s20
    %s160 = smul.u32 %s31, 2
    %s161 = sadd.s32 %s160, %s27
    %s162 = ssub.s32 %s159, %s161
    %p163 = scmp.eq.s32.totalorder %s162, 0
    %s165 = sadd.s32 %s164, 1
    %s166 = scalar_select %p163, %s164, %s165
    %p169 = pneg %p163
    %p170 = scmp.eq.s32.totalorder %s12, 3
    %p171 = por %p169, %p170
    %p172 = scmp.ne.s32.totalorder %s164, %s167
    %p173 = scmp.eq.s32.totalorder %s12, 0
    %p174 = por %p172, %p173
    %p175 = scmp.ne.s32.totalorder %s164, %s167
    %p176 = scmp.eq.s32.totalorder %s17, 3
    %p177 = por %p175, %p176
    %p178 = scmp.ne.s32.totalorder %s167, %s168
    %p179 = scmp.eq.s32.totalorder %s17, 0
    %p180 = por %p178, %p179
    %p181 = scmp.ne.s32.totalorder %s167, %s168
    %p182 = scmp.eq.s32.totalorder %s18, 3
    %p183 = por %p181, %p182
    %p185 = scmp.ne.s32.totalorder %s168, %s184
    %p186 = scmp.eq.s32.totalorder %s18, 0
    %p187 = por %p185, %p186
    %p188 = scmp.le.s32.totalorder 1, %s12
    %p189 = scmp.lt.s32.totalorder %s12, 5
    %p190 = pnand %p188, %p189
    %p191 = pneg %p190
    // Predicated region
    $region9: #{discriminator_forward.6} parent=5 // pred_check
      _
    $region10: #{discriminator_forward.6} parent=5 // pred_check_branch
      %193 = sbr.rel (%p190) target = $region12
    $region11: #{discriminator_forward.6} parent=5 // pred_region
      %s194 = ssub.s32 %s12, 1
      // Predicated region
      $region13: #{discriminator_forward.6} parent=11 // pred_check
        %p195 = pneg %p71
      $region14: #{discriminator_forward.6} parent=11 // pred_check_branch
        %197 = sbr.rel (%p195) target = $region16
      $region15: #{discriminator_forward.6} parent=11 // pred_region
        _
      $region16: #{discriminator_forward.6} parent=11 // pred_fallthru
        _
      // Predicated region
      $region17: #{discriminator_forward.6} parent=11 // pred_check
        %p198 = pneg %p92
      $region18: #{discriminator_forward.6} parent=11 // pred_check_branch
        %200 = sbr.rel (%p198) target = $region20
      $region19: #{discriminator_forward.6} parent=11 // pred_region
        _
      $region20: #{discriminator_forward.6} parent=11 // pred_fallthru
        _
    $region12: #{discriminator_forward.6} parent=5 // pred_fallthru
      _
    %p201 = scmp.lt.s32.totalorder %s12, 4
    // Predicated region
    $region21: #{discriminator_forward.6} parent=5 // pred_check
      %p202 = pneg %p201
    $region22: #{discriminator_forward.6} parent=5 // pred_check_branch
      %204 = sbr.rel (%p202) target = $region24
    $region23: #{discriminator_forward.6} parent=5 // pred_region
      // Predicated region
      $region25: #{discriminator_forward.6} parent=23 // pred_check
        %p205 = pneg %p44
      $region26: #{discriminator_forward.6} parent=23 // pred_check_branch
        %207 = sbr.rel (%p205) target = $region28
      $region27: #{discriminator_forward.6} parent=23 // pred_region
        %p208 = scmp.lt.s32.totalorder %s19, 1
        %s209 = scalar_select %p208, %s19, 1
        %s210 = smul.addr %s209, 20
        %s211 = smul.addr %s210, 4
        %s212 = scalar_lea.vmem %s0, %s211
      $region28: #{discriminator_forward.6} parent=23 // pred_fallthru
        _
    $region24: #{discriminator_forward.6} parent=5 // pred_fallthru
      _
    %p213 = scmp.le.s32.totalorder 1, %s12
    %p214 = scmp.lt.s32.totalorder %s12, 5
    %p215 = pnand %p213, %p214
    %p216 = pneg %p215
    // Predicated region
    $region29: #{discriminator_forward.6} parent=5 // pred_check
      _
    $region30: #{discriminator_forward.6} parent=5 // pred_check_branch
      %218 = sbr.rel (%p215) target = $region32
    $region31: #{discriminator_forward.6} parent=5 // pred_region
      %s219 = ssub.s32 %s12, 1
      %p220 = scmp.lt.s32.totalorder %s21, 1
      %s221 = scalar_select %p220, %s21, 1
      %s222 = smul.addr %s221, 20
      %s223 = smul.addr %s222, 4
      %s224 = scalar_lea.vmem %s0, %s223
      %p225 = pneg %p50
      %p226 = pneg %p47
      %p227 = pneg %p71
      %p228 = pneg %p68
      %p229 = pneg %p92
      %p230 = pneg %p89
      %p231 = pneg %p120
      %p232 = pneg %p117
      %s233 = smul.u32 2, %s22
      %p234 = scmp.lt.s32.totalorder %s21, 1
      %s235 = scalar_select %p234, %s21, 1
      %p236 = scmp.lt.s32.totalorder %s233, 3
      %s237 = scalar_select %p236, %s233, 3
      %s238 = smul.addr %s237, 2
      %s239 = smul.addr %s235, 8
      %s240 = sadd.s32 %s238, %s239
      %s241 = smul.addr %s240, 2
      %s242 = scalar_lea.vmem %s3, %s241
      %p243 = pneg %p150
      %p244 = pneg %p147
      %s245 = smul.u32 %s21, 2
      %s246 = sadd.s32 %s245, %s22
      %p247 = scmp.lt.s32.totalorder %s246, 3
      %s248 = scalar_select %p247, %s246, 3
      %s249 = smul.addr %s248, 2
      %s250 = smul.addr %s249, 8
      %s251 = scalar_lea.vmem %s4, %s250
      %p252 = pneg %p180
      %p253 = pneg %p177
      %s254 = smul.u32 %s21, 2
      %s255 = sadd.s32 %s254, %s22
      %p256 = scmp.lt.s32.totalorder %s255, 3
      %s257 = scalar_select %p256, %s255, 3
      %s258 = smul.addr %s257, 2
      %s259 = smul.addr %s258, 8
      %s260 = scalar_lea.vmem %s5, %s259
      %p261 = scmp.lt.s32.totalorder %s21, 1
      %s262 = scalar_select %p261, %s21, 1
      %s263 = smul.addr %s262, 20
      %s264 = smul.addr %s263, 4
      %s265 = scalar_lea.vmem %s0, %s264
      %s266 = smul.u32 2, %s22
      %p267 = scmp.lt.s32.totalorder %s21, 1
      %s268 = scalar_select %p267, %s21, 1
      %p269 = scmp.lt.s32.totalorder %s266, 3
      %s270 = scalar_select %p269, %s266, 3
      %s271 = smul.addr %s270, 2
      %s272 = smul.addr %s268, 8
      %s273 = sadd.s32 %s271, %s272
      %s274 = smul.addr %s273, 2
      %s275 = scalar_lea.vmem %s3, %s274
      %s276 = smul.u32 2, %s22
      %s277 = smul.u32 %s21, 2
      %s278 = sadd.s32 %s277, %s22
      %p279 = scmp.lt.s32.totalorder %s278, 3
      %s280 = scalar_select %p279, %s278, 3
      %s281 = smul.addr %s280, 2
      %s282 = smul.addr %s281, 8
      %s283 = scalar_lea.vmem %s4, %s282
      %s284 = smul.u32 %s21, 2
      %s285 = sadd.s32 %s284, %s22
      %s286 = smul.u32 %s21, 2
      %s287 = sadd.s32 %s286, %s22
      %p288 = scmp.lt.s32.totalorder %s287, 3
      %s289 = scalar_select %p288, %s287, 3
      %s290 = smul.addr %s289, 2
      %s291 = smul.addr %s290, 8
      %s292 = scalar_lea.vmem %s5, %s291
      %s293 = smul.u32 %s21, 2
      %s294 = sadd.s32 %s293, %s22
      %s295 = smul.u32 %s22, 2
      %v296 = vld [vmem:[%s2] sm:$0x3]
      %s297 = smul.u32 %s295, 4
      %s298 = smul.addr %s297, 4
      %s299 = scalar_lea.vmem %s265, %s298
      %v300 = vld [vmem:[%s299] sm:$0x33]
      %v301 = vld [vmem:[%s299 + $0x8] sm:$0x33]
      %v302 = vld [vmem:[%s299 + $0x10] sm:$0x33]
      %v303 = vld [vmem:[%s299 + $0x18] sm:$0x33]
      %v304 = vld [vmem:[%s1] sm:$0xff]
      %v305 = vld [vmem:[%s1 + $0x8] sm:$0xff]
      %v306 = vld [vmem:[%s1 + $0x10] sm:$0xff]
      %v307 = vld [vmem:[%s1 + $0x18] sm:$0xff]
      %v308 = vld [vmem:[%s1 + $0x20] sm:$0xff]
      %v309 = vld [vmem:[%s1 + $0x28] sm:$0xff]
      %v310 = vld [vmem:[%s1 + $0x30] sm:$0xff]
      %v311 = vld [vmem:[%s1 + $0x38] sm:$0xff]
      %v312 = vld [vmem:[%s1 + $0x40] sm:$0xff]
      %v313 = vld [vmem:[%s1 + $0x48] sm:$0xff]
      %v314 = vld [vmem:[%s1 + $0x50] sm:$0xff]
      %v315 = vld [vmem:[%s1 + $0x58] sm:$0xff]
      %v316 = vld [vmem:[%s1 + $0x60] sm:$0xff]
      %v317 = vld [vmem:[%s1 + $0x68] sm:$0xff]
      %v318 = vld [vmem:[%s1 + $0x70] sm:$0xff]
      %v319 = vld [vmem:[%s1 + $0x78] sm:$0xff]
      %v320 = vld [vmem:[%s1 + $0x80] sm:$0xff]
      %v321 = vld [vmem:[%s1 + $0x88] sm:$0xff]
      %v322 = vld [vmem:[%s1 + $0x90] sm:$0xff]
      %v323 = vld [vmem:[%s1 + $0x98] sm:$0xff]
      %v324 = vld [vmem:[%s1 + $0xa0] sm:$0xff]
      %v325 = vld [vmem:[%s1 + $0xa8] sm:$0xff]
      %v326 = vld [vmem:[%s1 + $0xb0] sm:$0xff]
      %v327 = vld [vmem:[%s1 + $0xb8] sm:$0xff]
      %v328 = vld [vmem:[%s1 + $0xc0] sm:$0xff]
      %v329 = vld [vmem:[%s1 + $0xc8] sm:$0xff]
      %v330 = vld [vmem:[%s1 + $0xd0] sm:$0xff]
      %v331 = vld [vmem:[%s1 + $0xd8] sm:$0xff]
      %v332 = vld [vmem:[%s1 + $0xe0] sm:$0xff]
      %v333 = vld [vmem:[%s1 + $0xe8] sm:$0xff]
      %v334 = vld [vmem:[%s1 + $0xf0] sm:$0xff]
      %v335 = vld [vmem:[%s1 + $0xf8] sm:$0xff]
      %v336 = vld [vmem:[%s1 + $0x100] sm:$0xff]
      %v337 = vld [vmem:[%s1 + $0x108] sm:$0xff]
      %v338 = vld [vmem:[%s1 + $0x110] sm:$0xff]
      %v339 = vld [vmem:[%s1 + $0x118] sm:$0xff]
      %v340 = vld [vmem:[%s1 + $0x120] sm:$0xff]
      %v341 = vld [vmem:[%s1 + $0x128] sm:$0xff]
      %v342 = vld [vmem:[%s1 + $0x130] sm:$0xff]
      %v343 = vld [vmem:[%s1 + $0x138] sm:$0xff]
      %v344 = vld [vmem:[%s1 + $0x140] sm:$0xff]
      %v345 = vld [vmem:[%s1 + $0x148] sm:$0xff]
      %v346 = vld [vmem:[%s1 + $0x150] sm:$0xff]
      %v347 = vld [vmem:[%s1 + $0x158] sm:$0xff]
      %v348 = vld [vmem:[%s1 + $0x160] sm:$0xff]
      %v349 = vld [vmem:[%s1 + $0x168] sm:$0xff]
      %v350 = vld [vmem:[%s1 + $0x170] sm:$0xff]
      %v351 = vld [vmem:[%s1 + $0x178] sm:$0xff]
      %v352 = vld [vmem:[%s1 + $0x180] sm:$0xff]
      %v353 = vld [vmem:[%s1 + $0x188] sm:$0xff]
      %v354 = vld [vmem:[%s1 + $0x190] sm:$0xff]
      %v355 = vld [vmem:[%s1 + $0x198] sm:$0xff]
      %v356 = vld [vmem:[%s1 + $0x1a0] sm:$0xff]
      %v357 = vld [vmem:[%s1 + $0x1a8] sm:$0xff]
      %v358 = vld [vmem:[%s1 + $0x1b0] sm:$0xff]
      %v359 = vld [vmem:[%s1 + $0x1b8] sm:$0xff]
      %v360 = vld [vmem:[%s1 + $0x1c0] sm:$0xff]
      %v361 = vld [vmem:[%s1 + $0x1c8] sm:$0xff]
      %v362 = vld [vmem:[%s1 + $0x1d0] sm:$0xff]
      %v363 = vld [vmem:[%s1 + $0x1d8] sm:$0xff]
      %v364 = vld [vmem:[%s1 + $0x1e0] sm:$0xff]
      %v365 = vld [vmem:[%s1 + $0x1e8] sm:$0xff]
      %v366 = vld [vmem:[%s1 + $0x1f0] sm:$0xff]
      %v367 = vld [vmem:[%s1 + $0x1f8] sm:$0xff]
      %v368 = vld [vmem:[%s299] sm:$0x77]
      %v369 = vld [vmem:[%s299 + $0x8] sm:$0x77]
      %v370 = vld [vmem:[%s299 + $0x10] sm:$0x77]
      %v371 = vld [vmem:[%s299 + $0x18] sm:$0x77]
      %s372 = scalar_lea.vmem %s1, 512
      %v373 = vld [vmem:[%s372] sm:$0xff]
      %v374 = vld [vmem:[%s372 + $0x8] sm:$0xff]
      %v375 = vld [vmem:[%s372 + $0x10] sm:$0xff]
      %v376 = vld [vmem:[%s372 + $0x18] sm:$0xff]
      %v377 = vld [vmem:[%s372 + $0x20] sm:$0xff]
      %v378 = vld [vmem:[%s372 + $0x28] sm:$0xff]
      %v379 = vld [vmem:[%s372 + $0x30] sm:$0xff]
      %v380 = vld [vmem:[%s372 + $0x38] sm:$0xff]
      %v381 = vld [vmem:[%s372 + $0x40] sm:$0xff]
      %v382 = vld [vmem:[%s372 + $0x48] sm:$0xff]
      %v383 = vld [vmem:[%s372 + $0x50] sm:$0xff]
      %v384 = vld [vmem:[%s372 + $0x58] sm:$0xff]
      %v385 = vld [vmem:[%s372 + $0x60] sm:$0xff]
      %v386 = vld [vmem:[%s372 + $0x68] sm:$0xff]
      %v387 = vld [vmem:[%s372 + $0x70] sm:$0xff]
      %v388 = vld [vmem:[%s372 + $0x78] sm:$0xff]
      %v389 = vld [vmem:[%s372 + $0x80] sm:$0xff]
      %v390 = vld [vmem:[%s372 + $0x88] sm:$0xff]
      %v391 = vld [vmem:[%s372 + $0x90] sm:$0xff]
      %v392 = vld [vmem:[%s372 + $0x98] sm:$0xff]
      %v393 = vld [vmem:[%s372 + $0xa0] sm:$0xff]
      %v394 = vld [vmem:[%s372 + $0xa8] sm:$0xff]
      %v395 = vld [vmem:[%s372 + $0xb0] sm:$0xff]
      %v396 = vld [vmem:[%s372 + $0xb8] sm:$0xff]
      %v397 = vld [vmem:[%s372 + $0xc0] sm:$0xff]
      %v398 = vld [vmem:[%s372 + $0xc8] sm:$0xff]
      %v399 = vld [vmem:[%s372 + $0xd0] sm:$0xff]
      %v400 = vld [vmem:[%s372 + $0xd8] sm:$0xff]
      %v401 = vld [vmem:[%s372 + $0xe0] sm:$0xff]
      %v402 = vld [vmem:[%s372 + $0xe8] sm:$0xff]
      %v403 = vld [vmem:[%s372 + $0xf0] sm:$0xff]
      %v404 = vld [vmem:[%s372 + $0xf8] sm:$0xff]
      %v405 = vld [vmem:[%s372 + $0x100] sm:$0xff]
      %v406 = vld [vmem:[%s372 + $0x108] sm:$0xff]
      %v407 = vld [vmem:[%s372 + $0x110] sm:$0xff]
      %v408 = vld [vmem:[%s372 + $0x118] sm:$0xff]
      %v409 = vld [vmem:[%s372 + $0x120] sm:$0xff]
      %v410 = vld [vmem:[%s372 + $0x128] sm:$0xff]
      %v411 = vld [vmem:[%s372 + $0x130] sm:$0xff]
      %v412 = vld [vmem:[%s372 + $0x138] sm:$0xff]
      %v413 = vld [vmem:[%s372 + $0x140] sm:$0xff]
      %v414 = vld [vmem:[%s372 + $0x148] sm:$0xff]
      %v415 = vld [vmem:[%s372 + $0x150] sm:$0xff]
      %v416 = vld [vmem:[%s372 + $0x158] sm:$0xff]
      %v417 = vld [vmem:[%s372 + $0x160] sm:$0xff]
      %v418 = vld [vmem:[%s372 + $0x168] sm:$0xff]
      %v419 = vld [vmem:[%s372 + $0x170] sm:$0xff]
      %v420 = vld [vmem:[%s372 + $0x178] sm:$0xff]
      %v421 = vld [vmem:[%s372 + $0x180] sm:$0xff]
      %v422 = vld [vmem:[%s372 + $0x188] sm:$0xff]
      %v423 = vld [vmem:[%s372 + $0x190] sm:$0xff]
      %v424 = vld [vmem:[%s372 + $0x198] sm:$0xff]
      %v425 = vld [vmem:[%s372 + $0x1a0] sm:$0xff]
      %v426 = vld [vmem:[%s372 + $0x1a8] sm:$0xff]
      %v427 = vld [vmem:[%s372 + $0x1b0] sm:$0xff]
      %v428 = vld [vmem:[%s372 + $0x1b8] sm:$0xff]
      %v429 = vld [vmem:[%s372 + $0x1c0] sm:$0xff]
      %v430 = vld [vmem:[%s372 + $0x1c8] sm:$0xff]
      %v431 = vld [vmem:[%s372 + $0x1d0] sm:$0xff]
      %v432 = vld [vmem:[%s372 + $0x1d8] sm:$0xff]
      %v433 = vld [vmem:[%s372 + $0x1e0] sm:$0xff]
      %v434 = vld [vmem:[%s372 + $0x1e8] sm:$0xff]
      %v435 = vld [vmem:[%s372 + $0x1f0] sm:$0xff]
      %v436 = vld [vmem:[%s372 + $0x1f8] sm:$0xff]
      %v439 = vunpack.c.l.b16 %v368
      %v440 = vunpack.c.h.b16 %v368
      %v441 = vunpack.c.l.b16 %v369
      %v442 = vunpack.c.h.b16 %v369
      %v443 = vpack.c.b16 %v439, %v439
      %v444 = vpack.c.b16 %v440, %v440
      %v445 = vpack.c.b16 %v441, %v441
      %v446 = vpack.c.b16 %v442, %v442
      %v448 = vshrl.u32 %v443, 16
      %v450 = vshll.u32 %v443, 16
      %v452 = vrot.slane %v450, 1
      %v453 = vor.u32 %v448, %v452
      %v455 = vshrl.u32 %v444, 16
      %v457 = vshll.u32 %v444, 16
      %v459 = vrot.slane %v457, 1
      %v460 = vor.u32 %v455, %v459
      %v462 = vshrl.u32 %v445, 16
      %v464 = vshll.u32 %v445, 16
      %v466 = vrot.slane %v464, 1
      %v467 = vor.u32 %v462, %v466
      %v469 = vshrl.u32 %v446, 16
      %v471 = vshll.u32 %v446, 16
      %v473 = vrot.slane %v471, 1
      %v474 = vor.u32 %v469, %v473
      %v543 = vunpack.c.l.b16 %v373
      %v544 = vunpack.c.h.b16 %v373
      %v545 = vunpack.c.l.b16 %v374
      %v546 = vunpack.c.h.b16 %v374
      %v547 = vunpack.c.l.b16 %v375
      %v548 = vunpack.c.h.b16 %v375
      %v549 = vunpack.c.l.b16 %v376
      %v550 = vunpack.c.h.b16 %v376
      %v551 = vunpack.c.l.b16 %v377
      %v552 = vunpack.c.h.b16 %v377
      %v553 = vunpack.c.l.b16 %v378
      %v554 = vunpack.c.h.b16 %v378
      %v555 = vunpack.c.l.b16 %v379
      %v556 = vunpack.c.h.b16 %v379
      %v557 = vunpack.c.l.b16 %v380
      %v558 = vunpack.c.h.b16 %v380
      %v559 = vunpack.c.l.b16 %v381
      %v560 = vunpack.c.h.b16 %v381
      %v561 = vunpack.c.l.b16 %v382
      %v562 = vunpack.c.h.b16 %v382
      %v563 = vunpack.c.l.b16 %v383
      %v564 = vunpack.c.h.b16 %v383
      %v565 = vunpack.c.l.b16 %v384
      %v566 = vunpack.c.h.b16 %v384
      %v567 = vunpack.c.l.b16 %v385
      %v568 = vunpack.c.h.b16 %v385
      %v569 = vunpack.c.l.b16 %v386
      %v570 = vunpack.c.h.b16 %v386
      %v571 = vunpack.c.l.b16 %v387
      %v572 = vunpack.c.h.b16 %v387
      %v573 = vunpack.c.l.b16 %v388
      %v574 = vunpack.c.h.b16 %v388
      %v575 = vunpack.c.l.b16 %v389
      %v576 = vunpack.c.h.b16 %v389
      %v577 = vunpack.c.l.b16 %v390
      %v578 = vunpack.c.h.b16 %v390
      %v579 = vunpack.c.l.b16 %v391
      %v580 = vunpack.c.h.b16 %v391
      %v581 = vunpack.c.l.b16 %v392
      %v582 = vunpack.c.h.b16 %v392
      %v583 = vunpack.c.l.b16 %v393
      %v584 = vunpack.c.h.b16 %v393
      %v585 = vunpack.c.l.b16 %v394
      %v586 = vunpack.c.h.b16 %v394
      %v587 = vunpack.c.l.b16 %v395
      %v588 = vunpack.c.h.b16 %v395
      %v589 = vunpack.c.l.b16 %v396
      %v590 = vunpack.c.h.b16 %v396
      %v591 = vunpack.c.l.b16 %v397
      %v592 = vunpack.c.h.b16 %v397
      %v593 = vunpack.c.l.b16 %v398
      %v594 = vunpack.c.h.b16 %v398
      %v595 = vunpack.c.l.b16 %v399
      %v596 = vunpack.c.h.b16 %v399
      %v597 = vunpack.c.l.b16 %v400
      %v598 = vunpack.c.h.b16 %v400
      %v599 = vunpack.c.l.b16 %v401
      %v600 = vunpack.c.h.b16 %v401
      %v601 = vunpack.c.l.b16 %v402
      %v602 = vunpack.c.h.b16 %v402
      %v603 = vunpack.c.l.b16 %v403
      %v604 = vunpack.c.h.b16 %v403
      %v605 = vunpack.c.l.b16 %v404
      %v606 = vunpack.c.h.b16 %v404
      %v607 = vunpack.c.l.b16 %v405
      %v608 = vunpack.c.h.b16 %v405
      %v609 = vunpack.c.l.b16 %v406
      %v610 = vunpack.c.h.b16 %v406
      %v611 = vunpack.c.l.b16 %v407
      %v612 = vunpack.c.h.b16 %v407
      %v613 = vunpack.c.l.b16 %v408
      %v614 = vunpack.c.h.b16 %v408
      %v615 = vunpack.c.l.b16 %v409
      %v616 = vunpack.c.h.b16 %v409
      %v617 = vunpack.c.l.b16 %v410
      %v618 = vunpack.c.h.b16 %v410
      %v619 = vunpack.c.l.b16 %v411
      %v620 = vunpack.c.h.b16 %v411
      %v621 = vunpack.c.l.b16 %v412
      %v622 = vunpack.c.h.b16 %v412
      %v623 = vunpack.c.l.b16 %v413
      %v624 = vunpack.c.h.b16 %v413
      %v625 = vunpack.c.l.b16 %v414
      %v626 = vunpack.c.h.b16 %v414
      %v627 = vunpack.c.l.b16 %v415
      %v628 = vunpack.c.h.b16 %v415
      %v629 = vunpack.c.l.b16 %v416
      %v630 = vunpack.c.h.b16 %v416
      %v631 = vunpack.c.l.b16 %v417
      %v632 = vunpack.c.h.b16 %v417
      %v633 = vunpack.c.l.b16 %v418
      %v634 = vunpack.c.h.b16 %v418
      %v635 = vunpack.c.l.b16 %v419
      %v636 = vunpack.c.h.b16 %v419
      %v637 = vunpack.c.l.b16 %v420
      %v638 = vunpack.c.h.b16 %v420
      %v639 = vunpack.c.l.b16 %v421
      %v640 = vunpack.c.h.b16 %v421
      %v641 = vunpack.c.l.b16 %v422
      %v642 = vunpack.c.h.b16 %v422
      %v643 = vunpack.c.l.b16 %v423
      %v644 = vunpack.c.h.b16 %v423
      %v645 = vunpack.c.l.b16 %v424
      %v646 = vunpack.c.h.b16 %v424
      %v647 = vunpack.c.l.b16 %v425
      %v648 = vunpack.c.h.b16 %v425
      %v649 = vunpack.c.l.b16 %v426
      %v650 = vunpack.c.h.b16 %v426
      %v651 = vunpack.c.l.b16 %v427
      %v652 = vunpack.c.h.b16 %v427
      %v653 = vunpack.c.l.b16 %v428
      %v654 = vunpack.c.h.b16 %v428
      %v655 = vunpack.c.l.b16 %v429
      %v656 = vunpack.c.h.b16 %v429
      %v657 = vunpack.c.l.b16 %v430
      %v658 = vunpack.c.h.b16 %v430
      %v659 = vunpack.c.l.b16 %v431
      %v660 = vunpack.c.h.b16 %v431
      %v661 = vunpack.c.l.b16 %v432
      %v662 = vunpack.c.h.b16 %v432
      %v663 = vunpack.c.l.b16 %v433
      %v664 = vunpack.c.h.b16 %v433
      %v665 = vunpack.c.l.b16 %v434
      %v666 = vunpack.c.h.b16 %v434
      %v667 = vunpack.c.l.b16 %v435
      %v668 = vunpack.c.h.b16 %v435
      %v669 = vunpack.c.l.b16 %v436
      %v670 = vunpack.c.h.b16 %v436
      %v671 = vpack.c.b16 %v545, %v543
      %v672 = vpack.c.b16 %v546, %v544
      %v673 = vpack.c.b16 %v549, %v547
      %v674 = vpack.c.b16 %v550, %v548
      %v675 = vpack.c.b16 %v553, %v551
      %v676 = vpack.c.b16 %v554, %v552
      %v677 = vpack.c.b16 %v557, %v555
      %v678 = vpack.c.b16 %v558, %v556
      %v679 = vpack.c.b16 %v561, %v559
      %v680 = vpack.c.b16 %v562, %v560
      %v681 = vpack.c.b16 %v565, %v563
      %v682 = vpack.c.b16 %v566, %v564
      %v683 = vpack.c.b16 %v569, %v567
      %v684 = vpack.c.b16 %v570, %v568
      %v685 = vpack.c.b16 %v573, %v571
      %v686 = vpack.c.b16 %v574, %v572
      %v687 = vpack.c.b16 %v577, %v575
      %v688 = vpack.c.b16 %v578, %v576
      %v689 = vpack.c.b16 %v581, %v579
      %v690 = vpack.c.b16 %v582, %v580
      %v691 = vpack.c.b16 %v585, %v583
      %v692 = vpack.c.b16 %v586, %v584
      %v693 = vpack.c.b16 %v589, %v587
      %v694 = vpack.c.b16 %v590, %v588
      %v695 = vpack.c.b16 %v593, %v591
      %v696 = vpack.c.b16 %v594, %v592
      %v697 = vpack.c.b16 %v597, %v595
      %v698 = vpack.c.b16 %v598, %v596
      %v699 = vpack.c.b16 %v601, %v599
      %v700 = vpack.c.b16 %v602, %v600
      %v701 = vpack.c.b16 %v605, %v603
      %v702 = vpack.c.b16 %v606, %v604
      %v703 = vpack.c.b16 %v609, %v607
      %v704 = vpack.c.b16 %v610, %v608
      %v705 = vpack.c.b16 %v613, %v611
      %v706 = vpack.c.b16 %v614, %v612
      %v707 = vpack.c.b16 %v617, %v615
      %v708 = vpack.c.b16 %v618, %v616
      %v709 = vpack.c.b16 %v621, %v619
      %v710 = vpack.c.b16 %v622, %v620
      %v711 = vpack.c.b16 %v625, %v623
      %v712 = vpack.c.b16 %v626, %v624
      %v713 = vpack.c.b16 %v629, %v627
      %v714 = vpack.c.b16 %v630, %v628
      %v715 = vpack.c.b16 %v633, %v631
      %v716 = vpack.c.b16 %v634, %v632
      %v717 = vpack.c.b16 %v637, %v635
      %v718 = vpack.c.b16 %v638, %v636
      %v719 = vpack.c.b16 %v641, %v639
      %v720 = vpack.c.b16 %v642, %v640
      %v721 = vpack.c.b16 %v645, %v643
      %v722 = vpack.c.b16 %v646, %v644
      %v723 = vpack.c.b16 %v649, %v647
      %v724 = vpack.c.b16 %v650, %v648
      %v725 = vpack.c.b16 %v653, %v651
      %v726 = vpack.c.b16 %v654, %v652
      %v727 = vpack.c.b16 %v657, %v655
      %v728 = vpack.c.b16 %v658, %v656
      %v729 = vpack.c.b16 %v661, %v659
      %v730 = vpack.c.b16 %v662, %v660
      %v731 = vpack.c.b16 %v665, %v663
      %v732 = vpack.c.b16 %v666, %v664
      %v733 = vpack.c.b16 %v669, %v667
      %v734 = vpack.c.b16 %v670, %v668
      %799 = vmatprep.subr.bf16.mxu0 %v672
      %800 = vmatpush1.bf16.msra.mxu0 %v671
      %801 = vmatprep.subr.bf16.mxu0 %v674
      %802 = vmatpush1.bf16.msra.mxu0 %v673
      %803 = vmatprep.subr.bf16.mxu0 %v676
      %804 = vmatpush1.bf16.msra.mxu0 %v675
      %805 = vmatprep.subr.bf16.mxu0 %v678
      %806 = vmatpush1.bf16.msra.mxu0 %v677
      %807 = vmatprep.subr.bf16.mxu0 %v680
      %808 = vmatpush1.bf16.msra.mxu0 %v679
      %809 = vmatprep.subr.bf16.mxu0 %v682
      %810 = vmatpush1.bf16.msra.mxu0 %v681
      %811 = vmatprep.subr.bf16.mxu0 %v684
      %812 = vmatpush1.bf16.msra.mxu0 %v683
      %813 = vmatprep.subr.bf16.mxu0 %v686
      %814 = vmatpush1.bf16.msra.mxu0 %v685
      %815 = vmatprep.subr.bf16.mxu0 %v688
      %816 = vmatpush1.bf16.msra.mxu0 %v687
      %817 = vmatprep.subr.bf16.mxu0 %v690
      %818 = vmatpush1.bf16.msra.mxu0 %v689
      %819 = vmatprep.subr.bf16.mxu0 %v692
      %820 = vmatpush1.bf16.msra.mxu0 %v691
      %821 = vmatprep.subr.bf16.mxu0 %v694
      %822 = vmatpush1.bf16.msra.mxu0 %v693
      %823 = vmatprep.subr.bf16.mxu0 %v696
      %824 = vmatpush1.bf16.msra.mxu0 %v695
      %825 = vmatprep.subr.bf16.mxu0 %v698
      %826 = vmatpush1.bf16.msra.mxu0 %v697
      %827 = vmatprep.subr.bf16.mxu0 %v700
      %828 = vmatpush1.bf16.msra.mxu0 %v699
      %829 = vmatprep.subr.bf16.mxu0 %v702
      %830 = vmatpush1.bf16.msra.mxu0 %v701
      %831 = vmatprep.mubr.bf16.mxu0 %v460
      %832 = vmatmul.mubr.bf16.gmra.mrb[0].mxu0 %v453
      %v833 = vpop.f32.mrb[0].mxu0
      %v834 = vadd.f32 0.0, %v833
      %v835 = vpop.f32.mrb[0].mxu0
      %v836 = vadd.f32 0.0, %v835
      %v837 = vpop.f32.mrb[0].mxu0
      %v838 = vpop.f32.mrb[0].mxu0
      %839 = vdwg.mxu0
      %840 = vmatprep.subr.bf16.mxu0 %v704
      %841 = vmatpush1.bf16.msra.mxu0 %v703
      %842 = vmatprep.subr.bf16.mxu0 %v706
      %843 = vmatpush1.bf16.msra.mxu0 %v705
      %844 = vmatprep.subr.bf16.mxu0 %v708
      %845 = vmatpush1.bf16.msra.mxu0 %v707
      %846 = vmatprep.subr.bf16.mxu0 %v710
      %847 = vmatpush1.bf16.msra.mxu0 %v709
      %848 = vmatprep.subr.bf16.mxu0 %v712
      %849 = vmatpush1.bf16.msra.mxu0 %v711
      %850 = vmatprep.subr.bf16.mxu0 %v714
      %851 = vmatpush1.bf16.msra.mxu0 %v713
      %852 = vmatprep.subr.bf16.mxu0 %v716
      %853 = vmatpush1.bf16.msra.mxu0 %v715
      %854 = vmatprep.subr.bf16.mxu0 %v718
      %855 = vmatpush1.bf16.msra.mxu0 %v717
      %856 = vmatprep.subr.bf16.mxu0 %v720
      %857 = vmatpush1.bf16.msra.mxu0 %v719
      %858 = vmatprep.subr.bf16.mxu0 %v722
      %859 = vmatpush1.bf16.msra.mxu0 %v721
      %860 = vmatprep.subr.bf16.mxu0 %v724
      %861 = vmatpush1.bf16.msra.mxu0 %v723
      %862 = vmatprep.subr.bf16.mxu0 %v726
      %863 = vmatpush1.bf16.msra.mxu0 %v725
      %864 = vmatprep.subr.bf16.mxu0 %v728
      %865 = vmatpush1.bf16.msra.mxu0 %v727
      %866 = vmatprep.subr.bf16.mxu0 %v730
      %867 = vmatpush1.bf16.msra.mxu0 %v729
      %868 = vmatprep.subr.bf16.mxu0 %v732
      %869 = vmatpush1.bf16.msra.mxu0 %v731
      %870 = vmatprep.subr.bf16.mxu0 %v734
      %871 = vmatpush1.bf16.msra.mxu0 %v733
      %872 = vmatprep.mubr.bf16.mxu0 %v474
      %873 = vmatmul.mubr.bf16.gmra.mrb[0].mxu0 %v467
      %v874 = vpop.f32.mrb[0].mxu0
      %v875 = vadd.f32 %v834, %v874
      %v876 = vpop.f32.mrb[0].mxu0
      %v877 = vadd.f32 %v836, %v876
      %v878 = vpop.f32.mrb[0].mxu0
      %v879 = vpop.f32.mrb[0].mxu0
      %880 = vdwg.mxu0
      %v883 = vunpack.c.l.b16 %v300
      %v884 = vunpack.c.h.b16 %v300
      %v885 = vunpack.c.l.b16 %v301
      %v886 = vunpack.c.h.b16 %v301
      %v887 = vpack.c.b16 %v883, %v883
      %v888 = vpack.c.b16 %v884, %v884
      %v889 = vpack.c.b16 %v885, %v885
      %v890 = vpack.c.b16 %v886, %v886
      %v959 = vunpack.c.l.b16 %v304
      %v960 = vunpack.c.h.b16 %v304
      %v961 = vunpack.c.l.b16 %v305
      %v962 = vunpack.c.h.b16 %v305
      %v963 = vunpack.c.l.b16 %v306
      %v964 = vunpack.c.h.b16 %v306
      %v965 = vunpack.c.l.b16 %v307
      %v966 = vunpack.c.h.b16 %v307
      %v967 = vunpack.c.l.b16 %v308
      %v968 = vunpack.c.h.b16 %v308
      %v969 = vunpack.c.l.b16 %v309
      %v970 = vunpack.c.h.b16 %v309
      %v971 = vunpack.c.l.b16 %v310
      %v972 = vunpack.c.h.b16 %v310
      %v973 = vunpack.c.l.b16 %v311
      %v974 = vunpack.c.h.b16 %v311
      %v975 = vunpack.c.l.b16 %v312
      %v976 = vunpack.c.h.b16 %v312
      %v977 = vunpack.c.l.b16 %v313
      %v978 = vunpack.c.h.b16 %v313
      %v979 = vunpack.c.l.b16 %v314
      %v980 = vunpack.c.h.b16 %v314
      %v981 = vunpack.c.l.b16 %v315
      %v982 = vunpack.c.h.b16 %v315
      %v983 = vunpack.c.l.b16 %v316
      %v984 = vunpack.c.h.b16 %v316
      %v985 = vunpack.c.l.b16 %v317
      %v986 = vunpack.c.h.b16 %v317
      %v987 = vunpack.c.l.b16 %v318
      %v988 = vunpack.c.h.b16 %v318
      %v989 = vunpack.c.l.b16 %v319
      %v990 = vunpack.c.h.b16 %v319
      %v991 = vunpack.c.l.b16 %v320
      %v992 = vunpack.c.h.b16 %v320
      %v993 = vunpack.c.l.b16 %v321
      %v994 = vunpack.c.h.b16 %v321
      %v995 = vunpack.c.l.b16 %v322
      %v996 = vunpack.c.h.b16 %v322
      %v997 = vunpack.c.l.b16 %v323
      %v998 = vunpack.c.h.b16 %v323
      %v999 = vunpack.c.l.b16 %v324
      %v1000 = vunpack.c.h.b16 %v324
      %v1001 = vunpack.c.l.b16 %v325
      %v1002 = vunpack.c.h.b16 %v325
      %v1003 = vunpack.c.l.b16 %v326
      %v1004 = vunpack.c.h.b16 %v326
      %v1005 = vunpack.c.l.b16 %v327
      %v1006 = vunpack.c.h.b16 %v327
      %v1007 = vunpack.c.l.b16 %v328
      %v1008 = vunpack.c.h.b16 %v328
      %v1009 = vunpack.c.l.b16 %v329
      %v1010 = vunpack.c.h.b16 %v329
      %v1011 = vunpack.c.l.b16 %v330
      %v1012 = vunpack.c.h.b16 %v330
      %v1013 = vunpack.c.l.b16 %v331
      %v1014 = vunpack.c.h.b16 %v331
      %v1015 = vunpack.c.l.b16 %v332
      %v1016 = vunpack.c.h.b16 %v332
      %v1017 = vunpack.c.l.b16 %v333
      %v1018 = vunpack.c.h.b16 %v333
      %v1019 = vunpack.c.l.b16 %v334
      %v1020 = vunpack.c.h.b16 %v334
      %v1021 = vunpack.c.l.b16 %v335
      %v1022 = vunpack.c.h.b16 %v335
      %v1023 = vunpack.c.l.b16 %v336
      %v1024 = vunpack.c.h.b16 %v336
      %v1025 = vunpack.c.l.b16 %v337
      %v1026 = vunpack.c.h.b16 %v337
      %v1027 = vunpack.c.l.b16 %v338
      %v1028 = vunpack.c.h.b16 %v338
      %v1029 = vunpack.c.l.b16 %v339
      %v1030 = vunpack.c.h.b16 %v339
      %v1031 = vunpack.c.l.b16 %v340
      %v1032 = vunpack.c.h.b16 %v340
      %v1033 = vunpack.c.l.b16 %v341
      %v1034 = vunpack.c.h.b16 %v341
      %v1035 = vunpack.c.l.b16 %v342
      %v1036 = vunpack.c.h.b16 %v342
      %v1037 = vunpack.c.l.b16 %v343
      %v1038 = vunpack.c.h.b16 %v343
      %v1039 = vunpack.c.l.b16 %v344
      %v1040 = vunpack.c.h.b16 %v344
      %v1041 = vunpack.c.l.b16 %v345
      %v1042 = vunpack.c.h.b16 %v345
      %v1043 = vunpack.c.l.b16 %v346
      %v1044 = vunpack.c.h.b16 %v346
      %v1045 = vunpack.c.l.b16 %v347
      %v1046 = vunpack.c.h.b16 %v347
      %v1047 = vunpack.c.l.b16 %v348
      %v1048 = vunpack.c.h.b16 %v348
      %v1049 = vunpack.c.l.b16 %v349
      %v1050 = vunpack.c.h.b16 %v349
      %v1051 = vunpack.c.l.b16 %v350
      %v1052 = vunpack.c.h.b16 %v350
      %v1053 = vunpack.c.l.b16 %v351
      %v1054 = vunpack.c.h.b16 %v351
      %v1055 = vunpack.c.l.b16 %v352
      %v1056 = vunpack.c.h.b16 %v352
      %v1057 = vunpack.c.l.b16 %v353
      %v1058 = vunpack.c.h.b16 %v353
      %v1059 = vunpack.c.l.b16 %v354
      %v1060 = vunpack.c.h.b16 %v354
      %v1061 = vunpack.c.l.b16 %v355
      %v1062 = vunpack.c.h.b16 %v355
      %v1063 = vunpack.c.l.b16 %v356
      %v1064 = vunpack.c.h.b16 %v356
      %v1065 = vunpack.c.l.b16 %v357
      %v1066 = vunpack.c.h.b16 %v357
      %v1067 = vunpack.c.l.b16 %v358
      %v1068 = vunpack.c.h.b16 %v358
      %v1069 = vunpack.c.l.b16 %v359
      %v1070 = vunpack.c.h.b16 %v359
      %v1071 = vunpack.c.l.b16 %v360
      %v1072 = vunpack.c.h.b16 %v360
      %v1073 = vunpack.c.l.b16 %v361
      %v1074 = vunpack.c.h.b16 %v361
      %v1075 = vunpack.c.l.b16 %v362
      %v1076 = vunpack.c.h.b16 %v362
      %v1077 = vunpack.c.l.b16 %v363
      %v1078 = vunpack.c.h.b16 %v363
      %v1079 = vunpack.c.l.b16 %v364
      %v1080 = vunpack.c.h.b16 %v364
      %v1081 = vunpack.c.l.b16 %v365
      %v1082 = vunpack.c.h.b16 %v365
      %v1083 = vunpack.c.l.b16 %v366
      %v1084 = vunpack.c.h.b16 %v366
      %v1085 = vunpack.c.l.b16 %v367
      %v1086 = vunpack.c.h.b16 %v367
      %v1087 = vpack.c.b16 %v961, %v959
      %v1088 = vpack.c.b16 %v962, %v960
      %v1089 = vpack.c.b16 %v965, %v963
      %v1090 = vpack.c.b16 %v966, %v964
      %v1091 = vpack.c.b16 %v969, %v967
      %v1092 = vpack.c.b16 %v970, %v968
      %v1093 = vpack.c.b16 %v973, %v971
      %v1094 = vpack.c.b16 %v974, %v972
      %v1095 = vpack.c.b16 %v977, %v975
      %v1096 = vpack.c.b16 %v978, %v976
      %v1097 = vpack.c.b16 %v981, %v979
      %v1098 = vpack.c.b16 %v982, %v980
      %v1099 = vpack.c.b16 %v985, %v983
      %v1100 = vpack.c.b16 %v986, %v984
      %v1101 = vpack.c.b16 %v989, %v987
      %v1102 = vpack.c.b16 %v990, %v988
      %v1103 = vpack.c.b16 %v993, %v991
      %v1104 = vpack.c.b16 %v994, %v992
      %v1105 = vpack.c.b16 %v997, %v995
      %v1106 = vpack.c.b16 %v998, %v996
      %v1107 = vpack.c.b16 %v1001, %v999
      %v1108 = vpack.c.b16 %v1002, %v1000
      %v1109 = vpack.c.b16 %v1005, %v1003
      %v1110 = vpack.c.b16 %v1006, %v1004
      %v1111 = vpack.c.b16 %v1009, %v1007
      %v1112 = vpack.c.b16 %v1010, %v1008
      %v1113 = vpack.c.b16 %v1013, %v1011
      %v1114 = vpack.c.b16 %v1014, %v1012
      %v1115 = vpack.c.b16 %v1017, %v1015
      %v1116 = vpack.c.b16 %v1018, %v1016
      %v1117 = vpack.c.b16 %v1021, %v1019
      %v1118 = vpack.c.b16 %v1022, %v1020
      %v1119 = vpack.c.b16 %v1025, %v1023
      %v1120 = vpack.c.b16 %v1026, %v1024
      %v1121 = vpack.c.b16 %v1029, %v1027
      %v1122 = vpack.c.b16 %v1030, %v1028
      %v1123 = vpack.c.b16 %v1033, %v1031
      %v1124 = vpack.c.b16 %v1034, %v1032
      %v1125 = vpack.c.b16 %v1037, %v1035
      %v1126 = vpack.c.b16 %v1038, %v1036
      %v1127 = vpack.c.b16 %v1041, %v1039
      %v1128 = vpack.c.b16 %v1042, %v1040
      %v1129 = vpack.c.b16 %v1045, %v1043
      %v1130 = vpack.c.b16 %v1046, %v1044
      %v1131 = vpack.c.b16 %v1049, %v1047
      %v1132 = vpack.c.b16 %v1050, %v1048
      %v1133 = vpack.c.b16 %v1053, %v1051
      %v1134 = vpack.c.b16 %v1054, %v1052
      %v1135 = vpack.c.b16 %v1057, %v1055
      %v1136 = vpack.c.b16 %v1058, %v1056
      %v1137 = vpack.c.b16 %v1061, %v1059
      %v1138 = vpack.c.b16 %v1062, %v1060
      %v1139 = vpack.c.b16 %v1065, %v1063
      %v1140 = vpack.c.b16 %v1066, %v1064
      %v1141 = vpack.c.b16 %v1069, %v1067
      %v1142 = vpack.c.b16 %v1070, %v1068
      %v1143 = vpack.c.b16 %v1073, %v1071
      %v1144 = vpack.c.b16 %v1074, %v1072
      %v1145 = vpack.c.b16 %v1077, %v1075
      %v1146 = vpack.c.b16 %v1078, %v1076
      %v1147 = vpack.c.b16 %v1081, %v1079
      %v1148 = vpack.c.b16 %v1082, %v1080
      %v1149 = vpack.c.b16 %v1085, %v1083
      %v1150 = vpack.c.b16 %v1086, %v1084
      %1215 = vmatprep.subr.bf16.mxu0 %v1088
      %1216 = vmatpush1.bf16.msra.mxu0 %v1087
      %1217 = vmatprep.subr.bf16.mxu0 %v1090
      %1218 = vmatpush1.bf16.msra.mxu0 %v1089
      %1219 = vmatprep.subr.bf16.mxu0 %v1092
      %1220 = vmatpush1.bf16.msra.mxu0 %v1091
      %1221 = vmatprep.subr.bf16.mxu0 %v1094
      %1222 = vmatpush1.bf16.msra.mxu0 %v1093
      %1223 = vmatprep.subr.bf16.mxu0 %v1096
      %1224 = vmatpush1.bf16.msra.mxu0 %v1095
      %1225 = vmatprep.subr.bf16.mxu0 %v1098
      %1226 = vmatpush1.bf16.msra.mxu0 %v1097
      %1227 = vmatprep.subr.bf16.mxu0 %v1100
      %1228 = vmatpush1.bf16.msra.mxu0 %v1099
      %1229 = vmatprep.subr.bf16.mxu0 %v1102
      %1230 = vmatpush1.bf16.msra.mxu0 %v1101
      %1231 = vmatprep.subr.bf16.mxu0 %v1104
      %1232 = vmatpush1.bf16.msra.mxu0 %v1103
      %1233 = vmatprep.subr.bf16.mxu0 %v1106
      %1234 = vmatpush1.bf16.msra.mxu0 %v1105
      %1235 = vmatprep.subr.bf16.mxu0 %v1108
      %1236 = vmatpush1.bf16.msra.mxu0 %v1107
      %1237 = vmatprep.subr.bf16.mxu0 %v1110
      %1238 = vmatpush1.bf16.msra.mxu0 %v1109
      %1239 = vmatprep.subr.bf16.mxu0 %v1112
      %1240 = vmatpush1.bf16.msra.mxu0 %v1111
      %1241 = vmatprep.subr.bf16.mxu0 %v1114
      %1242 = vmatpush1.bf16.msra.mxu0 %v1113
      %1243 = vmatprep.subr.bf16.mxu0 %v1116
      %1244 = vmatpush1.bf16.msra.mxu0 %v1115
      %1245 = vmatprep.subr.bf16.mxu0 %v1118
      %1246 = vmatpush1.bf16.msra.mxu0 %v1117
      %1247 = vmatprep.mubr.bf16.mxu0 %v888
      %1248 = vmatmul.mubr.bf16.gmra.mrb[0].mxu0 %v887
      %v1249 = vpop.f32.mrb[0].mxu0
      %v1250 = vadd.f32 %v875, %v1249
      %v1251 = vpop.f32.mrb[0].mxu0
      %v1252 = vadd.f32 %v877, %v1251
      %v1253 = vpop.f32.mrb[0].mxu0
      %v1254 = vpop.f32.mrb[0].mxu0
      %1255 = vdwg.mxu0
      %1256 = vmatprep.subr.bf16.mxu0 %v1120
      %1257 = vmatpush1.bf16.msra.mxu0 %v1119
      %1258 = vmatprep.subr.bf16.mxu0 %v1122
      %1259 = vmatpush1.bf16.msra.mxu0 %v1121
      %1260 = vmatprep.subr.bf16.mxu0 %v1124
      %1261 = vmatpush1.bf16.msra.mxu0 %v1123
      %1262 = vmatprep.subr.bf16.mxu0 %v1126
      %1263 = vmatpush1.bf16.msra.mxu0 %v1125
      %1264 = vmatprep.subr.bf16.mxu0 %v1128
      %1265 = vmatpush1.bf16.msra.mxu0 %v1127
      %1266 = vmatprep.subr.bf16.mxu0 %v1130
      %1267 = vmatpush1.bf16.msra.mxu0 %v1129
      %1268 = vmatprep.subr.bf16.mxu0 %v1132
      %1269 = vmatpush1.bf16.msra.mxu0 %v1131
      %1270 = vmatprep.subr.bf16.mxu0 %v1134
      %1271 = vmatpush1.bf16.msra.mxu0 %v1133
      %1272 = vmatprep.subr.bf16.mxu0 %v1136
      %1273 = vmatpush1.bf16.msra.mxu0 %v1135
      %1274 = vmatprep.subr.bf16.mxu0 %v1138
      %1275 = vmatpush1.bf16.msra.mxu0 %v1137
      %1276 = vmatprep.subr.bf16.mxu0 %v1140
      %1277 = vmatpush1.bf16.msra.mxu0 %v1139
      %1278 = vmatprep.subr.bf16.mxu0 %v1142
      %1279 = vmatpush1.bf16.msra.mxu0 %v1141
      %1280 = vmatprep.subr.bf16.mxu0 %v1144
      %1281 = vmatpush1.bf16.msra.mxu0 %v1143
      %1282 = vmatprep.subr.bf16.mxu0 %v1146
      %1283 = vmatpush1.bf16.msra.mxu0 %v1145
      %1284 = vmatprep.subr.bf16.mxu0 %v1148
      %1285 = vmatpush1.bf16.msra.mxu0 %v1147
      %1286 = vmatprep.subr.bf16.mxu0 %v1150
      %1287 = vmatpush1.bf16.msra.mxu0 %v1149
      %1288 = vmatprep.mubr.bf16.mxu0 %v890
      %1289 = vmatmul.mubr.bf16.gmra.mrb[0].mxu0 %v889
      %v1290 = vpop.f32.mrb[0].mxu0
      %v1291 = vadd.f32 %v1250, %v1290
      %v1292 = vpop.f32.mrb[0].mxu0
      %v1293 = vadd.f32 %v1252, %v1292
      %v1294 = vpop.f32.mrb[0].mxu0
      %v1295 = vpop.f32.mrb[0].mxu0
      %1296 = vdwg.mxu0
      %v1299 = vunpack.c.l.b16 %v370
      %v1300 = vunpack.c.h.b16 %v370
      %v1301 = vunpack.c.l.b16 %v371
      %v1302 = vunpack.c.h.b16 %v371
      %v1303 = vpack.c.b16 %v1299, %v1299
      %v1304 = vpack.c.b16 %v1300, %v1300
      %v1305 = vpack.c.b16 %v1301, %v1301
      %v1306 = vpack.c.b16 %v1302, %v1302
      %v1308 = vshrl.u32 %v1303, 16
      %v1310 = vshll.u32 %v1303, 16
      %v1312 = vrot.slane %v1310, 1
      %v1313 = vor.u32 %v1308, %v1312
      %v1315 = vshrl.u32 %v1304, 16
      %v1317 = vshll.u32 %v1304, 16
      %v1319 = vrot.slane %v1317, 1
      %v1320 = vor.u32 %v1315, %v1319
      %v1322 = vshrl.u32 %v1305, 16
      %v1324 = vshll.u32 %v1305, 16
      %v1326 = vrot.slane %v1324, 1
      %v1327 = vor.u32 %v1322, %v1326
      %v1329 = vshrl.u32 %v1306, 16
      %v1331 = vshll.u32 %v1306, 16
      %v1333 = vrot.slane %v1331, 1
      %v1334 = vor.u32 %v1329, %v1333
      %1339 = vmatprep.subr.bf16.mxu0 %v672
      %1340 = vmatpush1.bf16.msra.mxu0 %v671
      %1341 = vmatprep.subr.bf16.mxu0 %v674
      %1342 = vmatpush1.bf16.msra.mxu0 %v673
      %1343 = vmatprep.subr.bf16.mxu0 %v676
      %1344 = vmatpush1.bf16.msra.mxu0 %v675
      %1345 = vmatprep.subr.bf16.mxu0 %v678
      %1346 = vmatpush1.bf16.msra.mxu0 %v677
      %1347 = vmatprep.subr.bf16.mxu0 %v680
      %1348 = vmatpush1.bf16.msra.mxu0 %v679
      %1349 = vmatprep.subr.bf16.mxu0 %v682
      %1350 = vmatpush1.bf16.msra.mxu0 %v681
      %1351 = vmatprep.subr.bf16.mxu0 %v684
      %1352 = vmatpush1.bf16.msra.mxu0 %v683
      %1353 = vmatprep.subr.bf16.mxu0 %v686
      %1354 = vmatpush1.bf16.msra.mxu0 %v685
      %1355 = vmatprep.subr.bf16.mxu0 %v688
      %1356 = vmatpush1.bf16.msra.mxu0 %v687
      %1357 = vmatprep.subr.bf16.mxu0 %v690
      %1358 = vmatpush1.bf16.msra.mxu0 %v689
      %1359 = vmatprep.subr.bf16.mxu0 %v692
      %1360 = vmatpush1.bf16.msra.mxu0 %v691
      %1361 = vmatprep.subr.bf16.mxu0 %v694
      %1362 = vmatpush1.bf16.msra.mxu0 %v693
      %1363 = vmatprep.subr.bf16.mxu0 %v696
      %1364 = vmatpush1.bf16.msra.mxu0 %v695
      %1365 = vmatprep.subr.bf16.mxu0 %v698
      %1366 = vmatpush1.bf16.msra.mxu0 %v697
      %1367 = vmatprep.subr.bf16.mxu0 %v700
      %1368 = vmatpush1.bf16.msra.mxu0 %v699
      %1369 = vmatprep.subr.bf16.mxu0 %v702
      %1370 = vmatpush1.bf16.msra.mxu0 %v701
      %1371 = vmatprep.mubr.bf16.mxu0 %v1320
      %1372 = vmatmul.mubr.bf16.gmra.mrb[0].mxu0 %v1313
      %v1373 = vpop.f32.mrb[0].mxu0
      %v1374 = vadd.f32 0.0, %v1373
      %v1375 = vpop.f32.mrb[0].mxu0
      %v1376 = vadd.f32 0.0, %v1375
      %v1377 = vpop.f32.mrb[0].mxu0
      %v1378 = vpop.f32.mrb[0].mxu0
      %1379 = vdwg.mxu0
      %1380 = vmatprep.subr.bf16.mxu0 %v704
      %1381 = vmatpush1.bf16.msra.mxu0 %v703
      %1382 = vmatprep.subr.bf16.mxu0 %v706
      %1383 = vmatpush1.bf16.msra.mxu0 %v705
      %1384 = vmatprep.subr.bf16.mxu0 %v708
      %1385 = vmatpush1.bf16.msra.mxu0 %v707
      %1386 = vmatprep.subr.bf16.mxu0 %v710
      %1387 = vmatpush1.bf16.msra.mxu0 %v709
      %1388 = vmatprep.subr.bf16.mxu0 %v712
      %1389 = vmatpush1.bf16.msra.mxu0 %v711
      %1390 = vmatprep.subr.bf16.mxu0 %v714
      %1391 = vmatpush1.bf16.msra.mxu0 %v713
      %1392 = vmatprep.subr.bf16.mxu0 %v716
      %1393 = vmatpush1.bf16.msra.mxu0 %v715
      %1394 = vmatprep.subr.bf16.mxu0 %v718
      %1395 = vmatpush1.bf16.msra.mxu0 %v717
      %1396 = vmatprep.subr.bf16.mxu0 %v720
      %1397 = vmatpush1.bf16.msra.mxu0 %v719
      %1398 = vmatprep.subr.bf16.mxu0 %v722
      %1399 = vmatpush1.bf16.msra.mxu0 %v721
      %1400 = vmatprep.subr.bf16.mxu0 %v724
      %1401 = vmatpush1.bf16.msra.mxu0 %v723
      %1402 = vmatprep.subr.bf16.mxu0 %v726
      %1403 = vmatpush1.bf16.msra.mxu0 %v725
      %1404 = vmatprep.subr.bf16.mxu0 %v728
      %1405 = vmatpush1.bf16.msra.mxu0 %v727
      %1406 = vmatprep.subr.bf16.mxu0 %v730
      %1407 = vmatpush1.bf16.msra.mxu0 %v729
      %1408 = vmatprep.subr.bf16.mxu0 %v732
      %1409 = vmatpush1.bf16.msra.mxu0 %v731
      %1410 = vmatprep.subr.bf16.mxu0 %v734
      %1411 = vmatpush1.bf16.msra.mxu0 %v733
      %1412 = vmatprep.mubr.bf16.mxu0 %v1334
      %1413 = vmatmul.mubr.bf16.gmra.mrb[0].mxu0 %v1327
      %v1414 = vpop.f32.mrb[0].mxu0
      %v1415 = vadd.f32 %v1374, %v1414
      %v1416 = vpop.f32.mrb[0].mxu0
      %v1417 = vadd.f32 %v1376, %v1416
      %v1418 = vpop.f32.mrb[0].mxu0
      %v1419 = vpop.f32.mrb[0].mxu0
      %1420 = vdwg.mxu0
      %v1423 = vunpack.c.l.b16 %v302
      %v1424 = vunpack.c.h.b16 %v302
      %v1425 = vunpack.c.l.b16 %v303
      %v1426 = vunpack.c.h.b16 %v303
      %v1427 = vpack.c.b16 %v1423, %v1423
      %v1428 = vpack.c.b16 %v1424, %v1424
      %v1429 = vpack.c.b16 %v1425, %v1425
      %v1430 = vpack.c.b16 %v1426, %v1426
      %1435 = vmatprep.subr.bf16.mxu0 %v1088
      %1436 = vmatpush1.bf16.msra.mxu0 %v1087
      %1437 = vmatprep.subr.bf16.mxu0 %v1090
      %1438 = vmatpush1.bf16.msra.mxu0 %v1089
      %1439 = vmatprep.subr.bf16.mxu0 %v1092
      %1440 = vmatpush1.bf16.msra.mxu0 %v1091
      %1441 = vmatprep.subr.bf16.mxu0 %v1094
      %1442 = vmatpush1.bf16.msra.mxu0 %v1093
      %1443 = vmatprep.subr.bf16.mxu0 %v1096
      %1444 = vmatpush1.bf16.msra.mxu0 %v1095
      %1445 = vmatprep.subr.bf16.mxu0 %v1098
      %1446 = vmatpush1.bf16.msra.mxu0 %v1097
      %1447 = vmatprep.subr.bf16.mxu0 %v1100
      %1448 = vmatpush1.bf16.msra.mxu0 %v1099
      %1449 = vmatprep.subr.bf16.mxu0 %v1102
      %1450 = vmatpush1.bf16.msra.mxu0 %v1101
      %1451 = vmatprep.subr.bf16.mxu0 %v1104
      %1452 = vmatpush1.bf16.msra.mxu0 %v1103
      %1453 = vmatprep.subr.bf16.mxu0 %v1106
      %1454 = vmatpush1.bf16.msra.mxu0 %v1105
      %1455 = vmatprep.subr.bf16.mxu0 %v1108
      %1456 = vmatpush1.bf16.msra.mxu0 %v1107
      %1457 = vmatprep.subr.bf16.mxu0 %v1110
      %1458 = vmatpush1.bf16.msra.mxu0 %v1109
      %1459 = vmatprep.subr.bf16.mxu0 %v1112
      %1460 = vmatpush1.bf16.msra.mxu0 %v1111
      %1461 = vmatprep.subr.bf16.mxu0 %v1114
      %1462 = vmatpush1.bf16.msra.mxu0 %v1113
      %1463 = vmatprep.subr.bf16.mxu0 %v1116
      %1464 = vmatpush1.bf16.msra.mxu0 %v1115
      %1465 = vmatprep.subr.bf16.mxu0 %v1118
      %1466 = vmatpush1.bf16.msra.mxu0 %v1117
      %1467 = vmatprep.mubr.bf16.mxu0 %v1428
      %1468 = vmatmul.mubr.bf16.gmra.mrb[0].mxu0 %v1427
      %v1469 = vpop.f32.mrb[0].mxu0
      %v1470 = vadd.f32 %v1415, %v1469
      %v1471 = vpop.f32.mrb[0].mxu0
      %v1472 = vadd.f32 %v1417, %v1471
      %v1473 = vpop.f32.mrb[0].mxu0
      %v1474 = vpop.f32.mrb[0].mxu0
      %1475 = vdwg.mxu0
      %1476 = vmatprep.subr.bf16.mxu0 %v1120
      %1477 = vmatpush1.bf16.msra.mxu0 %v1119
      %1478 = vmatprep.subr.bf16.mxu0 %v1122
      %1479 = vmatpush1.bf16.msra.mxu0 %v1121
      %1480 = vmatprep.subr.bf16.mxu0 %v1124
      %1481 = vmatpush1.bf16.msra.mxu0 %v1123
      %1482 = vmatprep.subr.bf16.mxu0 %v1126
      %1483 = vmatpush1.bf16.msra.mxu0 %v1125
      %1484 = vmatprep.subr.bf16.mxu0 %v1128
      %1485 = vmatpush1.bf16.msra.mxu0 %v1127
      %1486 = vmatprep.subr.bf16.mxu0 %v1130
      %1487 = vmatpush1.bf16.msra.mxu0 %v1129
      %1488 = vmatprep.subr.bf16.mxu0 %v1132
      %1489 = vmatpush1.bf16.msra.mxu0 %v1131
      %1490 = vmatprep.subr.bf16.mxu0 %v1134
      %1491 = vmatpush1.bf16.msra.mxu0 %v1133
      %1492 = vmatprep.subr.bf16.mxu0 %v1136
      %1493 = vmatpush1.bf16.msra.mxu0 %v1135
      %1494 = vmatprep.subr.bf16.mxu0 %v1138
      %1495 = vmatpush1.bf16.msra.mxu0 %v1137
      %1496 = vmatprep.subr.bf16.mxu0 %v1140
      %1497 = vmatpush1.bf16.msra.mxu0 %v1139
      %1498 = vmatprep.subr.bf16.mxu0 %v1142
      %1499 = vmatpush1.bf16.msra.mxu0 %v1141
      %1500 = vmatprep.subr.bf16.mxu0 %v1144
      %1501 = vmatpush1.bf16.msra.mxu0 %v1143
      %1502 = vmatprep.subr.bf16.mxu0 %v1146
      %1503 = vmatpush1.bf16.msra.mxu0 %v1145
      %1504 = vmatprep.subr.bf16.mxu0 %v1148
      %1505 = vmatpush1.bf16.msra.mxu0 %v1147
      %1506 = vmatprep.subr.bf16.mxu0 %v1150
      %1507 = vmatpush1.bf16.msra.mxu0 %v1149
      %1508 = vmatprep.mubr.bf16.mxu0 %v1430
      %1509 = vmatmul.mubr.bf16.gmra.mrb[0].mxu0 %v1429
      %v1510 = vpop.f32.mrb[0].mxu0
      %v1511 = vadd.f32 %v1470, %v1510
      %v1512 = vpop.f32.mrb[0].mxu0
      %v1513 = vadd.f32 %v1472, %v1512
      %v1514 = vpop.f32.mrb[0].mxu0
      %v1515 = vpop.f32.mrb[0].mxu0
      %1516 = vdwg.mxu0
      %s1517 = sadd.s32 %s295, 1
      %s1518 = smul.u32 %s1517, 4
      %s1519 = smul.addr %s1518, 4
      %s1520 = scalar_lea.vmem %s265, %s1519
      %v1521 = vld [vmem:[%s1520] sm:$0x33]
      %v1522 = vld [vmem:[%s1520 + $0x8] sm:$0x33]
      %v1523 = vld [vmem:[%s1520 + $0x10] sm:$0x33]
      %v1524 = vld [vmem:[%s1520 + $0x18] sm:$0x33]
      %s1525 = scalar_lea.vmem %s1, 1024
      %v1526 = vld [vmem:[%s1525] sm:$0xff]
      %v1527 = vld [vmem:[%s1525 + $0x8] sm:$0xff]
      %v1528 = vld [vmem:[%s1525 + $0x10] sm:$0xff]
      %v1529 = vld [vmem:[%s1525 + $0x18] sm:$0xff]
      %v1530 = vld [vmem:[%s1525 + $0x20] sm:$0xff]
      %v1531 = vld [vmem:[%s1525 + $0x28] sm:$0xff]
      %v1532 = vld [vmem:[%s1525 + $0x30] sm:$0xff]
      %v1533 = vld [vmem:[%s1525 + $0x38] sm:$0xff]
      %v1534 = vld [vmem:[%s1525 + $0x40] sm:$0xff]
      %v1535 = vld [vmem:[%s1525 + $0x48] sm:$0xff]
      %v1536 = vld [vmem:[%s1525 + $0x50] sm:$0xff]
      %v1537 = vld [vmem:[%s1525 + $0x58] sm:$0xff]
      %v1538 = vld [vmem:[%s1525 + $0x60] sm:$0xff]
      %v1539 = vld [vmem:[%s1525 + $0x68] sm:$0xff]
      %v1540 = vld [vmem:[%s1525 + $0x70] sm:$0xff]
      %v1541 = vld [vmem:[%s1525 + $0x78] sm:$0xff]
      %v1542 = vld [vmem:[%s1525 + $0x80] sm:$0xff]
      %v1543 = vld [vmem:[%s1525 + $0x88] sm:$0xff]
      %v1544 = vld [vmem:[%s1525 + $0x90] sm:$0xff]
      %v1545 = vld [vmem:[%s1525 + $0x98] sm:$0xff]
      %v1546 = vld [vmem:[%s1525 + $0xa0] sm:$0xff]
      %v1547 = vld [vmem:[%s1525 + $0xa8] sm:$0xff]
      %v1548 = vld [vmem:[%s1525 + $0xb0] sm:$0xff]
      %v1549 = vld [vmem:[%s1525 + $0xb8] sm:$0xff]
      %v1550 = vld [vmem:[%s1525 + $0xc0] sm:$0xff]
      %v1551 = vld [vmem:[%s1525 + $0xc8] sm:$0xff]
      %v1552 = vld [vmem:[%s1525 + $0xd0] sm:$0xff]
      %v1553 = vld [vmem:[%s1525 + $0xd8] sm:$0xff]
      %v1554 = vld [vmem:[%s1525 + $0xe0] sm:$0xff]
      %v1555 = vld [vmem:[%s1525 + $0xe8] sm:$0xff]
      %v1556 = vld [vmem:[%s1525 + $0xf0] sm:$0xff]
      %v1557 = vld [vmem:[%s1525 + $0xf8] sm:$0xff]
      %v1558 = vld [vmem:[%s1525 + $0x100] sm:$0xff]
      %v1559 = vld [vmem:[%s1525 + $0x108] sm:$0xff]
      %v1560 = vld [vmem:[%s1525 + $0x110] sm:$0xff]
      %v1561 = vld [vmem:[%s1525 + $0x118] sm:$0xff]
      %v1562 = vld [vmem:[%s1525 + $0x120] sm:$0xff]
      %v1563 = vld [vmem:[%s1525 + $0x128] sm:$0xff]
      %v1564 = vld [vmem:[%s1525 + $0x130] sm:$0xff]
      %v1565 = vld [vmem:[%s1525 + $0x138] sm:$0xff]
      %v1566 = vld [vmem:[%s1525 + $0x140] sm:$0xff]
      %v1567 = vld [vmem:[%s1525 + $0x148] sm:$0xff]
      %v1568 = vld [vmem:[%s1525 + $0x150] sm:$0xff]
      %v1569 = vld [vmem:[%s1525 + $0x158] sm:$0xff]
      %v1570 = vld [vmem:[%s1525 + $0x160] sm:$0xff]
      %v1571 = vld [vmem:[%s1525 + $0x168] sm:$0xff]
      %v1572 = vld [vmem:[%s1525 + $0x170] sm:$0xff]
      %v1573 = vld [vmem:[%s1525 + $0x178] sm:$0xff]
      %v1574 = vld [vmem:[%s1525 + $0x180] sm:$0xff]
      %v1575 = vld [vmem:[%s1525 + $0x188] sm:$0xff]
      %v1576 = vld [vmem:[%s1525 + $0x190] sm:$0xff]
      %v1577 = vld [vmem:[%s1525 + $0x198] sm:$0xff]
      %v1578 = vld [vmem:[%s1525 + $0x1a0] sm:$0xff]
      %v1579 = vld [vmem:[%s1525 + $0x1a8] sm:$0xff]
      %v1580 = vld [vmem:[%s1525 + $0x1b0] sm:$0xff]
      %v1581 = vld [vmem:[%s1525 + $0x1b8] sm:$0xff]
      %v1582 = vld [vmem:[%s1525 + $0x1c0] sm:$0xff]
      %v1583 = vld [vmem:[%s1525 + $0x1c8] sm:$0xff]
      %v1584 = vld [vmem:[%s1525 + $0x1d0] sm:$0xff]
      %v1585 = vld [vmem:[%s1525 + $0x1d8] sm:$0xff]
      %v1586 = vld [vmem:[%s1525 + $0x1e0] sm:$0xff]
      %v1587 = vld [vmem:[%s1525 + $0x1e8] sm:$0xff]
      %v1588 = vld [vmem:[%s1525 + $0x1f0] sm:$0xff]
      %v1589 = vld [vmem:[%s1525 + $0x1f8] sm:$0xff]
      %v1592 = vunpack.c.l.b16 %v1521
      %v1593 = vunpack.c.h.b16 %v1521
      %v1594 = vunpack.c.l.b16 %v1522
      %v1595 = vunpack.c.h.b16 %v1522
      %v1596 = vpack.c.b16 %v1592, %v1592
      %v1597 = vpack.c.b16 %v1593, %v1593
      %v1598 = vpack.c.b16 %v1594, %v1594
      %v1599 = vpack.c.b16 %v1595, %v1595
      %v1668 = vunpack.c.l.b16 %v1526
      %v1669 = vunpack.c.h.b16 %v1526
      %v1670 = vunpack.c.l.b16 %v1527
      %v1671 = vunpack.c.h.b16 %v1527
      %v1672 = vunpack.c.l.b16 %v1528
      %v1673 = vunpack.c.h.b16 %v1528
      %v1674 = vunpack.c.l.b16 %v1529
      %v1675 = vunpack.c.h.b16 %v1529
      %v1676 = vunpack.c.l.b16 %v1530
      %v1677 = vunpack.c.h.b16 %v1530
      %v1678 = vunpack.c.l.b16 %v1531
      %v1679 = vunpack.c.h.b16 %v1531
      %v1680 = vunpack.c.l.b16 %v1532
      %v1681 = vunpack.c.h.b16 %v1532
      %v1682 = vunpack.c.l.b16 %v1533
      %v1683 = vunpack.c.h.b16 %v1533
      %v1684 = vunpack.c.l.b16 %v1534
      %v1685 = vunpack.c.h.b16 %v1534
      %v1686 = vunpack.c.l.b16 %v1535
      %v1687 = vunpack.c.h.b16 %v1535
      %v1688 = vunpack.c.l.b16 %v1536
      %v1689 = vunpack.c.h.b16 %v1536
      %v1690 = vunpack.c.l.b16 %v1537
      %v1691 = vunpack.c.h.b16 %v1537
      %v1692 = vunpack.c.l.b16 %v1538
      %v1693 = vunpack.c.h.b16 %v1538
      %v1694 = vunpack.c.l.b16 %v1539
      %v1695 = vunpack.c.h.b16 %v1539
      %v1696 = vunpack.c.l.b16 %v1540
      %v1697 = vunpack.c.h.b16 %v1540
      %v1698 = vunpack.c.l.b16 %v1541
      %v1699 = vunpack.c.h.b16 %v1541
      %v1700 = vunpack.c.l.b16 %v1542
      %v1701 = vunpack.c.h.b16 %v1542
      %v1702 = vunpack.c.l.b16 %v1543
      %v1703 = vunpack.c.h.b16 %v1543
      %v1704 = vunpack.c.l.b16 %v1544
      %v1705 = vunpack.c.h.b16 %v1544
      %v1706 = vunpack.c.l.b16 %v1545
      %v1707 = vunpack.c.h.b16 %v1545
      %v1708 = vunpack.c.l.b16 %v1546
      %v1709 = vunpack.c.h.b16 %v1546
      %v1710 = vunpack.c.l.b16 %v1547
      %v1711 = vunpack.c.h.b16 %v1547
      %v1712 = vunpack.c.l.b16 %v1548
      %v1713 = vunpack.c.h.b16 %v1548
      %v1714 = vunpack.c.l.b16 %v1549
      %v1715 = vunpack.c.h.b16 %v1549
      %v1716 = vunpack.c.l.b16 %v1550
      %v1717 = vunpack.c.h.b16 %v1550
      %v1718 = vunpack.c.l.b16 %v1551
      %v1719 = vunpack.c.h.b16 %v1551
      %v1720 = vunpack.c.l.b16 %v1552
      %v1721 = vunpack.c.h.b16 %v1552
      %v1722 = vunpack.c.l.b16 %v1553
      %v1723 = vunpack.c.h.b16 %v1553
      %v1724 = vunpack.c.l.b16 %v1554
      %v1725 = vunpack.c.h.b16 %v1554
      %v1726 = vunpack.c.l.b16 %v1555
      %v1727 = vunpack.c.h.b16 %v1555
      %v1728 = vunpack.c.l.b16 %v1556
      %v1729 = vunpack.c.h.b16 %v1556
      %v1730 = vunpack.c.l.b16 %v1557
      %v1731 = vunpack.c.h.b16 %v1557
      %v1732 = vunpack.c.l.b16 %v1558
      %v1733 = vunpack.c.h.b16 %v1558
      %v1734 = vunpack.c.l.b16 %v1559
      %v1735 = vunpack.c.h.b16 %v1559
      %v1736 = vunpack.c.l.b16 %v1560
      %v1737 = vunpack.c.h.b16 %v1560
      %v1738 = vunpack.c.l.b16 %v1561
      %v1739 = vunpack.c.h.b16 %v1561
      %v1740 = vunpack.c.l.b16 %v1562
      %v1741 = vunpack.c.h.b16 %v1562
      %v1742 = vunpack.c.l.b16 %v1563
      %v1743 = vunpack.c.h.b16 %v1563
      %v1744 = vunpack.c.l.b16 %v1564
      %v1745 = vunpack.c.h.b16 %v1564
      %v1746 = vunpack.c.l.b16 %v1565
      %v1747 = vunpack.c.h.b16 %v1565
      %v1748 = vunpack.c.l.b16 %v1566
      %v1749 = vunpack.c.h.b16 %v1566
      %v1750 = vunpack.c.l.b16 %v1567
      %v1751 = vunpack.c.h.b16 %v1567
      %v1752 = vunpack.c.l.b16 %v1568
      %v1753 = vunpack.c.h.b16 %v1568
      %v1754 = vunpack.c.l.b16 %v1569
      %v1755 = vunpack.c.h.b16 %v1569
      %v1756 = vunpack.c.l.b16 %v1570
      %v1757 = vunpack.c.h.b16 %v1570
      %v1758 = vunpack.c.l.b16 %v1571
      %v1759 = vunpack.c.h.b16 %v1571
      %v1760 = vunpack.c.l.b16 %v1572
      %v1761 = vunpack.c.h.b16 %v1572
      %v1762 = vunpack.c.l.b16 %v1573
      %v1763 = vunpack.c.h.b16 %v1573
      %v1764 = vunpack.c.l.b16 %v1574
      %v1765 = vunpack.c.h.b16 %v1574
      %v1766 = vunpack.c.l.b16 %v1575
      %v1767 = vunpack.c.h.b16 %v1575
      %v1768 = vunpack.c.l.b16 %v1576
      %v1769 = vunpack.c.h.b16 %v1576
      %v1770 = vunpack.c.l.b16 %v1577
      %v1771 = vunpack.c.h.b16 %v1577
      %v1772 = vunpack.c.l.b16 %v1578
      %v1773 = vunpack.c.h.b16 %v1578
      %v1774 = vunpack.c.l.b16 %v1579
      %v1775 = vunpack.c.h.b16 %v1579
      %v1776 = vunpack.c.l.b16 %v1580
      %v1777 = vunpack.c.h.b16 %v1580
      %v1778 = vunpack.c.l.b16 %v1581
      %v1779 = vunpack.c.h.b16 %v1581
      %v1780 = vunpack.c.l.b16 %v1582
      %v1781 = vunpack.c.h.b16 %v1582
      %v1782 = vunpack.c.l.b16 %v1583
      %v1783 = vunpack.c.h.b16 %v1583
      %v1784 = vunpack.c.l.b16 %v1584
      %v1785 = vunpack.c.h.b16 %v1584
      %v1786 = vunpack.c.l.b16 %v1585
      %v1787 = vunpack.c.h.b16 %v1585
      %v1788 = vunpack.c.l.b16 %v1586
      %v1789 = vunpack.c.h.b16 %v1586
      %v1790 = vunpack.c.l.b16 %v1587
      %v1791 = vunpack.c.h.b16 %v1587
      %v1792 = vunpack.c.l.b16 %v1588
      %v1793 = vunpack.c.h.b16 %v1588
      %v1794 = vunpack.c.l.b16 %v1589
      %v1795 = vunpack.c.h.b16 %v1589
      %v1796 = vpack.c.b16 %v1670, %v1668
      %v1797 = vpack.c.b16 %v1671, %v1669
      %v1798 = vpack.c.b16 %v1674, %v1672
      %v1799 = vpack.c.b16 %v1675, %v1673
      %v1800 = vpack.c.b16 %v1678, %v1676
      %v1801 = vpack.c.b16 %v1679, %v1677
      %v1802 = vpack.c.b16 %v1682, %v1680
      %v1803 = vpack.c.b16 %v1683, %v1681
      %v1804 = vpack.c.b16 %v1686, %v1684
      %v1805 = vpack.c.b16 %v1687, %v1685
      %v1806 = vpack.c.b16 %v1690, %v1688
      %v1807 = vpack.c.b16 %v1691, %v1689
      %v1808 = vpack.c.b16 %v1694, %v1692
      %v1809 = vpack.c.b16 %v1695, %v1693
      %v1810 = vpack.c.b16 %v1698, %v1696
      %v1811 = vpack.c.b16 %v1699, %v1697
      %v1812 = vpack.c.b16 %v1702, %v1700
      %v1813 = vpack.c.b16 %v1703, %v1701
      %v1814 = vpack.c.b16 %v1706, %v1704
      %v1815 = vpack.c.b16 %v1707, %v1705
      %v1816 = vpack.c.b16 %v1710, %v1708
      %v1817 = vpack.c.b16 %v1711, %v1709
      %v1818 = vpack.c.b16 %v1714, %v1712
      %v1819 = vpack.c.b16 %v1715, %v1713
      %v1820 = vpack.c.b16 %v1718, %v1716
      %v1821 = vpack.c.b16 %v1719, %v1717
      %v1822 = vpack.c.b16 %v1722, %v1720
      %v1823 = vpack.c.b16 %v1723, %v1721
      %v1824 = vpack.c.b16 %v1726, %v1724
      %v1825 = vpack.c.b16 %v1727, %v1725
      %v1826 = vpack.c.b16 %v1730, %v1728
      %v1827 = vpack.c.b16 %v1731, %v1729
      %v1828 = vpack.c.b16 %v1734, %v1732
      %v1829 = vpack.c.b16 %v1735, %v1733
      %v1830 = vpack.c.b16 %v1738, %v1736
      %v1831 = vpack.c.b16 %v1739, %v1737
      %v1832 = vpack.c.b16 %v1742, %v1740
      %v1833 = vpack.c.b16 %v1743, %v1741
      %v1834 = vpack.c.b16 %v1746, %v1744
      %v1835 = vpack.c.b16 %v1747, %v1745
      %v1836 = vpack.c.b16 %v1750, %v1748
      %v1837 = vpack.c.b16 %v1751, %v1749
      %v1838 = vpack.c.b16 %v1754, %v1752
      %v1839 = vpack.c.b16 %v1755, %v1753
      %v1840 = vpack.c.b16 %v1758, %v1756
      %v1841 = vpack.c.b16 %v1759, %v1757
      %v1842 = vpack.c.b16 %v1762, %v1760
      %v1843 = vpack.c.b16 %v1763, %v1761
      %v1844 = vpack.c.b16 %v1766, %v1764
      %v1845 = vpack.c.b16 %v1767, %v1765
      %v1846 = vpack.c.b16 %v1770, %v1768
      %v1847 = vpack.c.b16 %v1771, %v1769
      %v1848 = vpack.c.b16 %v1774, %v1772
      %v1849 = vpack.c.b16 %v1775, %v1773
      %v1850 = vpack.c.b16 %v1778, %v1776
      %v1851 = vpack.c.b16 %v1779, %v1777
      %v1852 = vpack.c.b16 %v1782, %v1780
      %v1853 = vpack.c.b16 %v1783, %v1781
      %v1854 = vpack.c.b16 %v1786, %v1784
      %v1855 = vpack.c.b16 %v1787, %v1785
      %v1856 = vpack.c.b16 %v1790, %v1788
      %v1857 = vpack.c.b16 %v1791, %v1789
      %v1858 = vpack.c.b16 %v1794, %v1792
      %v1859 = vpack.c.b16 %v1795, %v1793
      %1924 = vmatprep.subr.bf16.mxu0 %v1797
      %1925 = vmatpush1.bf16.msra.mxu0 %v1796
      %1926 = vmatprep.subr.bf16.mxu0 %v1799
      %1927 = vmatpush1.bf16.msra.mxu0 %v1798
      %1928 = vmatprep.subr.bf16.mxu0 %v1801
      %1929 = vmatpush1.bf16.msra.mxu0 %v1800
      %1930 = vmatprep.subr.bf16.mxu0 %v1803
      %1931 = vmatpush1.bf16.msra.mxu0 %v1802
      %1932 = vmatprep.subr.bf16.mxu0 %v1805
      %1933 = vmatpush1.bf16.msra.mxu0 %v1804
      %1934 = vmatprep.subr.bf16.mxu0 %v1807
      %1935 = vmatpush1.bf16.msra.mxu0 %v1806
      %1936 = vmatprep.subr.bf16.mxu0 %v1809
      %1937 = vmatpush1.bf16.msra.mxu0 %v1808
      %1938 = vmatprep.subr.bf16.mxu0 %v1811
      %1939 = vmatpush1.bf16.msra.mxu0 %v1810
      %1940 = vmatprep.subr.bf16.mxu0 %v1813
      %1941 = vmatpush1.bf16.msra.mxu0 %v1812
      %1942 = vmatprep.subr.bf16.mxu0 %v1815
      %1943 = vmatpush1.bf16.msra.mxu0 %v1814
      %1944 = vmatprep.subr.bf16.mxu0 %v1817
      %1945 = vmatpush1.bf16.msra.mxu0 %v1816
      %1946 = vmatprep.subr.bf16.mxu0 %v1819
      %1947 = vmatpush1.bf16.msra.mxu0 %v1818
      %1948 = vmatprep.subr.bf16.mxu0 %v1821
      %1949 = vmatpush1.bf16.msra.mxu0 %v1820
      %1950 = vmatprep.subr.bf16.mxu0 %v1823
      %1951 = vmatpush1.bf16.msra.mxu0 %v1822
      %1952 = vmatprep.subr.bf16.mxu0 %v1825
      %1953 = vmatpush1.bf16.msra.mxu0 %v1824
      %1954 = vmatprep.subr.bf16.mxu0 %v1827
      %1955 = vmatpush1.bf16.msra.mxu0 %v1826
      %1956 = vmatprep.mubr.bf16.mxu0 %v1597
      %1957 = vmatmul.mubr.bf16.gmra.mrb[0].mxu0 %v1596
      %v1958 = vpop.f32.mrb[0].mxu0
      %v1959 = vadd.f32 0.0, %v1958
      %v1960 = vpop.f32.mrb[0].mxu0
      %v1961 = vadd.f32 0.0, %v1960
      %v1962 = vpop.f32.mrb[0].mxu0
      %v1963 = vpop.f32.mrb[0].mxu0
      %1964 = vdwg.mxu0
      %1965 = vmatprep.subr.bf16.mxu0 %v1829
      %1966 = vmatpush1.bf16.msra.mxu0 %v1828
      %1967 = vmatprep.subr.bf16.mxu0 %v1831
      %1968 = vmatpush1.bf16.msra.mxu0 %v1830
      %1969 = vmatprep.subr.bf16.mxu0 %v1833
      %1970 = vmatpush1.bf16.msra.mxu0 %v1832
      %1971 = vmatprep.subr.bf16.mxu0 %v1835
      %1972 = vmatpush1.bf16.msra.mxu0 %v1834
      %1973 = vmatprep.subr.bf16.mxu0 %v1837
      %1974 = vmatpush1.bf16.msra.mxu0 %v1836
      %1975 = vmatprep.subr.bf16.mxu0 %v1839
      %1976 = vmatpush1.bf16.msra.mxu0 %v1838
      %1977 = vmatprep.subr.bf16.mxu0 %v1841
      %1978 = vmatpush1.bf16.msra.mxu0 %v1840
      %1979 = vmatprep.subr.bf16.mxu0 %v1843
      %1980 = vmatpush1.bf16.msra.mxu0 %v1842
      %1981 = vmatprep.subr.bf16.mxu0 %v1845
      %1982 = vmatpush1.bf16.msra.mxu0 %v1844
      %1983 = vmatprep.subr.bf16.mxu0 %v1847
      %1984 = vmatpush1.bf16.msra.mxu0 %v1846
      %1985 = vmatprep.subr.bf16.mxu0 %v1849
      %1986 = vmatpush1.bf16.msra.mxu0 %v1848
      %1987 = vmatprep.subr.bf16.mxu0 %v1851
      %1988 = vmatpush1.bf16.msra.mxu0 %v1850
      %1989 = vmatprep.subr.bf16.mxu0 %v1853
      %1990 = vmatpush1.bf16.msra.mxu0 %v1852
      %1991 = vmatprep.subr.bf16.mxu0 %v1855
      %1992 = vmatpush1.bf16.msra.mxu0 %v1854
      %1993 = vmatprep.subr.bf16.mxu0 %v1857
      %1994 = vmatpush1.bf16.msra.mxu0 %v1856
      %1995 = vmatprep.subr.bf16.mxu0 %v1859
      %1996 = vmatpush1.bf16.msra.mxu0 %v1858
      %1997 = vmatprep.mubr.bf16.mxu0 %v1599
      %1998 = vmatmul.mubr.bf16.gmra.mrb[0].mxu0 %v1598
      %v1999 = vpop.f32.mrb[0].mxu0
      %v2000 = vadd.f32 %v1959, %v1999
      %v2001 = vpop.f32.mrb[0].mxu0
      %v2002 = vadd.f32 %v1961, %v2001
      %v2003 = vpop.f32.mrb[0].mxu0
      %v2004 = vpop.f32.mrb[0].mxu0
      %2005 = vdwg.mxu0
      %v2006 = vadd.f32 %v1291, %v2000
      %v2007 = vadd.f32 %v1293, %v2002
      %v2010 = vunpack.c.l.b16 %v1523
      %v2011 = vunpack.c.h.b16 %v1523
      %v2012 = vunpack.c.l.b16 %v1524
      %v2013 = vunpack.c.h.b16 %v1524
      %v2014 = vpack.c.b16 %v2010, %v2010
      %v2015 = vpack.c.b16 %v2011, %v2011
      %v2016 = vpack.c.b16 %v2012, %v2012
      %v2017 = vpack.c.b16 %v2013, %v2013
      %2022 = vmatprep.subr.bf16.mxu0 %v1797
      %2023 = vmatpush1.bf16.msra.mxu0 %v1796
      %2024 = vmatprep.subr.bf16.mxu0 %v1799
      %2025 = vmatpush1.bf16.msra.mxu0 %v1798
      %2026 = vmatprep.subr.bf16.mxu0 %v1801
      %2027 = vmatpush1.bf16.msra.mxu0 %v1800
      %2028 = vmatprep.subr.bf16.mxu0 %v1803
      %2029 = vmatpush1.bf16.msra.mxu0 %v1802
      %2030 = vmatprep.subr.bf16.mxu0 %v1805
      %2031 = vmatpush1.bf16.msra.mxu0 %v1804
      %2032 = vmatprep.subr.bf16.mxu0 %v1807
      %2033 = vmatpush1.bf16.msra.mxu0 %v1806
      %2034 = vmatprep.subr.bf16.mxu0 %v1809
      %2035 = vmatpush1.bf16.msra.mxu0 %v1808
      %2036 = vmatprep.subr.bf16.mxu0 %v1811
      %2037 = vmatpush1.bf16.msra.mxu0 %v1810
      %2038 = vmatprep.subr.bf16.mxu0 %v1813
      %2039 = vmatpush1.bf16.msra.mxu0 %v1812
      %2040 = vmatprep.subr.bf16.mxu0 %v1815
      %2041 = vmatpush1.bf16.msra.mxu0 %v1814
      %2042 = vmatprep.subr.bf16.mxu0 %v1817
      %2043 = vmatpush1.bf16.msra.mxu0 %v1816
      %2044 = vmatprep.subr.bf16.mxu0 %v1819
      %2045 = vmatpush1.bf16.msra.mxu0 %v1818
      %2046 = vmatprep.subr.bf16.mxu0 %v1821
      %2047 = vmatpush1.bf16.msra.mxu0 %v1820
      %2048 = vmatprep.subr.bf16.mxu0 %v1823
      %2049 = vmatpush1.bf16.msra.mxu0 %v1822
      %2050 = vmatprep.subr.bf16.mxu0 %v1825
      %2051 = vmatpush1.bf16.msra.mxu0 %v1824
      %2052 = vmatprep.subr.bf16.mxu0 %v1827
      %2053 = vmatpush1.bf16.msra.mxu0 %v1826
      %2054 = vmatprep.mubr.bf16.mxu0 %v2015
      %2055 = vmatmul.mubr.bf16.gmra.mrb[0].mxu0 %v2014
      %v2056 = vpop.f32.mrb[0].mxu0
      %v2057 = vadd.f32 0.0, %v2056
      %v2058 = vpop.f32.mrb[0].mxu0
      %v2059 = vadd.f32 0.0, %v2058
      %v2060 = vpop.f32.mrb[0].mxu0
      %v2061 = vpop.f32.mrb[0].mxu0
      %2062 = vdwg.mxu0
      %2063 = vmatprep.subr.bf16.mxu0 %v1829
      %2064 = vmatpush1.bf16.msra.mxu0 %v1828
      %2065 = vmatprep.subr.bf16.mxu0 %v1831
      %2066 = vmatpush1.bf16.msra.mxu0 %v1830
      %2067 = vmatprep.subr.bf16.mxu0 %v1833
      %2068 = vmatpush1.bf16.msra.mxu0 %v1832
      %2069 = vmatprep.subr.bf16.mxu0 %v1835
      %2070 = vmatpush1.bf16.msra.mxu0 %v1834
      %2071 = vmatprep.subr.bf16.mxu0 %v1837
      %2072 = vmatpush1.bf16.msra.mxu0 %v1836
      %2073 = vmatprep.subr.bf16.mxu0 %v1839
      %2074 = vmatpush1.bf16.msra.mxu0 %v1838
      %2075 = vmatprep.subr.bf16.mxu0 %v1841
      %2076 = vmatpush1.bf16.msra.mxu0 %v1840
      %2077 = vmatprep.subr.bf16.mxu0 %v1843
      %2078 = vmatpush1.bf16.msra.mxu0 %v1842
      %2079 = vmatprep.subr.bf16.mxu0 %v1845
      %2080 = vmatpush1.bf16.msra.mxu0 %v1844
      %2081 = vmatprep.subr.bf16.mxu0 %v1847
      %2082 = vmatpush1.bf16.msra.mxu0 %v1846
      %2083 = vmatprep.subr.bf16.mxu0 %v1849
      %2084 = vmatpush1.bf16.msra.mxu0 %v1848
      %2085 = vmatprep.subr.bf16.mxu0 %v1851
      %2086 = vmatpush1.bf16.msra.mxu0 %v1850
      %2087 = vmatprep.subr.bf16.mxu0 %v1853
      %2088 = vmatpush1.bf16.msra.mxu0 %v1852
      %2089 = vmatprep.subr.bf16.mxu0 %v1855
      %2090 = vmatpush1.bf16.msra.mxu0 %v1854
      %2091 = vmatprep.subr.bf16.mxu0 %v1857
      %2092 = vmatpush1.bf16.msra.mxu0 %v1856
      %2093 = vmatprep.subr.bf16.mxu0 %v1859
      %2094 = vmatpush1.bf16.msra.mxu0 %v1858
      %2095 = vmatprep.mubr.bf16.mxu0 %v2017
      %2096 = vmatmul.mubr.bf16.gmra.mrb[0].mxu0 %v2016
      %v2097 = vpop.f32.mrb[0].mxu0
      %v2098 = vadd.f32 %v2057, %v2097
      %v2099 = vpop.f32.mrb[0].mxu0
      %v2100 = vadd.f32 %v2059, %v2099
      %v2101 = vpop.f32.mrb[0].mxu0
      %v2102 = vpop.f32.mrb[0].mxu0
      %2103 = vdwg.mxu0
      %v2104 = vadd.f32 %v1511, %v2098
      %v2105 = vadd.f32 %v1513, %v2100
      %v2106 = vld [vmem:[%s1520] sm:$0x77]
      %v2107 = vld [vmem:[%s1520 + $0x8] sm:$0x77]
      %v2108 = vld [vmem:[%s1520 + $0x10] sm:$0x77]
      %v2109 = vld [vmem:[%s1520 + $0x18] sm:$0x77]
      %s2110 = scalar_lea.vmem %s1, 1536
      %v2111 = vld [vmem:[%s2110] sm:$0xff]
      %v2112 = vld [vmem:[%s2110 + $0x8] sm:$0xff]
      %v2113 = vld [vmem:[%s2110 + $0x10] sm:$0xff]
      %v2114 = vld [vmem:[%s2110 + $0x18] sm:$0xff]
      %v2115 = vld [vmem:[%s2110 + $0x20] sm:$0xff]
      %v2116 = vld [vmem:[%s2110 + $0x28] sm:$0xff]
      %v2117 = vld [vmem:[%s2110 + $0x30] sm:$0xff]
      %v2118 = vld [vmem:[%s2110 + $0x38] sm:$0xff]
      %v2119 = vld [vmem:[%s2110 + $0x40] sm:$0xff]
      %v2120 = vld [vmem:[%s2110 + $0x48] sm:$0xff]
      %v2121 = vld [vmem:[%s2110 + $0x50] sm:$0xff]
      %v2122 = vld [vmem:[%s2110 + $0x58] sm:$0xff]
      %v2123 = vld [vmem:[%s2110 + $0x60] sm:$0xff]
      %v2124 = vld [vmem:[%s2110 + $0x68] sm:$0xff]
      %v2125 = vld [vmem:[%s2110 + $0x70] sm:$0xff]
      %v2126 = vld [vmem:[%s2110 + $0x78] sm:$0xff]
      %v2127 = vld [vmem:[%s2110 + $0x80] sm:$0xff]
      %v2128 = vld [vmem:[%s2110 + $0x88] sm:$0xff]
      %v2129 = vld [vmem:[%s2110 + $0x90] sm:$0xff]
      %v2130 = vld [vmem:[%s2110 + $0x98] sm:$0xff]
      %v2131 = vld [vmem:[%s2110 + $0xa0] sm:$0xff]
      %v2132 = vld [vmem:[%s2110 + $0xa8] sm:$0xff]
      %v2133 = vld [vmem:[%s2110 + $0xb0] sm:$0xff]
      %v2134 = vld [vmem:[%s2110 + $0xb8] sm:$0xff]
      %v2135 = vld [vmem:[%s2110 + $0xc0] sm:$0xff]
      %v2136 = vld [vmem:[%s2110 + $0xc8] sm:$0xff]
      %v2137 = vld [vmem:[%s2110 + $0xd0] sm:$0xff]
      %v2138 = vld [vmem:[%s2110 + $0xd8] sm:$0xff]
      %v2139 = vld [vmem:[%s2110 + $0xe0] sm:$0xff]
      %v2140 = vld [vmem:[%s2110 + $0xe8] sm:$0xff]
      %v2141 = vld [vmem:[%s2110 + $0xf0] sm:$0xff]
      %v2142 = vld [vmem:[%s2110 + $0xf8] sm:$0xff]
      %v2143 = vld [vmem:[%s2110 + $0x100] sm:$0xff]
      %v2144 = vld [vmem:[%s2110 + $0x108] sm:$0xff]
      %v2145 = vld [vmem:[%s2110 + $0x110] sm:$0xff]
      %v2146 = vld [vmem:[%s2110 + $0x118] sm:$0xff]
      %v2147 = vld [vmem:[%s2110 + $0x120] sm:$0xff]
      %v2148 = vld [vmem:[%s2110 + $0x128] sm:$0xff]
      %v2149 = vld [vmem:[%s2110 + $0x130] sm:$0xff]
      %v2150 = vld [vmem:[%s2110 + $0x138] sm:$0xff]
      %v2151 = vld [vmem:[%s2110 + $0x140] sm:$0xff]
      %v2152 = vld [vmem:[%s2110 + $0x148] sm:$0xff]
      %v2153 = vld [vmem:[%s2110 + $0x150] sm:$0xff]
      %v2154 = vld [vmem:[%s2110 + $0x158] sm:$0xff]
      %v2155 = vld [vmem:[%s2110 + $0x160] sm:$0xff]
      %v2156 = vld [vmem:[%s2110 + $0x168] sm:$0xff]
      %v2157 = vld [vmem:[%s2110 + $0x170] sm:$0xff]
      %v2158 = vld [vmem:[%s2110 + $0x178] sm:$0xff]
      %v2159 = vld [vmem:[%s2110 + $0x180] sm:$0xff]
      %v2160 = vld [vmem:[%s2110 + $0x188] sm:$0xff]
      %v2161 = vld [vmem:[%s2110 + $0x190] sm:$0xff]
      %v2162 = vld [vmem:[%s2110 + $0x198] sm:$0xff]
      %v2163 = vld [vmem:[%s2110 + $0x1a0] sm:$0xff]
      %v2164 = vld [vmem:[%s2110 + $0x1a8] sm:$0xff]
      %v2165 = vld [vmem:[%s2110 + $0x1b0] sm:$0xff]
      %v2166 = vld [vmem:[%s2110 + $0x1b8] sm:$0xff]
      %v2167 = vld [vmem:[%s2110 + $0x1c0] sm:$0xff]
      %v2168 = vld [vmem:[%s2110 + $0x1c8] sm:$0xff]
      %v2169 = vld [vmem:[%s2110 + $0x1d0] sm:$0xff]
      %v2170 = vld [vmem:[%s2110 + $0x1d8] sm:$0xff]
      %v2171 = vld [vmem:[%s2110 + $0x1e0] sm:$0xff]
      %v2172 = vld [vmem:[%s2110 + $0x1e8] sm:$0xff]
      %v2173 = vld [vmem:[%s2110 + $0x1f0] sm:$0xff]
      %v2174 = vld [vmem:[%s2110 + $0x1f8] sm:$0xff]
      %v2177 = vunpack.c.l.b16 %v2106
      %v2178 = vunpack.c.h.b16 %v2106
      %v2179 = vunpack.c.l.b16 %v2107
      %v2180 = vunpack.c.h.b16 %v2107
      %v2181 = vpack.c.b16 %v2177, %v2177
      %v2182 = vpack.c.b16 %v2178, %v2178
      %v2183 = vpack.c.b16 %v2179, %v2179
      %v2184 = vpack.c.b16 %v2180, %v2180
      %v2186 = vshrl.u32 %v2181, 16
      %v2188 = vshll.u32 %v2181, 16
      %v2190 = vrot.slane %v2188, 1
      %v2191 = vor.u32 %v2186, %v2190
      %v2193 = vshrl.u32 %v2182, 16
      %v2195 = vshll.u32 %v2182, 16
      %v2197 = vrot.slane %v2195, 1
      %v2198 = vor.u32 %v2193, %v2197
      %v2200 = vshrl.u32 %v2183, 16
      %v2202 = vshll.u32 %v2183, 16
      %v2204 = vrot.slane %v2202, 1
      %v2205 = vor.u32 %v2200, %v2204
      %v2207 = vshrl.u32 %v2184, 16
      %v2209 = vshll.u32 %v2184, 16
      %v2211 = vrot.slane %v2209, 1
      %v2212 = vor.u32 %v2207, %v2211
      %v2281 = vunpack.c.l.b16 %v2111
      %v2282 = vunpack.c.h.b16 %v2111
      %v2283 = vunpack.c.l.b16 %v2112
      %v2284 = vunpack.c.h.b16 %v2112
      %v2285 = vunpack.c.l.b16 %v2113
      %v2286 = vunpack.c.h.b16 %v2113
      %v2287 = vunpack.c.l.b16 %v2114
      %v2288 = vunpack.c.h.b16 %v2114
      %v2289 = vunpack.c.l.b16 %v2115
      %v2290 = vunpack.c.h.b16 %v2115
      %v2291 = vunpack.c.l.b16 %v2116
      %v2292 = vunpack.c.h.b16 %v2116
      %v2293 = vunpack.c.l.b16 %v2117
      %v2294 = vunpack.c.h.b16 %v2117
      %v2295 = vunpack.c.l.b16 %v2118
      %v2296 = vunpack.c.h.b16 %v2118
      %v2297 = vunpack.c.l.b16 %v2119
      %v2298 = vunpack.c.h.b16 %v2119
      %v2299 = vunpack.c.l.b16 %v2120
      %v2300 = vunpack.c.h.b16 %v2120
      %v2301 = vunpack.c.l.b16 %v2121
      %v2302 = vunpack.c.h.b16 %v2121
      %v2303 = vunpack.c.l.b16 %v2122
      %v2304 = vunpack.c.h.b16 %v2122
      %v2305 = vunpack.c.l.b16 %v2123
      %v2306 = vunpack.c.h.b16 %v2123
      %v2307 = vunpack.c.l.b16 %v2124
      %v2308 = vunpack.c.h.b16 %v2124
      %v2309 = vunpack.c.l.b16 %v2125
      %v2310 = vunpack.c.h.b16 %v2125
      %v2311 = vunpack.c.l.b16 %v2126
      %v2312 = vunpack.c.h.b16 %v2126
      %v2313 = vunpack.c.l.b16 %v2127
      %v2314 = vunpack.c.h.b16 %v2127
      %v2315 = vunpack.c.l.b16 %v2128
      %v2316 = vunpack.c.h.b16 %v2128
      %v2317 = vunpack.c.l.b16 %v2129
      %v2318 = vunpack.c.h.b16 %v2129
      %v2319 = vunpack.c.l.b16 %v2130
      %v2320 = vunpack.c.h.b16 %v2130
      %v2321 = vunpack.c.l.b16 %v2131
      %v2322 = vunpack.c.h.b16 %v2131
      %v2323 = vunpack.c.l.b16 %v2132
      %v2324 = vunpack.c.h.b16 %v2132
      %v2325 = vunpack.c.l.b16 %v2133
      %v2326 = vunpack.c.h.b16 %v2133
      %v2327 = vunpack.c.l.b16 %v2134
      %v2328 = vunpack.c.h.b16 %v2134
      %v2329 = vunpack.c.l.b16 %v2135
      %v2330 = vunpack.c.h.b16 %v2135
      %v2331 = vunpack.c.l.b16 %v2136
      %v2332 = vunpack.c.h.b16 %v2136
      %v2333 = vunpack.c.l.b16 %v2137
      %v2334 = vunpack.c.h.b16 %v2137
      %v2335 = vunpack.c.l.b16 %v2138
      %v2336 = vunpack.c.h.b16 %v2138
      %v2337 = vunpack.c.l.b16 %v2139
      %v2338 = vunpack.c.h.b16 %v2139
      %v2339 = vunpack.c.l.b16 %v2140
      %v2340 = vunpack.c.h.b16 %v2140
      %v2341 = vunpack.c.l.b16 %v2141
      %v2342 = vunpack.c.h.b16 %v2141
      %v2343 = vunpack.c.l.b16 %v2142
      %v2344 = vunpack.c.h.b16 %v2142
      %v2345 = vunpack.c.l.b16 %v2143
      %v2346 = vunpack.c.h.b16 %v2143
      %v2347 = vunpack.c.l.b16 %v2144
      %v2348 = vunpack.c.h.b16 %v2144
      %v2349 = vunpack.c.l.b16 %v2145
      %v2350 = vunpack.c.h.b16 %v2145
      %v2351 = vunpack.c.l.b16 %v2146
      %v2352 = vunpack.c.h.b16 %v2146
      %v2353 = vunpack.c.l.b16 %v2147
      %v2354 = vunpack.c.h.b16 %v2147
      %v2355 = vunpack.c.l.b16 %v2148
      %v2356 = vunpack.c.h.b16 %v2148
      %v2357 = vunpack.c.l.b16 %v2149
      %v2358 = vunpack.c.h.b16 %v2149
      %v2359 = vunpack.c.l.b16 %v2150
      %v2360 = vunpack.c.h.b16 %v2150
      %v2361 = vunpack.c.l.b16 %v2151
      %v2362 = vunpack.c.h.b16 %v2151
      %v2363 = vunpack.c.l.b16 %v2152
      %v2364 = vunpack.c.h.b16 %v2152
      %v2365 = vunpack.c.l.b16 %v2153
      %v2366 = vunpack.c.h.b16 %v2153
      %v2367 = vunpack.c.l.b16 %v2154
      %v2368 = vunpack.c.h.b16 %v2154
      %v2369 = vunpack.c.l.b16 %v2155
      %v2370 = vunpack.c.h.b16 %v2155
      %v2371 = vunpack.c.l.b16 %v2156
      %v2372 = vunpack.c.h.b16 %v2156
      %v2373 = vunpack.c.l.b16 %v2157
      %v2374 = vunpack.c.h.b16 %v2157
      %v2375 = vunpack.c.l.b16 %v2158
      %v2376 = vunpack.c.h.b16 %v2158
      %v2377 = vunpack.c.l.b16 %v2159
      %v2378 = vunpack.c.h.b16 %v2159
      %v2379 = vunpack.c.l.b16 %v2160
      %v2380 = vunpack.c.h.b16 %v2160
      %v2381 = vunpack.c.l.b16 %v2161
      %v2382 = vunpack.c.h.b16 %v2161
      %v2383 = vunpack.c.l.b16 %v2162
      %v2384 = vunpack.c.h.b16 %v2162
      %v2385 = vunpack.c.l.b16 %v2163
      %v2386 = vunpack.c.h.b16 %v2163
      %v2387 = vunpack.c.l.b16 %v2164
      %v2388 = vunpack.c.h.b16 %v2164
      %v2389 = vunpack.c.l.b16 %v2165
      %v2390 = vunpack.c.h.b16 %v2165
      %v2391 = vunpack.c.l.b16 %v2166
      %v2392 = vunpack.c.h.b16 %v2166
      %v2393 = vunpack.c.l.b16 %v2167
      %v2394 = vunpack.c.h.b16 %v2167
      %v2395 = vunpack.c.l.b16 %v2168
      %v2396 = vunpack.c.h.b16 %v2168
      %v2397 = vunpack.c.l.b16 %v2169
      %v2398 = vunpack.c.h.b16 %v2169
      %v2399 = vunpack.c.l.b16 %v2170
      %v2400 = vunpack.c.h.b16 %v2170
      %v2401 = vunpack.c.l.b16 %v2171
      %v2402 = vunpack.c.h.b16 %v2171
      %v2403 = vunpack.c.l.b16 %v2172
      %v2404 = vunpack.c.h.b16 %v2172
      %v2405 = vunpack.c.l.b16 %v2173
      %v2406 = vunpack.c.h.b16 %v2173
      %v2407 = vunpack.c.l.b16 %v2174
      %v2408 = vunpack.c.h.b16 %v2174
      %v2409 = vpack.c.b16 %v2283, %v2281
      %v2410 = vpack.c.b16 %v2284, %v2282
      %v2411 = vpack.c.b16 %v2287, %v2285
      %v2412 = vpack.c.b16 %v2288, %v2286
      %v2413 = vpack.c.b16 %v2291, %v2289
      %v2414 = vpack.c.b16 %v2292, %v2290
      %v2415 = vpack.c.b16 %v2295, %v2293
      %v2416 = vpack.c.b16 %v2296, %v2294
      %v2417 = vpack.c.b16 %v2299, %v2297
      %v2418 = vpack.c.b16 %v2300, %v2298
      %v2419 = vpack.c.b16 %v2303, %v2301
      %v2420 = vpack.c.b16 %v2304, %v2302
      %v2421 = vpack.c.b16 %v2307, %v2305
      %v2422 = vpack.c.b16 %v2308, %v2306
      %v2423 = vpack.c.b16 %v2311, %v2309
      %v2424 = vpack.c.b16 %v2312, %v2310
      %v2425 = vpack.c.b16 %v2315, %v2313
      %v2426 = vpack.c.b16 %v2316, %v2314
      %v2427 = vpack.c.b16 %v2319, %v2317
      %v2428 = vpack.c.b16 %v2320, %v2318
      %v2429 = vpack.c.b16 %v2323, %v2321
      %v2430 = vpack.c.b16 %v2324, %v2322
      %v2431 = vpack.c.b16 %v2327, %v2325
      %v2432 = vpack.c.b16 %v2328, %v2326
      %v2433 = vpack.c.b16 %v2331, %v2329
      %v2434 = vpack.c.b16 %v2332, %v2330
      %v2435 = vpack.c.b16 %v2335, %v2333
      %v2436 = vpack.c.b16 %v2336, %v2334
      %v2437 = vpack.c.b16 %v2339, %v2337
      %v2438 = vpack.c.b16 %v2340, %v2338
      %v2439 = vpack.c.b16 %v2343, %v2341
      %v2440 = vpack.c.b16 %v2344, %v2342
      %v2441 = vpack.c.b16 %v2347, %v2345
      %v2442 = vpack.c.b16 %v2348, %v2346
      %v2443 = vpack.c.b16 %v2351, %v2349
      %v2444 = vpack.c.b16 %v2352, %v2350
      %v2445 = vpack.c.b16 %v2355, %v2353
      %v2446 = vpack.c.b16 %v2356, %v2354
      %v2447 = vpack.c.b16 %v2359, %v2357
      %v2448 = vpack.c.b16 %v2360, %v2358
      %v2449 = vpack.c.b16 %v2363, %v2361
      %v2450 = vpack.c.b16 %v2364, %v2362
      %v2451 = vpack.c.b16 %v2367, %v2365
      %v2452 = vpack.c.b16 %v2368, %v2366
      %v2453 = vpack.c.b16 %v2371, %v2369
      %v2454 = vpack.c.b16 %v2372, %v2370
      %v2455 = vpack.c.b16 %v2375, %v2373
      %v2456 = vpack.c.b16 %v2376, %v2374
      %v2457 = vpack.c.b16 %v2379, %v2377
      %v2458 = vpack.c.b16 %v2380, %v2378
      %v2459 = vpack.c.b16 %v2383, %v2381
      %v2460 = vpack.c.b16 %v2384, %v2382
      %v2461 = vpack.c.b16 %v2387, %v2385
      %v2462 = vpack.c.b16 %v2388, %v2386
      %v2463 = vpack.c.b16 %v2391, %v2389
      %v2464 = vpack.c.b16 %v2392, %v2390
      %v2465 = vpack.c.b16 %v2395, %v2393
      %v2466 = vpack.c.b16 %v2396, %v2394
      %v2467 = vpack.c.b16 %v2399, %v2397
      %v2468 = vpack.c.b16 %v2400, %v2398
      %v2469 = vpack.c.b16 %v2403, %v2401
      %v2470 = vpack.c.b16 %v2404, %v2402
      %v2471 = vpack.c.b16 %v2407, %v2405
      %v2472 = vpack.c.b16 %v2408, %v2406
      %2537 = vmatprep.subr.bf16.mxu0 %v2410
      %2538 = vmatpush1.bf16.msra.mxu0 %v2409
      %2539 = vmatprep.subr.bf16.mxu0 %v2412
      %2540 = vmatpush1.bf16.msra.mxu0 %v2411
      %2541 = vmatprep.subr.bf16.mxu0 %v2414
      %2542 = vmatpush1.bf16.msra.mxu0 %v2413
      %2543 = vmatprep.subr.bf16.mxu0 %v2416
      %2544 = vmatpush1.bf16.msra.mxu0 %v2415
      %2545 = vmatprep.subr.bf16.mxu0 %v2418
      %2546 = vmatpush1.bf16.msra.mxu0 %v2417
      %2547 = vmatprep.subr.bf16.mxu0 %v2420
      %2548 = vmatpush1.bf16.msra.mxu0 %v2419
      %2549 = vmatprep.subr.bf16.mxu0 %v2422
      %2550 = vmatpush1.bf16.msra.mxu0 %v2421
      %2551 = vmatprep.subr.bf16.mxu0 %v2424
      %2552 = vmatpush1.bf16.msra.mxu0 %v2423
      %2553 = vmatprep.subr.bf16.mxu0 %v2426
      %2554 = vmatpush1.bf16.msra.mxu0 %v2425
      %2555 = vmatprep.subr.bf16.mxu0 %v2428
      %2556 = vmatpush1.bf16.msra.mxu0 %v2427
      %2557 = vmatprep.subr.bf16.mxu0 %v2430
      %2558 = vmatpush1.bf16.msra.mxu0 %v2429
      %2559 = vmatprep.subr.bf16.mxu0 %v2432
      %2560 = vmatpush1.bf16.msra.mxu0 %v2431
      %2561 = vmatprep.subr.bf16.mxu0 %v2434
      %2562 = vmatpush1.bf16.msra.mxu0 %v2433
      %2563 = vmatprep.subr.bf16.mxu0 %v2436
      %2564 = vmatpush1.bf16.msra.mxu0 %v2435
      %2565 = vmatprep.subr.bf16.mxu0 %v2438
      %2566 = vmatpush1.bf16.msra.mxu0 %v2437
      %2567 = vmatprep.subr.bf16.mxu0 %v2440
      %2568 = vmatpush1.bf16.msra.mxu0 %v2439
      %2569 = vmatprep.mubr.bf16.mxu0 %v2198
      %2570 = vmatmul.mubr.bf16.gmra.mrb[0].mxu0 %v2191
      %v2571 = vpop.f32.mrb[0].mxu0
      %v2572 = vadd.f32 0.0, %v2571
      %v2573 = vpop.f32.mrb[0].mxu0
      %v2574 = vadd.f32 0.0, %v2573
      %v2575 = vpop.f32.mrb[0].mxu0
      %v2576 = vpop.f32.mrb[0].mxu0
      %2577 = vdwg.mxu0
      %2578 = vmatprep.subr.bf16.mxu0 %v2442
      %2579 = vmatpush1.bf16.msra.mxu0 %v2441
      %2580 = vmatprep.subr.bf16.mxu0 %v2444
      %2581 = vmatpush1.bf16.msra.mxu0 %v2443
      %2582 = vmatprep.subr.bf16.mxu0 %v2446
      %2583 = vmatpush1.bf16.msra.mxu0 %v2445
      %2584 = vmatprep.subr.bf16.mxu0 %v2448
      %2585 = vmatpush1.bf16.msra.mxu0 %v2447
      %2586 = vmatprep.subr.bf16.mxu0 %v2450
      %2587 = vmatpush1.bf16.msra.mxu0 %v2449
      %2588 = vmatprep.subr.bf16.mxu0 %v2452
      %2589 = vmatpush1.bf16.msra.mxu0 %v2451
      %2590 = vmatprep.subr.bf16.mxu0 %v2454
      %2591 = vmatpush1.bf16.msra.mxu0 %v2453
      %2592 = vmatprep.subr.bf16.mxu0 %v2456
      %2593 = vmatpush1.bf16.msra.mxu0 %v2455
      %2594 = vmatprep.subr.bf16.mxu0 %v2458
      %2595 = vmatpush1.bf16.msra.mxu0 %v2457
      %2596 = vmatprep.subr.bf16.mxu0 %v2460
      %2597 = vmatpush1.bf16.msra.mxu0 %v2459
      %2598 = vmatprep.subr.bf16.mxu0 %v2462
      %2599 = vmatpush1.bf16.msra.mxu0 %v2461
      %2600 = vmatprep.subr.bf16.mxu0 %v2464
      %2601 = vmatpush1.bf16.msra.mxu0 %v2463
      %2602 = vmatprep.subr.bf16.mxu0 %v2466
      %2603 = vmatpush1.bf16.msra.mxu0 %v2465
      %2604 = vmatprep.subr.bf16.mxu0 %v2468
      %2605 = vmatpush1.bf16.msra.mxu0 %v2467
      %2606 = vmatprep.subr.bf16.mxu0 %v2470
      %2607 = vmatpush1.bf16.msra.mxu0 %v2469
      %2608 = vmatprep.subr.bf16.mxu0 %v2472
      %2609 = vmatpush1.bf16.msra.mxu0 %v2471
      %2610 = vmatprep.mubr.bf16.mxu0 %v2212
      %2611 = vmatmul.mubr.bf16.gmra.mrb[0].mxu0 %v2205
      %v2612 = vpop.f32.mrb[0].mxu0
      %v2613 = vadd.f32 %v2572, %v2612
      %v2614 = vpop.f32.mrb[0].mxu0
      %v2615 = vadd.f32 %v2574, %v2614
      %v2616 = vpop.f32.mrb[0].mxu0
      %v2617 = vpop.f32.mrb[0].mxu0
      %2618 = vdwg.mxu0
      %v2619 = vadd.f32 %v2006, %v2613
      %v2620 = vadd.f32 %v2007, %v2615
      %v2623 = vunpack.c.l.b16 %v2108
      %v2624 = vunpack.c.h.b16 %v2108
      %v2625 = vunpack.c.l.b16 %v2109
      %v2626 = vunpack.c.h.b16 %v2109
      %v2627 = vpack.c.b16 %v2623, %v2623
      %v2628 = vpack.c.b16 %v2624, %v2624
      %v2629 = vpack.c.b16 %v2625, %v2625
      %v2630 = vpack.c.b16 %v2626, %v2626
      %v2632 = vshrl.u32 %v2627, 16
      %v2634 = vshll.u32 %v2627, 16
      %v2636 = vrot.slane %v2634, 1
      %v2637 = vor.u32 %v2632, %v2636
      %v2639 = vshrl.u32 %v2628, 16
      %v2641 = vshll.u32 %v2628, 16
      %v2643 = vrot.slane %v2641, 1
      %v2644 = vor.u32 %v2639, %v2643
      %v2646 = vshrl.u32 %v2629, 16
      %v2648 = vshll.u32 %v2629, 16
      %v2650 = vrot.slane %v2648, 1
      %v2651 = vor.u32 %v2646, %v2650
      %v2653 = vshrl.u32 %v2630, 16
      %v2655 = vshll.u32 %v2630, 16
      %v2657 = vrot.slane %v2655, 1
      %v2658 = vor.u32 %v2653, %v2657
      %2663 = vmatprep.subr.bf16.mxu0 %v2410
      %2664 = vmatpush1.bf16.msra.mxu0 %v2409
      %2665 = vmatprep.subr.bf16.mxu0 %v2412
      %2666 = vmatpush1.bf16.msra.mxu0 %v2411
      %2667 = vmatprep.subr.bf16.mxu0 %v2414
      %2668 = vmatpush1.bf16.msra.mxu0 %v2413
      %2669 = vmatprep.subr.bf16.mxu0 %v2416
      %2670 = vmatpush1.bf16.msra.mxu0 %v2415
      %2671 = vmatprep.subr.bf16.mxu0 %v2418
      %2672 = vmatpush1.bf16.msra.mxu0 %v2417
      %2673 = vmatprep.subr.bf16.mxu0 %v2420
      %2674 = vmatpush1.bf16.msra.mxu0 %v2419
      %2675 = vmatprep.subr.bf16.mxu0 %v2422
      %2676 = vmatpush1.bf16.msra.mxu0 %v2421
      %2677 = vmatprep.subr.bf16.mxu0 %v2424
      %2678 = vmatpush1.bf16.msra.mxu0 %v2423
      %2679 = vmatprep.subr.bf16.mxu0 %v2426
      %2680 = vmatpush1.bf16.msra.mxu0 %v2425
      %2681 = vmatprep.subr.bf16.mxu0 %v2428
      %2682 = vmatpush1.bf16.msra.mxu0 %v2427
      %2683 = vmatprep.subr.bf16.mxu0 %v2430
      %2684 = vmatpush1.bf16.msra.mxu0 %v2429
      %2685 = vmatprep.subr.bf16.mxu0 %v2432
      %2686 = vmatpush1.bf16.msra.mxu0 %v2431
      %2687 = vmatprep.subr.bf16.mxu0 %v2434
      %2688 = vmatpush1.bf16.msra.mxu0 %v2433
      %2689 = vmatprep.subr.bf16.mxu0 %v2436
      %2690 = vmatpush1.bf16.msra.mxu0 %v2435
      %2691 = vmatprep.subr.bf16.mxu0 %v2438
      %2692 = vmatpush1.bf16.msra.mxu0 %v2437
      %2693 = vmatprep.subr.bf16.mxu0 %v2440
      %2694 = vmatpush1.bf16.msra.mxu0 %v2439
      %2695 = vmatprep.mubr.bf16.mxu0 %v2644
      %2696 = vmatmul.mubr.bf16.gmra.mrb[0].mxu0 %v2637
      %v2697 = vpop.f32.mrb[0].mxu0
      %v2698 = vadd.f32 0.0, %v2697
      %v2699 = vpop.f32.mrb[0].mxu0
      %v2700 = vadd.f32 0.0, %v2699
      %v2701 = vpop.f32.mrb[0].mxu0
      %v2702 = vpop.f32.mrb[0].mxu0
      %2703 = vdwg.mxu0
      %2704 = vmatprep.subr.bf16.mxu0 %v2442
      %2705 = vmatpush1.bf16.msra.mxu0 %v2441
      %2706 = vmatprep.subr.bf16.mxu0 %v2444
      %2707 = vmatpush1.bf16.msra.mxu0 %v2443
      %2708 = vmatprep.subr.bf16.mxu0 %v2446
      %2709 = vmatpush1.bf16.msra.mxu0 %v2445
      %2710 = vmatprep.subr.bf16.mxu0 %v2448
      %2711 = vmatpush1.bf16.msra.mxu0 %v2447
      %2712 = vmatprep.subr.bf16.mxu0 %v2450
      %2713 = vmatpush1.bf16.msra.mxu0 %v2449
      %2714 = vmatprep.subr.bf16.mxu0 %v2452
      %2715 = vmatpush1.bf16.msra.mxu0 %v2451
      %2716 = vmatprep.subr.bf16.mxu0 %v2454
      %2717 = vmatpush1.bf16.msra.mxu0 %v2453
      %2718 = vmatprep.subr.bf16.mxu0 %v2456
      %2719 = vmatpush1.bf16.msra.mxu0 %v2455
      %2720 = vmatprep.subr.bf16.mxu0 %v2458
      %2721 = vmatpush1.bf16.msra.mxu0 %v2457
      %2722 = vmatprep.subr.bf16.mxu0 %v2460
      %2723 = vmatpush1.bf16.msra.mxu0 %v2459
      %2724 = vmatprep.subr.bf16.mxu0 %v2462
      %2725 = vmatpush1.bf16.msra.mxu0 %v2461
      %2726 = vmatprep.subr.bf16.mxu0 %v2464
      %2727 = vmatpush1.bf16.msra.mxu0 %v2463
      %2728 = vmatprep.subr.bf16.mxu0 %v2466
      %2729 = vmatpush1.bf16.msra.mxu0 %v2465
      %2730 = vmatprep.subr.bf16.mxu0 %v2468
      %2731 = vmatpush1.bf16.msra.mxu0 %v2467
      %2732 = vmatprep.subr.bf16.mxu0 %v2470
      %2733 = vmatpush1.bf16.msra.mxu0 %v2469
      %2734 = vmatprep.subr.bf16.mxu0 %v2472
      %2735 = vmatpush1.bf16.msra.mxu0 %v2471
      %2736 = vmatprep.mubr.bf16.mxu0 %v2658
      %2737 = vmatmul.mubr.bf16.gmra.mrb[0].mxu0 %v2651
      %v2738 = vpop.f32.mrb[0].mxu0
      %v2739 = vadd.f32 %v2698, %v2738
      %v2740 = vpop.f32.mrb[0].mxu0
      %v2741 = vadd.f32 %v2700, %v2740
      %v2742 = vpop.f32.mrb[0].mxu0
      %v2743 = vpop.f32.mrb[0].mxu0
      %2744 = vdwg.mxu0
      %v2745 = vadd.f32 %v2104, %v2739
      %v2746 = vadd.f32 %v2105, %v2741
      %v2748 = vlaneseq
      %v2749 = vshrl.u32 %v2748, 7
      %v2750 = vsub.s32 0, %v2749
      %v2751 = vrot.slane %v296, %v2750
      %v2752 = vlaneseq
      %v2753 = vshrl.u32 %v2752, 7
      %v2754 = vsub.s32 1, %v2753
      %v2755 = vrot.slane %v296, %v2754
      %v2758 = vadd.f32 %v2619, %v2751
      %v2759 = vadd.f32 %v2620, %v2755
      %vm2760 = vcmask 1043456
      %v2761 = vsel %vm2760, %v2758, 0.0
      %v2762 = vrot.slane %v2761, 4
      %v2763 = vadd.f32 %v2761, %v2762
      %v2764 = vrot.slane %v2763, 2
      %v2765 = vadd.f32 %v2763, %v2764
      %v2766 = vrot.slane %v2765, 1
      %v2767 = vadd.f32 %v2765, %v2766
      %v2768 = vsel %vm2760, %v2759, 0.0
      %v2769 = vrot.slane %v2768, 4
      %v2770 = vadd.f32 %v2768, %v2769
      %v2771 = vrot.slane %v2770, 2
      %v2772 = vadd.f32 %v2770, %v2771
      %v2773 = vrot.slane %v2772, 1
      %v2774 = vadd.f32 %v2772, %v2773
      %v2775 = vmul.f32 %v2758, %v2758
      %v2776 = vmul.f32 %v2759, %v2759
      %v2777 = vsel %vm2760, %v2775, 0.0
      %v2778 = vrot.slane %v2777, 4
      %v2779 = vadd.f32 %v2777, %v2778
      %v2780 = vrot.slane %v2779, 2
      %v2781 = vadd.f32 %v2779, %v2780
      %v2782 = vrot.slane %v2781, 1
      %v2783 = vadd.f32 %v2781, %v2782
      %v2784 = vsel %vm2760, %v2776, 0.0
      %v2785 = vrot.slane %v2784, 4
      %v2786 = vadd.f32 %v2784, %v2785
      %v2787 = vrot.slane %v2786, 2
      %v2788 = vadd.f32 %v2786, %v2787
      %v2789 = vrot.slane %v2788, 1
      %v2790 = vadd.f32 %v2788, %v2789
      %v2791 = vpack.c.bf16 %v2758, %v2758
      %v2792 = vpack.c.bf16 %v2759, %v2759
      %v2795 = vcombine.low %v2791, %v2792
      %v2797 = vunpack.c.l.s4 1983009808
      %v2798 = vunpack.c.0.s8 %v2797
      %v2799 = vlaneseq
      %v2800 = vshrl.u32 %v2799, 7
      %v2801 = vsub.s32 %v2798, %v2800
      %v2802 = vrot.slane %v2795, %v2801
      %2804 = vst [vmem:[%s275] sm:$0xf] %v2802
      %v2805 = vadd.f32 %v2745, %v2751
      %v2806 = vadd.f32 %v2746, %v2755
      %v2807 = vsel %vm2760, %v2805, 0.0
      %v2808 = vrot.slane %v2807, 4
      %v2809 = vadd.f32 %v2807, %v2808
      %v2810 = vrot.slane %v2809, 2
      %v2811 = vadd.f32 %v2809, %v2810
      %v2812 = vrot.slane %v2811, 1
      %v2813 = vadd.f32 %v2811, %v2812
      %v2814 = vsel %vm2760, %v2806, 0.0
      %v2815 = vrot.slane %v2814, 4
      %v2816 = vadd.f32 %v2814, %v2815
      %v2817 = vrot.slane %v2816, 2
      %v2818 = vadd.f32 %v2816, %v2817
      %v2819 = vrot.slane %v2818, 1
      %v2820 = vadd.f32 %v2818, %v2819
      %v2821 = vmul.f32 %v2805, %v2805
      %v2822 = vmul.f32 %v2806, %v2806
      %v2823 = vsel %vm2760, %v2821, 0.0
      %v2824 = vrot.slane %v2823, 4
      %v2825 = vadd.f32 %v2823, %v2824
      %v2826 = vrot.slane %v2825, 2
      %v2827 = vadd.f32 %v2825, %v2826
      %v2828 = vrot.slane %v2827, 1
      %v2829 = vadd.f32 %v2827, %v2828
      %v2830 = vsel %vm2760, %v2822, 0.0
      %v2831 = vrot.slane %v2830, 4
      %v2832 = vadd.f32 %v2830, %v2831
      %v2833 = vrot.slane %v2832, 2
      %v2834 = vadd.f32 %v2832, %v2833
      %v2835 = vrot.slane %v2834, 1
      %v2836 = vadd.f32 %v2834, %v2835
      %v2837 = vadd.f32 %v2767, %v2813
      %v2838 = vadd.f32 %v2774, %v2820
      %v2839 = vadd.f32 %v2783, %v2829
      %v2840 = vadd.f32 %v2790, %v2836
      %v2841 = vpack.c.bf16 %v2805, %v2805
      %v2842 = vpack.c.bf16 %v2806, %v2806
      %v2845 = vcombine.low %v2841, %v2842
      %v2847 = vunpack.c.l.s4 1983009808
      %v2848 = vunpack.c.0.s8 %v2847
      %v2849 = vlaneseq
      %v2850 = vshrl.u32 %v2849, 7
      %v2851 = vsub.s32 %v2848, %v2850
      %v2852 = vrot.slane %v2845, %v2851
      %s2854 = scalar_lea.vmem %s275, 4
      %2855 = vst [vmem:[%s2854] sm:$0xf] %v2852
      %2856 = vst [vmem:[%s283] sm:$0xff] %v2837
      %2857 = vst [vmem:[%s283 + $0x8] sm:$0xff] %v2838
      %2858 = vst [vmem:[%s292] sm:$0xff] %v2839
      %2859 = vst [vmem:[%s292 + $0x8] sm:$0xff] %v2840
      %s2860 = smul.u32 2, %s22
      %p2861 = scmp.lt.s32.totalorder %s21, 1
      %s2862 = scalar_select %p2861, %s21, 1
      %p2863 = scmp.lt.s32.totalorder %s2860, 3
      %s2864 = scalar_select %p2863, %s2860, 3
      %s2865 = smul.addr %s2864, 2
      %s2866 = smul.addr %s2862, 8
      %s2867 = sadd.s32 %s2865, %s2866
      %s2868 = smul.addr %s2867, 2
      %s2869 = scalar_lea.vmem %s3, %s2868
      %s2870 = smul.u32 %s21, 2
      %s2871 = sadd.s32 %s2870, %s22
      %p2872 = scmp.lt.s32.totalorder %s2871, 3
      %s2873 = scalar_select %p2872, %s2871, 3
      %s2874 = smul.addr %s2873, 2
      %s2875 = smul.addr %s2874, 8
      %s2876 = scalar_lea.vmem %s4, %s2875
      %s2877 = smul.u32 %s21, 2
      %s2878 = sadd.s32 %s2877, %s22
      %p2879 = scmp.lt.s32.totalorder %s2878, 3
      %s2880 = scalar_select %p2879, %s2878, 3
      %s2881 = smul.addr %s2880, 2
      %s2882 = smul.addr %s2881, 8
      %s2883 = scalar_lea.vmem %s5, %s2882
      // Predicated region
      $region33: #{discriminator_forward.6} parent=31 // pred_check
        %p2884 = pneg %p117
      $region34: #{discriminator_forward.6} parent=31 // pred_check_branch
        %2886 = sbr.rel (%p2884) target = $region36
      $region35: #{discriminator_forward.6} parent=31 // pred_region
        %s2887 = smul.u32 2, %s22
      $region36: #{discriminator_forward.6} parent=31 // pred_fallthru
        _
      // Predicated region
      $region37: #{discriminator_forward.6} parent=31 // pred_check
        %p2888 = pneg %p147
      $region38: #{discriminator_forward.6} parent=31 // pred_check_branch
        %2890 = sbr.rel (%p2888) target = $region40
      $region39: #{discriminator_forward.6} parent=31 // pred_region
        %s2891 = smul.u32 %s21, 2
        %s2892 = sadd.s32 %s2891, %s22
      $region40: #{discriminator_forward.6} parent=31 // pred_fallthru
        _
      // Predicated region
      $region41: #{discriminator_forward.6} parent=31 // pred_check
        %p2893 = pneg %p177
      $region42: #{discriminator_forward.6} parent=31 // pred_check_branch
        %2895 = sbr.rel (%p2893) target = $region44
      $region43: #{discriminator_forward.6} parent=31 // pred_region
        %s2896 = smul.u32 %s21, 2
        %s2897 = sadd.s32 %s2896, %s22
      $region44: #{discriminator_forward.6} parent=31 // pred_fallthru
        _
    $region32: #{discriminator_forward.6} parent=5 // pred_fallthru
      _
    %p2898 = scmp.le.s32.totalorder 2, %s12
    // Predicated region
    $region45: #{discriminator_forward.6} parent=5 // pred_check
      %p2899 = pneg %p2898
    $region46: #{discriminator_forward.6} parent=5 // pred_check_branch
      %2901 = sbr.rel (%p2899) target = $region48
    $region47: #{discriminator_forward.6} parent=5 // pred_region
      %s2902 = ssub.s32 %s12, 2
      // Predicated region
      $region49: #{discriminator_forward.6} parent=47 // pred_check
        %p2903 = pneg %p123
      $region50: #{discriminator_forward.6} parent=47 // pred_check_branch
        %2905 = sbr.rel (%p2903) target = $region52
      $region51: #{discriminator_forward.6} parent=47 // pred_region
        %s2906 = smul.u32 2, %s24
        %p2907 = scmp.lt.s32.totalorder %s23, 1
        %s2908 = scalar_select %p2907, %s23, 1
        %p2909 = scmp.lt.s32.totalorder %s2906, 3
        %s2910 = scalar_select %p2909, %s2906, 3
        %s2911 = smul.addr %s2910, 2
        %s2912 = smul.addr %s2908, 8
        %s2913 = sadd.s32 %s2911, %s2912
        %s2914 = smul.addr %s2913, 2
        %s2915 = scalar_lea.vmem %s3, %s2914
      $region52: #{discriminator_forward.6} parent=47 // pred_fallthru
        _
      // Predicated region
      $region53: #{discriminator_forward.6} parent=47 // pred_check
        %p2916 = pneg %p153
      $region54: #{discriminator_forward.6} parent=47 // pred_check_branch
        %2918 = sbr.rel (%p2916) target = $region56
      $region55: #{discriminator_forward.6} parent=47 // pred_region
        %s2919 = smul.u32 %s23, 2
        %s2920 = sadd.s32 %s2919, %s24
        %p2921 = scmp.lt.s32.totalorder %s2920, 3
        %s2922 = scalar_select %p2921, %s2920, 3
        %s2923 = smul.addr %s2922, 2
        %s2924 = smul.addr %s2923, 8
        %s2925 = scalar_lea.vmem %s4, %s2924
      $region56: #{discriminator_forward.6} parent=47 // pred_fallthru
        _
      // Predicated region
      $region57: #{discriminator_forward.6} parent=47 // pred_check
        %p2926 = pneg %p183
      $region58: #{discriminator_forward.6} parent=47 // pred_check_branch
        %2928 = sbr.rel (%p2926) target = $region60
      $region59: #{discriminator_forward.6} parent=47 // pred_region
        %s2929 = smul.u32 %s23, 2
        %s2930 = sadd.s32 %s2929, %s24
        %p2931 = scmp.lt.s32.totalorder %s2930, 3
        %s2932 = scalar_select %p2931, %s2930, 3
        %s2933 = smul.addr %s2932, 2
        %s2934 = smul.addr %s2933, 8
        %s2935 = scalar_lea.vmem %s5, %s2934
      $region60: #{discriminator_forward.6} parent=47 // pred_fallthru
        _
    $region48: #{discriminator_forward.6} parent=5 // pred_fallthru
      _
  $region6: #{discriminator_forward.6} parent=0 // loop_footer
    %s16 = sadd.s32 1, %s12
  $region7: #{discriminator_forward.6} parent=0 // loop_footer_branch
    %11 = sbr.rel target = $region3
  $region8: #{discriminator_forward.6} parent=0 // loop_exit
    _

</llo_original>
